<compile_context>
chip_gen: v6e
topology: v6e:2x2x1
jax: 0.10.0
libtpu: 0.0.40
codegen_flags: <defaults>
</compile_context>

<pallas_src>
import math

import numpy as np

import jax
import jax.numpy as jnp
from jax.experimental import pallas as pl
from jax.experimental.pallas import tpu as pltpu  # noqa: F401  (per template)


# ---------------------------------------------------------------------------
# Static network configuration (NOT part of the jitted pytree).
# ---------------------------------------------------------------------------
_CONV_CFG = (  # (Cout, Cin, k, stride)
    (8, 4, 4, 2), (16, 8, 3, 2), (32, 16, 2, 2),
    (64, 32, 2, 2), (128, 64, 3, 1), (256, 128, 3, 1))
_IN_HW = 96  # spatial size required so the conv stack reduces to 1x1


def _out_hw(h, k, s):
    return (h - k) // s + 1


# ---------------------------------------------------------------------------
# Pallas kernels
# ---------------------------------------------------------------------------
def _conv_mm_kernel(w_ref, a_ref, b_ref, o_ref):
    # o = relu(W @ A + b); W:(Cout,K) bf16, A:(K,M) bf16, b:(Cout,1) f32.
    acc = jnp.dot(w_ref[...], a_ref[...], preferred_element_type=jnp.float32)
    o_ref[...] = jnp.maximum(acc + b_ref[...], 0.0).astype(o_ref.dtype)


def _softplus(x):
    # PyTorch Softplus (beta=1, threshold=20).
    return jnp.where(x > 20.0, x, jnp.log1p(jnp.exp(jnp.minimum(x, 20.0))))


def _sel_conv(h_in, s_ref, w_ref, b_ref):
    """relu(conv(h_in) + b) with im2col expressed as selection-matrix matmuls.

    h_in : (Cin, P)        bf16 activation, lanes flattened as (b, h, w)
    s    : (P, k*k*Q)      bf16 0/1 selection matrix (Q-column block per offset)
    w    : (Cout, k*k*Cin) bf16 weights, offset-major column blocks W[:, :, i, j]
    b    : (Cout, 1)       f32 bias
    """
    cin = h_in.shape[0]
    cout = w_ref.shape[0]
    n_off = w_ref.shape[1] // cin
    q = s_ref.shape[1] // n_off
    acc = jnp.zeros((cout, q), jnp.float32)
    for idx in range(n_off):
        sel = s_ref[:, idx * q:(idx + 1) * q]                       # (P, Q)
        patch = jnp.dot(h_in, sel,
                        preferred_element_type=jnp.float32)         # exact gather
        acc = acc + jnp.dot(w_ref[:, idx * cin:(idx + 1) * cin],
                            patch.astype(jnp.bfloat16),
                            preferred_element_type=jnp.float32)
    return jnp.maximum(acc + b_ref[...], 0.0).astype(jnp.bfloat16)


def _tail_kernel(a3_ref, w3_ref, b3_ref,
                 s4_ref, w4_ref, b4_ref,
                 s5_ref, w5_ref, b5_ref,
                 s6_ref, w6_ref, b6_ref,
                 wv1_ref, bv1_ref, wv2_ref, bv2_ref,
                 wfc_ref, bfc_ref, wab_ref, bab_ref,
                 out_ref):
    # conv3 on prebuilt patches: (32, 64) @ (64, B*121)
    h = jnp.maximum(
        jnp.dot(w3_ref[...], a3_ref[...], preferred_element_type=jnp.float32)
        + b3_ref[...], 0.0).astype(jnp.bfloat16)
    # conv4 / conv5 / conv6 -- all VMEM-resident
    h = _sel_conv(h, s4_ref, w4_ref, b4_ref)     # (64,  B*25)
    h = _sel_conv(h, s5_ref, w5_ref, b5_ref)     # (128, B*9)
    h = _sel_conv(h, s6_ref, w6_ref, b6_ref)     # (256, B)
    # heads (h is the flattened 256-d feature, column per batch element)
    v1 = jnp.maximum(
        jnp.dot(wv1_ref[...], h, preferred_element_type=jnp.float32)
        + bv1_ref[...], 0.0).astype(jnp.bfloat16)
    v = jnp.dot(wv2_ref[...], v1, preferred_element_type=jnp.float32) + bv2_ref[...]
    fc = jnp.maximum(
        jnp.dot(wfc_ref[...], h, preferred_element_type=jnp.float32)
        + bfc_ref[...], 0.0).astype(jnp.bfloat16)
    ab = _softplus(
        jnp.dot(wab_ref[...], fc, preferred_element_type=jnp.float32)
        + bab_ref[...]) + 1.0                    # (6, B): rows 0-2 alpha, 3-5 beta
    out_ref[0:6, :] = ab
    out_ref[6:7, :] = v
    out_ref[7:8, :] = jnp.zeros_like(v)


# ---------------------------------------------------------------------------
# pallas_call wrappers
# ---------------------------------------------------------------------------
def conv_block(w, b, a):
    """relu(w @ a + b) as one whole-array Pallas block (no grid / pad / slice)."""
    cout, k = w.shape
    m = a.shape[1]
    return pl.pallas_call(
        _conv_mm_kernel,
        out_shape=jax.ShapeDtypeStruct((cout, m), jnp.bfloat16),
        in_specs=[pl.BlockSpec((cout, k), lambda: (0, 0)),
                  pl.BlockSpec((k, m), lambda: (0, 0)),
                  pl.BlockSpec((cout, 1), lambda: (0, 0))],
        out_specs=pl.BlockSpec((cout, m), lambda: (0, 0)),
    )(w, a, b)


def fused_tail(prep, a3, bsz):
    """conv3..conv6 + all five head linears in one pallas_call -> (8, B) f32."""
    args = (a3,
            prep["w3"], prep["b3"],
            prep["s4"], prep["w4"], prep["b4"],
            prep["s5"], prep["w5"], prep["b5"],
            prep["s6"], prep["w6"], prep["b6"],
            prep["wv1"], prep["bv1"], prep["wv2"], prep["bv2"],
            prep["wfc"], prep["bfc"], prep["wab"], prep["bab"])
    in_specs = [pl.BlockSpec(a.shape, lambda: (0, 0)) for a in args]  # all 2-D
    return pl.pallas_call(
        _tail_kernel,
        out_shape=jax.ShapeDtypeStruct((8, bsz), jnp.float32),
        in_specs=in_specs,
        out_specs=pl.BlockSpec((8, bsz), lambda: (0, 0)),
    )(*args)


# ---------------------------------------------------------------------------
# XLA-side im2col (only for conv1 / conv2 / conv3 patch construction)
# ---------------------------------------------------------------------------
def _im2col_t(x_t, k, stride):
    # x_t: (Cin, B, H, W) -> (Cin*k*k, B*Ho*Wo); K-order = (Cin, i, j).
    c, bsz, h, w = x_t.shape
    ho = _out_hw(h, k, stride)
    wo = _out_hw(w, k, stride)
    cols = [x_t[:, :, i:i + stride * (ho - 1) + 1:stride,
                   j:j + stride * (wo - 1) + 1:stride]
            for i in range(k) for j in range(k)]
    patches = jnp.stack(cols, axis=1)                   # (C, k*k, B, Ho, Wo)
    return patches.reshape(c * k * k, bsz * ho * wo), ho, wo


# ---------------------------------------------------------------------------
# Parameter init (same shapes / inits as the PyTorch module) + preparation
# ---------------------------------------------------------------------------
def _xavier_uniform_relu(key, shape):
    cout, cin, kh, kw = shape
    fan_in = cin * kh * kw
    fan_out = cout * kh * kw
    bound = math.sqrt(2.0) * math.sqrt(6.0 / (fan_in + fan_out))
    return jax.random.uniform(key, shape, jnp.float32, -bound, bound)


def _linear_init(key, out_f, in_f):
    kw_, kb_ = jax.random.split(key)
    bound = 1.0 / math.sqrt(in_f)
    w = jax.random.uniform(kw_, (out_f, in_f), jnp.float32, -bound, bound)
    b = jax.random.uniform(kb_, (out_f,), jnp.float32, -bound, bound)
    return w, b


def init_params(key):
    keys = jax.random.split(key, len(_CONV_CFG) + 5)
    params = {"conv": []}
    for i, (cout, cin, k, _s) in enumerate(_CONV_CFG):
        w = _xavier_uniform_relu(keys[i], (cout, cin, k, k))
        b = jnp.full((cout,), 0.1, jnp.float32)
        params["conv"].append((w, b))
    params["v1"] = _linear_init(keys[6], 100, 256)
    params["v2"] = _linear_init(keys[7], 1, 100)
    params["fc"] = _linear_init(keys[8], 100, 256)
    params["alpha"] = _linear_init(keys[9], 3, 100)
    params["beta"] = _linear_init(keys[10], 3, 100)
    return params


def _selection_matrix(bsz, h, w, k, stride):
    """0/1 matrix S with S[p, (i*k+j)*Q + q] = 1 iff input lane p equals the
    (i, j)-offset patch element of output lane q (lanes flattened (b, h, w))."""
    ho = _out_hw(h, k, stride)
    wo = _out_hw(w, k, stride)
    p_tot = bsz * h * w
    q_tot = bsz * ho * wo
    s = np.zeros((p_tot, k * k * q_tot), np.float32)
    for i in range(k):
        for j in range(k):
            base = (i * k + j) * q_tot
            for b in range(bsz):
                for oh in range(ho):
                    for ow in range(wo):
                        q = (b * ho + oh) * wo + ow
                        p = (b * h + oh * stride + i) * w + ow * stride + j
                        s[p, base + q] = 1.0
    return jnp.asarray(s, jnp.bfloat16)


def prepare_params(params, batch_size):
    """Pre-reshape / pre-cast everything the kernels need (run once, not jitted)."""
    bf16 = jnp.bfloat16
    prep = {}
    conv = params["conv"]
    # conv1-3: plain (Cout, Cin*k*k) flatten -> matches the XLA im2col K-order.
    for name, idx in (("1", 0), ("2", 1), ("3", 2)):
        w, b = conv[idx]
        prep["w" + name] = w.reshape(w.shape[0], -1).astype(bf16)
        prep["b" + name] = b.reshape(-1, 1).astype(jnp.float32)
    # Per-layer input spatial sizes: [96, 47, 23, 11, 5, 3, 1].
    hs = [_IN_HW]
    for (_c, _ci, k, s) in _CONV_CFG:
        hs.append(_out_hw(hs[-1], k, s))
    # conv4-6: offset-major (Cout, k*k*Cin) weights + bf16 selection matrices.
    for name, idx in (("4", 3), ("5", 4), ("6", 5)):
        w, b = conv[idx]
        cout, cin, k, _ = w.shape
        stride = _CONV_CFG[idx][3]
        prep["w" + name] = jnp.transpose(w, (0, 2, 3, 1)).reshape(cout, -1).astype(bf16)
        prep["b" + name] = b.reshape(-1, 1).astype(jnp.float32)
        prep["s" + name] = _selection_matrix(batch_size, hs[idx], hs[idx], k, stride)
    # heads (alpha & beta share one matmul; v1/fc kept separate)
    v1w, v1b = params["v1"]
    v2w, v2b = params["v2"]
    fcw, fcb = params["fc"]
    aw, a_b = params["alpha"]
    bw, b_b = params["beta"]
    prep["wv1"] = v1w.astype(bf16); prep["bv1"] = v1b.reshape(-1, 1)
    prep["wv2"] = v2w.astype(bf16); prep["bv2"] = v2b.reshape(-1, 1)
    prep["wfc"] = fcw.astype(bf16); prep["bfc"] = fcb.reshape(-1, 1)
    prep["wab"] = jnp.concatenate([aw, bw], axis=0).astype(bf16)      # (6, 100)
    prep["bab"] = jnp.concatenate([a_b, b_b], axis=0).reshape(-1, 1)  # (6, 1)
    return prep


# ---------------------------------------------------------------------------
# Forward pass: ((alpha, beta), v), mirroring PyTorch Net.forward
# ---------------------------------------------------------------------------
def net_forward(prep, x):
    """x: (B, 4, 96, 96) NCHW -> ((alpha, beta), v) as in the PyTorch Net."""
    bsz = x.shape[0]
    x_t = jnp.transpose(x, (1, 0, 2, 3)).astype(jnp.bfloat16)   # (C, B, H, W)
    # conv1, conv2: XLA im2col + single-block Pallas matmul (bias + ReLU fused).
    a1, ho1, wo1 = _im2col_t(x_t, 4, 2)
    o1 = conv_block(prep["w1"], prep["b1"], a1)                  # (8,  B*47*47)
    a2, ho2, wo2 = _im2col_t(o1.reshape(8, bsz, ho1, wo1), 3, 2)
    o2 = conv_block(prep["w2"], prep["b2"], a2)                  # (16, B*23*23)
    # conv3 patches (tiny) feed the fused conv3..conv6 + heads kernel.
    a3, _, _ = _im2col_t(o2.reshape(16, bsz, ho2, wo2), 2, 2)    # (64, B*121)
    out8 = fused_tail(prep, a3, bsz)                             # (8, B)
    alpha = out8[0:3, :].T
    beta = out8[3:6, :].T
    v = out8[6:7, :].T
    return (alpha, beta), v


if __name__ == "__main__":
    key = jax.random.PRNGKey(0)
    pkey, xkey = jax.random.split(key)
    params = init_params(pkey)

    batch = 2
    prep = prepare_params(params, batch)
    # 96x96 is structurally required so the conv stack reduces to 1x1 before
    # view(-1, 256), exactly as in the original CarRacing Net.
    x = jax.random.normal(xkey, (batch, 4, _IN_HW, _IN_HW), jnp.float32)

    fwd = jax.jit(net_forward)
    (alpha, beta), v = fwd(prep, x)
    jax.block_until_ready((alpha, beta, v))

    assert alpha.shape == (batch, 3) and beta.shape == (batch, 3) and v.shape == (batch, 1)
    assert bool(jnp.all(jnp.isfinite(alpha)))
    assert bool(jnp.all(jnp.isfinite(beta)))
    assert bool(jnp.all(jnp.isfinite(v)))
    assert bool(jnp.all(alpha >= 1.0)) and bool(jnp.all(beta >= 1.0))
    print("KERNEL_OK")
</pallas_src>

<mosaic_0001>
module attributes {stable_mosaic.version = 11 : i64} {
  func.func @_conv_mm_kernel(%arg0: memref<8x64xbf16, #tpu.memory_space<vmem>>, %arg1: memref<64x4418xbf16, #tpu.memory_space<vmem>>, %arg2: memref<8x1xf32, #tpu.memory_space<vmem>>, %arg3: memref<8x4418xbf16, #tpu.memory_space<vmem>>) attributes {dimension_semantics = [], scalar_prefetch = 0 : i64, scratch_operands = 0 : i64, tpu.core_type = #tpu.core_type<tc>} {
    %c0 = arith.constant 0 : index
    %c0_0 = arith.constant 0 : index
    %0 = vector.load %arg0[%c0, %c0_0] : memref<8x64xbf16, #tpu.memory_space<vmem>>, vector<8x64xbf16>
    %c0_1 = arith.constant 0 : index
    %c0_2 = arith.constant 0 : index
    %1 = vector.load %arg1[%c0_1, %c0_2] : memref<64x4418xbf16, #tpu.memory_space<vmem>>, vector<64x4418xbf16>
    %cst = arith.constant dense<0.000000e+00> : vector<8x4418xf32>
    %2 = tpu.matmul %0, %1, %cst {dimension_numbers = #tpu.dot_dimension_numbers<[1], [0], [0], [1], [0, 0, 1, 1], [], []>} : vector<8x64xbf16>, vector<64x4418xbf16>, vector<8x4418xf32> -> vector<8x4418xf32>
    %c0_3 = arith.constant 0 : index
    %c0_4 = arith.constant 0 : index
    %3 = vector.load %arg2[%c0_3, %c0_4] : memref<8x1xf32, #tpu.memory_space<vmem>>, vector<8x1xf32>
    %4 = vector.broadcast %3 : vector<8x1xf32> to vector<8x4418xf32>
    %5 = arith.addf %2, %4 : vector<8x4418xf32>
    %cst_5 = arith.constant 0.000000e+00 : f32
    %6 = vector.broadcast %cst_5 : f32 to vector<8x4418xf32>
    %7 = arith.maximumf %5, %6 : vector<8x4418xf32>
    %8 = arith.truncf %7 : vector<8x4418xf32> to vector<8x4418xbf16>
    %c0_6 = arith.constant 0 : index
    %c0_7 = arith.constant 0 : index
    %9 = vector.load %arg3[%c0_6, %c0_7] : memref<8x4418xbf16, #tpu.memory_space<vmem>>, vector<8x4418xbf16>
    tpu.vector_store %arg3[%c0_6, %c0_7], %8 {strides = array<i32>} : memref<8x4418xbf16, #tpu.memory_space<vmem>>, vector<8x4418xbf16>,
    return
  }
}

module attributes {stable_mosaic.version = 11 : i64} {
  func.func @_conv_mm_kernel(%arg0: memref<16x72xbf16, #tpu.memory_space<vmem>>, %arg1: memref<72x1058xbf16, #tpu.memory_space<vmem>>, %arg2: memref<16x1xf32, #tpu.memory_space<vmem>>, %arg3: memref<16x1058xbf16, #tpu.memory_space<vmem>>) attributes {dimension_semantics = [], scalar_prefetch = 0 : i64, scratch_operands = 0 : i64, tpu.core_type = #tpu.core_type<tc>} {
    %c0 = arith.constant 0 : index
    %c0_0 = arith.constant 0 : index
    %0 = vector.load %arg0[%c0, %c0_0] : memref<16x72xbf16, #tpu.memory_space<vmem>>, vector<16x72xbf16>
    %c0_1 = arith.constant 0 : index
    %c0_2 = arith.constant 0 : index
    %1 = vector.load %arg1[%c0_1, %c0_2] : memref<72x1058xbf16, #tpu.memory_space<vmem>>, vector<72x1058xbf16>
    %cst = arith.constant dense<0.000000e+00> : vector<16x1058xf32>
    %2 = tpu.matmul %0, %1, %cst {dimension_numbers = #tpu.dot_dimension_numbers<[1], [0], [0], [1], [0, 0, 1, 1], [], []>} : vector<16x72xbf16>, vector<72x1058xbf16>, vector<16x1058xf32> -> vector<16x1058xf32>
    %c0_3 = arith.constant 0 : index
    %c0_4 = arith.constant 0 : index
    %3 = vector.load %arg2[%c0_3, %c0_4] : memref<16x1xf32, #tpu.memory_space<vmem>>, vector<16x1xf32>
    %4 = vector.broadcast %3 : vector<16x1xf32> to vector<16x1058xf32>
    %5 = arith.addf %2, %4 : vector<16x1058xf32>
    %cst_5 = arith.constant 0.000000e+00 : f32
    %6 = vector.broadcast %cst_5 : f32 to vector<16x1058xf32>
    %7 = arith.maximumf %5, %6 : vector<16x1058xf32>
    %8 = arith.truncf %7 : vector<16x1058xf32> to vector<16x1058xbf16>
    %c0_6 = arith.constant 0 : index
    %c0_7 = arith.constant 0 : index
    %9 = vector.load %arg3[%c0_6, %c0_7] : memref<16x1058xbf16, #tpu.memory_space<vmem>>, vector<16x1058xbf16>
    tpu.vector_store %arg3[%c0_6, %c0_7], %8 {strides = array<i32>} : memref<16x1058xbf16, #tpu.memory_space<vmem>>, vector<16x1058xbf16>,
    return
  }
}

module attributes {stable_mosaic.version = 11 : i64} {
  func.func @_tail_kernel(%arg0: memref<64x242xbf16, #tpu.memory_space<vmem>>, %arg1: memref<32x64xbf16, #tpu.memory_space<vmem>>, %arg2: memref<32x1xf32, #tpu.memory_space<vmem>>, %arg3: memref<242x200xbf16, #tpu.memory_space<vmem>>, %arg4: memref<64x128xbf16, #tpu.memory_space<vmem>>, %arg5: memref<64x1xf32, #tpu.memory_space<vmem>>, %arg6: memref<50x162xbf16, #tpu.memory_space<vmem>>, %arg7: memref<128x576xbf16, #tpu.memory_space<vmem>>, %arg8: memref<128x1xf32, #tpu.memory_space<vmem>>, %arg9: memref<18x18xbf16, #tpu.memory_space<vmem>>, %arg10: memref<256x1152xbf16, #tpu.memory_space<vmem>>, %arg11: memref<256x1xf32, #tpu.memory_space<vmem>>, %arg12: memref<100x256xbf16, #tpu.memory_space<vmem>>, %arg13: memref<100x1xf32, #tpu.memory_space<vmem>>, %arg14: memref<1x100xbf16, #tpu.memory_space<vmem>>, %arg15: memref<1x1xf32, #tpu.memory_space<vmem>>, %arg16: memref<100x256xbf16, #tpu.memory_space<vmem>>, %arg17: memref<100x1xf32, #tpu.memory_space<vmem>>, %arg18: memref<6x100xbf16, #tpu.memory_space<vmem>>, %arg19: memref<6x1xf32, #tpu.memory_space<vmem>>, %arg20: memref<8x2xf32, #tpu.memory_space<vmem>>) attributes {dimension_semantics = [], scalar_prefetch = 0 : i64, scratch_operands = 0 : i64, tpu.core_type = #tpu.core_type<tc>} {
    %c0 = arith.constant 0 : index
    %c0_0 = arith.constant 0 : index
    %0 = vector.load %arg1[%c0, %c0_0] : memref<32x64xbf16, #tpu.memory_space<vmem>>, vector<32x64xbf16>
    %c0_1 = arith.constant 0 : index
    %c0_2 = arith.constant 0 : index
    %1 = vector.load %arg0[%c0_1, %c0_2] : memref<64x242xbf16, #tpu.memory_space<vmem>>, vector<64x242xbf16>
    %cst = arith.constant dense<0.000000e+00> : vector<32x242xf32>
    %2 = tpu.matmul %0, %1, %cst {dimension_numbers = #tpu.dot_dimension_numbers<[1], [0], [0], [1], [0, 0, 1, 1], [], []>} : vector<32x64xbf16>, vector<64x242xbf16>, vector<32x242xf32> -> vector<32x242xf32>
    %c0_3 = arith.constant 0 : index
    %c0_4 = arith.constant 0 : index
    %3 = vector.load %arg2[%c0_3, %c0_4] : memref<32x1xf32, #tpu.memory_space<vmem>>, vector<32x1xf32>
    %4 = vector.broadcast %3 : vector<32x1xf32> to vector<32x242xf32>
    %5 = arith.addf %2, %4 : vector<32x242xf32>
    %cst_5 = arith.constant 0.000000e+00 : f32
    %6 = vector.broadcast %cst_5 : f32 to vector<32x242xf32>
    %7 = arith.maximumf %5, %6 : vector<32x242xf32>
    %8 = arith.truncf %7 : vector<32x242xf32> to vector<32x242xbf16>
    %cst_6 = arith.constant 0.000000e+00 : f32
    %9 = vector.broadcast %cst_6 : f32 to vector<64x50xf32>
    %c0_7 = arith.constant 0 : index
    %c0_8 = arith.constant 0 : index
    %10 = vector.load %arg3[%c0_7, %c0_8] : memref<242x200xbf16, #tpu.memory_space<vmem>>, vector<242x50xbf16>
    %cst_9 = arith.constant dense<0.000000e+00> : vector<32x50xf32>
    %11 = tpu.matmul %8, %10, %cst_9 {dimension_numbers = #tpu.dot_dimension_numbers<[1], [0], [0], [1], [0, 0, 1, 1], [], []>} : vector<32x242xbf16>, vector<242x50xbf16>, vector<32x50xf32> -> vector<32x50xf32>
    %c0_10 = arith.constant 0 : index
    %c0_11 = arith.constant 0 : index
    %12 = vector.load %arg4[%c0_10, %c0_11] : memref<64x128xbf16, #tpu.memory_space<vmem>>, vector<64x32xbf16>
    %13 = arith.truncf %11 : vector<32x50xf32> to vector<32x50xbf16>
    %cst_12 = arith.constant dense<0.000000e+00> : vector<64x50xf32>
    %14 = tpu.matmul %12, %13, %cst_12 {dimension_numbers = #tpu.dot_dimension_numbers<[1], [0], [0], [1], [0, 0, 1, 1], [], []>} : vector<64x32xbf16>, vector<32x50xbf16>, vector<64x50xf32> -> vector<64x50xf32>
    %15 = arith.addf %9, %14 : vector<64x50xf32>
    %c0_13 = arith.constant 0 : index
    %c50 = arith.constant 50 : index
    %16 = vector.load %arg3[%c0_13, %c50] : memref<242x200xbf16, #tpu.memory_space<vmem>>, vector<242x50xbf16>
    %cst_14 = arith.constant dense<0.000000e+00> : vector<32x50xf32>
    %17 = tpu.matmul %8, %16, %cst_14 {dimension_numbers = #tpu.dot_dimension_numbers<[1], [0], [0], [1], [0, 0, 1, 1], [], []>} : vector<32x242xbf16>, vector<242x50xbf16>, vector<32x50xf32> -> vector<32x50xf32>
    %c0_15 = arith.constant 0 : index
    %c32 = arith.constant 32 : index
    %18 = vector.load %arg4[%c0_15, %c32] : memref<64x128xbf16, #tpu.memory_space<vmem>>, vector<64x32xbf16>
    %19 = arith.truncf %17 : vector<32x50xf32> to vector<32x50xbf16>
    %cst_16 = arith.constant dense<0.000000e+00> : vector<64x50xf32>
    %20 = tpu.matmul %18, %19, %cst_16 {dimension_numbers = #tpu.dot_dimension_numbers<[1], [0], [0], [1], [0, 0, 1, 1], [], []>} : vector<64x32xbf16>, vector<32x50xbf16>, vector<64x50xf32> -> vector<64x50xf32>
    %21 = arith.addf %15, %20 : vector<64x50xf32>
    %c0_17 = arith.constant 0 : index
    %c100 = arith.constant 100 : index
    %22 = vector.load %arg3[%c0_17, %c100] : memref<242x200xbf16, #tpu.memory_space<vmem>>, vector<242x50xbf16>
    %cst_18 = arith.constant dense<0.000000e+00> : vector<32x50xf32>
    %23 = tpu.matmul %8, %22, %cst_18 {dimension_numbers = #tpu.dot_dimension_numbers<[1], [0], [0], [1], [0, 0, 1, 1], [], []>} : vector<32x242xbf16>, vector<242x50xbf16>, vector<32x50xf32> -> vector<32x50xf32>
    %c0_19 = arith.constant 0 : index
    %c64 = arith.constant 64 : index
    %24 = vector.load %arg4[%c0_19, %c64] : memref<64x128xbf16, #tpu.memory_space<vmem>>, vector<64x32xbf16>
    %25 = arith.truncf %23 : vector<32x50xf32> to vector<32x50xbf16>
    %cst_20 = arith.constant dense<0.000000e+00> : vector<64x50xf32>
    %26 = tpu.matmul %24, %25, %cst_20 {dimension_numbers = #tpu.dot_dimension_numbers<[1], [0], [0], [1], [0, 0, 1, 1], [], []>} : vector<64x32xbf16>, vector<32x50xbf16>, vector<64x50xf32> -> vector<64x50xf32>
    %27 = arith.addf %21, %26 : vector<64x50xf32>
    %c0_21 = arith.constant 0 : index
    %c150 = arith.constant 150 : index
    %28 = vector.load %arg3[%c0_21, %c150] : memref<242x200xbf16, #tpu.memory_space<vmem>>, vector<242x50xbf16>
    %cst_22 = arith.constant dense<0.000000e+00> : vector<32x50xf32>
    %29 = tpu.matmul %8, %28, %cst_22 {dimension_numbers = #tpu.dot_dimension_numbers<[1], [0], [0], [1], [0, 0, 1, 1], [], []>} : vector<32x242xbf16>, vector<242x50xbf16>, vector<32x50xf32> -> vector<32x50xf32>
    %c0_23 = arith.constant 0 : index
    %c96 = arith.constant 96 : index
    %30 = vector.load %arg4[%c0_23, %c96] : memref<64x128xbf16, #tpu.memory_space<vmem>>, vector<64x32xbf16>
    %31 = arith.truncf %29 : vector<32x50xf32> to vector<32x50xbf16>
    %cst_24 = arith.constant dense<0.000000e+00> : vector<64x50xf32>
    %32 = tpu.matmul %30, %31, %cst_24 {dimension_numbers = #tpu.dot_dimension_numbers<[1], [0], [0], [1], [0, 0, 1, 1], [], []>} : vector<64x32xbf16>, vector<32x50xbf16>, vector<64x50xf32> -> vector<64x50xf32>
    %33 = arith.addf %27, %32 : vector<64x50xf32>
    %c0_25 = arith.constant 0 : index
    %c0_26 = arith.constant 0 : index
    %34 = vector.load %arg5[%c0_25, %c0_26] : memref<64x1xf32, #tpu.memory_space<vmem>>, vector<64x1xf32>
    %35 = vector.broadcast %34 : vector<64x1xf32> to vector<64x50xf32>
    %36 = arith.addf %33, %35 : vector<64x50xf32>
    %cst_27 = arith.constant 0.000000e+00 : f32
    %37 = vector.broadcast %cst_27 : f32 to vector<64x50xf32>
    %38 = arith.maximumf %36, %37 : vector<64x50xf32>
    %39 = arith.truncf %38 : vector<64x50xf32> to vector<64x50xbf16>
    %cst_28 = arith.constant 0.000000e+00 : f32
    %40 = vector.broadcast %cst_28 : f32 to vector<128x18xf32>
    %c0_29 = arith.constant 0 : index
    %c0_30 = arith.constant 0 : index
    %41 = vector.load %arg6[%c0_29, %c0_30] : memref<50x162xbf16, #tpu.memory_space<vmem>>, vector<50x18xbf16>
    %cst_31 = arith.constant dense<0.000000e+00> : vector<64x18xf32>
    %42 = tpu.matmul %39, %41, %cst_31 {dimension_numbers = #tpu.dot_dimension_numbers<[1], [0], [0], [1], [0, 0, 1, 1], [], []>} : vector<64x50xbf16>, vector<50x18xbf16>, vector<64x18xf32> -> vector<64x18xf32>
    %c0_32 = arith.constant 0 : index
    %c0_33 = arith.constant 0 : index
    %43 = vector.load %arg7[%c0_32, %c0_33] : memref<128x576xbf16, #tpu.memory_space<vmem>>, vector<128x64xbf16>
    %44 = arith.truncf %42 : vector<64x18xf32> to vector<64x18xbf16>
    %cst_34 = arith.constant dense<0.000000e+00> : vector<128x18xf32>
    %45 = tpu.matmul %43, %44, %cst_34 {dimension_numbers = #tpu.dot_dimension_numbers<[1], [0], [0], [1], [0, 0, 1, 1], [], []>} : vector<128x64xbf16>, vector<64x18xbf16>, vector<128x18xf32> -> vector<128x18xf32>
    %46 = arith.addf %40, %45 : vector<128x18xf32>
    %c0_35 = arith.constant 0 : index
    %c18 = arith.constant 18 : index
    %47 = vector.load %arg6[%c0_35, %c18] : memref<50x162xbf16, #tpu.memory_space<vmem>>, vector<50x18xbf16>
    %cst_36 = arith.constant dense<0.000000e+00> : vector<64x18xf32>
    %48 = tpu.matmul %39, %47, %cst_36 {dimension_numbers = #tpu.dot_dimension_numbers<[1], [0], [0], [1], [0, 0, 1, 1], [], []>} : vector<64x50xbf16>, vector<50x18xbf16>, vector<64x18xf32> -> vector<64x18xf32>
    %c0_37 = arith.constant 0 : index
    %c64_38 = arith.constant 64 : index
    %49 = vector.load %arg7[%c0_37, %c64_38] : memref<128x576xbf16, #tpu.memory_space<vmem>>, vector<128x64xbf16>
    %50 = arith.truncf %48 : vector<64x18xf32> to vector<64x18xbf16>
    %cst_39 = arith.constant dense<0.000000e+00> : vector<128x18xf32>
    %51 = tpu.matmul %49, %50, %cst_39 {dimension_numbers = #tpu.dot_dimension_numbers<[1], [0], [0], [1], [0, 0, 1, 1], [], []>} : vector<128x64xbf16>, vector<64x18xbf16>, vector<128x18xf32> -> vector<128x18xf32>
    %52 = arith.addf %46, %51 : vector<128x18xf32>
    %c0_40 = arith.constant 0 : index
    %c36 = arith.constant 36 : index
    %53 = vector.load %arg6[%c0_40, %c36] : memref<50x162xbf16, #tpu.memory_space<vmem>>, vector<50x18xbf16>
    %cst_41 = arith.constant dense<0.000000e+00> : vector<64x18xf32>
    %54 = tpu.matmul %39, %53, %cst_41 {dimension_numbers = #tpu.dot_dimension_numbers<[1], [0], [0], [1], [0, 0, 1, 1], [], []>} : vector<64x50xbf16>, vector<50x18xbf16>, vector<64x18xf32> -> vector<64x18xf32>
    %c0_42 = arith.constant 0 : index
    %c128 = arith.constant 128 : index
    %55 = vector.load %arg7[%c0_42, %c128] : memref<128x576xbf16, #tpu.memory_space<vmem>>, vector<128x64xbf16>
    %56 = arith.truncf %54 : vector<64x18xf32> to vector<64x18xbf16>
    %cst_43 = arith.constant dense<0.000000e+00> : vector<128x18xf32>
    %57 = tpu.matmul %55, %56, %cst_43 {dimension_numbers = #tpu.dot_dimension_numbers<[1], [0], [0], [1], [0, 0, 1, 1], [], []>} : vector<128x64xbf16>, vector<64x18xbf16>, vector<128x18xf32> -> vector<128x18xf32>
    %58 = arith.addf %52, %57 : vector<128x18xf32>
    %c0_44 = arith.constant 0 : index
    %c54 = arith.constant 54 : index
    %59 = vector.load %arg6[%c0_44, %c54] : memref<50x162xbf16, #tpu.memory_space<vmem>>, vector<50x18xbf16>
    %cst_45 = arith.constant dense<0.000000e+00> : vector<64x18xf32>
    %60 = tpu.matmul %39, %59, %cst_45 {dimension_numbers = #tpu.dot_dimension_numbers<[1], [0], [0], [1], [0, 0, 1, 1], [], []>} : vector<64x50xbf16>, vector<50x18xbf16>, vector<64x18xf32> -> vector<64x18xf32>
    %c0_46 = arith.constant 0 : index
    %c192 = arith.constant 192 : index
    %61 = vector.load %arg7[%c0_46, %c192] : memref<128x576xbf16, #tpu.memory_space<vmem>>, vector<128x64xbf16>
    %62 = arith.truncf %60 : vector<64x18xf32> to vector<64x18xbf16>
    %cst_47 = arith.constant dense<0.000000e+00> : vector<128x18xf32>
    %63 = tpu.matmul %61, %62, %cst_47 {dimension_numbers = #tpu.dot_dimension_numbers<[1], [0], [0], [1], [0, 0, 1, 1], [], []>} : vector<128x64xbf16>, vector<64x18xbf16>, vector<128x18xf32> -> vector<128x18xf32>
    %64 = arith.addf %58, %63 : vector<128x18xf32>
    %c0_48 = arith.constant 0 : index
    %c72 = arith.constant 72 : index
    %65 = vector.load %arg6[%c0_48, %c72] : memref<50x162xbf16, #tpu.memory_space<vmem>>, vector<50x18xbf16>
    %cst_49 = arith.constant dense<0.000000e+00> : vector<64x18xf32>
    %66 = tpu.matmul %39, %65, %cst_49 {dimension_numbers = #tpu.dot_dimension_numbers<[1], [0], [0], [1], [0, 0, 1, 1], [], []>} : vector<64x50xbf16>, vector<50x18xbf16>, vector<64x18xf32> -> vector<64x18xf32>
    %c0_50 = arith.constant 0 : index
    %c256 = arith.constant 256 : index
    %67 = vector.load %arg7[%c0_50, %c256] : memref<128x576xbf16, #tpu.memory_space<vmem>>, vector<128x64xbf16>
    %68 = arith.truncf %66 : vector<64x18xf32> to vector<64x18xbf16>
    %cst_51 = arith.constant dense<0.000000e+00> : vector<128x18xf32>
    %69 = tpu.matmul %67, %68, %cst_51 {dimension_numbers = #tpu.dot_dimension_numbers<[1], [0], [0], [1], [0, 0, 1, 1], [], []>} : vector<128x64xbf16>, vector<64x18xbf16>, vector<128x18xf32> -> vector<128x18xf32>
    %70 = arith.addf %64, %69 : vector<128x18xf32>
    %c0_52 = arith.constant 0 : index
    %c90 = arith.constant 90 : index
    %71 = vector.load %arg6[%c0_52, %c90] : memref<50x162xbf16, #tpu.memory_space<vmem>>, vector<50x18xbf16>
    %cst_53 = arith.constant dense<0.000000e+00> : vector<64x18xf32>
    %72 = tpu.matmul %39, %71, %cst_53 {dimension_numbers = #tpu.dot_dimension_numbers<[1], [0], [0], [1], [0, 0, 1, 1], [], []>} : vector<64x50xbf16>, vector<50x18xbf16>, vector<64x18xf32> -> vector<64x18xf32>
    %c0_54 = arith.constant 0 : index
    %c320 = arith.constant 320 : index
    %73 = vector.load %arg7[%c0_54, %c320] : memref<128x576xbf16, #tpu.memory_space<vmem>>, vector<128x64xbf16>
    %74 = arith.truncf %72 : vector<64x18xf32> to vector<64x18xbf16>
    %cst_55 = arith.constant dense<0.000000e+00> : vector<128x18xf32>
    %75 = tpu.matmul %73, %74, %cst_55 {dimension_numbers = #tpu.dot_dimension_numbers<[1], [0], [0], [1], [0, 0, 1, 1], [], []>} : vector<128x64xbf16>, vector<64x18xbf16>, vector<128x18xf32> -> vector<128x18xf32>
    %76 = arith.addf %70, %75 : vector<128x18xf32>
    %c0_56 = arith.constant 0 : index
    %c108 = arith.constant 108 : index
    %77 = vector.load %arg6[%c0_56, %c108] : memref<50x162xbf16, #tpu.memory_space<vmem>>, vector<50x18xbf16>
    %cst_57 = arith.constant dense<0.000000e+00> : vector<64x18xf32>
    %78 = tpu.matmul %39, %77, %cst_57 {dimension_numbers = #tpu.dot_dimension_numbers<[1], [0], [0], [1], [0, 0, 1, 1], [], []>} : vector<64x50xbf16>, vector<50x18xbf16>, vector<64x18xf32> -> vector<64x18xf32>
    %c0_58 = arith.constant 0 : index
    %c384 = arith.constant 384 : index
    %79 = vector.load %arg7[%c0_58, %c384] : memref<128x576xbf16, #tpu.memory_space<vmem>>, vector<128x64xbf16>
    %80 = arith.truncf %78 : vector<64x18xf32> to vector<64x18xbf16>
    %cst_59 = arith.constant dense<0.000000e+00> : vector<128x18xf32>
    %81 = tpu.matmul %79, %80, %cst_59 {dimension_numbers = #tpu.dot_dimension_numbers<[1], [0], [0], [1], [0, 0, 1, 1], [], []>} : vector<128x64xbf16>, vector<64x18xbf16>, vector<128x18xf32> -> vector<128x18xf32>
    %82 = arith.addf %76, %81 : vector<128x18xf32>
    %c0_60 = arith.constant 0 : index
    %c126 = arith.constant 126 : index
    %83 = vector.load %arg6[%c0_60, %c126] : memref<50x162xbf16, #tpu.memory_space<vmem>>, vector<50x18xbf16>
    %cst_61 = arith.constant dense<0.000000e+00> : vector<64x18xf32>
    %84 = tpu.matmul %39, %83, %cst_61 {dimension_numbers = #tpu.dot_dimension_numbers<[1], [0], [0], [1], [0, 0, 1, 1], [], []>} : vector<64x50xbf16>, vector<50x18xbf16>, vector<64x18xf32> -> vector<64x18xf32>
    %c0_62 = arith.constant 0 : index
    %c448 = arith.constant 448 : index
    %85 = vector.load %arg7[%c0_62, %c448] : memref<128x576xbf16, #tpu.memory_space<vmem>>, vector<128x64xbf16>
    %86 = arith.truncf %84 : vector<64x18xf32> to vector<64x18xbf16>
    %cst_63 = arith.constant dense<0.000000e+00> : vector<128x18xf32>
    %87 = tpu.matmul %85, %86, %cst_63 {dimension_numbers = #tpu.dot_dimension_numbers<[1], [0], [0], [1], [0, 0, 1, 1], [], []>} : vector<128x64xbf16>, vector<64x18xbf16>, vector<128x18xf32> -> vector<128x18xf32>
    %88 = arith.addf %82, %87 : vector<128x18xf32>
    %c0_64 = arith.constant 0 : index
    %c144 = arith.constant 144 : index
    %89 = vector.load %arg6[%c0_64, %c144] : memref<50x162xbf16, #tpu.memory_space<vmem>>, vector<50x18xbf16>
    %cst_65 = arith.constant dense<0.000000e+00> : vector<64x18xf32>
    %90 = tpu.matmul %39, %89, %cst_65 {dimension_numbers = #tpu.dot_dimension_numbers<[1], [0], [0], [1], [0, 0, 1, 1], [], []>} : vector<64x50xbf16>, vector<50x18xbf16>, vector<64x18xf32> -> vector<64x18xf32>
    %c0_66 = arith.constant 0 : index
    %c512 = arith.constant 512 : index
    %91 = vector.load %arg7[%c0_66, %c512] : memref<128x576xbf16, #tpu.memory_space<vmem>>, vector<128x64xbf16>
    %92 = arith.truncf %90 : vector<64x18xf32> to vector<64x18xbf16>
    %cst_67 = arith.constant dense<0.000000e+00> : vector<128x18xf32>
    %93 = tpu.matmul %91, %92, %cst_67 {dimension_numbers = #tpu.dot_dimension_numbers<[1], [0], [0], [1], [0, 0, 1, 1], [], []>} : vector<128x64xbf16>, vector<64x18xbf16>, vector<128x18xf32> -> vector<128x18xf32>
    %94 = arith.addf %88, %93 : vector<128x18xf32>
    %c0_68 = arith.constant 0 : index
    %c0_69 = arith.constant 0 : index
    %95 = vector.load %arg8[%c0_68, %c0_69] : memref<128x1xf32, #tpu.memory_space<vmem>>, vector<128x1xf32>
    %96 = vector.broadcast %95 : vector<128x1xf32> to vector<128x18xf32>
    %97 = arith.addf %94, %96 : vector<128x18xf32>
    %cst_70 = arith.constant 0.000000e+00 : f32
    %98 = vector.broadcast %cst_70 : f32 to vector<128x18xf32>
    %99 = arith.maximumf %97, %98 : vector<128x18xf32>
    %100 = arith.truncf %99 : vector<128x18xf32> to vector<128x18xbf16>
    %cst_71 = arith.constant 0.000000e+00 : f32
    %101 = vector.broadcast %cst_71 : f32 to vector<256x2xf32>
    %c0_72 = arith.constant 0 : index
    %c0_73 = arith.constant 0 : index
    %102 = vector.load %arg9[%c0_72, %c0_73] : memref<18x18xbf16, #tpu.memory_space<vmem>>, vector<18x2xbf16>
    %cst_74 = arith.constant dense<0.000000e+00> : vector<128x2xf32>
    %103 = tpu.matmul %100, %102, %cst_74 {dimension_numbers = #tpu.dot_dimension_numbers<[1], [0], [0], [1], [0, 0, 1, 1], [], []>} : vector<128x18xbf16>, vector<18x2xbf16>, vector<128x2xf32> -> vector<128x2xf32>
    %c0_75 = arith.constant 0 : index
    %c0_76 = arith.constant 0 : index
    %104 = vector.load %arg10[%c0_75, %c0_76] : memref<256x1152xbf16, #tpu.memory_space<vmem>>, vector<256x128xbf16>
    %105 = arith.truncf %103 : vector<128x2xf32> to vector<128x2xbf16>
    %cst_77 = arith.constant dense<0.000000e+00> : vector<256x2xf32>
    %106 = tpu.matmul %104, %105, %cst_77 {dimension_numbers = #tpu.dot_dimension_numbers<[1], [0], [0], [1], [0, 0, 1, 1], [], []>} : vector<256x128xbf16>, vector<128x2xbf16>, vector<256x2xf32> -> vector<256x2xf32>
    %107 = arith.addf %101, %106 : vector<256x2xf32>
    %c0_78 = arith.constant 0 : index
    %c2 = arith.constant 2 : index
    %108 = vector.load %arg9[%c0_78, %c2] : memref<18x18xbf16, #tpu.memory_space<vmem>>, vector<18x2xbf16>
    %cst_79 = arith.constant dense<0.000000e+00> : vector<128x2xf32>
    %109 = tpu.matmul %100, %108, %cst_79 {dimension_numbers = #tpu.dot_dimension_numbers<[1], [0], [0], [1], [0, 0, 1, 1], [], []>} : vector<128x18xbf16>, vector<18x2xbf16>, vector<128x2xf32> -> vector<128x2xf32>
    %c0_80 = arith.constant 0 : index
    %c128_81 = arith.constant 128 : index
    %110 = vector.load %arg10[%c0_80, %c128_81] : memref<256x1152xbf16, #tpu.memory_space<vmem>>, vector<256x128xbf16>
    %111 = arith.truncf %109 : vector<128x2xf32> to vector<128x2xbf16>
    %cst_82 = arith.constant dense<0.000000e+00> : vector<256x2xf32>
    %112 = tpu.matmul %110, %111, %cst_82 {dimension_numbers = #tpu.dot_dimension_numbers<[1], [0], [0], [1], [0, 0, 1, 1], [], []>} : vector<256x128xbf16>, vector<128x2xbf16>, vector<256x2xf32> -> vector<256x2xf32>
    %113 = arith.addf %107, %112 : vector<256x2xf32>
    %c0_83 = arith.constant 0 : index
    %c4 = arith.constant 4 : index
    %114 = vector.load %arg9[%c0_83, %c4] : memref<18x18xbf16, #tpu.memory_space<vmem>>, vector<18x2xbf16>
    %cst_84 = arith.constant dense<0.000000e+00> : vector<128x2xf32>
    %115 = tpu.matmul %100, %114, %cst_84 {dimension_numbers = #tpu.dot_dimension_numbers<[1], [0], [0], [1], [0, 0, 1, 1], [], []>} : vector<128x18xbf16>, vector<18x2xbf16>, vector<128x2xf32> -> vector<128x2xf32>
    %c0_85 = arith.constant 0 : index
    %c256_86 = arith.constant 256 : index
    %116 = vector.load %arg10[%c0_85, %c256_86] : memref<256x1152xbf16, #tpu.memory_space<vmem>>, vector<256x128xbf16>
    %117 = arith.truncf %115 : vector<128x2xf32> to vector<128x2xbf16>
    %cst_87 = arith.constant dense<0.000000e+00> : vector<256x2xf32>
    %118 = tpu.matmul %116, %117, %cst_87 {dimension_numbers = #tpu.dot_dimension_numbers<[1], [0], [0], [1], [0, 0, 1, 1], [], []>} : vector<256x128xbf16>, vector<128x2xbf16>, vector<256x2xf32> -> vector<256x2xf32>
    %119 = arith.addf %113, %118 : vector<256x2xf32>
    %c0_88 = arith.constant 0 : index
    %c6 = arith.constant 6 : index
    %120 = vector.load %arg9[%c0_88, %c6] : memref<18x18xbf16, #tpu.memory_space<vmem>>, vector<18x2xbf16>
    %cst_89 = arith.constant dense<0.000000e+00> : vector<128x2xf32>
    %121 = tpu.matmul %100, %120, %cst_89 {dimension_numbers = #tpu.dot_dimension_numbers<[1], [0], [0], [1], [0, 0, 1, 1], [], []>} : vector<128x18xbf16>, vector<18x2xbf16>, vector<128x2xf32> -> vector<128x2xf32>
    %c0_90 = arith.constant 0 : index
    %c384_91 = arith.constant 384 : index
    %122 = vector.load %arg10[%c0_90, %c384_91] : memref<256x1152xbf16, #tpu.memory_space<vmem>>, vector<256x128xbf16>
    %123 = arith.truncf %121 : vector<128x2xf32> to vector<128x2xbf16>
    %cst_92 = arith.constant dense<0.000000e+00> : vector<256x2xf32>
    %124 = tpu.matmul %122, %123, %cst_92 {dimension_numbers = #tpu.dot_dimension_numbers<[1], [0], [0], [1], [0, 0, 1, 1], [], []>} : vector<256x128xbf16>, vector<128x2xbf16>, vector<256x2xf32> -> vector<256x2xf32>
    %125 = arith.addf %119, %124 : vector<256x2xf32>
    %c0_93 = arith.constant 0 : index
    %c8 = arith.constant 8 : index
    %126 = vector.load %arg9[%c0_93, %c8] : memref<18x18xbf16, #tpu.memory_space<vmem>>, vector<18x2xbf16>
    %cst_94 = arith.constant dense<0.000000e+00> : vector<128x2xf32>
    %127 = tpu.matmul %100, %126, %cst_94 {dimension_numbers = #tpu.dot_dimension_numbers<[1], [0], [0], [1], [0, 0, 1, 1], [], []>} : vector<128x18xbf16>, vector<18x2xbf16>, vector<128x2xf32> -> vector<128x2xf32>
    %c0_95 = arith.constant 0 : index
    %c512_96 = arith.constant 512 : index
    %128 = vector.load %arg10[%c0_95, %c512_96] : memref<256x1152xbf16, #tpu.memory_space<vmem>>, vector<256x128xbf16>
    %129 = arith.truncf %127 : vector<128x2xf32> to vector<128x2xbf16>
    %cst_97 = arith.constant dense<0.000000e+00> : vector<256x2xf32>
    %130 = tpu.matmul %128, %129, %cst_97 {dimension_numbers = #tpu.dot_dimension_numbers<[1], [0], [0], [1], [0, 0, 1, 1], [], []>} : vector<256x128xbf16>, vector<128x2xbf16>, vector<256x2xf32> -> vector<256x2xf32>
    %131 = arith.addf %125, %130 : vector<256x2xf32>
    %c0_98 = arith.constant 0 : index
    %c10 = arith.constant 10 : index
    %132 = vector.load %arg9[%c0_98, %c10] : memref<18x18xbf16, #tpu.memory_space<vmem>>, vector<18x2xbf16>
    %cst_99 = arith.constant dense<0.000000e+00> : vector<128x2xf32>
    %133 = tpu.matmul %100, %132, %cst_99 {dimension_numbers = #tpu.dot_dimension_numbers<[1], [0], [0], [1], [0, 0, 1, 1], [], []>} : vector<128x18xbf16>, vector<18x2xbf16>, vector<128x2xf32> -> vector<128x2xf32>
    %c0_100 = arith.constant 0 : index
    %c640 = arith.constant 640 : index
    %134 = vector.load %arg10[%c0_100, %c640] : memref<256x1152xbf16, #tpu.memory_space<vmem>>, vector<256x128xbf16>
    %135 = arith.truncf %133 : vector<128x2xf32> to vector<128x2xbf16>
    %cst_101 = arith.constant dense<0.000000e+00> : vector<256x2xf32>
    %136 = tpu.matmul %134, %135, %cst_101 {dimension_numbers = #tpu.dot_dimension_numbers<[1], [0], [0], [1], [0, 0, 1, 1], [], []>} : vector<256x128xbf16>, vector<128x2xbf16>, vector<256x2xf32> -> vector<256x2xf32>
    %137 = arith.addf %131, %136 : vector<256x2xf32>
    %c0_102 = arith.constant 0 : index
    %c12 = arith.constant 12 : index
    %138 = vector.load %arg9[%c0_102, %c12] : memref<18x18xbf16, #tpu.memory_space<vmem>>, vector<18x2xbf16>
    %cst_103 = arith.constant dense<0.000000e+00> : vector<128x2xf32>
    %139 = tpu.matmul %100, %138, %cst_103 {dimension_numbers = #tpu.dot_dimension_numbers<[1], [0], [0], [1], [0, 0, 1, 1], [], []>} : vector<128x18xbf16>, vector<18x2xbf16>, vector<128x2xf32> -> vector<128x2xf32>
    %c0_104 = arith.constant 0 : index
    %c768 = arith.constant 768 : index
    %140 = vector.load %arg10[%c0_104, %c768] : memref<256x1152xbf16, #tpu.memory_space<vmem>>, vector<256x128xbf16>
    %141 = arith.truncf %139 : vector<128x2xf32> to vector<128x2xbf16>
    %cst_105 = arith.constant dense<0.000000e+00> : vector<256x2xf32>
    %142 = tpu.matmul %140, %141, %cst_105 {dimension_numbers = #tpu.dot_dimension_numbers<[1], [0], [0], [1], [0, 0, 1, 1], [], []>} : vector<256x128xbf16>, vector<128x2xbf16>, vector<256x2xf32> -> vector<256x2xf32>
    %143 = arith.addf %137, %142 : vector<256x2xf32>
    %c0_106 = arith.constant 0 : index
    %c14 = arith.constant 14 : index
    %144 = vector.load %arg9[%c0_106, %c14] : memref<18x18xbf16, #tpu.memory_space<vmem>>, vector<18x2xbf16>
    %cst_107 = arith.constant dense<0.000000e+00> : vector<128x2xf32>
    %145 = tpu.matmul %100, %144, %cst_107 {dimension_numbers = #tpu.dot_dimension_numbers<[1], [0], [0], [1], [0, 0, 1, 1], [], []>} : vector<128x18xbf16>, vector<18x2xbf16>, vector<128x2xf32> -> vector<128x2xf32>
    %c0_108 = arith.constant 0 : index
    %c896 = arith.constant 896 : index
    %146 = vector.load %arg10[%c0_108, %c896] : memref<256x1152xbf16, #tpu.memory_space<vmem>>, vector<256x128xbf16>
    %147 = arith.truncf %145 : vector<128x2xf32> to vector<128x2xbf16>
    %cst_109 = arith.constant dense<0.000000e+00> : vector<256x2xf32>
    %148 = tpu.matmul %146, %147, %cst_109 {dimension_numbers = #tpu.dot_dimension_numbers<[1], [0], [0], [1], [0, 0, 1, 1], [], []>} : vector<256x128xbf16>, vector<128x2xbf16>, vector<256x2xf32> -> vector<256x2xf32>
    %149 = arith.addf %143, %148 : vector<256x2xf32>
    %c0_110 = arith.constant 0 : index
    %c16 = arith.constant 16 : index
    %150 = vector.load %arg9[%c0_110, %c16] : memref<18x18xbf16, #tpu.memory_space<vmem>>, vector<18x2xbf16>
    %cst_111 = arith.constant dense<0.000000e+00> : vector<128x2xf32>
    %151 = tpu.matmul %100, %150, %cst_111 {dimension_numbers = #tpu.dot_dimension_numbers<[1], [0], [0], [1], [0, 0, 1, 1], [], []>} : vector<128x18xbf16>, vector<18x2xbf16>, vector<128x2xf32> -> vector<128x2xf32>
    %c0_112 = arith.constant 0 : index
    %c1024 = arith.constant 1024 : index
    %152 = vector.load %arg10[%c0_112, %c1024] : memref<256x1152xbf16, #tpu.memory_space<vmem>>, vector<256x128xbf16>
    %153 = arith.truncf %151 : vector<128x2xf32> to vector<128x2xbf16>
    %cst_113 = arith.constant dense<0.000000e+00> : vector<256x2xf32>
    %154 = tpu.matmul %152, %153, %cst_113 {dimension_numbers = #tpu.dot_dimension_numbers<[1], [0], [0], [1], [0, 0, 1, 1], [], []>} : vector<256x128xbf16>, vector<128x2xbf16>, vector<256x2xf32> -> vector<256x2xf32>
    %155 = arith.addf %149, %154 : vector<256x2xf32>
    %c0_114 = arith.constant 0 : index
    %c0_115 = arith.constant 0 : index
    %156 = vector.load %arg11[%c0_114, %c0_115] : memref<256x1xf32, #tpu.memory_space<vmem>>, vector<256x1xf32>
    %157 = vector.broadcast %156 : vector<256x1xf32> to vector<256x2xf32>
    %158 = arith.addf %155, %157 : vector<256x2xf32>
    %cst_116 = arith.constant 0.000000e+00 : f32
    %159 = vector.broadcast %cst_116 : f32 to vector<256x2xf32>
    %160 = arith.maximumf %158, %159 : vector<256x2xf32>
    %161 = arith.truncf %160 : vector<256x2xf32> to vector<256x2xbf16>
    %c0_117 = arith.constant 0 : index
    %c0_118 = arith.constant 0 : index
    %162 = vector.load %arg12[%c0_117, %c0_118] : memref<100x256xbf16, #tpu.memory_space<vmem>>, vector<100x256xbf16>
    %cst_119 = arith.constant dense<0.000000e+00> : vector<100x2xf32>
    %163 = tpu.matmul %162, %161, %cst_119 {dimension_numbers = #tpu.dot_dimension_numbers<[1], [0], [0], [1], [0, 0, 1, 1], [], []>} : vector<100x256xbf16>, vector<256x2xbf16>, vector<100x2xf32> -> vector<100x2xf32>
    %c0_120 = arith.constant 0 : index
    %c0_121 = arith.constant 0 : index
    %164 = vector.load %arg13[%c0_120, %c0_121] : memref<100x1xf32, #tpu.memory_space<vmem>>, vector<100x1xf32>
    %165 = vector.broadcast %164 : vector<100x1xf32> to vector<100x2xf32>
    %166 = arith.addf %163, %165 : vector<100x2xf32>
    %cst_122 = arith.constant 0.000000e+00 : f32
    %167 = vector.broadcast %cst_122 : f32 to vector<100x2xf32>
    %168 = arith.maximumf %166, %167 : vector<100x2xf32>
    %169 = arith.truncf %168 : vector<100x2xf32> to vector<100x2xbf16>
    %c0_123 = arith.constant 0 : index
    %c0_124 = arith.constant 0 : index
    %170 = vector.load %arg14[%c0_123, %c0_124] : memref<1x100xbf16, #tpu.memory_space<vmem>>, vector<1x100xbf16>
    %cst_125 = arith.constant dense<0.000000e+00> : vector<1x2xf32>
    %171 = tpu.matmul %170, %169, %cst_125 {dimension_numbers = #tpu.dot_dimension_numbers<[1], [0], [0], [1], [0, 0, 1, 1], [], []>} : vector<1x100xbf16>, vector<100x2xbf16>, vector<1x2xf32> -> vector<1x2xf32>
    %c0_126 = arith.constant 0 : index
    %c0_127 = arith.constant 0 : index
    %172 = vector.load %arg15[%c0_126, %c0_127] : memref<1x1xf32, #tpu.memory_space<vmem>>, vector<1x1xf32>
    %173 = vector.broadcast %172 : vector<1x1xf32> to vector<1x2xf32>
    %174 = arith.addf %171, %173 : vector<1x2xf32>
    %c0_128 = arith.constant 0 : index
    %c0_129 = arith.constant 0 : index
    %175 = vector.load %arg16[%c0_128, %c0_129] : memref<100x256xbf16, #tpu.memory_space<vmem>>, vector<100x256xbf16>
    %cst_130 = arith.constant dense<0.000000e+00> : vector<100x2xf32>
    %176 = tpu.matmul %175, %161, %cst_130 {dimension_numbers = #tpu.dot_dimension_numbers<[1], [0], [0], [1], [0, 0, 1, 1], [], []>} : vector<100x256xbf16>, vector<256x2xbf16>, vector<100x2xf32> -> vector<100x2xf32>
    %c0_131 = arith.constant 0 : index
    %c0_132 = arith.constant 0 : index
    %177 = vector.load %arg17[%c0_131, %c0_132] : memref<100x1xf32, #tpu.memory_space<vmem>>, vector<100x1xf32>
    %178 = vector.broadcast %177 : vector<100x1xf32> to vector<100x2xf32>
    %179 = arith.addf %176, %178 : vector<100x2xf32>
    %cst_133 = arith.constant 0.000000e+00 : f32
    %180 = vector.broadcast %cst_133 : f32 to vector<100x2xf32>
    %181 = arith.maximumf %179, %180 : vector<100x2xf32>
    %182 = arith.truncf %181 : vector<100x2xf32> to vector<100x2xbf16>
    %c0_134 = arith.constant 0 : index
    %c0_135 = arith.constant 0 : index
    %183 = vector.load %arg18[%c0_134, %c0_135] : memref<6x100xbf16, #tpu.memory_space<vmem>>, vector<6x100xbf16>
    %cst_136 = arith.constant dense<0.000000e+00> : vector<6x2xf32>
    %184 = tpu.matmul %183, %182, %cst_136 {dimension_numbers = #tpu.dot_dimension_numbers<[1], [0], [0], [1], [0, 0, 1, 1], [], []>} : vector<6x100xbf16>, vector<100x2xbf16>, vector<6x2xf32> -> vector<6x2xf32>
    %c0_137 = arith.constant 0 : index
    %c0_138 = arith.constant 0 : index
    %185 = vector.load %arg19[%c0_137, %c0_138] : memref<6x1xf32, #tpu.memory_space<vmem>>, vector<6x1xf32>
    %186 = vector.broadcast %185 : vector<6x1xf32> to vector<6x2xf32>
    %187 = arith.addf %184, %186 : vector<6x2xf32>
    %cst_139 = arith.constant 2.000000e+01 : f32
    %188 = vector.broadcast %cst_139 : f32 to vector<6x2xf32>
    %189 = arith.cmpf ogt, %187, %188 : vector<6x2xf32>
    %cst_140 = arith.constant 2.000000e+01 : f32
    %190 = vector.broadcast %cst_140 : f32 to vector<6x2xf32>
    %191 = arith.minimumf %187, %190 : vector<6x2xf32>
    %192 = math.exp %191 : vector<6x2xf32>
    %193 = math.log1p %192 : vector<6x2xf32>
    %194 = arith.select %189, %187, %193 : vector<6x2xi1>, vector<6x2xf32>
    %cst_141 = arith.constant 1.000000e+00 : f32
    %195 = vector.broadcast %cst_141 : f32 to vector<6x2xf32>
    %196 = arith.addf %194, %195 : vector<6x2xf32>
    %c0_142 = arith.constant 0 : index
    %c0_143 = arith.constant 0 : index
    %197 = vector.load %arg20[%c0_142, %c0_143] : memref<8x2xf32, #tpu.memory_space<vmem>>, vector<6x2xf32>
    tpu.vector_store %arg20[%c0_142, %c0_143], %196 {strides = array<i32>} : memref<8x2xf32, #tpu.memory_space<vmem>>, vector<6x2xf32>,
    %c6_144 = arith.constant 6 : index
    %c0_145 = arith.constant 0 : index
    %198 = vector.load %arg20[%c6_144, %c0_145] : memref<8x2xf32, #tpu.memory_space<vmem>>, vector<1x2xf32>
    tpu.vector_store %arg20[%c6_144, %c0_145], %174 {strides = array<i32>} : memref<8x2xf32, #tpu.memory_space<vmem>>, vector<1x2xf32>,
    %cst_146 = arith.constant 0.000000e+00 : f32
    %199 = vector.broadcast %cst_146 : f32 to vector<1x2xf32>
    %c7 = arith.constant 7 : index
    %c0_147 = arith.constant 0 : index
    %200 = vector.load %arg20[%c7, %c0_147] : memref<8x2xf32, #tpu.memory_space<vmem>>, vector<1x2xf32>
    tpu.vector_store %arg20[%c7, %c0_147], %199 {strides = array<i32>} : memref<8x2xf32, #tpu.memory_space<vmem>>, vector<1x2xf32>,
    return
  }
}

</mosaic_0001>

<llo_original>
// kernel: net_forward.3
$region0: #{net_forward.3}
  #allocation0 [shape = 'u32[]', space=smem, size = 0x4, offset = 0x4, fixed_abs, tag = 'smem constant byte address 0x4 - core index']
  #allocation1 [shape = 'u32[144,128]{1,0:T(1,128)}', space=vmem, size = 0x12000, scoped, tag = 'internal scratch']
  %s0 = inlined_call_operand.vmem [shape: bf16[8,64], index: 0, kind: input, shape index: {}]
  %s1 = inlined_call_operand.vmem [shape: bf16[64,4418], index: 1, kind: input, shape index: {}]
  %s2 = inlined_call_operand.vmem [shape: f32[8,1], index: 2, kind: input, shape index: {}]
  %s3 = inlined_call_operand.vmem [shape: bf16[8,4418], index: 3, kind: output, shape index: {}]
  %s4 = sld [smem:[#allocation0]]
  $region22: #{net_forward.3} parent=0
    _
  %s6 = ssub.s32 1, %s4
  %s7 = scalar_select 0, %s6, %s4
  // Predicated region
  $region2: #{net_forward.3} parent=0 // pred_check
    _
  $region3: #{net_forward.3} parent=0 // pred_check_branch
    %9 = sbr.rel (0) target = $region5
  $region4: #{net_forward.3} parent=0 // pred_region
    _
  $region5: #{net_forward.3} parent=0 // pred_fallthru
    _
  // Predicated region
  $region6: #{net_forward.3} parent=0 // pred_check
    _
  $region7: #{net_forward.3} parent=0 // pred_check_branch
    %11 = sbr.rel (0) target = $region9
  $region8: #{net_forward.3} parent=0 // pred_region
    _
  $region9: #{net_forward.3} parent=0 // pred_fallthru
    _
  // Predicated region
  $region10: #{net_forward.3} parent=0 // pred_check
    _
  $region11: #{net_forward.3} parent=0 // pred_check_branch
    %13 = sbr.rel (0) target = $region13
  $region12: #{net_forward.3} parent=0 // pred_region
    _
  $region13: #{net_forward.3} parent=0 // pred_fallthru
    _
  %v15 = vld [vmem:[%s0] sm:$0xf]
  %v16 = vld [vmem:[%s1] sm:$0xff]
  %v17 = vld [vmem:[%s1 + $0x8] sm:$0xff]
  %v18 = vld [vmem:[%s1 + $0x10] sm:$0xff]
  %v19 = vld [vmem:[%s1 + $0x18] sm:$0xff]
  %v20 = vld [vmem:[%s1 + $0x20] sm:$0xff]
  %v21 = vld [vmem:[%s1 + $0x28] sm:$0xff]
  %v22 = vld [vmem:[%s1 + $0x30] sm:$0xff]
  %v23 = vld [vmem:[%s1 + $0x38] sm:$0xff]
  %v24 = vld [vmem:[%s1 + $0x40] sm:$0xff]
  %v25 = vld [vmem:[%s1 + $0x48] sm:$0xff]
  %v26 = vld [vmem:[%s1 + $0x50] sm:$0xff]
  %v27 = vld [vmem:[%s1 + $0x58] sm:$0xff]
  %v28 = vld [vmem:[%s1 + $0x60] sm:$0xff]
  %v29 = vld [vmem:[%s1 + $0x68] sm:$0xff]
  %v30 = vld [vmem:[%s1 + $0x70] sm:$0xff]
  %v31 = vld [vmem:[%s1 + $0x78] sm:$0xff]
  %v32 = vld [vmem:[%s1 + $0x80] sm:$0xff]
  %v33 = vld [vmem:[%s1 + $0x88] sm:$0xf]
  %v34 = vld [vmem:[%s1 + $0x8c] sm:$0xff]
  %v35 = vld [vmem:[%s1 + $0x94] sm:$0xff]
  %v36 = vld [vmem:[%s1 + $0x9c] sm:$0xff]
  %v37 = vld [vmem:[%s1 + $0xa4] sm:$0xff]
  %v38 = vld [vmem:[%s1 + $0xac] sm:$0xff]
  %v39 = vld [vmem:[%s1 + $0xb4] sm:$0xff]
  %v40 = vld [vmem:[%s1 + $0xbc] sm:$0xff]
  %v41 = vld [vmem:[%s1 + $0xc4] sm:$0xff]
  %v42 = vld [vmem:[%s1 + $0xcc] sm:$0xff]
  %v43 = vld [vmem:[%s1 + $0xd4] sm:$0xff]
  %v44 = vld [vmem:[%s1 + $0xdc] sm:$0xff]
  %v45 = vld [vmem:[%s1 + $0xe4] sm:$0xff]
  %v46 = vld [vmem:[%s1 + $0xec] sm:$0xff]
  %v47 = vld [vmem:[%s1 + $0xf4] sm:$0xff]
  %v48 = vld [vmem:[%s1 + $0xfc] sm:$0xff]
  %v49 = vld [vmem:[%s1 + $0x104] sm:$0xff]
  %v50 = vld [vmem:[%s1 + $0x10c] sm:$0xff]
  %v51 = vld [vmem:[%s1 + $0x114] sm:$0xf]
  %v52 = vld [vmem:[%s1 + $0x118] sm:$0xff]
  %v53 = vld [vmem:[%s1 + $0x120] sm:$0xff]
  %v54 = vld [vmem:[%s1 + $0x128] sm:$0xff]
  %v55 = vld [vmem:[%s1 + $0x130] sm:$0xff]
  %v56 = vld [vmem:[%s1 + $0x138] sm:$0xff]
  %v57 = vld [vmem:[%s1 + $0x140] sm:$0xff]
  %v58 = vld [vmem:[%s1 + $0x148] sm:$0xff]
  %v59 = vld [vmem:[%s1 + $0x150] sm:$0xff]
  %v60 = vld [vmem:[%s1 + $0x158] sm:$0xff]
  %v61 = vld [vmem:[%s1 + $0x160] sm:$0xff]
  %v62 = vld [vmem:[%s1 + $0x168] sm:$0xff]
  %v63 = vld [vmem:[%s1 + $0x170] sm:$0xff]
  %v64 = vld [vmem:[%s1 + $0x178] sm:$0xff]
  %v65 = vld [vmem:[%s1 + $0x180] sm:$0xff]
  %v66 = vld [vmem:[%s1 + $0x188] sm:$0xff]
  %v67 = vld [vmem:[%s1 + $0x190] sm:$0xff]
  %v68 = vld [vmem:[%s1 + $0x198] sm:$0xff]
  %v69 = vld [vmem:[%s1 + $0x1a0] sm:$0xf]
  %v70 = vld [vmem:[%s1 + $0x1a4] sm:$0xff]
  %v71 = vld [vmem:[%s1 + $0x1ac] sm:$0xff]
  %v72 = vld [vmem:[%s1 + $0x1b4] sm:$0xff]
  %v73 = vld [vmem:[%s1 + $0x1bc] sm:$0xff]
  %v74 = vld [vmem:[%s1 + $0x1c4] sm:$0xff]
  %v75 = vld [vmem:[%s1 + $0x1cc] sm:$0xff]
  %v76 = vld [vmem:[%s1 + $0x1d4] sm:$0xff]
  %v77 = vld [vmem:[%s1 + $0x1dc] sm:$0xff]
  %v78 = vld [vmem:[%s1 + $0x1e4] sm:$0xff]
  %v79 = vld [vmem:[%s1 + $0x1ec] sm:$0xff]
  %v80 = vld [vmem:[%s1 + $0x1f4] sm:$0xff]
  %v81 = vld [vmem:[%s1 + $0x1fc] sm:$0xff]
  %v82 = vld [vmem:[%s1 + $0x204] sm:$0xff]
  %v83 = vld [vmem:[%s1 + $0x20c] sm:$0xff]
  %v84 = vld [vmem:[%s1 + $0x214] sm:$0xff]
  %v85 = vld [vmem:[%s1 + $0x21c] sm:$0xff]
  %v86 = vld [vmem:[%s1 + $0x224] sm:$0xff]
  %v87 = vld [vmem:[%s1 + $0x22c] sm:$0xf]
  %v88 = vld [vmem:[%s1 + $0x230] sm:$0xff]
  %v89 = vld [vmem:[%s1 + $0x238] sm:$0xff]
  %v90 = vld [vmem:[%s1 + $0x240] sm:$0xff]
  %v91 = vld [vmem:[%s1 + $0x248] sm:$0xff]
  %v92 = vld [vmem:[%s1 + $0x250] sm:$0xff]
  %v93 = vld [vmem:[%s1 + $0x258] sm:$0xff]
  %v94 = vld [vmem:[%s1 + $0x260] sm:$0xff]
  %v95 = vld [vmem:[%s1 + $0x268] sm:$0xff]
  %v96 = vld [vmem:[%s1 + $0x270] sm:$0xff]
  %v97 = vld [vmem:[%s1 + $0x278] sm:$0xff]
  %v98 = vld [vmem:[%s1 + $0x280] sm:$0xff]
  %v99 = vld [vmem:[%s1 + $0x288] sm:$0xff]
  %v100 = vld [vmem:[%s1 + $0x290] sm:$0xff]
  %v101 = vld [vmem:[%s1 + $0x298] sm:$0xff]
  %v102 = vld [vmem:[%s1 + $0x2a0] sm:$0xff]
  %v103 = vld [vmem:[%s1 + $0x2a8] sm:$0xff]
  %v104 = vld [vmem:[%s1 + $0x2b0] sm:$0xff]
  %v105 = vld [vmem:[%s1 + $0x2b8] sm:$0xf]
  %v106 = vld [vmem:[%s1 + $0x2bc] sm:$0xff]
  %v107 = vld [vmem:[%s1 + $0x2c4] sm:$0xff]
  %v108 = vld [vmem:[%s1 + $0x2cc] sm:$0xff]
  %v109 = vld [vmem:[%s1 + $0x2d4] sm:$0xff]
  %v110 = vld [vmem:[%s1 + $0x2dc] sm:$0xff]
  %v111 = vld [vmem:[%s1 + $0x2e4] sm:$0xff]
  %v112 = vld [vmem:[%s1 + $0x2ec] sm:$0xff]
  %v113 = vld [vmem:[%s1 + $0x2f4] sm:$0xff]
  %v114 = vld [vmem:[%s1 + $0x2fc] sm:$0xff]
  %v115 = vld [vmem:[%s1 + $0x304] sm:$0xff]
  %v116 = vld [vmem:[%s1 + $0x30c] sm:$0xff]
  %v117 = vld [vmem:[%s1 + $0x314] sm:$0xff]
  %v118 = vld [vmem:[%s1 + $0x31c] sm:$0xff]
  %v119 = vld [vmem:[%s1 + $0x324] sm:$0xff]
  %v120 = vld [vmem:[%s1 + $0x32c] sm:$0xff]
  %v121 = vld [vmem:[%s1 + $0x334] sm:$0xff]
  %v122 = vld [vmem:[%s1 + $0x33c] sm:$0xff]
  %v123 = vld [vmem:[%s1 + $0x344] sm:$0xf]
  %v124 = vld [vmem:[%s1 + $0x348] sm:$0xff]
  %v125 = vld [vmem:[%s1 + $0x350] sm:$0xff]
  %v126 = vld [vmem:[%s1 + $0x358] sm:$0xff]
  %v127 = vld [vmem:[%s1 + $0x360] sm:$0xff]
  %v128 = vld [vmem:[%s1 + $0x368] sm:$0xff]
  %v129 = vld [vmem:[%s1 + $0x370] sm:$0xff]
  %v130 = vld [vmem:[%s1 + $0x378] sm:$0xff]
  %v131 = vld [vmem:[%s1 + $0x380] sm:$0xff]
  %v132 = vld [vmem:[%s1 + $0x388] sm:$0xff]
  %v133 = vld [vmem:[%s1 + $0x390] sm:$0xff]
  %v134 = vld [vmem:[%s1 + $0x398] sm:$0xff]
  %v135 = vld [vmem:[%s1 + $0x3a0] sm:$0xff]
  %v136 = vld [vmem:[%s1 + $0x3a8] sm:$0xff]
  %v137 = vld [vmem:[%s1 + $0x3b0] sm:$0xff]
  %v138 = vld [vmem:[%s1 + $0x3b8] sm:$0xff]
  %v139 = vld [vmem:[%s1 + $0x3c0] sm:$0xff]
  %v140 = vld [vmem:[%s1 + $0x3c8] sm:$0xff]
  %v141 = vld [vmem:[%s1 + $0x3d0] sm:$0xf]
  %v142 = vld [vmem:[%s1 + $0x3d4] sm:$0xff]
  %v143 = vld [vmem:[%s1 + $0x3dc] sm:$0xff]
  %v144 = vld [vmem:[%s1 + $0x3e4] sm:$0xff]
  %v145 = vld [vmem:[%s1 + $0x3ec] sm:$0xff]
  %v146 = vld [vmem:[%s1 + $0x3f4] sm:$0xff]
  %v147 = vld [vmem:[%s1 + $0x3fc] sm:$0xff]
  %v148 = vld [vmem:[%s1 + $0x404] sm:$0xff]
  %v149 = vld [vmem:[%s1 + $0x40c] sm:$0xff]
  %v150 = vld [vmem:[%s1 + $0x414] sm:$0xff]
  %v151 = vld [vmem:[%s1 + $0x41c] sm:$0xff]
  %v152 = vld [vmem:[%s1 + $0x424] sm:$0xff]
  %v153 = vld [vmem:[%s1 + $0x42c] sm:$0xff]
  %v154 = vld [vmem:[%s1 + $0x434] sm:$0xff]
  %v155 = vld [vmem:[%s1 + $0x43c] sm:$0xff]
  %v156 = vld [vmem:[%s1 + $0x444] sm:$0xff]
  %v157 = vld [vmem:[%s1 + $0x44c] sm:$0xff]
  %v158 = vld [vmem:[%s1 + $0x454] sm:$0xff]
  %v159 = vld [vmem:[%s1 + $0x45c] sm:$0xf]
  %v160 = vld [vmem:[%s2] sm:$0xff]
  %162 = vset.pattern.permute.xlu0 0
  %163 = vperm.xlu0 %162, %v160
  %v164 = vpop.permute.xlu0 %163
  %v310 = vunpack.c.l.b16 %v16
  %v311 = vunpack.c.h.b16 %v16
  %v312 = vunpack.c.l.b16 %v17
  %v313 = vunpack.c.h.b16 %v17
  %v314 = vunpack.c.l.b16 %v18
  %v315 = vunpack.c.h.b16 %v18
  %v316 = vunpack.c.l.b16 %v19
  %v317 = vunpack.c.h.b16 %v19
  %v318 = vunpack.c.l.b16 %v20
  %v319 = vunpack.c.h.b16 %v20
  %v320 = vunpack.c.l.b16 %v21
  %v321 = vunpack.c.h.b16 %v21
  %v322 = vunpack.c.l.b16 %v22
  %v323 = vunpack.c.h.b16 %v22
  %v324 = vunpack.c.l.b16 %v23
  %v325 = vunpack.c.h.b16 %v23
  %v326 = vunpack.c.l.b16 %v24
  %v327 = vunpack.c.h.b16 %v24
  %v328 = vunpack.c.l.b16 %v25
  %v329 = vunpack.c.h.b16 %v25
  %v330 = vunpack.c.l.b16 %v26
  %v331 = vunpack.c.h.b16 %v26
  %v332 = vunpack.c.l.b16 %v27
  %v333 = vunpack.c.h.b16 %v27
  %v334 = vunpack.c.l.b16 %v28
  %v335 = vunpack.c.h.b16 %v28
  %v336 = vunpack.c.l.b16 %v29
  %v337 = vunpack.c.h.b16 %v29
  %v338 = vunpack.c.l.b16 %v30
  %v339 = vunpack.c.h.b16 %v30
  %v340 = vunpack.c.l.b16 %v31
  %v341 = vunpack.c.h.b16 %v31
  %v342 = vunpack.c.l.b16 %v32
  %v343 = vunpack.c.h.b16 %v32
  %v344 = vunpack.c.l.b16 %v33
  %v345 = vunpack.c.l.b16 %v34
  %v346 = vunpack.c.h.b16 %v34
  %v347 = vunpack.c.l.b16 %v35
  %v348 = vunpack.c.h.b16 %v35
  %v349 = vunpack.c.l.b16 %v36
  %v350 = vunpack.c.h.b16 %v36
  %v351 = vunpack.c.l.b16 %v37
  %v352 = vunpack.c.h.b16 %v37
  %v353 = vunpack.c.l.b16 %v38
  %v354 = vunpack.c.h.b16 %v38
  %v355 = vunpack.c.l.b16 %v39
  %v356 = vunpack.c.h.b16 %v39
  %v357 = vunpack.c.l.b16 %v40
  %v358 = vunpack.c.h.b16 %v40
  %v359 = vunpack.c.l.b16 %v41
  %v360 = vunpack.c.h.b16 %v41
  %v361 = vunpack.c.l.b16 %v42
  %v362 = vunpack.c.h.b16 %v42
  %v363 = vunpack.c.l.b16 %v43
  %v364 = vunpack.c.h.b16 %v43
  %v365 = vunpack.c.l.b16 %v44
  %v366 = vunpack.c.h.b16 %v44
  %v367 = vunpack.c.l.b16 %v45
  %v368 = vunpack.c.h.b16 %v45
  %v369 = vunpack.c.l.b16 %v46
  %v370 = vunpack.c.h.b16 %v46
  %v371 = vunpack.c.l.b16 %v47
  %v372 = vunpack.c.h.b16 %v47
  %v373 = vunpack.c.l.b16 %v48
  %v374 = vunpack.c.h.b16 %v48
  %v375 = vunpack.c.l.b16 %v49
  %v376 = vunpack.c.h.b16 %v49
  %v377 = vunpack.c.l.b16 %v50
  %v378 = vunpack.c.h.b16 %v50
  %v379 = vunpack.c.l.b16 %v51
  %v380 = vunpack.c.l.b16 %v52
  %v381 = vunpack.c.h.b16 %v52
  %v382 = vunpack.c.l.b16 %v53
  %v383 = vunpack.c.h.b16 %v53
  %v384 = vunpack.c.l.b16 %v54
  %v385 = vunpack.c.h.b16 %v54
  %v386 = vunpack.c.l.b16 %v55
  %v387 = vunpack.c.h.b16 %v55
  %v388 = vunpack.c.l.b16 %v56
  %v389 = vunpack.c.h.b16 %v56
  %v390 = vunpack.c.l.b16 %v57
  %v391 = vunpack.c.h.b16 %v57
  %v392 = vunpack.c.l.b16 %v58
  %v393 = vunpack.c.h.b16 %v58
  %v394 = vunpack.c.l.b16 %v59
  %v395 = vunpack.c.h.b16 %v59
  %v396 = vunpack.c.l.b16 %v60
  %v397 = vunpack.c.h.b16 %v60
  %v398 = vunpack.c.l.b16 %v61
  %v399 = vunpack.c.h.b16 %v61
  %v400 = vunpack.c.l.b16 %v62
  %v401 = vunpack.c.h.b16 %v62
  %v402 = vunpack.c.l.b16 %v63
  %v403 = vunpack.c.h.b16 %v63
  %v404 = vunpack.c.l.b16 %v64
  %v405 = vunpack.c.h.b16 %v64
  %v406 = vunpack.c.l.b16 %v65
  %v407 = vunpack.c.h.b16 %v65
  %v408 = vunpack.c.l.b16 %v66
  %v409 = vunpack.c.h.b16 %v66
  %v410 = vunpack.c.l.b16 %v67
  %v411 = vunpack.c.h.b16 %v67
  %v412 = vunpack.c.l.b16 %v68
  %v413 = vunpack.c.h.b16 %v68
  %v414 = vunpack.c.l.b16 %v69
  %v415 = vunpack.c.l.b16 %v70
  %v416 = vunpack.c.h.b16 %v70
  %v417 = vunpack.c.l.b16 %v71
  %v418 = vunpack.c.h.b16 %v71
  %v419 = vunpack.c.l.b16 %v72
  %v420 = vunpack.c.h.b16 %v72
  %v421 = vunpack.c.l.b16 %v73
  %v422 = vunpack.c.h.b16 %v73
  %v423 = vunpack.c.l.b16 %v74
  %v424 = vunpack.c.h.b16 %v74
  %v425 = vunpack.c.l.b16 %v75
  %v426 = vunpack.c.h.b16 %v75
  %v427 = vunpack.c.l.b16 %v76
  %v428 = vunpack.c.h.b16 %v76
  %v429 = vunpack.c.l.b16 %v77
  %v430 = vunpack.c.h.b16 %v77
  %v431 = vunpack.c.l.b16 %v78
  %v432 = vunpack.c.h.b16 %v78
  %v433 = vunpack.c.l.b16 %v79
  %v434 = vunpack.c.h.b16 %v79
  %v435 = vunpack.c.l.b16 %v80
  %v436 = vunpack.c.h.b16 %v80
  %v437 = vunpack.c.l.b16 %v81
  %v438 = vunpack.c.h.b16 %v81
  %v439 = vunpack.c.l.b16 %v82
  %v440 = vunpack.c.h.b16 %v82
  %v441 = vunpack.c.l.b16 %v83
  %v442 = vunpack.c.h.b16 %v83
  %v443 = vunpack.c.l.b16 %v84
  %v444 = vunpack.c.h.b16 %v84
  %v445 = vunpack.c.l.b16 %v85
  %v446 = vunpack.c.h.b16 %v85
  %v447 = vunpack.c.l.b16 %v86
  %v448 = vunpack.c.h.b16 %v86
  %v449 = vunpack.c.l.b16 %v87
  %v450 = vunpack.c.l.b16 %v88
  %v451 = vunpack.c.h.b16 %v88
  %v452 = vunpack.c.l.b16 %v89
  %v453 = vunpack.c.h.b16 %v89
  %v454 = vunpack.c.l.b16 %v90
  %v455 = vunpack.c.h.b16 %v90
  %v456 = vunpack.c.l.b16 %v91
  %v457 = vunpack.c.h.b16 %v91
  %v458 = vunpack.c.l.b16 %v92
  %v459 = vunpack.c.h.b16 %v92
  %v460 = vunpack.c.l.b16 %v93
  %v461 = vunpack.c.h.b16 %v93
  %v462 = vunpack.c.l.b16 %v94
  %v463 = vunpack.c.h.b16 %v94
  %v464 = vunpack.c.l.b16 %v95
  %v465 = vunpack.c.h.b16 %v95
  %v466 = vunpack.c.l.b16 %v96
  %v467 = vunpack.c.h.b16 %v96
  %v468 = vunpack.c.l.b16 %v97
  %v469 = vunpack.c.h.b16 %v97
  %v470 = vunpack.c.l.b16 %v98
  %v471 = vunpack.c.h.b16 %v98
  %v472 = vunpack.c.l.b16 %v99
  %v473 = vunpack.c.h.b16 %v99
  %v474 = vunpack.c.l.b16 %v100
  %v475 = vunpack.c.h.b16 %v100
  %v476 = vunpack.c.l.b16 %v101
  %v477 = vunpack.c.h.b16 %v101
  %v478 = vunpack.c.l.b16 %v102
  %v479 = vunpack.c.h.b16 %v102
  %v480 = vunpack.c.l.b16 %v103
  %v481 = vunpack.c.h.b16 %v103
  %v482 = vunpack.c.l.b16 %v104
  %v483 = vunpack.c.h.b16 %v104
  %v484 = vunpack.c.l.b16 %v105
  %v485 = vunpack.c.l.b16 %v106
  %v486 = vunpack.c.h.b16 %v106
  %v487 = vunpack.c.l.b16 %v107
  %v488 = vunpack.c.h.b16 %v107
  %v489 = vunpack.c.l.b16 %v108
  %v490 = vunpack.c.h.b16 %v108
  %v491 = vunpack.c.l.b16 %v109
  %v492 = vunpack.c.h.b16 %v109
  %v493 = vunpack.c.l.b16 %v110
  %v494 = vunpack.c.h.b16 %v110
  %v495 = vunpack.c.l.b16 %v111
  %v496 = vunpack.c.h.b16 %v111
  %v497 = vunpack.c.l.b16 %v112
  %v498 = vunpack.c.h.b16 %v112
  %v499 = vunpack.c.l.b16 %v113
  %v500 = vunpack.c.h.b16 %v113
  %v501 = vunpack.c.l.b16 %v114
  %v502 = vunpack.c.h.b16 %v114
  %v503 = vunpack.c.l.b16 %v115
  %v504 = vunpack.c.h.b16 %v115
  %v505 = vunpack.c.l.b16 %v116
  %v506 = vunpack.c.h.b16 %v116
  %v507 = vunpack.c.l.b16 %v117
  %v508 = vunpack.c.h.b16 %v117
  %v509 = vunpack.c.l.b16 %v118
  %v510 = vunpack.c.h.b16 %v118
  %v511 = vunpack.c.l.b16 %v119
  %v512 = vunpack.c.h.b16 %v119
  %v513 = vunpack.c.l.b16 %v120
  %v514 = vunpack.c.h.b16 %v120
  %v515 = vunpack.c.l.b16 %v121
  %v516 = vunpack.c.h.b16 %v121
  %v517 = vunpack.c.l.b16 %v122
  %v518 = vunpack.c.h.b16 %v122
  %v519 = vunpack.c.l.b16 %v123
  %v520 = vunpack.c.l.b16 %v124
  %v521 = vunpack.c.h.b16 %v124
  %v522 = vunpack.c.l.b16 %v125
  %v523 = vunpack.c.h.b16 %v125
  %v524 = vunpack.c.l.b16 %v126
  %v525 = vunpack.c.h.b16 %v126
  %v526 = vunpack.c.l.b16 %v127
  %v527 = vunpack.c.h.b16 %v127
  %v528 = vunpack.c.l.b16 %v128
  %v529 = vunpack.c.h.b16 %v128
  %v530 = vunpack.c.l.b16 %v129
  %v531 = vunpack.c.h.b16 %v129
  %v532 = vunpack.c.l.b16 %v130
  %v533 = vunpack.c.h.b16 %v130
  %v534 = vunpack.c.l.b16 %v131
  %v535 = vunpack.c.h.b16 %v131
  %v536 = vunpack.c.l.b16 %v132
  %v537 = vunpack.c.h.b16 %v132
  %v538 = vunpack.c.l.b16 %v133
  %v539 = vunpack.c.h.b16 %v133
  %v540 = vunpack.c.l.b16 %v134
  %v541 = vunpack.c.h.b16 %v134
  %v542 = vunpack.c.l.b16 %v135
  %v543 = vunpack.c.h.b16 %v135
  %v544 = vunpack.c.l.b16 %v136
  %v545 = vunpack.c.h.b16 %v136
  %v546 = vunpack.c.l.b16 %v137
  %v547 = vunpack.c.h.b16 %v137
  %v548 = vunpack.c.l.b16 %v138
  %v549 = vunpack.c.h.b16 %v138
  %v550 = vunpack.c.l.b16 %v139
  %v551 = vunpack.c.h.b16 %v139
  %v552 = vunpack.c.l.b16 %v140
  %v553 = vunpack.c.h.b16 %v140
  %v554 = vunpack.c.l.b16 %v141
  %v555 = vunpack.c.l.b16 %v142
  %v556 = vunpack.c.h.b16 %v142
  %v557 = vunpack.c.l.b16 %v143
  %v558 = vunpack.c.h.b16 %v143
  %v559 = vunpack.c.l.b16 %v144
  %v560 = vunpack.c.h.b16 %v144
  %v561 = vunpack.c.l.b16 %v145
  %v562 = vunpack.c.h.b16 %v145
  %v563 = vunpack.c.l.b16 %v146
  %v564 = vunpack.c.h.b16 %v146
  %v565 = vunpack.c.l.b16 %v147
  %v566 = vunpack.c.h.b16 %v147
  %v567 = vunpack.c.l.b16 %v148
  %v568 = vunpack.c.h.b16 %v148
  %v569 = vunpack.c.l.b16 %v149
  %v570 = vunpack.c.h.b16 %v149
  %v571 = vunpack.c.l.b16 %v150
  %v572 = vunpack.c.h.b16 %v150
  %v573 = vunpack.c.l.b16 %v151
  %v574 = vunpack.c.h.b16 %v151
  %v575 = vunpack.c.l.b16 %v152
  %v576 = vunpack.c.h.b16 %v152
  %v577 = vunpack.c.l.b16 %v153
  %v578 = vunpack.c.h.b16 %v153
  %v579 = vunpack.c.l.b16 %v154
  %v580 = vunpack.c.h.b16 %v154
  %v581 = vunpack.c.l.b16 %v155
  %v582 = vunpack.c.h.b16 %v155
  %v583 = vunpack.c.l.b16 %v156
  %v584 = vunpack.c.h.b16 %v156
  %v585 = vunpack.c.l.b16 %v157
  %v586 = vunpack.c.h.b16 %v157
  %v587 = vunpack.c.l.b16 %v158
  %v588 = vunpack.c.h.b16 %v158
  %v589 = vunpack.c.l.b16 %v159
  %v590 = vpack.c.b16 %v345, %v310
  %v591 = vpack.c.b16 %v346, %v311
  %v592 = vpack.c.b16 %v347, %v312
  %v593 = vpack.c.b16 %v348, %v313
  %v594 = vpack.c.b16 %v349, %v314
  %v595 = vpack.c.b16 %v350, %v315
  %v596 = vpack.c.b16 %v351, %v316
  %v597 = vpack.c.b16 %v352, %v317
  %v598 = vpack.c.b16 %v353, %v318
  %v599 = vpack.c.b16 %v354, %v319
  %v600 = vpack.c.b16 %v355, %v320
  %v601 = vpack.c.b16 %v356, %v321
  %v602 = vpack.c.b16 %v357, %v322
  %v603 = vpack.c.b16 %v358, %v323
  %v604 = vpack.c.b16 %v359, %v324
  %v605 = vpack.c.b16 %v360, %v325
  %v606 = vpack.c.b16 %v361, %v326
  %v607 = vpack.c.b16 %v362, %v327
  %v608 = vpack.c.b16 %v363, %v328
  %v609 = vpack.c.b16 %v364, %v329
  %v610 = vpack.c.b16 %v365, %v330
  %v611 = vpack.c.b16 %v366, %v331
  %v612 = vpack.c.b16 %v367, %v332
  %v613 = vpack.c.b16 %v368, %v333
  %v614 = vpack.c.b16 %v369, %v334
  %v615 = vpack.c.b16 %v370, %v335
  %v616 = vpack.c.b16 %v371, %v336
  %v617 = vpack.c.b16 %v372, %v337
  %v618 = vpack.c.b16 %v373, %v338
  %v619 = vpack.c.b16 %v374, %v339
  %v620 = vpack.c.b16 %v375, %v340
  %v621 = vpack.c.b16 %v376, %v341
  %v622 = vpack.c.b16 %v377, %v342
  %v623 = vpack.c.b16 %v378, %v343
  %v624 = vpack.c.b16 %v379, %v344
  %v625 = vpack.c.b16 %v415, %v380
  %v626 = vpack.c.b16 %v416, %v381
  %v627 = vpack.c.b16 %v417, %v382
  %v628 = vpack.c.b16 %v418, %v383
  %v629 = vpack.c.b16 %v419, %v384
  %v630 = vpack.c.b16 %v420, %v385
  %v631 = vpack.c.b16 %v421, %v386
  %v632 = vpack.c.b16 %v422, %v387
  %v633 = vpack.c.b16 %v423, %v388
  %v634 = vpack.c.b16 %v424, %v389
  %v635 = vpack.c.b16 %v425, %v390
  %v636 = vpack.c.b16 %v426, %v391
  %v637 = vpack.c.b16 %v427, %v392
  %v638 = vpack.c.b16 %v428, %v393
  %v639 = vpack.c.b16 %v429, %v394
  %v640 = vpack.c.b16 %v430, %v395
  %v641 = vpack.c.b16 %v431, %v396
  %v642 = vpack.c.b16 %v432, %v397
  %v643 = vpack.c.b16 %v433, %v398
  %v644 = vpack.c.b16 %v434, %v399
  %v645 = vpack.c.b16 %v435, %v400
  %v646 = vpack.c.b16 %v436, %v401
  %v647 = vpack.c.b16 %v437, %v402
  %v648 = vpack.c.b16 %v438, %v403
  %v649 = vpack.c.b16 %v439, %v404
  %v650 = vpack.c.b16 %v440, %v405
  %v651 = vpack.c.b16 %v441, %v406
  %v652 = vpack.c.b16 %v442, %v407
  %v653 = vpack.c.b16 %v443, %v408
  %v654 = vpack.c.b16 %v444, %v409
  %v655 = vpack.c.b16 %v445, %v410
  %v656 = vpack.c.b16 %v446, %v411
  %v657 = vpack.c.b16 %v447, %v412
  %v658 = vpack.c.b16 %v448, %v413
  %v659 = vpack.c.b16 %v449, %v414
  %v660 = vpack.c.b16 %v485, %v450
  %v661 = vpack.c.b16 %v486, %v451
  %v662 = vpack.c.b16 %v487, %v452
  %v663 = vpack.c.b16 %v488, %v453
  %v664 = vpack.c.b16 %v489, %v454
  %v665 = vpack.c.b16 %v490, %v455
  %v666 = vpack.c.b16 %v491, %v456
  %v667 = vpack.c.b16 %v492, %v457
  %v668 = vpack.c.b16 %v493, %v458
  %v669 = vpack.c.b16 %v494, %v459
  %v670 = vpack.c.b16 %v495, %v460
  %v671 = vpack.c.b16 %v496, %v461
  %v672 = vpack.c.b16 %v497, %v462
  %v673 = vpack.c.b16 %v498, %v463
  %v674 = vpack.c.b16 %v499, %v464
  %v675 = vpack.c.b16 %v500, %v465
  %v676 = vpack.c.b16 %v501, %v466
  %v677 = vpack.c.b16 %v502, %v467
  %v678 = vpack.c.b16 %v503, %v468
  %v679 = vpack.c.b16 %v504, %v469
  %v680 = vpack.c.b16 %v505, %v470
  %v681 = vpack.c.b16 %v506, %v471
  %v682 = vpack.c.b16 %v507, %v472
  %v683 = vpack.c.b16 %v508, %v473
  %v684 = vpack.c.b16 %v509, %v474
  %v685 = vpack.c.b16 %v510, %v475
  %v686 = vpack.c.b16 %v511, %v476
  %v687 = vpack.c.b16 %v512, %v477
  %v688 = vpack.c.b16 %v513, %v478
  %v689 = vpack.c.b16 %v514, %v479
  %v690 = vpack.c.b16 %v515, %v480
  %v691 = vpack.c.b16 %v516, %v481
  %v692 = vpack.c.b16 %v517, %v482
  %v693 = vpack.c.b16 %v518, %v483
  %v694 = vpack.c.b16 %v519, %v484
  %v695 = vpack.c.b16 %v555, %v520
  %v696 = vpack.c.b16 %v556, %v521
  %v697 = vpack.c.b16 %v557, %v522
  %v698 = vpack.c.b16 %v558, %v523
  %v699 = vpack.c.b16 %v559, %v524
  %v700 = vpack.c.b16 %v560, %v525
  %v701 = vpack.c.b16 %v561, %v526
  %v702 = vpack.c.b16 %v562, %v527
  %v703 = vpack.c.b16 %v563, %v528
  %v704 = vpack.c.b16 %v564, %v529
  %v705 = vpack.c.b16 %v565, %v530
  %v706 = vpack.c.b16 %v566, %v531
  %v707 = vpack.c.b16 %v567, %v532
  %v708 = vpack.c.b16 %v568, %v533
  %v709 = vpack.c.b16 %v569, %v534
  %v710 = vpack.c.b16 %v570, %v535
  %v711 = vpack.c.b16 %v571, %v536
  %v712 = vpack.c.b16 %v572, %v537
  %v713 = vpack.c.b16 %v573, %v538
  %v714 = vpack.c.b16 %v574, %v539
  %v715 = vpack.c.b16 %v575, %v540
  %v716 = vpack.c.b16 %v576, %v541
  %v717 = vpack.c.b16 %v577, %v542
  %v718 = vpack.c.b16 %v578, %v543
  %v719 = vpack.c.b16 %v579, %v544
  %v720 = vpack.c.b16 %v580, %v545
  %v721 = vpack.c.b16 %v581, %v546
  %v722 = vpack.c.b16 %v582, %v547
  %v723 = vpack.c.b16 %v583, %v548
  %v724 = vpack.c.b16 %v584, %v549
  %v725 = vpack.c.b16 %v585, %v550
  %v726 = vpack.c.b16 %v586, %v551
  %v727 = vpack.c.b16 %v587, %v552
  %v728 = vpack.c.b16 %v588, %v553
  %v729 = vpack.c.b16 %v589, %v554
  %vm870 = vcmask 523264
  %v872 = vsel %vm870, %v15, 0
  %874 = vmatprep.subr.bf16.mxu0 0
  %875 = vmatpush1.bf16.msra.mxu0 0
  %876 = vmatprep.subr.bf16.mxu0 0
  %877 = vmatpush1.bf16.msra.mxu0 0
  %878 = vmatprep.subr.bf16.mxu0 0
  %879 = vmatpush1.bf16.msra.mxu0 0
  %880 = vmatprep.subr.bf16.mxu0 0
  %881 = vmatpush1.bf16.msra.mxu0 0
  %882 = vmatprep.subr.bf16.mxu0 %v696
  %883 = vmatpush1.bf16.msra.mxu0 %v695
  %884 = vmatprep.subr.bf16.mxu0 %v661
  %885 = vmatpush1.bf16.msra.mxu0 %v660
  %886 = vmatprep.subr.bf16.mxu0 %v626
  %887 = vmatpush1.bf16.msra.mxu0 %v625
  %888 = vmatprep.subr.bf16.mxu0 %v591
  %889 = vmatpush1.bf16.msra.mxu0 %v590
  %890 = vmatprep.subr.bf16.mxu0 0
  %891 = vmatpush2.bf16.msra.mxu0 0
  %892 = vmatprep.subr.bf16.mxu0 0
  %893 = vmatpush2.bf16.msra.mxu0 0
  %894 = vmatprep.subr.bf16.mxu0 0
  %895 = vmatpush2.bf16.msra.mxu0 0
  %896 = vmatprep.subr.bf16.mxu0 0
  %897 = vmatpush2.bf16.msra.mxu0 0
  %898 = vmatprep.subr.bf16.mxu0 0
  %899 = vmatpush2.bf16.msra.mxu0 0
  %900 = vmatprep.subr.bf16.mxu0 0
  %901 = vmatpush2.bf16.msra.mxu0 0
  %902 = vmatprep.subr.bf16.mxu0 0
  %903 = vmatpush2.bf16.msra.mxu0 0
  %904 = vmatprep.subr.bf16.mxu0 0
  %905 = vmatpush2.bf16.msra.mxu0 0
  %906 = vmatprep.mubr.bf16.mxu0 0
  %907 = vmatmul.mubr.bf16.gmra.mxu0 %v872
  %v908 = vpop.f32.mrf.mxu0
  %v909 = vadd.f32 %v164, %v908
  %v910 = vpop.f32.mrf.mxu0
  %v911 = vadd.f32 %v164, %v910
  %v912 = vpop.f32.mrf.mxu0
  %v913 = vpop.f32.mrf.mxu0
  %914 = vdwg.mxu0
  %915 = vmatprep.subr.bf16.mxu0 0
  %916 = vmatpush1.bf16.msra.mxu0 0
  %917 = vmatprep.subr.bf16.mxu0 0
  %918 = vmatpush1.bf16.msra.mxu0 0
  %919 = vmatprep.subr.bf16.mxu0 0
  %920 = vmatpush1.bf16.msra.mxu0 0
  %921 = vmatprep.subr.bf16.mxu0 0
  %922 = vmatpush1.bf16.msra.mxu0 0
  %923 = vmatprep.subr.bf16.mxu0 %v698
  %924 = vmatpush1.bf16.msra.mxu0 %v697
  %925 = vmatprep.subr.bf16.mxu0 %v663
  %926 = vmatpush1.bf16.msra.mxu0 %v662
  %927 = vmatprep.subr.bf16.mxu0 %v628
  %928 = vmatpush1.bf16.msra.mxu0 %v627
  %929 = vmatprep.subr.bf16.mxu0 %v593
  %930 = vmatpush1.bf16.msra.mxu0 %v592
  %931 = vmatprep.subr.bf16.mxu0 0
  %932 = vmatpush2.bf16.msra.mxu0 0
  %933 = vmatprep.subr.bf16.mxu0 0
  %934 = vmatpush2.bf16.msra.mxu0 0
  %935 = vmatprep.subr.bf16.mxu0 0
  %936 = vmatpush2.bf16.msra.mxu0 0
  %937 = vmatprep.subr.bf16.mxu0 0
  %938 = vmatpush2.bf16.msra.mxu0 0
  %939 = vmatprep.subr.bf16.mxu0 0
  %940 = vmatpush2.bf16.msra.mxu0 0
  %941 = vmatprep.subr.bf16.mxu0 0
  %942 = vmatpush2.bf16.msra.mxu0 0
  %943 = vmatprep.subr.bf16.mxu0 0
  %944 = vmatpush2.bf16.msra.mxu0 0
  %945 = vmatprep.subr.bf16.mxu0 0
  %946 = vmatpush2.bf16.msra.mxu0 0
  %947 = vmatprep.mubr.bf16.mxu0 0
  %948 = vmatmul.mubr.bf16.gmra.mxu0 %v872
  %v949 = vpop.f32.mrf.mxu0
  %v950 = vadd.f32 %v164, %v949
  %v951 = vpop.f32.mrf.mxu0
  %v952 = vadd.f32 %v164, %v951
  %v953 = vpop.f32.mrf.mxu0
  %v954 = vpop.f32.mrf.mxu0
  %955 = vdwg.mxu0
  %956 = vmatprep.subr.bf16.mxu0 0
  %957 = vmatpush1.bf16.msra.mxu0 0
  %958 = vmatprep.subr.bf16.mxu0 0
  %959 = vmatpush1.bf16.msra.mxu0 0
  %960 = vmatprep.subr.bf16.mxu0 0
  %961 = vmatpush1.bf16.msra.mxu0 0
  %962 = vmatprep.subr.bf16.mxu0 0
  %963 = vmatpush1.bf16.msra.mxu0 0
  %964 = vmatprep.subr.bf16.mxu0 %v700
  %965 = vmatpush1.bf16.msra.mxu0 %v699
  %966 = vmatprep.subr.bf16.mxu0 %v665
  %967 = vmatpush1.bf16.msra.mxu0 %v664
  %968 = vmatprep.subr.bf16.mxu0 %v630
  %969 = vmatpush1.bf16.msra.mxu0 %v629
  %970 = vmatprep.subr.bf16.mxu0 %v595
  %971 = vmatpush1.bf16.msra.mxu0 %v594
  %972 = vmatprep.subr.bf16.mxu0 0
  %973 = vmatpush2.bf16.msra.mxu0 0
  %974 = vmatprep.subr.bf16.mxu0 0
  %975 = vmatpush2.bf16.msra.mxu0 0
  %976 = vmatprep.subr.bf16.mxu0 0
  %977 = vmatpush2.bf16.msra.mxu0 0
  %978 = vmatprep.subr.bf16.mxu0 0
  %979 = vmatpush2.bf16.msra.mxu0 0
  %980 = vmatprep.subr.bf16.mxu0 0
  %981 = vmatpush2.bf16.msra.mxu0 0
  %982 = vmatprep.subr.bf16.mxu0 0
  %983 = vmatpush2.bf16.msra.mxu0 0
  %984 = vmatprep.subr.bf16.mxu0 0
  %985 = vmatpush2.bf16.msra.mxu0 0
  %986 = vmatprep.subr.bf16.mxu0 0
  %987 = vmatpush2.bf16.msra.mxu0 0
  %988 = vmatprep.mubr.bf16.mxu0 0
  %989 = vmatmul.mubr.bf16.gmra.mxu0 %v872
  %v990 = vpop.f32.mrf.mxu0
  %v991 = vadd.f32 %v164, %v990
  %v992 = vpop.f32.mrf.mxu0
  %v993 = vadd.f32 %v164, %v992
  %v994 = vpop.f32.mrf.mxu0
  %v995 = vpop.f32.mrf.mxu0
  %996 = vdwg.mxu0
  %997 = vmatprep.subr.bf16.mxu0 0
  %998 = vmatpush1.bf16.msra.mxu0 0
  %999 = vmatprep.subr.bf16.mxu0 0
  %1000 = vmatpush1.bf16.msra.mxu0 0
  %1001 = vmatprep.subr.bf16.mxu0 0
  %1002 = vmatpush1.bf16.msra.mxu0 0
  %1003 = vmatprep.subr.bf16.mxu0 0
  %1004 = vmatpush1.bf16.msra.mxu0 0
  %1005 = vmatprep.subr.bf16.mxu0 %v702
  %1006 = vmatpush1.bf16.msra.mxu0 %v701
  %1007 = vmatprep.subr.bf16.mxu0 %v667
  %1008 = vmatpush1.bf16.msra.mxu0 %v666
  %1009 = vmatprep.subr.bf16.mxu0 %v632
  %1010 = vmatpush1.bf16.msra.mxu0 %v631
  %1011 = vmatprep.subr.bf16.mxu0 %v597
  %1012 = vmatpush1.bf16.msra.mxu0 %v596
  %1013 = vmatprep.subr.bf16.mxu0 0
  %1014 = vmatpush2.bf16.msra.mxu0 0
  %1015 = vmatprep.subr.bf16.mxu0 0
  %1016 = vmatpush2.bf16.msra.mxu0 0
  %1017 = vmatprep.subr.bf16.mxu0 0
  %1018 = vmatpush2.bf16.msra.mxu0 0
  %1019 = vmatprep.subr.bf16.mxu0 0
  %1020 = vmatpush2.bf16.msra.mxu0 0
  %1021 = vmatprep.subr.bf16.mxu0 0
  %1022 = vmatpush2.bf16.msra.mxu0 0
  %1023 = vmatprep.subr.bf16.mxu0 0
  %1024 = vmatpush2.bf16.msra.mxu0 0
  %1025 = vmatprep.subr.bf16.mxu0 0
  %1026 = vmatpush2.bf16.msra.mxu0 0
  %1027 = vmatprep.subr.bf16.mxu0 0
  %1028 = vmatpush2.bf16.msra.mxu0 0
  %1029 = vmatprep.mubr.bf16.mxu0 0
  %1030 = vmatmul.mubr.bf16.gmra.mxu0 %v872
  %v1031 = vpop.f32.mrf.mxu0
  %v1032 = vadd.f32 %v164, %v1031
  %v1033 = vpop.f32.mrf.mxu0
  %v1034 = vadd.f32 %v164, %v1033
  %v1035 = vpop.f32.mrf.mxu0
  %v1036 = vpop.f32.mrf.mxu0
  %1037 = vdwg.mxu0
  %1038 = vmatprep.subr.bf16.mxu0 0
  %1039 = vmatpush1.bf16.msra.mxu0 0
  %1040 = vmatprep.subr.bf16.mxu0 0
  %1041 = vmatpush1.bf16.msra.mxu0 0
  %1042 = vmatprep.subr.bf16.mxu0 0
  %1043 = vmatpush1.bf16.msra.mxu0 0
  %1044 = vmatprep.subr.bf16.mxu0 0
  %1045 = vmatpush1.bf16.msra.mxu0 0
  %1046 = vmatprep.subr.bf16.mxu0 %v704
  %1047 = vmatpush1.bf16.msra.mxu0 %v703
  %1048 = vmatprep.subr.bf16.mxu0 %v669
  %1049 = vmatpush1.bf16.msra.mxu0 %v668
  %1050 = vmatprep.subr.bf16.mxu0 %v634
  %1051 = vmatpush1.bf16.msra.mxu0 %v633
  %1052 = vmatprep.subr.bf16.mxu0 %v599
  %1053 = vmatpush1.bf16.msra.mxu0 %v598
  %1054 = vmatprep.subr.bf16.mxu0 0
  %1055 = vmatpush2.bf16.msra.mxu0 0
  %1056 = vmatprep.subr.bf16.mxu0 0
  %1057 = vmatpush2.bf16.msra.mxu0 0
  %1058 = vmatprep.subr.bf16.mxu0 0
  %1059 = vmatpush2.bf16.msra.mxu0 0
  %1060 = vmatprep.subr.bf16.mxu0 0
  %1061 = vmatpush2.bf16.msra.mxu0 0
  %1062 = vmatprep.subr.bf16.mxu0 0
  %1063 = vmatpush2.bf16.msra.mxu0 0
  %1064 = vmatprep.subr.bf16.mxu0 0
  %1065 = vmatpush2.bf16.msra.mxu0 0
  %1066 = vmatprep.subr.bf16.mxu0 0
  %1067 = vmatpush2.bf16.msra.mxu0 0
  %1068 = vmatprep.subr.bf16.mxu0 0
  %1069 = vmatpush2.bf16.msra.mxu0 0
  %1070 = vmatprep.mubr.bf16.mxu0 0
  %1071 = vmatmul.mubr.bf16.gmra.mxu0 %v872
  %v1072 = vpop.f32.mrf.mxu0
  %v1073 = vadd.f32 %v164, %v1072
  %v1074 = vpop.f32.mrf.mxu0
  %v1075 = vadd.f32 %v164, %v1074
  %v1076 = vpop.f32.mrf.mxu0
  %v1077 = vpop.f32.mrf.mxu0
  %1078 = vdwg.mxu0
  %1079 = vmatprep.subr.bf16.mxu0 0
  %1080 = vmatpush1.bf16.msra.mxu0 0
  %1081 = vmatprep.subr.bf16.mxu0 0
  %1082 = vmatpush1.bf16.msra.mxu0 0
  %1083 = vmatprep.subr.bf16.mxu0 0
  %1084 = vmatpush1.bf16.msra.mxu0 0
  %1085 = vmatprep.subr.bf16.mxu0 0
  %1086 = vmatpush1.bf16.msra.mxu0 0
  %1087 = vmatprep.subr.bf16.mxu0 %v706
  %1088 = vmatpush1.bf16.msra.mxu0 %v705
  %1089 = vmatprep.subr.bf16.mxu0 %v671
  %1090 = vmatpush1.bf16.msra.mxu0 %v670
  %1091 = vmatprep.subr.bf16.mxu0 %v636
  %1092 = vmatpush1.bf16.msra.mxu0 %v635
  %1093 = vmatprep.subr.bf16.mxu0 %v601
  %1094 = vmatpush1.bf16.msra.mxu0 %v600
  %1095 = vmatprep.subr.bf16.mxu0 0
  %1096 = vmatpush2.bf16.msra.mxu0 0
  %1097 = vmatprep.subr.bf16.mxu0 0
  %1098 = vmatpush2.bf16.msra.mxu0 0
  %1099 = vmatprep.subr.bf16.mxu0 0
  %1100 = vmatpush2.bf16.msra.mxu0 0
  %1101 = vmatprep.subr.bf16.mxu0 0
  %1102 = vmatpush2.bf16.msra.mxu0 0
  %1103 = vmatprep.subr.bf16.mxu0 0
  %1104 = vmatpush2.bf16.msra.mxu0 0
  %1105 = vmatprep.subr.bf16.mxu0 0
  %1106 = vmatpush2.bf16.msra.mxu0 0
  %1107 = vmatprep.subr.bf16.mxu0 0
  %1108 = vmatpush2.bf16.msra.mxu0 0
  %1109 = vmatprep.subr.bf16.mxu0 0
  %1110 = vmatpush2.bf16.msra.mxu0 0
  %1111 = vmatprep.mubr.bf16.mxu0 0
  %1112 = vmatmul.mubr.bf16.gmra.mxu0 %v872
  %v1113 = vpop.f32.mrf.mxu0
  %v1114 = vadd.f32 %v164, %v1113
  %v1115 = vpop.f32.mrf.mxu0
  %v1116 = vadd.f32 %v164, %v1115
  %v1117 = vpop.f32.mrf.mxu0
  %v1118 = vpop.f32.mrf.mxu0
  %1119 = vdwg.mxu0
  %1120 = vmatprep.subr.bf16.mxu0 0
  %1121 = vmatpush1.bf16.msra.mxu0 0
  %1122 = vmatprep.subr.bf16.mxu0 0
  %1123 = vmatpush1.bf16.msra.mxu0 0
  %1124 = vmatprep.subr.bf16.mxu0 0
  %1125 = vmatpush1.bf16.msra.mxu0 0
  %1126 = vmatprep.subr.bf16.mxu0 0
  %1127 = vmatpush1.bf16.msra.mxu0 0
  %1128 = vmatprep.subr.bf16.mxu0 %v708
  %1129 = vmatpush1.bf16.msra.mxu0 %v707
  %1130 = vmatprep.subr.bf16.mxu0 %v673
  %1131 = vmatpush1.bf16.msra.mxu0 %v672
  %1132 = vmatprep.subr.bf16.mxu0 %v638
  %1133 = vmatpush1.bf16.msra.mxu0 %v637
  %1134 = vmatprep.subr.bf16.mxu0 %v603
  %1135 = vmatpush1.bf16.msra.mxu0 %v602
  %1136 = vmatprep.subr.bf16.mxu0 0
  %1137 = vmatpush2.bf16.msra.mxu0 0
  %1138 = vmatprep.subr.bf16.mxu0 0
  %1139 = vmatpush2.bf16.msra.mxu0 0
  %1140 = vmatprep.subr.bf16.mxu0 0
  %1141 = vmatpush2.bf16.msra.mxu0 0
  %1142 = vmatprep.subr.bf16.mxu0 0
  %1143 = vmatpush2.bf16.msra.mxu0 0
  %1144 = vmatprep.subr.bf16.mxu0 0
  %1145 = vmatpush2.bf16.msra.mxu0 0
  %1146 = vmatprep.subr.bf16.mxu0 0
  %1147 = vmatpush2.bf16.msra.mxu0 0
  %1148 = vmatprep.subr.bf16.mxu0 0
  %1149 = vmatpush2.bf16.msra.mxu0 0
  %1150 = vmatprep.subr.bf16.mxu0 0
  %1151 = vmatpush2.bf16.msra.mxu0 0
  %1152 = vmatprep.mubr.bf16.mxu0 0
  %1153 = vmatmul.mubr.bf16.gmra.mxu0 %v872
  %v1154 = vpop.f32.mrf.mxu0
  %v1155 = vadd.f32 %v164, %v1154
  %v1156 = vpop.f32.mrf.mxu0
  %v1157 = vadd.f32 %v164, %v1156
  %v1158 = vpop.f32.mrf.mxu0
  %v1159 = vpop.f32.mrf.mxu0
  %1160 = vdwg.mxu0
  %1161 = vmatprep.subr.bf16.mxu0 0
  %1162 = vmatpush1.bf16.msra.mxu0 0
  %1163 = vmatprep.subr.bf16.mxu0 0
  %1164 = vmatpush1.bf16.msra.mxu0 0
  %1165 = vmatprep.subr.bf16.mxu0 0
  %1166 = vmatpush1.bf16.msra.mxu0 0
  %1167 = vmatprep.subr.bf16.mxu0 0
  %1168 = vmatpush1.bf16.msra.mxu0 0
  %1169 = vmatprep.subr.bf16.mxu0 %v710
  %1170 = vmatpush1.bf16.msra.mxu0 %v709
  %1171 = vmatprep.subr.bf16.mxu0 %v675
  %1172 = vmatpush1.bf16.msra.mxu0 %v674
  %1173 = vmatprep.subr.bf16.mxu0 %v640
  %1174 = vmatpush1.bf16.msra.mxu0 %v639
  %1175 = vmatprep.subr.bf16.mxu0 %v605
  %1176 = vmatpush1.bf16.msra.mxu0 %v604
  %1177 = vmatprep.subr.bf16.mxu0 0
  %1178 = vmatpush2.bf16.msra.mxu0 0
  %1179 = vmatprep.subr.bf16.mxu0 0
  %1180 = vmatpush2.bf16.msra.mxu0 0
  %1181 = vmatprep.subr.bf16.mxu0 0
  %1182 = vmatpush2.bf16.msra.mxu0 0
  %1183 = vmatprep.subr.bf16.mxu0 0
  %1184 = vmatpush2.bf16.msra.mxu0 0
  %1185 = vmatprep.subr.bf16.mxu0 0
  %1186 = vmatpush2.bf16.msra.mxu0 0
  %1187 = vmatprep.subr.bf16.mxu0 0
  %1188 = vmatpush2.bf16.msra.mxu0 0
  %1189 = vmatprep.subr.bf16.mxu0 0
  %1190 = vmatpush2.bf16.msra.mxu0 0
  %1191 = vmatprep.subr.bf16.mxu0 0
  %1192 = vmatpush2.bf16.msra.mxu0 0
  %1193 = vmatprep.mubr.bf16.mxu0 0
  %1194 = vmatmul.mubr.bf16.gmra.mxu0 %v872
  %v1195 = vpop.f32.mrf.mxu0
  %v1196 = vadd.f32 %v164, %v1195
  %v1197 = vpop.f32.mrf.mxu0
  %v1198 = vadd.f32 %v164, %v1197
  %v1199 = vpop.f32.mrf.mxu0
  %v1200 = vpop.f32.mrf.mxu0
  %1201 = vdwg.mxu0
  %1202 = vmatprep.subr.bf16.mxu0 0
  %1203 = vmatpush1.bf16.msra.mxu0 0
  %1204 = vmatprep.subr.bf16.mxu0 0
  %1205 = vmatpush1.bf16.msra.mxu0 0
  %1206 = vmatprep.subr.bf16.mxu0 0
  %1207 = vmatpush1.bf16.msra.mxu0 0
  %1208 = vmatprep.subr.bf16.mxu0 0
  %1209 = vmatpush1.bf16.msra.mxu0 0
  %1210 = vmatprep.subr.bf16.mxu0 %v712
  %1211 = vmatpush1.bf16.msra.mxu0 %v711
  %1212 = vmatprep.subr.bf16.mxu0 %v677
  %1213 = vmatpush1.bf16.msra.mxu0 %v676
  %1214 = vmatprep.subr.bf16.mxu0 %v642
  %1215 = vmatpush1.bf16.msra.mxu0 %v641
  %1216 = vmatprep.subr.bf16.mxu0 %v607
  %1217 = vmatpush1.bf16.msra.mxu0 %v606
  %1218 = vmatprep.subr.bf16.mxu0 0
  %1219 = vmatpush2.bf16.msra.mxu0 0
  %1220 = vmatprep.subr.bf16.mxu0 0
  %1221 = vmatpush2.bf16.msra.mxu0 0
  %1222 = vmatprep.subr.bf16.mxu0 0
  %1223 = vmatpush2.bf16.msra.mxu0 0
  %1224 = vmatprep.subr.bf16.mxu0 0
  %1225 = vmatpush2.bf16.msra.mxu0 0
  %1226 = vmatprep.subr.bf16.mxu0 0
  %1227 = vmatpush2.bf16.msra.mxu0 0
  %1228 = vmatprep.subr.bf16.mxu0 0
  %1229 = vmatpush2.bf16.msra.mxu0 0
  %1230 = vmatprep.subr.bf16.mxu0 0
  %1231 = vmatpush2.bf16.msra.mxu0 0
  %1232 = vmatprep.subr.bf16.mxu0 0
  %1233 = vmatpush2.bf16.msra.mxu0 0
  %1234 = vmatprep.mubr.bf16.mxu0 0
  %1235 = vmatmul.mubr.bf16.gmra.mxu0 %v872
  %v1236 = vpop.f32.mrf.mxu0
  %v1237 = vadd.f32 %v164, %v1236
  %v1238 = vpop.f32.mrf.mxu0
  %v1239 = vadd.f32 %v164, %v1238
  %v1240 = vpop.f32.mrf.mxu0
  %v1241 = vpop.f32.mrf.mxu0
  %1242 = vdwg.mxu0
  %1243 = vmatprep.subr.bf16.mxu0 0
  %1244 = vmatpush1.bf16.msra.mxu0 0
  %1245 = vmatprep.subr.bf16.mxu0 0
  %1246 = vmatpush1.bf16.msra.mxu0 0
  %1247 = vmatprep.subr.bf16.mxu0 0
  %1248 = vmatpush1.bf16.msra.mxu0 0
  %1249 = vmatprep.subr.bf16.mxu0 0
  %1250 = vmatpush1.bf16.msra.mxu0 0
  %1251 = vmatprep.subr.bf16.mxu0 %v714
  %1252 = vmatpush1.bf16.msra.mxu0 %v713
  %1253 = vmatprep.subr.bf16.mxu0 %v679
  %1254 = vmatpush1.bf16.msra.mxu0 %v678
  %1255 = vmatprep.subr.bf16.mxu0 %v644
  %1256 = vmatpush1.bf16.msra.mxu0 %v643
  %1257 = vmatprep.subr.bf16.mxu0 %v609
  %1258 = vmatpush1.bf16.msra.mxu0 %v608
  %1259 = vmatprep.subr.bf16.mxu0 0
  %1260 = vmatpush2.bf16.msra.mxu0 0
  %1261 = vmatprep.subr.bf16.mxu0 0
  %1262 = vmatpush2.bf16.msra.mxu0 0
  %1263 = vmatprep.subr.bf16.mxu0 0
  %1264 = vmatpush2.bf16.msra.mxu0 0
  %1265 = vmatprep.subr.bf16.mxu0 0
  %1266 = vmatpush2.bf16.msra.mxu0 0
  %1267 = vmatprep.subr.bf16.mxu0 0
  %1268 = vmatpush2.bf16.msra.mxu0 0
  %1269 = vmatprep.subr.bf16.mxu0 0
  %1270 = vmatpush2.bf16.msra.mxu0 0
  %1271 = vmatprep.subr.bf16.mxu0 0
  %1272 = vmatpush2.bf16.msra.mxu0 0
  %1273 = vmatprep.subr.bf16.mxu0 0
  %1274 = vmatpush2.bf16.msra.mxu0 0
  %1275 = vmatprep.mubr.bf16.mxu0 0
  %1276 = vmatmul.mubr.bf16.gmra.mxu0 %v872
  %v1277 = vpop.f32.mrf.mxu0
  %v1278 = vadd.f32 %v164, %v1277
  %v1279 = vpop.f32.mrf.mxu0
  %v1280 = vadd.f32 %v164, %v1279
  %v1281 = vpop.f32.mrf.mxu0
  %v1282 = vpop.f32.mrf.mxu0
  %1283 = vdwg.mxu0
  %1284 = vmatprep.subr.bf16.mxu0 0
  %1285 = vmatpush1.bf16.msra.mxu0 0
  %1286 = vmatprep.subr.bf16.mxu0 0
  %1287 = vmatpush1.bf16.msra.mxu0 0
  %1288 = vmatprep.subr.bf16.mxu0 0
  %1289 = vmatpush1.bf16.msra.mxu0 0
  %1290 = vmatprep.subr.bf16.mxu0 0
  %1291 = vmatpush1.bf16.msra.mxu0 0
  %1292 = vmatprep.subr.bf16.mxu0 %v716
  %1293 = vmatpush1.bf16.msra.mxu0 %v715
  %1294 = vmatprep.subr.bf16.mxu0 %v681
  %1295 = vmatpush1.bf16.msra.mxu0 %v680
  %1296 = vmatprep.subr.bf16.mxu0 %v646
  %1297 = vmatpush1.bf16.msra.mxu0 %v645
  %1298 = vmatprep.subr.bf16.mxu0 %v611
  %1299 = vmatpush1.bf16.msra.mxu0 %v610
  %1300 = vmatprep.subr.bf16.mxu0 0
  %1301 = vmatpush2.bf16.msra.mxu0 0
  %1302 = vmatprep.subr.bf16.mxu0 0
  %1303 = vmatpush2.bf16.msra.mxu0 0
  %1304 = vmatprep.subr.bf16.mxu0 0
  %1305 = vmatpush2.bf16.msra.mxu0 0
  %1306 = vmatprep.subr.bf16.mxu0 0
  %1307 = vmatpush2.bf16.msra.mxu0 0
  %1308 = vmatprep.subr.bf16.mxu0 0
  %1309 = vmatpush2.bf16.msra.mxu0 0
  %1310 = vmatprep.subr.bf16.mxu0 0
  %1311 = vmatpush2.bf16.msra.mxu0 0
  %1312 = vmatprep.subr.bf16.mxu0 0
  %1313 = vmatpush2.bf16.msra.mxu0 0
  %1314 = vmatprep.subr.bf16.mxu0 0
  %1315 = vmatpush2.bf16.msra.mxu0 0
  %1316 = vmatprep.mubr.bf16.mxu0 0
  %1317 = vmatmul.mubr.bf16.gmra.mxu0 %v872
  %v1318 = vpop.f32.mrf.mxu0
  %v1319 = vadd.f32 %v164, %v1318
  %v1320 = vpop.f32.mrf.mxu0
  %v1321 = vadd.f32 %v164, %v1320
  %v1322 = vpop.f32.mrf.mxu0
  %v1323 = vpop.f32.mrf.mxu0
  %1324 = vdwg.mxu0
  %1325 = vmatprep.subr.bf16.mxu0 0
  %1326 = vmatpush1.bf16.msra.mxu0 0
  %1327 = vmatprep.subr.bf16.mxu0 0
  %1328 = vmatpush1.bf16.msra.mxu0 0
  %1329 = vmatprep.subr.bf16.mxu0 0
  %1330 = vmatpush1.bf16.msra.mxu0 0
  %1331 = vmatprep.subr.bf16.mxu0 0
  %1332 = vmatpush1.bf16.msra.mxu0 0
  %1333 = vmatprep.subr.bf16.mxu0 %v718
  %1334 = vmatpush1.bf16.msra.mxu0 %v717
  %1335 = vmatprep.subr.bf16.mxu0 %v683
  %1336 = vmatpush1.bf16.msra.mxu0 %v682
  %1337 = vmatprep.subr.bf16.mxu0 %v648
  %1338 = vmatpush1.bf16.msra.mxu0 %v647
  %1339 = vmatprep.subr.bf16.mxu0 %v613
  %1340 = vmatpush1.bf16.msra.mxu0 %v612
  %1341 = vmatprep.subr.bf16.mxu0 0
  %1342 = vmatpush2.bf16.msra.mxu0 0
  %1343 = vmatprep.subr.bf16.mxu0 0
  %1344 = vmatpush2.bf16.msra.mxu0 0
  %1345 = vmatprep.subr.bf16.mxu0 0
  %1346 = vmatpush2.bf16.msra.mxu0 0
  %1347 = vmatprep.subr.bf16.mxu0 0
  %1348 = vmatpush2.bf16.msra.mxu0 0
  %1349 = vmatprep.subr.bf16.mxu0 0
  %1350 = vmatpush2.bf16.msra.mxu0 0
  %1351 = vmatprep.subr.bf16.mxu0 0
  %1352 = vmatpush2.bf16.msra.mxu0 0
  %1353 = vmatprep.subr.bf16.mxu0 0
  %1354 = vmatpush2.bf16.msra.mxu0 0
  %1355 = vmatprep.subr.bf16.mxu0 0
  %1356 = vmatpush2.bf16.msra.mxu0 0
  %1357 = vmatprep.mubr.bf16.mxu0 0
  %1358 = vmatmul.mubr.bf16.gmra.mxu0 %v872
  %v1359 = vpop.f32.mrf.mxu0
  %v1360 = vadd.f32 %v164, %v1359
  %v1361 = vpop.f32.mrf.mxu0
  %v1362 = vadd.f32 %v164, %v1361
  %v1363 = vpop.f32.mrf.mxu0
  %v1364 = vpop.f32.mrf.mxu0
  %1365 = vdwg.mxu0
  %1366 = vmatprep.subr.bf16.mxu0 0
  %1367 = vmatpush1.bf16.msra.mxu0 0
  %1368 = vmatprep.subr.bf16.mxu0 0
  %1369 = vmatpush1.bf16.msra.mxu0 0
  %1370 = vmatprep.subr.bf16.mxu0 0
  %1371 = vmatpush1.bf16.msra.mxu0 0
  %1372 = vmatprep.subr.bf16.mxu0 0
  %1373 = vmatpush1.bf16.msra.mxu0 0
  %1374 = vmatprep.subr.bf16.mxu0 %v720
  %1375 = vmatpush1.bf16.msra.mxu0 %v719
  %1376 = vmatprep.subr.bf16.mxu0 %v685
  %1377 = vmatpush1.bf16.msra.mxu0 %v684
  %1378 = vmatprep.subr.bf16.mxu0 %v650
  %1379 = vmatpush1.bf16.msra.mxu0 %v649
  %1380 = vmatprep.subr.bf16.mxu0 %v615
  %1381 = vmatpush1.bf16.msra.mxu0 %v614
  %1382 = vmatprep.subr.bf16.mxu0 0
  %1383 = vmatpush2.bf16.msra.mxu0 0
  %1384 = vmatprep.subr.bf16.mxu0 0
  %1385 = vmatpush2.bf16.msra.mxu0 0
  %1386 = vmatprep.subr.bf16.mxu0 0
  %1387 = vmatpush2.bf16.msra.mxu0 0
  %1388 = vmatprep.subr.bf16.mxu0 0
  %1389 = vmatpush2.bf16.msra.mxu0 0
  %1390 = vmatprep.subr.bf16.mxu0 0
  %1391 = vmatpush2.bf16.msra.mxu0 0
  %1392 = vmatprep.subr.bf16.mxu0 0
  %1393 = vmatpush2.bf16.msra.mxu0 0
  %1394 = vmatprep.subr.bf16.mxu0 0
  %1395 = vmatpush2.bf16.msra.mxu0 0
  %1396 = vmatprep.subr.bf16.mxu0 0
  %1397 = vmatpush2.bf16.msra.mxu0 0
  %1398 = vmatprep.mubr.bf16.mxu0 0
  %1399 = vmatmul.mubr.bf16.gmra.mxu0 %v872
  %v1400 = vpop.f32.mrf.mxu0
  %v1401 = vadd.f32 %v164, %v1400
  %v1402 = vpop.f32.mrf.mxu0
  %v1403 = vadd.f32 %v164, %v1402
  %v1404 = vpop.f32.mrf.mxu0
  %v1405 = vpop.f32.mrf.mxu0
  %1406 = vdwg.mxu0
  %1407 = vmatprep.subr.bf16.mxu0 0
  %1408 = vmatpush1.bf16.msra.mxu0 0
  %1409 = vmatprep.subr.bf16.mxu0 0
  %1410 = vmatpush1.bf16.msra.mxu0 0
  %1411 = vmatprep.subr.bf16.mxu0 0
  %1412 = vmatpush1.bf16.msra.mxu0 0
  %1413 = vmatprep.subr.bf16.mxu0 0
  %1414 = vmatpush1.bf16.msra.mxu0 0
  %1415 = vmatprep.subr.bf16.mxu0 %v722
  %1416 = vmatpush1.bf16.msra.mxu0 %v721
  %1417 = vmatprep.subr.bf16.mxu0 %v687
  %1418 = vmatpush1.bf16.msra.mxu0 %v686
  %1419 = vmatprep.subr.bf16.mxu0 %v652
  %1420 = vmatpush1.bf16.msra.mxu0 %v651
  %1421 = vmatprep.subr.bf16.mxu0 %v617
  %1422 = vmatpush1.bf16.msra.mxu0 %v616
  %1423 = vmatprep.subr.bf16.mxu0 0
  %1424 = vmatpush2.bf16.msra.mxu0 0
  %1425 = vmatprep.subr.bf16.mxu0 0
  %1426 = vmatpush2.bf16.msra.mxu0 0
  %1427 = vmatprep.subr.bf16.mxu0 0
  %1428 = vmatpush2.bf16.msra.mxu0 0
  %1429 = vmatprep.subr.bf16.mxu0 0
  %1430 = vmatpush2.bf16.msra.mxu0 0
  %1431 = vmatprep.subr.bf16.mxu0 0
  %1432 = vmatpush2.bf16.msra.mxu0 0
  %1433 = vmatprep.subr.bf16.mxu0 0
  %1434 = vmatpush2.bf16.msra.mxu0 0
  %1435 = vmatprep.subr.bf16.mxu0 0
  %1436 = vmatpush2.bf16.msra.mxu0 0
  %1437 = vmatprep.subr.bf16.mxu0 0
  %1438 = vmatpush2.bf16.msra.mxu0 0
  %1439 = vmatprep.mubr.bf16.mxu0 0
  %1440 = vmatmul.mubr.bf16.gmra.mxu0 %v872
  %v1441 = vpop.f32.mrf.mxu0
  %v1442 = vadd.f32 %v164, %v1441
  %v1443 = vpop.f32.mrf.mxu0
  %v1444 = vadd.f32 %v164, %v1443
  %v1445 = vpop.f32.mrf.mxu0
  %v1446 = vpop.f32.mrf.mxu0
  %1447 = vdwg.mxu0
  %1448 = vmatprep.subr.bf16.mxu0 0
  %1449 = vmatpush1.bf16.msra.mxu0 0
  %1450 = vmatprep.subr.bf16.mxu0 0
  %1451 = vmatpush1.bf16.msra.mxu0 0
  %1452 = vmatprep.subr.bf16.mxu0 0
  %1453 = vmatpush1.bf16.msra.mxu0 0
  %1454 = vmatprep.subr.bf16.mxu0 0
  %1455 = vmatpush1.bf16.msra.mxu0 0
  %1456 = vmatprep.subr.bf16.mxu0 %v724
  %1457 = vmatpush1.bf16.msra.mxu0 %v723
  %1458 = vmatprep.subr.bf16.mxu0 %v689
  %1459 = vmatpush1.bf16.msra.mxu0 %v688
  %1460 = vmatprep.subr.bf16.mxu0 %v654
  %1461 = vmatpush1.bf16.msra.mxu0 %v653
  %1462 = vmatprep.subr.bf16.mxu0 %v619
  %1463 = vmatpush1.bf16.msra.mxu0 %v618
  %1464 = vmatprep.subr.bf16.mxu0 0
  %1465 = vmatpush2.bf16.msra.mxu0 0
  %1466 = vmatprep.subr.bf16.mxu0 0
  %1467 = vmatpush2.bf16.msra.mxu0 0
  %1468 = vmatprep.subr.bf16.mxu0 0
  %1469 = vmatpush2.bf16.msra.mxu0 0
  %1470 = vmatprep.subr.bf16.mxu0 0
  %1471 = vmatpush2.bf16.msra.mxu0 0
  %1472 = vmatprep.subr.bf16.mxu0 0
  %1473 = vmatpush2.bf16.msra.mxu0 0
  %1474 = vmatprep.subr.bf16.mxu0 0
  %1475 = vmatpush2.bf16.msra.mxu0 0
  %1476 = vmatprep.subr.bf16.mxu0 0
  %1477 = vmatpush2.bf16.msra.mxu0 0
  %1478 = vmatprep.subr.bf16.mxu0 0
  %1479 = vmatpush2.bf16.msra.mxu0 0
  %1480 = vmatprep.mubr.bf16.mxu0 0
  %1481 = vmatmul.mubr.bf16.gmra.mxu0 %v872
  %v1482 = vpop.f32.mrf.mxu0
  %v1483 = vadd.f32 %v164, %v1482
  %v1484 = vpop.f32.mrf.mxu0
  %v1485 = vadd.f32 %v164, %v1484
  %v1486 = vpop.f32.mrf.mxu0
  %v1487 = vpop.f32.mrf.mxu0
  %1488 = vdwg.mxu0
  %1489 = vmatprep.subr.bf16.mxu0 0
  %1490 = vmatpush1.bf16.msra.mxu0 0
  %1491 = vmatprep.subr.bf16.mxu0 0
  %1492 = vmatpush1.bf16.msra.mxu0 0
  %1493 = vmatprep.subr.bf16.mxu0 0
  %1494 = vmatpush1.bf16.msra.mxu0 0
  %1495 = vmatprep.subr.bf16.mxu0 0
  %1496 = vmatpush1.bf16.msra.mxu0 0
  %1497 = vmatprep.subr.bf16.mxu0 %v726
  %1498 = vmatpush1.bf16.msra.mxu0 %v725
  %1499 = vmatprep.subr.bf16.mxu0 %v691
  %1500 = vmatpush1.bf16.msra.mxu0 %v690
  %1501 = vmatprep.subr.bf16.mxu0 %v656
  %1502 = vmatpush1.bf16.msra.mxu0 %v655
  %1503 = vmatprep.subr.bf16.mxu0 %v621
  %1504 = vmatpush1.bf16.msra.mxu0 %v620
  %1505 = vmatprep.subr.bf16.mxu0 0
  %1506 = vmatpush2.bf16.msra.mxu0 0
  %1507 = vmatprep.subr.bf16.mxu0 0
  %1508 = vmatpush2.bf16.msra.mxu0 0
  %1509 = vmatprep.subr.bf16.mxu0 0
  %1510 = vmatpush2.bf16.msra.mxu0 0
  %1511 = vmatprep.subr.bf16.mxu0 0
  %1512 = vmatpush2.bf16.msra.mxu0 0
  %1513 = vmatprep.subr.bf16.mxu0 0
  %1514 = vmatpush2.bf16.msra.mxu0 0
  %1515 = vmatprep.subr.bf16.mxu0 0
  %1516 = vmatpush2.bf16.msra.mxu0 0
  %1517 = vmatprep.subr.bf16.mxu0 0
  %1518 = vmatpush2.bf16.msra.mxu0 0
  %1519 = vmatprep.subr.bf16.mxu0 0
  %1520 = vmatpush2.bf16.msra.mxu0 0
  %1521 = vmatprep.mubr.bf16.mxu0 0
  %1522 = vmatmul.mubr.bf16.gmra.mxu0 %v872
  %v1523 = vpop.f32.mrf.mxu0
  %v1524 = vadd.f32 %v164, %v1523
  %v1525 = vpop.f32.mrf.mxu0
  %v1526 = vadd.f32 %v164, %v1525
  %v1527 = vpop.f32.mrf.mxu0
  %v1528 = vpop.f32.mrf.mxu0
  %1529 = vdwg.mxu0
  %1530 = vmatprep.subr.bf16.mxu0 0
  %1531 = vmatpush1.bf16.msra.mxu0 0
  %1532 = vmatprep.subr.bf16.mxu0 0
  %1533 = vmatpush1.bf16.msra.mxu0 0
  %1534 = vmatprep.subr.bf16.mxu0 0
  %1535 = vmatpush1.bf16.msra.mxu0 0
  %1536 = vmatprep.subr.bf16.mxu0 0
  %1537 = vmatpush1.bf16.msra.mxu0 0
  %1538 = vmatprep.subr.bf16.mxu0 %v728
  %1539 = vmatpush1.bf16.msra.mxu0 %v727
  %1540 = vmatprep.subr.bf16.mxu0 %v693
  %1541 = vmatpush1.bf16.msra.mxu0 %v692
  %1542 = vmatprep.subr.bf16.mxu0 %v658
  %1543 = vmatpush1.bf16.msra.mxu0 %v657
  %1544 = vmatprep.subr.bf16.mxu0 %v623
  %1545 = vmatpush1.bf16.msra.mxu0 %v622
  %1546 = vmatprep.subr.bf16.mxu0 0
  %1547 = vmatpush2.bf16.msra.mxu0 0
  %1548 = vmatprep.subr.bf16.mxu0 0
  %1549 = vmatpush2.bf16.msra.mxu0 0
  %1550 = vmatprep.subr.bf16.mxu0 0
  %1551 = vmatpush2.bf16.msra.mxu0 0
  %1552 = vmatprep.subr.bf16.mxu0 0
  %1553 = vmatpush2.bf16.msra.mxu0 0
  %1554 = vmatprep.subr.bf16.mxu0 0
  %1555 = vmatpush2.bf16.msra.mxu0 0
  %1556 = vmatprep.subr.bf16.mxu0 0
  %1557 = vmatpush2.bf16.msra.mxu0 0
  %1558 = vmatprep.subr.bf16.mxu0 0
  %1559 = vmatpush2.bf16.msra.mxu0 0
  %1560 = vmatprep.subr.bf16.mxu0 0
  %1561 = vmatpush2.bf16.msra.mxu0 0
  %1562 = vmatprep.mubr.bf16.mxu0 0
  %1563 = vmatmul.mubr.bf16.gmra.mxu0 %v872
  %v1564 = vpop.f32.mrf.mxu0
  %v1565 = vadd.f32 %v164, %v1564
  %v1566 = vpop.f32.mrf.mxu0
  %v1567 = vadd.f32 %v164, %v1566
  %v1568 = vpop.f32.mrf.mxu0
  %v1569 = vpop.f32.mrf.mxu0
  %1570 = vdwg.mxu0
  %1571 = vmatprep.subr.bf16.mxu0 0
  %1572 = vmatpush1.bf16.msra.mxu0 0
  %1573 = vmatprep.subr.bf16.mxu0 0
  %1574 = vmatpush1.bf16.msra.mxu0 0
  %1575 = vmatprep.subr.bf16.mxu0 0
  %1576 = vmatpush1.bf16.msra.mxu0 0
  %1577 = vmatprep.subr.bf16.mxu0 0
  %1578 = vmatpush1.bf16.msra.mxu0 0
  %1579 = vmatprep.subr.bf16.mxu0 0
  %1580 = vmatpush1.bf16.msra.mxu0 %v729
  %1581 = vmatprep.subr.bf16.mxu0 0
  %1582 = vmatpush1.bf16.msra.mxu0 %v694
  %1583 = vmatprep.subr.bf16.mxu0 0
  %1584 = vmatpush1.bf16.msra.mxu0 %v659
  %1585 = vmatprep.subr.bf16.mxu0 0
  %1586 = vmatpush1.bf16.msra.mxu0 %v624
  %1587 = vmatprep.subr.bf16.mxu0 0
  %1588 = vmatpush2.bf16.msra.mxu0 0
  %1589 = vmatprep.subr.bf16.mxu0 0
  %1590 = vmatpush2.bf16.msra.mxu0 0
  %1591 = vmatprep.subr.bf16.mxu0 0
  %1592 = vmatpush2.bf16.msra.mxu0 0
  %1593 = vmatprep.subr.bf16.mxu0 0
  %1594 = vmatpush2.bf16.msra.mxu0 0
  %1595 = vmatprep.subr.bf16.mxu0 0
  %1596 = vmatpush2.bf16.msra.mxu0 0
  %1597 = vmatprep.subr.bf16.mxu0 0
  %1598 = vmatpush2.bf16.msra.mxu0 0
  %1599 = vmatprep.subr.bf16.mxu0 0
  %1600 = vmatpush2.bf16.msra.mxu0 0
  %1601 = vmatprep.subr.bf16.mxu0 0
  %1602 = vmatpush2.bf16.msra.mxu0 0
  %1603 = vmatprep.mubr.bf16.mxu0 0
  %1604 = vmatmul.mubr.bf16.gmra.mxu0 %v872
  %v1605 = vpop.f32.mrf.mxu0
  %v1606 = vadd.f32 %v164, %v1605
  %v1607 = vpop.f32.mrf.mxu0
  %v1608 = vpop.f32.mrf.mxu0
  %v1609 = vpop.f32.mrf.mxu0
  %1610 = vdwg.mxu0
  %v1611 = vmax.f32 %v909, 0.0
  %v1612 = vmax.f32 %v911, 0.0
  %v1613 = vmax.f32 %v950, 0.0
  %v1614 = vmax.f32 %v952, 0.0
  %v1615 = vmax.f32 %v991, 0.0
  %v1616 = vmax.f32 %v993, 0.0
  %v1617 = vmax.f32 %v1032, 0.0
  %v1618 = vmax.f32 %v1034, 0.0
  %v1619 = vmax.f32 %v1073, 0.0
  %v1620 = vmax.f32 %v1075, 0.0
  %v1621 = vmax.f32 %v1114, 0.0
  %v1622 = vmax.f32 %v1116, 0.0
  %v1623 = vmax.f32 %v1155, 0.0
  %v1624 = vmax.f32 %v1157, 0.0
  %v1625 = vmax.f32 %v1196, 0.0
  %v1626 = vmax.f32 %v1198, 0.0
  %v1627 = vmax.f32 %v1237, 0.0
  %v1628 = vmax.f32 %v1239, 0.0
  %v1629 = vmax.f32 %v1278, 0.0
  %v1630 = vmax.f32 %v1280, 0.0
  %v1631 = vmax.f32 %v1319, 0.0
  %v1632 = vmax.f32 %v1321, 0.0
  %v1633 = vmax.f32 %v1360, 0.0
  %v1634 = vmax.f32 %v1362, 0.0
  %v1635 = vmax.f32 %v1401, 0.0
  %v1636 = vmax.f32 %v1403, 0.0
  %v1637 = vmax.f32 %v1442, 0.0
  %v1638 = vmax.f32 %v1444, 0.0
  %v1639 = vmax.f32 %v1483, 0.0
  %v1640 = vmax.f32 %v1485, 0.0
  %v1641 = vmax.f32 %v1524, 0.0
  %v1642 = vmax.f32 %v1526, 0.0
  %v1643 = vmax.f32 %v1565, 0.0
  %v1644 = vmax.f32 %v1567, 0.0
  %v1645 = vmax.f32 %v1606, 0.0
  %v1646 = vpack.c.bf16 %v1611, %v1611
  %v1647 = vpack.c.bf16 %v1612, %v1612
  %v1648 = vpack.c.bf16 %v1613, %v1613
  %v1649 = vpack.c.bf16 %v1614, %v1614
  %v1650 = vpack.c.bf16 %v1615, %v1615
  %v1651 = vpack.c.bf16 %v1616, %v1616
  %v1652 = vpack.c.bf16 %v1617, %v1617
  %v1653 = vpack.c.bf16 %v1618, %v1618
  %v1654 = vpack.c.bf16 %v1619, %v1619
  %v1655 = vpack.c.bf16 %v1620, %v1620
  %v1656 = vpack.c.bf16 %v1621, %v1621
  %v1657 = vpack.c.bf16 %v1622, %v1622
  %v1658 = vpack.c.bf16 %v1623, %v1623
  %v1659 = vpack.c.bf16 %v1624, %v1624
  %v1660 = vpack.c.bf16 %v1625, %v1625
  %v1661 = vpack.c.bf16 %v1626, %v1626
  %v1662 = vpack.c.bf16 %v1627, %v1627
  %v1663 = vpack.c.bf16 %v1628, %v1628
  %v1664 = vpack.c.bf16 %v1629, %v1629
  %v1665 = vpack.c.bf16 %v1630, %v1630
  %v1666 = vpack.c.bf16 %v1631, %v1631
  %v1667 = vpack.c.bf16 %v1632, %v1632
  %v1668 = vpack.c.bf16 %v1633, %v1633
  %v1669 = vpack.c.bf16 %v1634, %v1634
  %v1670 = vpack.c.bf16 %v1635, %v1635
  %v1671 = vpack.c.bf16 %v1636, %v1636
  %v1672 = vpack.c.bf16 %v1637, %v1637
  %v1673 = vpack.c.bf16 %v1638, %v1638
  %v1674 = vpack.c.bf16 %v1639, %v1639
  %v1675 = vpack.c.bf16 %v1640, %v1640
  %v1676 = vpack.c.bf16 %v1641, %v1641
  %v1677 = vpack.c.bf16 %v1642, %v1642
  %v1678 = vpack.c.bf16 %v1643, %v1643
  %v1679 = vpack.c.bf16 %v1644, %v1644
  %v1680 = vpack.c.bf16 %v1645, %v1645
  %v1716 = vunpack.c.l.b16 %v1646
  %v1717 = vunpack.c.l.b16 %v1647
  %v1718 = vunpack.c.l.b16 %v1648
  %v1719 = vunpack.c.l.b16 %v1649
  %v1720 = vunpack.c.l.b16 %v1650
  %v1721 = vunpack.c.l.b16 %v1651
  %v1722 = vunpack.c.l.b16 %v1652
  %v1723 = vunpack.c.l.b16 %v1653
  %v1724 = vunpack.c.l.b16 %v1654
  %v1725 = vunpack.c.l.b16 %v1655
  %v1726 = vunpack.c.l.b16 %v1656
  %v1727 = vunpack.c.l.b16 %v1657
  %v1728 = vunpack.c.l.b16 %v1658
  %v1729 = vunpack.c.l.b16 %v1659
  %v1730 = vunpack.c.l.b16 %v1660
  %v1731 = vunpack.c.l.b16 %v1661
  %v1732 = vunpack.c.l.b16 %v1662
  %v1733 = vunpack.c.l.b16 %v1663
  %v1734 = vunpack.c.l.b16 %v1664
  %v1735 = vunpack.c.l.b16 %v1665
  %v1736 = vunpack.c.l.b16 %v1666
  %v1737 = vunpack.c.l.b16 %v1667
  %v1738 = vunpack.c.l.b16 %v1668
  %v1739 = vunpack.c.l.b16 %v1669
  %v1740 = vunpack.c.l.b16 %v1670
  %v1741 = vunpack.c.l.b16 %v1671
  %v1742 = vunpack.c.l.b16 %v1672
  %v1743 = vunpack.c.l.b16 %v1673
  %v1744 = vunpack.c.l.b16 %v1674
  %v1745 = vunpack.c.l.b16 %v1675
  %v1746 = vunpack.c.l.b16 %v1676
  %v1747 = vunpack.c.l.b16 %v1677
  %v1748 = vunpack.c.l.b16 %v1678
  %v1749 = vunpack.c.l.b16 %v1679
  %v1750 = vunpack.c.l.b16 %v1680
  %v1751 = vpack.c.b16 %v1717, %v1716
  %v1752 = vpack.c.b16 %v1719, %v1718
  %v1753 = vpack.c.b16 %v1721, %v1720
  %v1754 = vpack.c.b16 %v1723, %v1722
  %v1755 = vpack.c.b16 %v1725, %v1724
  %v1756 = vpack.c.b16 %v1727, %v1726
  %v1757 = vpack.c.b16 %v1729, %v1728
  %v1758 = vpack.c.b16 %v1731, %v1730
  %v1759 = vpack.c.b16 %v1733, %v1732
  %v1760 = vpack.c.b16 %v1735, %v1734
  %v1761 = vpack.c.b16 %v1737, %v1736
  %v1762 = vpack.c.b16 %v1739, %v1738
  %v1763 = vpack.c.b16 %v1741, %v1740
  %v1764 = vpack.c.b16 %v1743, %v1742
  %v1765 = vpack.c.b16 %v1745, %v1744
  %v1766 = vpack.c.b16 %v1747, %v1746
  %v1767 = vpack.c.b16 %v1749, %v1748
  %v1768 = vpack.c.b16 %v1750, %v1750
  %1787 = vst [vmem:[%s3] sm:$0xff] %v1751
  %1788 = vst [vmem:[%s3 + $0x8] sm:$0xff] %v1752
  %1789 = vst [vmem:[%s3 + $0x10] sm:$0xff] %v1753
  %1790 = vst [vmem:[%s3 + $0x18] sm:$0xff] %v1754
  %1791 = vst [vmem:[%s3 + $0x20] sm:$0xff] %v1755
  %1792 = vst [vmem:[%s3 + $0x28] sm:$0xff] %v1756
  %1793 = vst [vmem:[%s3 + $0x30] sm:$0xff] %v1757
  %1794 = vst [vmem:[%s3 + $0x38] sm:$0xff] %v1758
  %1795 = vst [vmem:[%s3 + $0x40] sm:$0xff] %v1759
  %1796 = vst [vmem:[%s3 + $0x48] sm:$0xff] %v1760
  %1797 = vst [vmem:[%s3 + $0x50] sm:$0xff] %v1761
  %1798 = vst [vmem:[%s3 + $0x58] sm:$0xff] %v1762
  %1799 = vst [vmem:[%s3 + $0x60] sm:$0xff] %v1763
  %1800 = vst [vmem:[%s3 + $0x68] sm:$0xff] %v1764
  %1801 = vst [vmem:[%s3 + $0x70] sm:$0xff] %v1765
  %1802 = vst [vmem:[%s3 + $0x78] sm:$0xff] %v1766
  %1803 = vst [vmem:[%s3 + $0x80] sm:$0xff] %v1767
  %vm1804 = vcmask 535552
  %1805 = vst.msk [vmem:[%s3 + $0x88] sm:$0xf] %vm1804, %v1768
  // Predicated region
  $region14: #{net_forward.3} parent=0 // pred_check
    _
  $region15: #{net_forward.3} parent=0 // pred_check_branch
    %1807 = sbr.rel (0) target = $region17
  $region16: #{net_forward.3} parent=0 // pred_region
    _
  $region17: #{net_forward.3} parent=0 // pred_fallthru
    _
  // Predicated region
  $region18: #{net_forward.3} parent=0 // pred_check
    _
  $region19: #{net_forward.3} parent=0 // pred_check_branch
    %1809 = sbr.rel (0) target = $region21
  $region20: #{net_forward.3} parent=0 // pred_region
    _
  $region21: #{net_forward.3} parent=0 // pred_fallthru
    _

// kernel: net_forward.4
$region0: #{net_forward.4}
  #allocation0 [shape = 'u32[]', space=smem, size = 0x4, offset = 0x4, fixed_abs, tag = 'smem constant byte address 0x4 - core index']
  #allocation1 [shape = 'u32[144,128]{1,0:T(1,128)}', space=vmem, size = 0x12000, scoped, tag = 'internal scratch']
  %s0 = inlined_call_operand.vmem [shape: bf16[16,72], index: 0, kind: input, shape index: {}]
  %s1 = inlined_call_operand.vmem [shape: bf16[72,1058], index: 1, kind: input, shape index: {}]
  %s2 = inlined_call_operand.vmem [shape: f32[16,1], index: 2, kind: input, shape index: {}]
  %s3 = inlined_call_operand.vmem [shape: bf16[16,1058], index: 3, kind: output, shape index: {}]
  %s4 = sld [smem:[#allocation0]]
  $region22: #{net_forward.4} parent=0
    _
  %s6 = ssub.s32 1, %s4
  %s7 = scalar_select 0, %s6, %s4
  // Predicated region
  $region2: #{net_forward.4} parent=0 // pred_check
    _
  $region3: #{net_forward.4} parent=0 // pred_check_branch
    %9 = sbr.rel (0) target = $region5
  $region4: #{net_forward.4} parent=0 // pred_region
    _
  $region5: #{net_forward.4} parent=0 // pred_fallthru
    _
  // Predicated region
  $region6: #{net_forward.4} parent=0 // pred_check
    _
  $region7: #{net_forward.4} parent=0 // pred_check_branch
    %11 = sbr.rel (0) target = $region9
  $region8: #{net_forward.4} parent=0 // pred_region
    _
  $region9: #{net_forward.4} parent=0 // pred_fallthru
    _
  // Predicated region
  $region10: #{net_forward.4} parent=0 // pred_check
    _
  $region11: #{net_forward.4} parent=0 // pred_check_branch
    %13 = sbr.rel (0) target = $region13
  $region12: #{net_forward.4} parent=0 // pred_region
    _
  $region13: #{net_forward.4} parent=0 // pred_fallthru
    _
  %v15 = vld [vmem:[%s0] sm:$0xf]
  %v16 = vld [vmem:[%s0 + $0x4] sm:$0xf]
  %v17 = vld [vmem:[%s1] sm:$0xff]
  %v18 = vld [vmem:[%s1 + $0x8] sm:$0xff]
  %v19 = vld [vmem:[%s1 + $0x10] sm:$0xff]
  %v20 = vld [vmem:[%s1 + $0x18] sm:$0xff]
  %v21 = vld [vmem:[%s1 + $0x20] sm:$0xf]
  %v22 = vld [vmem:[%s1 + $0x24] sm:$0xff]
  %v23 = vld [vmem:[%s1 + $0x2c] sm:$0xff]
  %v24 = vld [vmem:[%s1 + $0x34] sm:$0xff]
  %v25 = vld [vmem:[%s1 + $0x3c] sm:$0xff]
  %v26 = vld [vmem:[%s1 + $0x44] sm:$0xf]
  %v27 = vld [vmem:[%s1 + $0x48] sm:$0xff]
  %v28 = vld [vmem:[%s1 + $0x50] sm:$0xff]
  %v29 = vld [vmem:[%s1 + $0x58] sm:$0xff]
  %v30 = vld [vmem:[%s1 + $0x60] sm:$0xff]
  %v31 = vld [vmem:[%s1 + $0x68] sm:$0xf]
  %v32 = vld [vmem:[%s1 + $0x6c] sm:$0xff]
  %v33 = vld [vmem:[%s1 + $0x74] sm:$0xff]
  %v34 = vld [vmem:[%s1 + $0x7c] sm:$0xff]
  %v35 = vld [vmem:[%s1 + $0x84] sm:$0xff]
  %v36 = vld [vmem:[%s1 + $0x8c] sm:$0xf]
  %v37 = vld [vmem:[%s1 + $0x90] sm:$0xff]
  %v38 = vld [vmem:[%s1 + $0x98] sm:$0xff]
  %v39 = vld [vmem:[%s1 + $0xa0] sm:$0xff]
  %v40 = vld [vmem:[%s1 + $0xa8] sm:$0xff]
  %v41 = vld [vmem:[%s1 + $0xb0] sm:$0xf]
  %v42 = vld [vmem:[%s1 + $0xb4] sm:$0xff]
  %v43 = vld [vmem:[%s1 + $0xbc] sm:$0xff]
  %v44 = vld [vmem:[%s1 + $0xc4] sm:$0xff]
  %v45 = vld [vmem:[%s1 + $0xcc] sm:$0xff]
  %v46 = vld [vmem:[%s1 + $0xd4] sm:$0xf]
  %v47 = vld [vmem:[%s1 + $0xd8] sm:$0xff]
  %v48 = vld [vmem:[%s1 + $0xe0] sm:$0xff]
  %v49 = vld [vmem:[%s1 + $0xe8] sm:$0xff]
  %v50 = vld [vmem:[%s1 + $0xf0] sm:$0xff]
  %v51 = vld [vmem:[%s1 + $0xf8] sm:$0xf]
  %v52 = vld [vmem:[%s1 + $0xfc] sm:$0xff]
  %v53 = vld [vmem:[%s1 + $0x104] sm:$0xff]
  %v54 = vld [vmem:[%s1 + $0x10c] sm:$0xff]
  %v55 = vld [vmem:[%s1 + $0x114] sm:$0xff]
  %v56 = vld [vmem:[%s1 + $0x11c] sm:$0xf]
  %v57 = vld [vmem:[%s1 + $0x120] sm:$0xff]
  %v58 = vld [vmem:[%s1 + $0x128] sm:$0xff]
  %v59 = vld [vmem:[%s1 + $0x130] sm:$0xff]
  %v60 = vld [vmem:[%s1 + $0x138] sm:$0xff]
  %v61 = vld [vmem:[%s1 + $0x140] sm:$0xf]
  %v62 = vld [vmem:[%s2] sm:$0xff]
  %v63 = vld [vmem:[%s2 + $0x8] sm:$0xff]
  %65 = vset.pattern.permute.xlu0 0
  %66 = vperm.xlu0 %65, %v62
  %v67 = vpop.permute.xlu0 %66
  %70 = vset.pattern.permute.xlu0 0
  %71 = vperm.xlu0 %70, %v63
  %v72 = vpop.permute.xlu0 %71
  %v76 = vunpack.c.l.b16 %v15
  %v77 = vunpack.c.l.b16 %v16
  %v78 = vpack.c.b16 %v77, %v76
  %v124 = vunpack.c.l.b16 %v17
  %v125 = vunpack.c.h.b16 %v17
  %v126 = vunpack.c.l.b16 %v18
  %v127 = vunpack.c.h.b16 %v18
  %v128 = vunpack.c.l.b16 %v19
  %v129 = vunpack.c.h.b16 %v19
  %v130 = vunpack.c.l.b16 %v20
  %v131 = vunpack.c.h.b16 %v20
  %v132 = vunpack.c.l.b16 %v21
  %v133 = vunpack.c.l.b16 %v22
  %v134 = vunpack.c.h.b16 %v22
  %v135 = vunpack.c.l.b16 %v23
  %v136 = vunpack.c.h.b16 %v23
  %v137 = vunpack.c.l.b16 %v24
  %v138 = vunpack.c.h.b16 %v24
  %v139 = vunpack.c.l.b16 %v25
  %v140 = vunpack.c.h.b16 %v25
  %v141 = vunpack.c.l.b16 %v26
  %v142 = vunpack.c.l.b16 %v27
  %v143 = vunpack.c.h.b16 %v27
  %v144 = vunpack.c.l.b16 %v28
  %v145 = vunpack.c.h.b16 %v28
  %v146 = vunpack.c.l.b16 %v29
  %v147 = vunpack.c.h.b16 %v29
  %v148 = vunpack.c.l.b16 %v30
  %v149 = vunpack.c.h.b16 %v30
  %v150 = vunpack.c.l.b16 %v31
  %v151 = vunpack.c.l.b16 %v32
  %v152 = vunpack.c.h.b16 %v32
  %v153 = vunpack.c.l.b16 %v33
  %v154 = vunpack.c.h.b16 %v33
  %v155 = vunpack.c.l.b16 %v34
  %v156 = vunpack.c.h.b16 %v34
  %v157 = vunpack.c.l.b16 %v35
  %v158 = vunpack.c.h.b16 %v35
  %v159 = vunpack.c.l.b16 %v36
  %v160 = vunpack.c.l.b16 %v37
  %v161 = vunpack.c.h.b16 %v37
  %v162 = vunpack.c.l.b16 %v38
  %v163 = vunpack.c.h.b16 %v38
  %v164 = vunpack.c.l.b16 %v39
  %v165 = vunpack.c.h.b16 %v39
  %v166 = vunpack.c.l.b16 %v40
  %v167 = vunpack.c.h.b16 %v40
  %v168 = vunpack.c.l.b16 %v41
  %v169 = vunpack.c.l.b16 %v42
  %v170 = vunpack.c.h.b16 %v42
  %v171 = vunpack.c.l.b16 %v43
  %v172 = vunpack.c.h.b16 %v43
  %v173 = vunpack.c.l.b16 %v44
  %v174 = vunpack.c.h.b16 %v44
  %v175 = vunpack.c.l.b16 %v45
  %v176 = vunpack.c.h.b16 %v45
  %v177 = vunpack.c.l.b16 %v46
  %v178 = vunpack.c.l.b16 %v47
  %v179 = vunpack.c.h.b16 %v47
  %v180 = vunpack.c.l.b16 %v48
  %v181 = vunpack.c.h.b16 %v48
  %v182 = vunpack.c.l.b16 %v49
  %v183 = vunpack.c.h.b16 %v49
  %v184 = vunpack.c.l.b16 %v50
  %v185 = vunpack.c.h.b16 %v50
  %v186 = vunpack.c.l.b16 %v51
  %v187 = vunpack.c.l.b16 %v52
  %v188 = vunpack.c.h.b16 %v52
  %v189 = vunpack.c.l.b16 %v53
  %v190 = vunpack.c.h.b16 %v53
  %v191 = vunpack.c.l.b16 %v54
  %v192 = vunpack.c.h.b16 %v54
  %v193 = vunpack.c.l.b16 %v55
  %v194 = vunpack.c.h.b16 %v55
  %v195 = vunpack.c.l.b16 %v56
  %v196 = vunpack.c.l.b16 %v57
  %v197 = vunpack.c.h.b16 %v57
  %v198 = vunpack.c.l.b16 %v58
  %v199 = vunpack.c.h.b16 %v58
  %v200 = vunpack.c.l.b16 %v59
  %v201 = vunpack.c.h.b16 %v59
  %v202 = vunpack.c.l.b16 %v60
  %v203 = vunpack.c.h.b16 %v60
  %v204 = vunpack.c.l.b16 %v61
  %v205 = vpack.c.b16 %v133, %v124
  %v206 = vpack.c.b16 %v134, %v125
  %v207 = vpack.c.b16 %v135, %v126
  %v208 = vpack.c.b16 %v136, %v127
  %v209 = vpack.c.b16 %v137, %v128
  %v210 = vpack.c.b16 %v138, %v129
  %v211 = vpack.c.b16 %v139, %v130
  %v212 = vpack.c.b16 %v140, %v131
  %v213 = vpack.c.b16 %v141, %v132
  %v214 = vpack.c.b16 %v151, %v142
  %v215 = vpack.c.b16 %v152, %v143
  %v216 = vpack.c.b16 %v153, %v144
  %v217 = vpack.c.b16 %v154, %v145
  %v218 = vpack.c.b16 %v155, %v146
  %v219 = vpack.c.b16 %v156, %v147
  %v220 = vpack.c.b16 %v157, %v148
  %v221 = vpack.c.b16 %v158, %v149
  %v222 = vpack.c.b16 %v159, %v150
  %v223 = vpack.c.b16 %v169, %v160
  %v224 = vpack.c.b16 %v170, %v161
  %v225 = vpack.c.b16 %v171, %v162
  %v226 = vpack.c.b16 %v172, %v163
  %v227 = vpack.c.b16 %v173, %v164
  %v228 = vpack.c.b16 %v174, %v165
  %v229 = vpack.c.b16 %v175, %v166
  %v230 = vpack.c.b16 %v176, %v167
  %v231 = vpack.c.b16 %v177, %v168
  %v232 = vpack.c.b16 %v187, %v178
  %v233 = vpack.c.b16 %v188, %v179
  %v234 = vpack.c.b16 %v189, %v180
  %v235 = vpack.c.b16 %v190, %v181
  %v236 = vpack.c.b16 %v191, %v182
  %v237 = vpack.c.b16 %v192, %v183
  %v238 = vpack.c.b16 %v193, %v184
  %v239 = vpack.c.b16 %v194, %v185
  %v240 = vpack.c.b16 %v195, %v186
  %v241 = vpack.c.b16 %v196, %v196
  %v242 = vpack.c.b16 %v197, %v197
  %v243 = vpack.c.b16 %v198, %v198
  %v244 = vpack.c.b16 %v199, %v199
  %v245 = vpack.c.b16 %v200, %v200
  %v246 = vpack.c.b16 %v201, %v201
  %v247 = vpack.c.b16 %v202, %v202
  %v248 = vpack.c.b16 %v203, %v203
  %v249 = vpack.c.b16 %v204, %v204
  %vm286 = vcmask 588800
  %v288 = vsel %vm286, %v78, 0
  %vm290 = vcmask 1043456
  %v292 = vsel %vm290, %v241, 0
  %v295 = vsel %vm290, %v242, 0
  %v298 = vsel %vm290, %v243, 0
  %v301 = vsel %vm290, %v244, 0
  %v304 = vsel %vm290, %v245, 0
  %v307 = vsel %vm290, %v246, 0
  %v310 = vsel %vm290, %v247, 0
  %v313 = vsel %vm290, %v248, 0
  %v316 = vsel %vm290, %v249, 0
  %318 = vmatprep.subr.bf16.mxu0 0
  %319 = vmatpush1.bf16.msra.mxu0 0
  %320 = vmatprep.subr.bf16.mxu0 0
  %321 = vmatpush1.bf16.msra.mxu0 0
  %322 = vmatprep.subr.bf16.mxu0 0
  %323 = vmatpush1.bf16.msra.mxu0 0
  %324 = vmatprep.subr.bf16.mxu0 %v295
  %325 = vmatpush1.bf16.msra.mxu0 %v292
  %326 = vmatprep.subr.bf16.mxu0 %v233
  %327 = vmatpush1.bf16.msra.mxu0 %v232
  %328 = vmatprep.subr.bf16.mxu0 %v224
  %329 = vmatpush1.bf16.msra.mxu0 %v223
  %330 = vmatprep.subr.bf16.mxu0 %v215
  %331 = vmatpush1.bf16.msra.mxu0 %v214
  %332 = vmatprep.subr.bf16.mxu0 %v206
  %333 = vmatpush1.bf16.msra.mxu0 %v205
  %334 = vmatprep.subr.bf16.mxu0 0
  %335 = vmatpush2.bf16.msra.mxu0 0
  %336 = vmatprep.subr.bf16.mxu0 0
  %337 = vmatpush2.bf16.msra.mxu0 0
  %338 = vmatprep.subr.bf16.mxu0 0
  %339 = vmatpush2.bf16.msra.mxu0 0
  %340 = vmatprep.subr.bf16.mxu0 0
  %341 = vmatpush2.bf16.msra.mxu0 0
  %342 = vmatprep.subr.bf16.mxu0 0
  %343 = vmatpush2.bf16.msra.mxu0 0
  %344 = vmatprep.subr.bf16.mxu0 0
  %345 = vmatpush2.bf16.msra.mxu0 0
  %346 = vmatprep.subr.bf16.mxu0 0
  %347 = vmatpush2.bf16.msra.mxu0 0
  %348 = vmatprep.subr.bf16.mxu0 0
  %349 = vmatpush2.bf16.msra.mxu0 0
  %350 = vmatprep.mubr.bf16.mxu0 0
  %351 = vmatmul.mubr.bf16.gmra.mxu0 %v288
  %v352 = vpop.f32.mrf.mxu0
  %v353 = vadd.f32 %v67, %v352
  %v354 = vpop.f32.mrf.mxu0
  %v355 = vadd.f32 %v67, %v354
  %v356 = vpop.f32.mrf.mxu0
  %v357 = vadd.f32 %v72, %v356
  %v358 = vpop.f32.mrf.mxu0
  %v359 = vadd.f32 %v72, %v358
  %360 = vdwg.mxu0
  %361 = vmatprep.subr.bf16.mxu0 0
  %362 = vmatpush1.bf16.msra.mxu0 0
  %363 = vmatprep.subr.bf16.mxu0 0
  %364 = vmatpush1.bf16.msra.mxu0 0
  %365 = vmatprep.subr.bf16.mxu0 0
  %366 = vmatpush1.bf16.msra.mxu0 0
  %367 = vmatprep.subr.bf16.mxu0 %v301
  %368 = vmatpush1.bf16.msra.mxu0 %v298
  %369 = vmatprep.subr.bf16.mxu0 %v235
  %370 = vmatpush1.bf16.msra.mxu0 %v234
  %371 = vmatprep.subr.bf16.mxu0 %v226
  %372 = vmatpush1.bf16.msra.mxu0 %v225
  %373 = vmatprep.subr.bf16.mxu0 %v217
  %374 = vmatpush1.bf16.msra.mxu0 %v216
  %375 = vmatprep.subr.bf16.mxu0 %v208
  %376 = vmatpush1.bf16.msra.mxu0 %v207
  %377 = vmatprep.subr.bf16.mxu0 0
  %378 = vmatpush2.bf16.msra.mxu0 0
  %379 = vmatprep.subr.bf16.mxu0 0
  %380 = vmatpush2.bf16.msra.mxu0 0
  %381 = vmatprep.subr.bf16.mxu0 0
  %382 = vmatpush2.bf16.msra.mxu0 0
  %383 = vmatprep.subr.bf16.mxu0 0
  %384 = vmatpush2.bf16.msra.mxu0 0
  %385 = vmatprep.subr.bf16.mxu0 0
  %386 = vmatpush2.bf16.msra.mxu0 0
  %387 = vmatprep.subr.bf16.mxu0 0
  %388 = vmatpush2.bf16.msra.mxu0 0
  %389 = vmatprep.subr.bf16.mxu0 0
  %390 = vmatpush2.bf16.msra.mxu0 0
  %391 = vmatprep.subr.bf16.mxu0 0
  %392 = vmatpush2.bf16.msra.mxu0 0
  %393 = vmatprep.mubr.bf16.mxu0 0
  %394 = vmatmul.mubr.bf16.gmra.mxu0 %v288
  %v395 = vpop.f32.mrf.mxu0
  %v396 = vadd.f32 %v67, %v395
  %v397 = vpop.f32.mrf.mxu0
  %v398 = vadd.f32 %v67, %v397
  %v399 = vpop.f32.mrf.mxu0
  %v400 = vadd.f32 %v72, %v399
  %v401 = vpop.f32.mrf.mxu0
  %v402 = vadd.f32 %v72, %v401
  %403 = vdwg.mxu0
  %404 = vmatprep.subr.bf16.mxu0 0
  %405 = vmatpush1.bf16.msra.mxu0 0
  %406 = vmatprep.subr.bf16.mxu0 0
  %407 = vmatpush1.bf16.msra.mxu0 0
  %408 = vmatprep.subr.bf16.mxu0 0
  %409 = vmatpush1.bf16.msra.mxu0 0
  %410 = vmatprep.subr.bf16.mxu0 %v307
  %411 = vmatpush1.bf16.msra.mxu0 %v304
  %412 = vmatprep.subr.bf16.mxu0 %v237
  %413 = vmatpush1.bf16.msra.mxu0 %v236
  %414 = vmatprep.subr.bf16.mxu0 %v228
  %415 = vmatpush1.bf16.msra.mxu0 %v227
  %416 = vmatprep.subr.bf16.mxu0 %v219
  %417 = vmatpush1.bf16.msra.mxu0 %v218
  %418 = vmatprep.subr.bf16.mxu0 %v210
  %419 = vmatpush1.bf16.msra.mxu0 %v209
  %420 = vmatprep.subr.bf16.mxu0 0
  %421 = vmatpush2.bf16.msra.mxu0 0
  %422 = vmatprep.subr.bf16.mxu0 0
  %423 = vmatpush2.bf16.msra.mxu0 0
  %424 = vmatprep.subr.bf16.mxu0 0
  %425 = vmatpush2.bf16.msra.mxu0 0
  %426 = vmatprep.subr.bf16.mxu0 0
  %427 = vmatpush2.bf16.msra.mxu0 0
  %428 = vmatprep.subr.bf16.mxu0 0
  %429 = vmatpush2.bf16.msra.mxu0 0
  %430 = vmatprep.subr.bf16.mxu0 0
  %431 = vmatpush2.bf16.msra.mxu0 0
  %432 = vmatprep.subr.bf16.mxu0 0
  %433 = vmatpush2.bf16.msra.mxu0 0
  %434 = vmatprep.subr.bf16.mxu0 0
  %435 = vmatpush2.bf16.msra.mxu0 0
  %436 = vmatprep.mubr.bf16.mxu0 0
  %437 = vmatmul.mubr.bf16.gmra.mxu0 %v288
  %v438 = vpop.f32.mrf.mxu0
  %v439 = vadd.f32 %v67, %v438
  %v440 = vpop.f32.mrf.mxu0
  %v441 = vadd.f32 %v67, %v440
  %v442 = vpop.f32.mrf.mxu0
  %v443 = vadd.f32 %v72, %v442
  %v444 = vpop.f32.mrf.mxu0
  %v445 = vadd.f32 %v72, %v444
  %446 = vdwg.mxu0
  %447 = vmatprep.subr.bf16.mxu0 0
  %448 = vmatpush1.bf16.msra.mxu0 0
  %449 = vmatprep.subr.bf16.mxu0 0
  %450 = vmatpush1.bf16.msra.mxu0 0
  %451 = vmatprep.subr.bf16.mxu0 0
  %452 = vmatpush1.bf16.msra.mxu0 0
  %453 = vmatprep.subr.bf16.mxu0 %v313
  %454 = vmatpush1.bf16.msra.mxu0 %v310
  %455 = vmatprep.subr.bf16.mxu0 %v239
  %456 = vmatpush1.bf16.msra.mxu0 %v238
  %457 = vmatprep.subr.bf16.mxu0 %v230
  %458 = vmatpush1.bf16.msra.mxu0 %v229
  %459 = vmatprep.subr.bf16.mxu0 %v221
  %460 = vmatpush1.bf16.msra.mxu0 %v220
  %461 = vmatprep.subr.bf16.mxu0 %v212
  %462 = vmatpush1.bf16.msra.mxu0 %v211
  %463 = vmatprep.subr.bf16.mxu0 0
  %464 = vmatpush2.bf16.msra.mxu0 0
  %465 = vmatprep.subr.bf16.mxu0 0
  %466 = vmatpush2.bf16.msra.mxu0 0
  %467 = vmatprep.subr.bf16.mxu0 0
  %468 = vmatpush2.bf16.msra.mxu0 0
  %469 = vmatprep.subr.bf16.mxu0 0
  %470 = vmatpush2.bf16.msra.mxu0 0
  %471 = vmatprep.subr.bf16.mxu0 0
  %472 = vmatpush2.bf16.msra.mxu0 0
  %473 = vmatprep.subr.bf16.mxu0 0
  %474 = vmatpush2.bf16.msra.mxu0 0
  %475 = vmatprep.subr.bf16.mxu0 0
  %476 = vmatpush2.bf16.msra.mxu0 0
  %477 = vmatprep.subr.bf16.mxu0 0
  %478 = vmatpush2.bf16.msra.mxu0 0
  %479 = vmatprep.mubr.bf16.mxu0 0
  %480 = vmatmul.mubr.bf16.gmra.mxu0 %v288
  %v481 = vpop.f32.mrf.mxu0
  %v482 = vadd.f32 %v67, %v481
  %v483 = vpop.f32.mrf.mxu0
  %v484 = vadd.f32 %v67, %v483
  %v485 = vpop.f32.mrf.mxu0
  %v486 = vadd.f32 %v72, %v485
  %v487 = vpop.f32.mrf.mxu0
  %v488 = vadd.f32 %v72, %v487
  %489 = vdwg.mxu0
  %490 = vmatprep.subr.bf16.mxu0 0
  %491 = vmatpush1.bf16.msra.mxu0 0
  %492 = vmatprep.subr.bf16.mxu0 0
  %493 = vmatpush1.bf16.msra.mxu0 0
  %494 = vmatprep.subr.bf16.mxu0 0
  %495 = vmatpush1.bf16.msra.mxu0 0
  %496 = vmatprep.subr.bf16.mxu0 0
  %497 = vmatpush1.bf16.msra.mxu0 %v316
  %498 = vmatprep.subr.bf16.mxu0 0
  %499 = vmatpush1.bf16.msra.mxu0 %v240
  %500 = vmatprep.subr.bf16.mxu0 0
  %501 = vmatpush1.bf16.msra.mxu0 %v231
  %502 = vmatprep.subr.bf16.mxu0 0
  %503 = vmatpush1.bf16.msra.mxu0 %v222
  %504 = vmatprep.subr.bf16.mxu0 0
  %505 = vmatpush1.bf16.msra.mxu0 %v213
  %506 = vmatprep.subr.bf16.mxu0 0
  %507 = vmatpush2.bf16.msra.mxu0 0
  %508 = vmatprep.subr.bf16.mxu0 0
  %509 = vmatpush2.bf16.msra.mxu0 0
  %510 = vmatprep.subr.bf16.mxu0 0
  %511 = vmatpush2.bf16.msra.mxu0 0
  %512 = vmatprep.subr.bf16.mxu0 0
  %513 = vmatpush2.bf16.msra.mxu0 0
  %514 = vmatprep.subr.bf16.mxu0 0
  %515 = vmatpush2.bf16.msra.mxu0 0
  %516 = vmatprep.subr.bf16.mxu0 0
  %517 = vmatpush2.bf16.msra.mxu0 0
  %518 = vmatprep.subr.bf16.mxu0 0
  %519 = vmatpush2.bf16.msra.mxu0 0
  %520 = vmatprep.subr.bf16.mxu0 0
  %521 = vmatpush2.bf16.msra.mxu0 0
  %522 = vmatprep.mubr.bf16.mxu0 0
  %523 = vmatmul.mubr.bf16.gmra.mxu0 %v288
  %v524 = vpop.f32.mrf.mxu0
  %v525 = vadd.f32 %v67, %v524
  %v526 = vpop.f32.mrf.mxu0
  %v527 = vpop.f32.mrf.mxu0
  %v528 = vadd.f32 %v72, %v527
  %v529 = vpop.f32.mrf.mxu0
  %530 = vdwg.mxu0
  %v531 = vmax.f32 %v353, 0.0
  %v532 = vmax.f32 %v355, 0.0
  %v533 = vmax.f32 %v396, 0.0
  %v534 = vmax.f32 %v398, 0.0
  %v535 = vmax.f32 %v439, 0.0
  %v536 = vmax.f32 %v441, 0.0
  %v537 = vmax.f32 %v482, 0.0
  %v538 = vmax.f32 %v484, 0.0
  %v539 = vmax.f32 %v525, 0.0
  %v540 = vmax.f32 %v357, 0.0
  %v541 = vmax.f32 %v359, 0.0
  %v542 = vmax.f32 %v400, 0.0
  %v543 = vmax.f32 %v402, 0.0
  %v544 = vmax.f32 %v443, 0.0
  %v545 = vmax.f32 %v445, 0.0
  %v546 = vmax.f32 %v486, 0.0
  %v547 = vmax.f32 %v488, 0.0
  %v548 = vmax.f32 %v528, 0.0
  %v549 = vpack.c.bf16 %v540, %v531
  %v550 = vpack.c.bf16 %v541, %v532
  %v551 = vpack.c.bf16 %v542, %v533
  %v552 = vpack.c.bf16 %v543, %v534
  %v553 = vpack.c.bf16 %v544, %v535
  %v554 = vpack.c.bf16 %v545, %v536
  %v555 = vpack.c.bf16 %v546, %v537
  %v556 = vpack.c.bf16 %v547, %v538
  %v557 = vpack.c.bf16 %v548, %v539
  %v567 = vunpack.c.l.b16 %v549
  %v568 = vunpack.c.l.b16 %v550
  %v569 = vunpack.c.l.b16 %v551
  %v570 = vunpack.c.l.b16 %v552
  %v571 = vunpack.c.l.b16 %v553
  %v572 = vunpack.c.l.b16 %v554
  %v573 = vunpack.c.l.b16 %v555
  %v574 = vunpack.c.l.b16 %v556
  %v575 = vunpack.c.l.b16 %v557
  %v576 = vunpack.c.h.b16 %v549
  %v577 = vunpack.c.h.b16 %v550
  %v578 = vunpack.c.h.b16 %v551
  %v579 = vunpack.c.h.b16 %v552
  %v580 = vunpack.c.h.b16 %v553
  %v581 = vunpack.c.h.b16 %v554
  %v582 = vunpack.c.h.b16 %v555
  %v583 = vunpack.c.h.b16 %v556
  %v584 = vunpack.c.h.b16 %v557
  %v585 = vpack.c.b16 %v568, %v567
  %v586 = vpack.c.b16 %v570, %v569
  %v587 = vpack.c.b16 %v572, %v571
  %v588 = vpack.c.b16 %v574, %v573
  %v589 = vpack.c.b16 %v575, %v575
  %v590 = vpack.c.b16 %v577, %v576
  %v591 = vpack.c.b16 %v579, %v578
  %v592 = vpack.c.b16 %v581, %v580
  %v593 = vpack.c.b16 %v583, %v582
  %v594 = vpack.c.b16 %v584, %v584
  %605 = vst [vmem:[%s3] sm:$0xff] %v585
  %606 = vst [vmem:[%s3 + $0x8] sm:$0xff] %v586
  %607 = vst [vmem:[%s3 + $0x10] sm:$0xff] %v587
  %608 = vst [vmem:[%s3 + $0x18] sm:$0xff] %v588
  %vm609 = vcmask 273408
  %610 = vst.msk [vmem:[%s3 + $0x20] sm:$0xf] %vm609, %v589
  %611 = vst [vmem:[%s3 + $0x24] sm:$0xff] %v590
  %612 = vst [vmem:[%s3 + $0x2c] sm:$0xff] %v591
  %613 = vst [vmem:[%s3 + $0x34] sm:$0xff] %v592
  %614 = vst [vmem:[%s3 + $0x3c] sm:$0xff] %v593
  %615 = vst.msk [vmem:[%s3 + $0x44] sm:$0xf] %vm609, %v594
  // Predicated region
  $region14: #{net_forward.4} parent=0 // pred_check
    _
  $region15: #{net_forward.4} parent=0 // pred_check_branch
    %617 = sbr.rel (0) target = $region17
  $region16: #{net_forward.4} parent=0 // pred_region
    _
  $region17: #{net_forward.4} parent=0 // pred_fallthru
    _
  // Predicated region
  $region18: #{net_forward.4} parent=0 // pred_check
    _
  $region19: #{net_forward.4} parent=0 // pred_check_branch
    %619 = sbr.rel (0) target = $region21
  $region20: #{net_forward.4} parent=0 // pred_region
    _
  $region21: #{net_forward.4} parent=0 // pred_fallthru
    _

// kernel: net_forward.5
$region0: #{net_forward.5}
  #allocation0 [shape = 'u32[]', space=smem, size = 0x4, offset = 0x4, fixed_abs, tag = 'smem constant byte address 0x4 - core index']
  #allocation1 [shape = 'u32[144,128]{1,0:T(1,128)}', space=vmem, size = 0x12000, scoped, tag = 'internal scratch']
  #allocation2 [shape = 'f32[1,1]{1,0:T(1,128)S(1)}', space=vmem, size = 0x200, scoped, tag = 'scoped memory for net_forward.5']
  %s0 = inlined_call_operand.vmem [shape: bf16[64,242], index: 0, kind: input, shape index: {}]
  %s1 = inlined_call_operand.vmem [shape: bf16[32,64], index: 1, kind: input, shape index: {}]
  %s2 = inlined_call_operand.vmem [shape: f32[32,1], index: 2, kind: input, shape index: {}]
  %s3 = inlined_call_operand.vmem [shape: bf16[242,200], index: 3, kind: input, shape index: {}]
  %s4 = inlined_call_operand.vmem [shape: bf16[64,128], index: 4, kind: input, shape index: {}]
  %s5 = inlined_call_operand.vmem [shape: f32[64,1], index: 5, kind: input, shape index: {}]
  %s6 = inlined_call_operand.vmem [shape: bf16[50,162], index: 6, kind: input, shape index: {}]
  %s7 = inlined_call_operand.vmem [shape: bf16[128,576], index: 7, kind: input, shape index: {}]
  %s8 = inlined_call_operand.vmem [shape: f32[128,1], index: 8, kind: input, shape index: {}]
  %s9 = inlined_call_operand.vmem [shape: bf16[18,18], index: 9, kind: input, shape index: {}]
  %s10 = inlined_call_operand.vmem [shape: bf16[256,1152], index: 10, kind: input, shape index: {}]
  %s11 = inlined_call_operand.vmem [shape: f32[256,1], index: 11, kind: input, shape index: {}]
  %s12 = inlined_call_operand.vmem [shape: bf16[100,256], index: 12, kind: input, shape index: {}]
  %s13 = inlined_call_operand.vmem [shape: f32[100,1], index: 13, kind: input, shape index: {}]
  %s14 = inlined_call_operand.vmem [shape: bf16[1,100], index: 14, kind: input, shape index: {}]
  %s15 = inlined_call_operand.<no memory space> [shape: f32[1,1], index: 15, kind: input, shape index: {}]
  %s16 = inlined_call_operand.vmem [shape: bf16[100,256], index: 16, kind: input, shape index: {}]
  %s17 = inlined_call_operand.vmem [shape: f32[100,1], index: 17, kind: input, shape index: {}]
  %s18 = inlined_call_operand.vmem [shape: bf16[6,100], index: 18, kind: input, shape index: {}]
  %s19 = inlined_call_operand.vmem [shape: f32[6,1], index: 19, kind: input, shape index: {}]
  %s20 = inlined_call_operand.vmem [shape: f32[8,2], index: 20, kind: output, shape index: {}]
  %s21 = sld [smem:[#allocation0]]
  $region90: #{net_forward.5} parent=0
    _
  %s23 = ssub.s32 1, %s21
  %s24 = scalar_select 0, %s23, %s21
  %v25 = vstv %s15
  %26 = vst [vmem:[#allocation2] sm:$0x1] %v25
  // Predicated region
  $region2: #{net_forward.5} parent=0 // pred_check
    _
  $region3: #{net_forward.5} parent=0 // pred_check_branch
    %28 = sbr.rel (0) target = $region5
  $region4: #{net_forward.5} parent=0 // pred_region
    _
  $region5: #{net_forward.5} parent=0 // pred_fallthru
    _
  // Predicated region
  $region6: #{net_forward.5} parent=0 // pred_check
    _
  $region7: #{net_forward.5} parent=0 // pred_check_branch
    %30 = sbr.rel (0) target = $region9
  $region8: #{net_forward.5} parent=0 // pred_region
    _
  $region9: #{net_forward.5} parent=0 // pred_fallthru
    _
  // Predicated region
  $region10: #{net_forward.5} parent=0 // pred_check
    _
  $region11: #{net_forward.5} parent=0 // pred_check_branch
    %32 = sbr.rel (0) target = $region13
  $region12: #{net_forward.5} parent=0 // pred_region
    _
  $region13: #{net_forward.5} parent=0 // pred_fallthru
    _
  // Predicated region
  $region14: #{net_forward.5} parent=0 // pred_check
    _
  $region15: #{net_forward.5} parent=0 // pred_check_branch
    %34 = sbr.rel (0) target = $region17
  $region16: #{net_forward.5} parent=0 // pred_region
    _
  $region17: #{net_forward.5} parent=0 // pred_fallthru
    _
  // Predicated region
  $region18: #{net_forward.5} parent=0 // pred_check
    _
  $region19: #{net_forward.5} parent=0 // pred_check_branch
    %36 = sbr.rel (0) target = $region21
  $region20: #{net_forward.5} parent=0 // pred_region
    _
  $region21: #{net_forward.5} parent=0 // pred_fallthru
    _
  // Predicated region
  $region22: #{net_forward.5} parent=0 // pred_check
    _
  $region23: #{net_forward.5} parent=0 // pred_check_branch
    %38 = sbr.rel (0) target = $region25
  $region24: #{net_forward.5} parent=0 // pred_region
    _
  $region25: #{net_forward.5} parent=0 // pred_fallthru
    _
  // Predicated region
  $region26: #{net_forward.5} parent=0 // pred_check
    _
  $region27: #{net_forward.5} parent=0 // pred_check_branch
    %40 = sbr.rel (0) target = $region29
  $region28: #{net_forward.5} parent=0 // pred_region
    _
  $region29: #{net_forward.5} parent=0 // pred_fallthru
    _
  // Predicated region
  $region30: #{net_forward.5} parent=0 // pred_check
    _
  $region31: #{net_forward.5} parent=0 // pred_check_branch
    %42 = sbr.rel (0) target = $region33
  $region32: #{net_forward.5} parent=0 // pred_region
    _
  $region33: #{net_forward.5} parent=0 // pred_fallthru
    _
  // Predicated region
  $region34: #{net_forward.5} parent=0 // pred_check
    _
  $region35: #{net_forward.5} parent=0 // pred_check_branch
    %44 = sbr.rel (0) target = $region37
  $region36: #{net_forward.5} parent=0 // pred_region
    _
  $region37: #{net_forward.5} parent=0 // pred_fallthru
    _
  // Predicated region
  $region38: #{net_forward.5} parent=0 // pred_check
    _
  $region39: #{net_forward.5} parent=0 // pred_check_branch
    %46 = sbr.rel (0) target = $region41
  $region40: #{net_forward.5} parent=0 // pred_region
    _
  $region41: #{net_forward.5} parent=0 // pred_fallthru
    _
  // Predicated region
  $region42: #{net_forward.5} parent=0 // pred_check
    _
  $region43: #{net_forward.5} parent=0 // pred_check_branch
    %48 = sbr.rel (0) target = $region45
  $region44: #{net_forward.5} parent=0 // pred_region
    _
  $region45: #{net_forward.5} parent=0 // pred_fallthru
    _
  // Predicated region
  $region46: #{net_forward.5} parent=0 // pred_check
    _
  $region47: #{net_forward.5} parent=0 // pred_check_branch
    %50 = sbr.rel (0) target = $region49
  $region48: #{net_forward.5} parent=0 // pred_region
    _
  $region49: #{net_forward.5} parent=0 // pred_fallthru
    _
  // Predicated region
  $region50: #{net_forward.5} parent=0 // pred_check
    _
  $region51: #{net_forward.5} parent=0 // pred_check_branch
    %52 = sbr.rel (0) target = $region53
  $region52: #{net_forward.5} parent=0 // pred_region
    _
  $region53: #{net_forward.5} parent=0 // pred_fallthru
    _
  // Predicated region
  $region54: #{net_forward.5} parent=0 // pred_check
    _
  $region55: #{net_forward.5} parent=0 // pred_check_branch
    %54 = sbr.rel (0) target = $region57
  $region56: #{net_forward.5} parent=0 // pred_region
    _
  $region57: #{net_forward.5} parent=0 // pred_fallthru
    _
  // Predicated region
  $region58: #{net_forward.5} parent=0 // pred_check
    _
  $region59: #{net_forward.5} parent=0 // pred_check_branch
    %56 = sbr.rel (0) target = $region61
  $region60: #{net_forward.5} parent=0 // pred_region
    _
  $region61: #{net_forward.5} parent=0 // pred_fallthru
    _
  // Predicated region
  $region62: #{net_forward.5} parent=0 // pred_check
    _
  $region63: #{net_forward.5} parent=0 // pred_check_branch
    %58 = sbr.rel (0) target = $region65
  $region64: #{net_forward.5} parent=0 // pred_region
    _
  $region65: #{net_forward.5} parent=0 // pred_fallthru
    _
  // Predicated region
  $region66: #{net_forward.5} parent=0 // pred_check
    _
  $region67: #{net_forward.5} parent=0 // pred_check_branch
    %60 = sbr.rel (0) target = $region69
  $region68: #{net_forward.5} parent=0 // pred_region
    _
  $region69: #{net_forward.5} parent=0 // pred_fallthru
    _
  // Predicated region
  $region70: #{net_forward.5} parent=0 // pred_check
    _
  $region71: #{net_forward.5} parent=0 // pred_check_branch
    %62 = sbr.rel (0) target = $region73
  $region72: #{net_forward.5} parent=0 // pred_region
    _
  $region73: #{net_forward.5} parent=0 // pred_fallthru
    _
  // Predicated region
  $region74: #{net_forward.5} parent=0 // pred_check
    _
  $region75: #{net_forward.5} parent=0 // pred_check_branch
    %64 = sbr.rel (0) target = $region77
  $region76: #{net_forward.5} parent=0 // pred_region
    _
  $region77: #{net_forward.5} parent=0 // pred_fallthru
    _
  // Predicated region
  $region78: #{net_forward.5} parent=0 // pred_check
    _
  $region79: #{net_forward.5} parent=0 // pred_check_branch
    %66 = sbr.rel (0) target = $region81
  $region80: #{net_forward.5} parent=0 // pred_region
    _
  $region81: #{net_forward.5} parent=0 // pred_fallthru
    _
  %v68 = vld [vmem:[%s1] sm:$0xf]
  %v69 = vld [vmem:[%s1 + $0x4] sm:$0xf]
  %v70 = vld [vmem:[%s1 + $0x8] sm:$0xf]
  %v71 = vld [vmem:[%s1 + $0xc] sm:$0xf]
  %v72 = vld [vmem:[%s0] sm:$0xff]
  %v73 = vld [vmem:[%s0 + $0x8] sm:$0xff]
  %v74 = vld [vmem:[%s0 + $0x10] sm:$0xff]
  %v75 = vld [vmem:[%s0 + $0x18] sm:$0xff]
  %v76 = vld [vmem:[%s0 + $0x20] sm:$0xff]
  %v77 = vld [vmem:[%s0 + $0x28] sm:$0xff]
  %v78 = vld [vmem:[%s0 + $0x30] sm:$0xff]
  %v79 = vld [vmem:[%s0 + $0x38] sm:$0xff]
  %v80 = vld [vmem:[%s2] sm:$0xff]
  %v81 = vld [vmem:[%s2 + $0x8] sm:$0xff]
  %v82 = vld [vmem:[%s2 + $0x10] sm:$0xff]
  %v83 = vld [vmem:[%s2 + $0x18] sm:$0xff]
  %85 = vset.pattern.permute.xlu0 0
  %86 = vperm.xlu0 %85, %v80
  %v87 = vpop.permute.xlu0 %86
  %90 = vset.pattern.permute.xlu0 0
  %91 = vperm.xlu0 %90, %v81
  %v92 = vpop.permute.xlu0 %91
  %95 = vset.pattern.permute.xlu0 0
  %96 = vperm.xlu0 %95, %v82
  %v97 = vpop.permute.xlu0 %96
  %100 = vset.pattern.permute.xlu0 0
  %101 = vperm.xlu0 %100, %v83
  %v102 = vpop.permute.xlu0 %101
  %v108 = vunpack.c.l.b16 %v68
  %v109 = vunpack.c.l.b16 %v69
  %v110 = vunpack.c.l.b16 %v70
  %v111 = vunpack.c.l.b16 %v71
  %v112 = vpack.c.b16 %v109, %v108
  %v113 = vpack.c.b16 %v111, %v110
  %v122 = vunpack.c.l.b16 %v72
  %v123 = vunpack.c.h.b16 %v72
  %v124 = vunpack.c.l.b16 %v73
  %v125 = vunpack.c.h.b16 %v73
  %v126 = vunpack.c.l.b16 %v74
  %v127 = vunpack.c.h.b16 %v74
  %v128 = vunpack.c.l.b16 %v75
  %v129 = vunpack.c.h.b16 %v75
  %v130 = vunpack.c.l.b16 %v76
  %v131 = vunpack.c.h.b16 %v76
  %v132 = vunpack.c.l.b16 %v77
  %v133 = vunpack.c.h.b16 %v77
  %v134 = vunpack.c.l.b16 %v78
  %v135 = vunpack.c.h.b16 %v78
  %v136 = vunpack.c.l.b16 %v79
  %v137 = vunpack.c.h.b16 %v79
  %v138 = vpack.c.b16 %v124, %v122
  %v139 = vpack.c.b16 %v125, %v123
  %v140 = vpack.c.b16 %v128, %v126
  %v141 = vpack.c.b16 %v129, %v127
  %v142 = vpack.c.b16 %v132, %v130
  %v143 = vpack.c.b16 %v133, %v131
  %v144 = vpack.c.b16 %v136, %v134
  %v145 = vpack.c.b16 %v137, %v135
  %vm154 = vcmask 523264
  %v156 = vsel %vm154, %v112, 0
  %v159 = vsel %vm154, %v113, 0
  %161 = vmatprep.subr.bf16.mxu0 0
  %162 = vmatpush1.bf16.msra.mxu0 0
  %163 = vmatprep.subr.bf16.mxu0 0
  %164 = vmatpush1.bf16.msra.mxu0 0
  %165 = vmatprep.subr.bf16.mxu0 0
  %166 = vmatpush1.bf16.msra.mxu0 0
  %167 = vmatprep.subr.bf16.mxu0 0
  %168 = vmatpush1.bf16.msra.mxu0 0
  %169 = vmatprep.subr.bf16.mxu0 %v145
  %170 = vmatpush1.bf16.msra.mxu0 %v144
  %171 = vmatprep.subr.bf16.mxu0 %v143
  %172 = vmatpush1.bf16.msra.mxu0 %v142
  %173 = vmatprep.subr.bf16.mxu0 %v141
  %174 = vmatpush1.bf16.msra.mxu0 %v140
  %175 = vmatprep.subr.bf16.mxu0 %v139
  %176 = vmatpush1.bf16.msra.mxu0 %v138
  %177 = vmatprep.subr.bf16.mxu0 0
  %178 = vmatpush2.bf16.msra.mxu0 0
  %179 = vmatprep.subr.bf16.mxu0 0
  %180 = vmatpush2.bf16.msra.mxu0 0
  %181 = vmatprep.subr.bf16.mxu0 0
  %182 = vmatpush2.bf16.msra.mxu0 0
  %183 = vmatprep.subr.bf16.mxu0 0
  %184 = vmatpush2.bf16.msra.mxu0 0
  %185 = vmatprep.subr.bf16.mxu0 0
  %186 = vmatpush2.bf16.msra.mxu0 0
  %187 = vmatprep.subr.bf16.mxu0 0
  %188 = vmatpush2.bf16.msra.mxu0 0
  %189 = vmatprep.subr.bf16.mxu0 0
  %190 = vmatpush2.bf16.msra.mxu0 0
  %191 = vmatprep.subr.bf16.mxu0 0
  %192 = vmatpush2.bf16.msra.mxu0 0
  %193 = vmatprep.mubr.bf16.mxu0 0
  %194 = vmatmul.mubr.bf16.gmra.mxu0 %v156
  %v195 = vpop.f32.mrf.mxu0
  %v196 = vadd.f32 %v87, %v195
  %v197 = vpop.f32.mrf.mxu0
  %v198 = vadd.f32 %v87, %v197
  %v199 = vpop.f32.mrf.mxu0
  %v200 = vadd.f32 %v92, %v199
  %v201 = vpop.f32.mrf.mxu0
  %v202 = vadd.f32 %v92, %v201
  %203 = vmatprep.mubr.bf16.mxu0 0
  %204 = vmatmul.mubr.bf16.gmra.mxu0 %v159
  %v205 = vpop.f32.mrf.mxu0
  %v206 = vadd.f32 %v97, %v205
  %v207 = vpop.f32.mrf.mxu0
  %v208 = vadd.f32 %v97, %v207
  %v209 = vpop.f32.mrf.mxu0
  %v210 = vadd.f32 %v102, %v209
  %v211 = vpop.f32.mrf.mxu0
  %v212 = vadd.f32 %v102, %v211
  %213 = vdwg.mxu0
  %v214 = vmax.f32 %v196, 0.0
  %v215 = vmax.f32 %v198, 0.0
  %v216 = vmax.f32 %v200, 0.0
  %v217 = vmax.f32 %v202, 0.0
  %v218 = vmax.f32 %v206, 0.0
  %v219 = vmax.f32 %v208, 0.0
  %v220 = vmax.f32 %v210, 0.0
  %v221 = vmax.f32 %v212, 0.0
  %v222 = vpack.c.bf16 %v216, %v214
  %v223 = vpack.c.bf16 %v217, %v215
  %v224 = vpack.c.bf16 %v220, %v218
  %v225 = vpack.c.bf16 %v221, %v219
  %v226 = vld [vmem:[%s3] sm:$0xf]
  %v227 = vld [vmem:[%s3 + $0x8] sm:$0xf]
  %v228 = vld [vmem:[%s3 + $0x10] sm:$0xf]
  %v229 = vld [vmem:[%s3 + $0x18] sm:$0xf]
  %v230 = vld [vmem:[%s3 + $0x20] sm:$0xf]
  %v231 = vld [vmem:[%s3 + $0x28] sm:$0xf]
  %v232 = vld [vmem:[%s3 + $0x30] sm:$0xf]
  %v233 = vld [vmem:[%s3 + $0x38] sm:$0xf]
  %v234 = vld [vmem:[%s3 + $0x40] sm:$0xf]
  %v235 = vld [vmem:[%s3 + $0x48] sm:$0xf]
  %v236 = vld [vmem:[%s3 + $0x50] sm:$0xf]
  %v237 = vld [vmem:[%s3 + $0x58] sm:$0xf]
  %v238 = vld [vmem:[%s3 + $0x60] sm:$0xf]
  %v239 = vld [vmem:[%s3 + $0x68] sm:$0xf]
  %v240 = vld [vmem:[%s3 + $0x70] sm:$0xf]
  %v241 = vld [vmem:[%s3 + $0x78] sm:$0xf]
  %v242 = vld [vmem:[%s3 + $0x80] sm:$0xf]
  %v243 = vld [vmem:[%s3 + $0x88] sm:$0xf]
  %v244 = vld [vmem:[%s3 + $0x90] sm:$0xf]
  %v245 = vld [vmem:[%s3 + $0x98] sm:$0xf]
  %v246 = vld [vmem:[%s3 + $0xa0] sm:$0xf]
  %v247 = vld [vmem:[%s3 + $0xa8] sm:$0xf]
  %v248 = vld [vmem:[%s3 + $0xb0] sm:$0xf]
  %v249 = vld [vmem:[%s3 + $0xb8] sm:$0xf]
  %v250 = vld [vmem:[%s3 + $0xc0] sm:$0xf]
  %v251 = vld [vmem:[%s3 + $0xc8] sm:$0xf]
  %v252 = vld [vmem:[%s3 + $0xd0] sm:$0xf]
  %v253 = vld [vmem:[%s3 + $0xd8] sm:$0xf]
  %v254 = vld [vmem:[%s3 + $0xe0] sm:$0xf]
  %v255 = vld [vmem:[%s3 + $0xe8] sm:$0xf]
  %v256 = vld [vmem:[%s3 + $0xf0] sm:$0x1]
  %v288 = vunpack.c.l.b16 %v226
  %v289 = vunpack.c.l.b16 %v227
  %v290 = vunpack.c.l.b16 %v228
  %v291 = vunpack.c.l.b16 %v229
  %v292 = vunpack.c.l.b16 %v230
  %v293 = vunpack.c.l.b16 %v231
  %v294 = vunpack.c.l.b16 %v232
  %v295 = vunpack.c.l.b16 %v233
  %v296 = vunpack.c.l.b16 %v234
  %v297 = vunpack.c.l.b16 %v235
  %v298 = vunpack.c.l.b16 %v236
  %v299 = vunpack.c.l.b16 %v237
  %v300 = vunpack.c.l.b16 %v238
  %v301 = vunpack.c.l.b16 %v239
  %v302 = vunpack.c.l.b16 %v240
  %v303 = vunpack.c.l.b16 %v241
  %v304 = vunpack.c.l.b16 %v242
  %v305 = vunpack.c.l.b16 %v243
  %v306 = vunpack.c.l.b16 %v244
  %v307 = vunpack.c.l.b16 %v245
  %v308 = vunpack.c.l.b16 %v246
  %v309 = vunpack.c.l.b16 %v247
  %v310 = vunpack.c.l.b16 %v248
  %v311 = vunpack.c.l.b16 %v249
  %v312 = vunpack.c.l.b16 %v250
  %v313 = vunpack.c.l.b16 %v251
  %v314 = vunpack.c.l.b16 %v252
  %v315 = vunpack.c.l.b16 %v253
  %v316 = vunpack.c.l.b16 %v254
  %v317 = vunpack.c.l.b16 %v255
  %v318 = vunpack.c.l.b16 %v256
  %v319 = vpack.c.b16 %v289, %v288
  %v320 = vpack.c.b16 %v291, %v290
  %v321 = vpack.c.b16 %v293, %v292
  %v322 = vpack.c.b16 %v295, %v294
  %v323 = vpack.c.b16 %v297, %v296
  %v324 = vpack.c.b16 %v299, %v298
  %v325 = vpack.c.b16 %v301, %v300
  %v326 = vpack.c.b16 %v303, %v302
  %v327 = vpack.c.b16 %v305, %v304
  %v328 = vpack.c.b16 %v307, %v306
  %v329 = vpack.c.b16 %v309, %v308
  %v330 = vpack.c.b16 %v311, %v310
  %v331 = vpack.c.b16 %v313, %v312
  %v332 = vpack.c.b16 %v315, %v314
  %v333 = vpack.c.b16 %v317, %v316
  %v334 = vpack.c.b16 %v318, %v318
  %vm350 = vcmask 932864
  %v352 = vsel %vm350, %v223, 0
  %v355 = vsel %vm350, %v225, 0
  %vm357 = vcmask 1040384
  %v359 = vsel %vm357, %v334, 0
  %361 = vmatprep.subr.bf16.mxu0 0
  %362 = vmatpush1.bf16.msra.mxu0 %v326
  %363 = vmatprep.subr.bf16.mxu0 0
  %364 = vmatpush1.bf16.msra.mxu0 %v325
  %365 = vmatprep.subr.bf16.mxu0 0
  %366 = vmatpush1.bf16.msra.mxu0 %v324
  %367 = vmatprep.subr.bf16.mxu0 0
  %368 = vmatpush1.bf16.msra.mxu0 %v323
  %369 = vmatprep.subr.bf16.mxu0 0
  %370 = vmatpush1.bf16.msra.mxu0 %v322
  %371 = vmatprep.subr.bf16.mxu0 0
  %372 = vmatpush1.bf16.msra.mxu0 %v321
  %373 = vmatprep.subr.bf16.mxu0 0
  %374 = vmatpush1.bf16.msra.mxu0 %v320
  %375 = vmatprep.subr.bf16.mxu0 0
  %376 = vmatpush1.bf16.msra.mxu0 %v319
  %377 = vmatprep.subr.bf16.mxu0 0
  %378 = vmatpush2.bf16.msra.mxu0 %v359
  %379 = vmatprep.subr.bf16.mxu0 0
  %380 = vmatpush2.bf16.msra.mxu0 %v333
  %381 = vmatprep.subr.bf16.mxu0 0
  %382 = vmatpush2.bf16.msra.mxu0 %v332
  %383 = vmatprep.subr.bf16.mxu0 0
  %384 = vmatpush2.bf16.msra.mxu0 %v331
  %385 = vmatprep.subr.bf16.mxu0 0
  %386 = vmatpush2.bf16.msra.mxu0 %v330
  %387 = vmatprep.subr.bf16.mxu0 0
  %388 = vmatpush2.bf16.msra.mxu0 %v329
  %389 = vmatprep.subr.bf16.mxu0 0
  %390 = vmatpush2.bf16.msra.mxu0 %v328
  %391 = vmatprep.subr.bf16.mxu0 0
  %392 = vmatpush2.bf16.msra.mxu0 %v327
  %393 = vmatprep.mubr.bf16.mxu0 %v352
  %394 = vmatmul.mubr.bf16.gmra.mxu0 %v222
  %v395 = vpop.f32.mrf.mxu0
  %v396 = vadd.f32 0.0, %v395
  %v397 = vpop.f32.mrf.mxu0
  %v398 = vpop.f32.mrf.mxu0
  %v399 = vadd.f32 0.0, %v398
  %v400 = vpop.f32.mrf.mxu0
  %401 = vmatprep.mubr.bf16.mxu0 %v355
  %402 = vmatmul.mubr.bf16.gmra.mxu0 %v224
  %v403 = vpop.f32.mrf.mxu0
  %v404 = vadd.f32 0.0, %v403
  %v405 = vpop.f32.mrf.mxu0
  %v406 = vpop.f32.mrf.mxu0
  %v407 = vadd.f32 0.0, %v406
  %v408 = vpop.f32.mrf.mxu0
  %409 = vdwg.mxu0
  %v410 = vld [vmem:[%s4] sm:$0xf]
  %v411 = vld [vmem:[%s4 + $0x4] sm:$0xf]
  %v412 = vld [vmem:[%s4 + $0x8] sm:$0xf]
  %v413 = vld [vmem:[%s4 + $0xc] sm:$0xf]
  %v414 = vld [vmem:[%s4 + $0x10] sm:$0xf]
  %v415 = vld [vmem:[%s4 + $0x14] sm:$0xf]
  %v416 = vld [vmem:[%s4 + $0x18] sm:$0xf]
  %v417 = vld [vmem:[%s4 + $0x1c] sm:$0xf]
  %v418 = vpack.c.bf16 %v399, %v396
  %v419 = vpack.c.bf16 %v407, %v404
  %420 = vrot.lane.b32.xlu0 %v319, 78
  %v421 = vpop.permute.xlu0 %420
  %422 = vrot.lane.b32.xlu0 %v320, 78
  %v423 = vpop.permute.xlu0 %422
  %424 = vrot.lane.b32.xlu0 %v321, 78
  %v425 = vpop.permute.xlu0 %424
  %426 = vrot.lane.b32.xlu0 %v322, 78
  %v427 = vpop.permute.xlu0 %426
  %428 = vrot.lane.b32.xlu0 %v323, 78
  %v429 = vpop.permute.xlu0 %428
  %430 = vrot.lane.b32.xlu0 %v324, 78
  %v431 = vpop.permute.xlu0 %430
  %432 = vrot.lane.b32.xlu0 %v325, 78
  %v433 = vpop.permute.xlu0 %432
  %434 = vrot.lane.b32.xlu0 %v326, 78
  %v435 = vpop.permute.xlu0 %434
  %436 = vrot.lane.b32.xlu0 %v327, 78
  %v437 = vpop.permute.xlu0 %436
  %438 = vrot.lane.b32.xlu0 %v328, 78
  %v439 = vpop.permute.xlu0 %438
  %440 = vrot.lane.b32.xlu0 %v329, 78
  %v441 = vpop.permute.xlu0 %440
  %442 = vrot.lane.b32.xlu0 %v330, 78
  %v443 = vpop.permute.xlu0 %442
  %444 = vrot.lane.b32.xlu0 %v331, 78
  %v445 = vpop.permute.xlu0 %444
  %446 = vrot.lane.b32.xlu0 %v332, 78
  %v447 = vpop.permute.xlu0 %446
  %448 = vrot.lane.b32.xlu0 %v333, 78
  %v449 = vpop.permute.xlu0 %448
  %450 = vrot.lane.b32.xlu0 %v334, 78
  %v451 = vpop.permute.xlu0 %450
  %v468 = vsel %vm357, %v451, 0
  %470 = vmatprep.subr.bf16.mxu0 0
  %471 = vmatpush1.bf16.msra.mxu0 %v435
  %472 = vmatprep.subr.bf16.mxu0 0
  %473 = vmatpush1.bf16.msra.mxu0 %v433
  %474 = vmatprep.subr.bf16.mxu0 0
  %475 = vmatpush1.bf16.msra.mxu0 %v431
  %476 = vmatprep.subr.bf16.mxu0 0
  %477 = vmatpush1.bf16.msra.mxu0 %v429
  %478 = vmatprep.subr.bf16.mxu0 0
  %479 = vmatpush1.bf16.msra.mxu0 %v427
  %480 = vmatprep.subr.bf16.mxu0 0
  %481 = vmatpush1.bf16.msra.mxu0 %v425
  %482 = vmatprep.subr.bf16.mxu0 0
  %483 = vmatpush1.bf16.msra.mxu0 %v423
  %484 = vmatprep.subr.bf16.mxu0 0
  %485 = vmatpush1.bf16.msra.mxu0 %v421
  %486 = vmatprep.subr.bf16.mxu0 0
  %487 = vmatpush2.bf16.msra.mxu0 %v468
  %488 = vmatprep.subr.bf16.mxu0 0
  %489 = vmatpush2.bf16.msra.mxu0 %v449
  %490 = vmatprep.subr.bf16.mxu0 0
  %491 = vmatpush2.bf16.msra.mxu0 %v447
  %492 = vmatprep.subr.bf16.mxu0 0
  %493 = vmatpush2.bf16.msra.mxu0 %v445
  %494 = vmatprep.subr.bf16.mxu0 0
  %495 = vmatpush2.bf16.msra.mxu0 %v443
  %496 = vmatprep.subr.bf16.mxu0 0
  %497 = vmatpush2.bf16.msra.mxu0 %v441
  %498 = vmatprep.subr.bf16.mxu0 0
  %499 = vmatpush2.bf16.msra.mxu0 %v439
  %500 = vmatprep.subr.bf16.mxu0 0
  %501 = vmatpush2.bf16.msra.mxu0 %v437
  %502 = vmatprep.mubr.bf16.mxu0 %v352
  %503 = vmatmul.mubr.bf16.gmra.mxu0 %v222
  %v504 = vpop.f32.mrf.mxu0
  %v505 = vadd.f32 0.0, %v504
  %v506 = vpop.f32.mrf.mxu0
  %v507 = vpop.f32.mrf.mxu0
  %v508 = vadd.f32 0.0, %v507
  %v509 = vpop.f32.mrf.mxu0
  %510 = vmatprep.mubr.bf16.mxu0 %v355
  %511 = vmatmul.mubr.bf16.gmra.mxu0 %v224
  %v512 = vpop.f32.mrf.mxu0
  %v513 = vadd.f32 0.0, %v512
  %v514 = vpop.f32.mrf.mxu0
  %v515 = vpop.f32.mrf.mxu0
  %v516 = vadd.f32 0.0, %v515
  %v517 = vpop.f32.mrf.mxu0
  %518 = vdwg.mxu0
  %v519 = vpack.c.bf16 %v508, %v505
  %v520 = vpack.c.bf16 %v516, %v513
  %v529 = vunpack.c.l.b16 %v410
  %v530 = vunpack.c.l.b16 %v411
  %v531 = vunpack.c.l.b16 %v412
  %v532 = vunpack.c.l.b16 %v413
  %v533 = vunpack.c.l.b16 %v414
  %v534 = vunpack.c.l.b16 %v415
  %v535 = vunpack.c.l.b16 %v416
  %v536 = vunpack.c.l.b16 %v417
  %v537 = vpack.c.b16 %v530, %v529
  %v538 = vpack.c.b16 %v532, %v531
  %v539 = vpack.c.b16 %v534, %v533
  %v540 = vpack.c.b16 %v536, %v535
  %541 = vrot.lane.b32.xlu0 %v537, 96
  %v542 = vpop.permute.xlu0 %541
  %543 = vrot.lane.b32.xlu0 %v538, 96
  %v544 = vpop.permute.xlu0 %543
  %545 = vrot.lane.b32.xlu0 %v539, 96
  %v546 = vpop.permute.xlu0 %545
  %547 = vrot.lane.b32.xlu0 %v540, 96
  %v548 = vpop.permute.xlu0 %547
  %vm549 = vcmask 261120
  %v551 = vsel %vm549, %v542, 0
  %v554 = vsel %vm549, %v544, 0
  %v557 = vsel %vm549, %v546, 0
  %v560 = vsel %vm549, %v548, 0
  %562 = vmatprep.subr.bf16.mxu0 0
  %563 = vmatpush1.bf16.msra.mxu0 0
  %564 = vmatprep.subr.bf16.mxu0 0
  %565 = vmatpush1.bf16.msra.mxu0 0
  %566 = vmatprep.subr.bf16.mxu0 0
  %567 = vmatpush1.bf16.msra.mxu0 0
  %568 = vmatprep.subr.bf16.mxu0 0
  %569 = vmatpush1.bf16.msra.mxu0 0
  %570 = vmatprep.subr.bf16.mxu0 0
  %571 = vmatpush1.bf16.msra.mxu0 0
  %572 = vmatprep.subr.bf16.mxu0 0
  %573 = vmatpush1.bf16.msra.mxu0 0
  %574 = vmatprep.subr.bf16.mxu0 0
  %575 = vmatpush1.bf16.msra.mxu0 %v520
  %576 = vmatprep.subr.bf16.mxu0 0
  %577 = vmatpush1.bf16.msra.mxu0 %v519
  %578 = vmatprep.subr.bf16.mxu0 0
  %579 = vmatpush2.bf16.msra.mxu0 0
  %580 = vmatprep.subr.bf16.mxu0 0
  %581 = vmatpush2.bf16.msra.mxu0 0
  %582 = vmatprep.subr.bf16.mxu0 0
  %583 = vmatpush2.bf16.msra.mxu0 0
  %584 = vmatprep.subr.bf16.mxu0 0
  %585 = vmatpush2.bf16.msra.mxu0 0
  %586 = vmatprep.subr.bf16.mxu0 0
  %587 = vmatpush2.bf16.msra.mxu0 0
  %588 = vmatprep.subr.bf16.mxu0 0
  %589 = vmatpush2.bf16.msra.mxu0 0
  %590 = vmatprep.subr.bf16.mxu0 0
  %591 = vmatpush2.bf16.msra.mxu0 0
  %592 = vmatprep.subr.bf16.mxu0 0
  %593 = vmatpush2.bf16.msra.mxu0 0
  %594 = vmatprep.mubr.bf16.mxu0 0
  %595 = vmatmul.mubr.bf16.gmra.mxu0 %v551
  %v596 = vpop.f32.mrf.mxu0
  %v597 = vadd.f32 0.0, %v596
  %v598 = vpop.f32.mrf.mxu0
  %v599 = vpop.f32.mrf.mxu0
  %v600 = vadd.f32 0.0, %v599
  %v601 = vpop.f32.mrf.mxu0
  %602 = vmatprep.mubr.bf16.mxu0 0
  %603 = vmatmul.mubr.bf16.gmra.mxu0 %v554
  %v604 = vpop.f32.mrf.mxu0
  %v605 = vadd.f32 0.0, %v604
  %v606 = vpop.f32.mrf.mxu0
  %v607 = vpop.f32.mrf.mxu0
  %v608 = vadd.f32 0.0, %v607
  %v609 = vpop.f32.mrf.mxu0
  %610 = vmatprep.mubr.bf16.mxu0 0
  %611 = vmatmul.mubr.bf16.gmra.mxu0 %v557
  %v612 = vpop.f32.mrf.mxu0
  %v613 = vadd.f32 0.0, %v612
  %v614 = vpop.f32.mrf.mxu0
  %v615 = vpop.f32.mrf.mxu0
  %v616 = vadd.f32 0.0, %v615
  %v617 = vpop.f32.mrf.mxu0
  %618 = vmatprep.mubr.bf16.mxu0 0
  %619 = vmatmul.mubr.bf16.gmra.mxu0 %v560
  %v620 = vpop.f32.mrf.mxu0
  %v621 = vadd.f32 0.0, %v620
  %v622 = vpop.f32.mrf.mxu0
  %v623 = vpop.f32.mrf.mxu0
  %v624 = vadd.f32 0.0, %v623
  %v625 = vpop.f32.mrf.mxu0
  %626 = vdwg.mxu0
  %v628 = vsel %vm549, %v537, 0
  %v631 = vsel %vm549, %v538, 0
  %v634 = vsel %vm549, %v539, 0
  %v637 = vsel %vm549, %v540, 0
  %639 = vmatprep.subr.bf16.mxu0 0
  %640 = vmatpush1.bf16.msra.mxu0 0
  %641 = vmatprep.subr.bf16.mxu0 0
  %642 = vmatpush1.bf16.msra.mxu0 0
  %643 = vmatprep.subr.bf16.mxu0 0
  %644 = vmatpush1.bf16.msra.mxu0 0
  %645 = vmatprep.subr.bf16.mxu0 0
  %646 = vmatpush1.bf16.msra.mxu0 0
  %647 = vmatprep.subr.bf16.mxu0 0
  %648 = vmatpush1.bf16.msra.mxu0 0
  %649 = vmatprep.subr.bf16.mxu0 0
  %650 = vmatpush1.bf16.msra.mxu0 0
  %651 = vmatprep.subr.bf16.mxu0 0
  %652 = vmatpush1.bf16.msra.mxu0 %v419
  %653 = vmatprep.subr.bf16.mxu0 0
  %654 = vmatpush1.bf16.msra.mxu0 %v418
  %655 = vmatprep.subr.bf16.mxu0 0
  %656 = vmatpush2.bf16.msra.mxu0 0
  %657 = vmatprep.subr.bf16.mxu0 0
  %658 = vmatpush2.bf16.msra.mxu0 0
  %659 = vmatprep.subr.bf16.mxu0 0
  %660 = vmatpush2.bf16.msra.mxu0 0
  %661 = vmatprep.subr.bf16.mxu0 0
  %662 = vmatpush2.bf16.msra.mxu0 0
  %663 = vmatprep.subr.bf16.mxu0 0
  %664 = vmatpush2.bf16.msra.mxu0 0
  %665 = vmatprep.subr.bf16.mxu0 0
  %666 = vmatpush2.bf16.msra.mxu0 0
  %667 = vmatprep.subr.bf16.mxu0 0
  %668 = vmatpush2.bf16.msra.mxu0 0
  %669 = vmatprep.subr.bf16.mxu0 0
  %670 = vmatpush2.bf16.msra.mxu0 0
  %671 = vmatprep.mubr.bf16.mxu0 0
  %672 = vmatmul.mubr.bf16.gmra.mxu0 %v628
  %v673 = vpop.f32.mrf.mxu0
  %v674 = vadd.f32 %v597, %v673
  %v675 = vpop.f32.mrf.mxu0
  %v676 = vpop.f32.mrf.mxu0
  %v677 = vadd.f32 %v600, %v676
  %v678 = vpop.f32.mrf.mxu0
  %679 = vmatprep.mubr.bf16.mxu0 0
  %680 = vmatmul.mubr.bf16.gmra.mxu0 %v631
  %v681 = vpop.f32.mrf.mxu0
  %v682 = vadd.f32 %v605, %v681
  %v683 = vpop.f32.mrf.mxu0
  %v684 = vpop.f32.mrf.mxu0
  %v685 = vadd.f32 %v608, %v684
  %v686 = vpop.f32.mrf.mxu0
  %687 = vmatprep.mubr.bf16.mxu0 0
  %688 = vmatmul.mubr.bf16.gmra.mxu0 %v634
  %v689 = vpop.f32.mrf.mxu0
  %v690 = vadd.f32 %v613, %v689
  %v691 = vpop.f32.mrf.mxu0
  %v692 = vpop.f32.mrf.mxu0
  %v693 = vadd.f32 %v616, %v692
  %v694 = vpop.f32.mrf.mxu0
  %695 = vmatprep.mubr.bf16.mxu0 0
  %696 = vmatmul.mubr.bf16.gmra.mxu0 %v637
  %v697 = vpop.f32.mrf.mxu0
  %v698 = vadd.f32 %v621, %v697
  %v699 = vpop.f32.mrf.mxu0
  %v700 = vpop.f32.mrf.mxu0
  %v701 = vadd.f32 %v624, %v700
  %v702 = vpop.f32.mrf.mxu0
  %703 = vdwg.mxu0
  %v704 = vld [vmem:[%s3] sm:$0xff]
  %v705 = vld [vmem:[%s3 + $0x8] sm:$0xff]
  %v706 = vld [vmem:[%s3 + $0x10] sm:$0xff]
  %v707 = vld [vmem:[%s3 + $0x18] sm:$0xff]
  %v708 = vld [vmem:[%s3 + $0x20] sm:$0xff]
  %v709 = vld [vmem:[%s3 + $0x28] sm:$0xff]
  %v710 = vld [vmem:[%s3 + $0x30] sm:$0xff]
  %v711 = vld [vmem:[%s3 + $0x38] sm:$0xff]
  %v712 = vld [vmem:[%s3 + $0x40] sm:$0xff]
  %v713 = vld [vmem:[%s3 + $0x48] sm:$0xff]
  %v714 = vld [vmem:[%s3 + $0x50] sm:$0xff]
  %v715 = vld [vmem:[%s3 + $0x58] sm:$0xff]
  %v716 = vld [vmem:[%s3 + $0x60] sm:$0xff]
  %v717 = vld [vmem:[%s3 + $0x68] sm:$0xff]
  %v718 = vld [vmem:[%s3 + $0x70] sm:$0xff]
  %v719 = vld [vmem:[%s3 + $0x78] sm:$0xff]
  %v720 = vld [vmem:[%s3 + $0x80] sm:$0xff]
  %v721 = vld [vmem:[%s3 + $0x88] sm:$0xff]
  %v722 = vld [vmem:[%s3 + $0x90] sm:$0xff]
  %v723 = vld [vmem:[%s3 + $0x98] sm:$0xff]
  %v724 = vld [vmem:[%s3 + $0xa0] sm:$0xff]
  %v725 = vld [vmem:[%s3 + $0xa8] sm:$0xff]
  %v726 = vld [vmem:[%s3 + $0xb0] sm:$0xff]
  %v727 = vld [vmem:[%s3 + $0xb8] sm:$0xff]
  %v728 = vld [vmem:[%s3 + $0xc0] sm:$0xff]
  %v729 = vld [vmem:[%s3 + $0xc8] sm:$0xff]
  %v730 = vld [vmem:[%s3 + $0xd0] sm:$0xff]
  %v731 = vld [vmem:[%s3 + $0xd8] sm:$0xff]
  %v732 = vld [vmem:[%s3 + $0xe0] sm:$0xff]
  %v733 = vld [vmem:[%s3 + $0xe8] sm:$0xff]
  %v734 = vld [vmem:[%s3 + $0xf0] sm:$0x11]
  %v766 = vunpack.c.l.b16 %v704
  %v767 = vunpack.c.h.b16 %v704
  %v768 = vunpack.c.l.b16 %v705
  %v769 = vunpack.c.h.b16 %v705
  %v770 = vunpack.c.l.b16 %v706
  %v771 = vunpack.c.h.b16 %v706
  %v772 = vunpack.c.l.b16 %v707
  %v773 = vunpack.c.h.b16 %v707
  %v774 = vunpack.c.l.b16 %v708
  %v775 = vunpack.c.h.b16 %v708
  %v776 = vunpack.c.l.b16 %v709
  %v777 = vunpack.c.h.b16 %v709
  %v778 = vunpack.c.l.b16 %v710
  %v779 = vunpack.c.h.b16 %v710
  %v780 = vunpack.c.l.b16 %v711
  %v781 = vunpack.c.h.b16 %v711
  %v782 = vunpack.c.l.b16 %v712
  %v783 = vunpack.c.h.b16 %v712
  %v784 = vunpack.c.l.b16 %v713
  %v785 = vunpack.c.h.b16 %v713
  %v786 = vunpack.c.l.b16 %v714
  %v787 = vunpack.c.h.b16 %v714
  %v788 = vunpack.c.l.b16 %v715
  %v789 = vunpack.c.h.b16 %v715
  %v790 = vunpack.c.l.b16 %v716
  %v791 = vunpack.c.h.b16 %v716
  %v792 = vunpack.c.l.b16 %v717
  %v793 = vunpack.c.h.b16 %v717
  %v794 = vunpack.c.l.b16 %v718
  %v795 = vunpack.c.h.b16 %v718
  %v796 = vunpack.c.l.b16 %v719
  %v797 = vunpack.c.h.b16 %v719
  %v798 = vunpack.c.l.b16 %v720
  %v799 = vunpack.c.h.b16 %v720
  %v800 = vunpack.c.l.b16 %v721
  %v801 = vunpack.c.h.b16 %v721
  %v802 = vunpack.c.l.b16 %v722
  %v803 = vunpack.c.h.b16 %v722
  %v804 = vunpack.c.l.b16 %v723
  %v805 = vunpack.c.h.b16 %v723
  %v806 = vunpack.c.l.b16 %v724
  %v807 = vunpack.c.h.b16 %v724
  %v808 = vunpack.c.l.b16 %v725
  %v809 = vunpack.c.h.b16 %v725
  %v810 = vunpack.c.l.b16 %v726
  %v811 = vunpack.c.h.b16 %v726
  %v812 = vunpack.c.l.b16 %v727
  %v813 = vunpack.c.h.b16 %v727
  %v814 = vunpack.c.l.b16 %v728
  %v815 = vunpack.c.h.b16 %v728
  %v816 = vunpack.c.l.b16 %v729
  %v817 = vunpack.c.h.b16 %v729
  %v818 = vunpack.c.l.b16 %v730
  %v819 = vunpack.c.h.b16 %v730
  %v820 = vunpack.c.l.b16 %v731
  %v821 = vunpack.c.h.b16 %v731
  %v822 = vunpack.c.l.b16 %v732
  %v823 = vunpack.c.h.b16 %v732
  %v824 = vunpack.c.l.b16 %v733
  %v825 = vunpack.c.h.b16 %v733
  %v826 = vunpack.c.l.b16 %v734
  %v827 = vunpack.c.h.b16 %v734
  %v828 = vpack.c.b16 %v768, %v766
  %v829 = vpack.c.b16 %v769, %v767
  %v830 = vpack.c.b16 %v772, %v770
  %v831 = vpack.c.b16 %v773, %v771
  %v832 = vpack.c.b16 %v776, %v774
  %v833 = vpack.c.b16 %v777, %v775
  %v834 = vpack.c.b16 %v780, %v778
  %v835 = vpack.c.b16 %v781, %v779
  %v836 = vpack.c.b16 %v784, %v782
  %v837 = vpack.c.b16 %v785, %v783
  %v838 = vpack.c.b16 %v788, %v786
  %v839 = vpack.c.b16 %v789, %v787
  %v840 = vpack.c.b16 %v792, %v790
  %v841 = vpack.c.b16 %v793, %v791
  %v842 = vpack.c.b16 %v796, %v794
  %v843 = vpack.c.b16 %v797, %v795
  %v844 = vpack.c.b16 %v800, %v798
  %v845 = vpack.c.b16 %v801, %v799
  %v846 = vpack.c.b16 %v804, %v802
  %v847 = vpack.c.b16 %v805, %v803
  %v848 = vpack.c.b16 %v808, %v806
  %v849 = vpack.c.b16 %v809, %v807
  %v850 = vpack.c.b16 %v812, %v810
  %v851 = vpack.c.b16 %v813, %v811
  %v852 = vpack.c.b16 %v816, %v814
  %v853 = vpack.c.b16 %v817, %v815
  %v854 = vpack.c.b16 %v820, %v818
  %v855 = vpack.c.b16 %v821, %v819
  %v856 = vpack.c.b16 %v824, %v822
  %v857 = vpack.c.b16 %v825, %v823
  %v858 = vpack.c.b16 %v826, %v826
  %v859 = vpack.c.b16 %v827, %v827
  %860 = vrot.lane.b32.xlu0 %v828, 28
  %v861 = vpop.permute.xlu0 %860
  %862 = vrot.lane.b32.xlu0 %v829, 28
  %v863 = vpop.permute.xlu0 %862
  %864 = vrot.lane.b32.xlu0 %v830, 28
  %v865 = vpop.permute.xlu0 %864
  %866 = vrot.lane.b32.xlu0 %v831, 28
  %v867 = vpop.permute.xlu0 %866
  %868 = vrot.lane.b32.xlu0 %v832, 28
  %v869 = vpop.permute.xlu0 %868
  %870 = vrot.lane.b32.xlu0 %v833, 28
  %v871 = vpop.permute.xlu0 %870
  %872 = vrot.lane.b32.xlu0 %v834, 28
  %v873 = vpop.permute.xlu0 %872
  %874 = vrot.lane.b32.xlu0 %v835, 28
  %v875 = vpop.permute.xlu0 %874
  %876 = vrot.lane.b32.xlu0 %v836, 28
  %v877 = vpop.permute.xlu0 %876
  %878 = vrot.lane.b32.xlu0 %v837, 28
  %v879 = vpop.permute.xlu0 %878
  %880 = vrot.lane.b32.xlu0 %v838, 28
  %v881 = vpop.permute.xlu0 %880
  %882 = vrot.lane.b32.xlu0 %v839, 28
  %v883 = vpop.permute.xlu0 %882
  %884 = vrot.lane.b32.xlu0 %v840, 28
  %v885 = vpop.permute.xlu0 %884
  %886 = vrot.lane.b32.xlu0 %v841, 28
  %v887 = vpop.permute.xlu0 %886
  %888 = vrot.lane.b32.xlu0 %v842, 28
  %v889 = vpop.permute.xlu0 %888
  %890 = vrot.lane.b32.xlu0 %v843, 28
  %v891 = vpop.permute.xlu0 %890
  %892 = vrot.lane.b32.xlu0 %v844, 28
  %v893 = vpop.permute.xlu0 %892
  %894 = vrot.lane.b32.xlu0 %v845, 28
  %v895 = vpop.permute.xlu0 %894
  %896 = vrot.lane.b32.xlu0 %v846, 28
  %v897 = vpop.permute.xlu0 %896
  %898 = vrot.lane.b32.xlu0 %v847, 28
  %v899 = vpop.permute.xlu0 %898
  %900 = vrot.lane.b32.xlu0 %v848, 28
  %v901 = vpop.permute.xlu0 %900
  %902 = vrot.lane.b32.xlu0 %v849, 28
  %v903 = vpop.permute.xlu0 %902
  %904 = vrot.lane.b32.xlu0 %v850, 28
  %v905 = vpop.permute.xlu0 %904
  %906 = vrot.lane.b32.xlu0 %v851, 28
  %v907 = vpop.permute.xlu0 %906
  %908 = vrot.lane.b32.xlu0 %v852, 28
  %v909 = vpop.permute.xlu0 %908
  %910 = vrot.lane.b32.xlu0 %v853, 28
  %v911 = vpop.permute.xlu0 %910
  %912 = vrot.lane.b32.xlu0 %v854, 28
  %v913 = vpop.permute.xlu0 %912
  %914 = vrot.lane.b32.xlu0 %v855, 28
  %v915 = vpop.permute.xlu0 %914
  %916 = vrot.lane.b32.xlu0 %v856, 28
  %v917 = vpop.permute.xlu0 %916
  %918 = vrot.lane.b32.xlu0 %v857, 28
  %v919 = vpop.permute.xlu0 %918
  %920 = vrot.lane.b32.xlu0 %v858, 28
  %v921 = vpop.permute.xlu0 %920
  %922 = vrot.lane.b32.xlu0 %v859, 28
  %v923 = vpop.permute.xlu0 %922
  %vm924 = vcmask 228352
  %v925 = vsel %vm924, %v861, %v863
  %v926 = vsel %vm924, %v865, %v867
  %v927 = vsel %vm924, %v869, %v871
  %v928 = vsel %vm924, %v873, %v875
  %v929 = vsel %vm924, %v877, %v879
  %v930 = vsel %vm924, %v881, %v883
  %v931 = vsel %vm924, %v885, %v887
  %v932 = vsel %vm924, %v889, %v891
  %v933 = vsel %vm924, %v893, %v895
  %v934 = vsel %vm924, %v897, %v899
  %v935 = vsel %vm924, %v901, %v903
  %v936 = vsel %vm924, %v905, %v907
  %v937 = vsel %vm924, %v909, %v911
  %v938 = vsel %vm924, %v913, %v915
  %v939 = vsel %vm924, %v917, %v919
  %v940 = vsel %vm924, %v921, %v923
  %v957 = vsel %vm357, %v940, 0
  %959 = vmatprep.subr.bf16.mxu0 0
  %960 = vmatpush1.bf16.msra.mxu0 %v932
  %961 = vmatprep.subr.bf16.mxu0 0
  %962 = vmatpush1.bf16.msra.mxu0 %v931
  %963 = vmatprep.subr.bf16.mxu0 0
  %964 = vmatpush1.bf16.msra.mxu0 %v930
  %965 = vmatprep.subr.bf16.mxu0 0
  %966 = vmatpush1.bf16.msra.mxu0 %v929
  %967 = vmatprep.subr.bf16.mxu0 0
  %968 = vmatpush1.bf16.msra.mxu0 %v928
  %969 = vmatprep.subr.bf16.mxu0 0
  %970 = vmatpush1.bf16.msra.mxu0 %v927
  %971 = vmatprep.subr.bf16.mxu0 0
  %972 = vmatpush1.bf16.msra.mxu0 %v926
  %973 = vmatprep.subr.bf16.mxu0 0
  %974 = vmatpush1.bf16.msra.mxu0 %v925
  %975 = vmatprep.subr.bf16.mxu0 0
  %976 = vmatpush2.bf16.msra.mxu0 %v957
  %977 = vmatprep.subr.bf16.mxu0 0
  %978 = vmatpush2.bf16.msra.mxu0 %v939
  %979 = vmatprep.subr.bf16.mxu0 0
  %980 = vmatpush2.bf16.msra.mxu0 %v938
  %981 = vmatprep.subr.bf16.mxu0 0
  %982 = vmatpush2.bf16.msra.mxu0 %v937
  %983 = vmatprep.subr.bf16.mxu0 0
  %984 = vmatpush2.bf16.msra.mxu0 %v936
  %985 = vmatprep.subr.bf16.mxu0 0
  %986 = vmatpush2.bf16.msra.mxu0 %v935
  %987 = vmatprep.subr.bf16.mxu0 0
  %988 = vmatpush2.bf16.msra.mxu0 %v934
  %989 = vmatprep.subr.bf16.mxu0 0
  %990 = vmatpush2.bf16.msra.mxu0 %v933
  %991 = vmatprep.mubr.bf16.mxu0 %v352
  %992 = vmatmul.mubr.bf16.gmra.mxu0 %v222
  %v993 = vpop.f32.mrf.mxu0
  %v994 = vadd.f32 0.0, %v993
  %v995 = vpop.f32.mrf.mxu0
  %v996 = vpop.f32.mrf.mxu0
  %v997 = vadd.f32 0.0, %v996
  %v998 = vpop.f32.mrf.mxu0
  %999 = vmatprep.mubr.bf16.mxu0 %v355
  %1000 = vmatmul.mubr.bf16.gmra.mxu0 %v224
  %v1001 = vpop.f32.mrf.mxu0
  %v1002 = vadd.f32 0.0, %v1001
  %v1003 = vpop.f32.mrf.mxu0
  %v1004 = vpop.f32.mrf.mxu0
  %v1005 = vadd.f32 0.0, %v1004
  %v1006 = vpop.f32.mrf.mxu0
  %1007 = vdwg.mxu0
  %v1008 = vpack.c.bf16 %v997, %v994
  %v1009 = vpack.c.bf16 %v1005, %v1002
  %1010 = vrot.lane.b32.xlu0 %v537, 64
  %v1011 = vpop.permute.xlu0 %1010
  %1012 = vrot.lane.b32.xlu0 %v538, 64
  %v1013 = vpop.permute.xlu0 %1012
  %1014 = vrot.lane.b32.xlu0 %v539, 64
  %v1015 = vpop.permute.xlu0 %1014
  %1016 = vrot.lane.b32.xlu0 %v540, 64
  %v1017 = vpop.permute.xlu0 %1016
  %v1019 = vsel %vm549, %v1011, 0
  %v1022 = vsel %vm549, %v1013, 0
  %v1025 = vsel %vm549, %v1015, 0
  %v1028 = vsel %vm549, %v1017, 0
  %1030 = vmatprep.subr.bf16.mxu0 0
  %1031 = vmatpush1.bf16.msra.mxu0 0
  %1032 = vmatprep.subr.bf16.mxu0 0
  %1033 = vmatpush1.bf16.msra.mxu0 0
  %1034 = vmatprep.subr.bf16.mxu0 0
  %1035 = vmatpush1.bf16.msra.mxu0 0
  %1036 = vmatprep.subr.bf16.mxu0 0
  %1037 = vmatpush1.bf16.msra.mxu0 0
  %1038 = vmatprep.subr.bf16.mxu0 0
  %1039 = vmatpush1.bf16.msra.mxu0 0
  %1040 = vmatprep.subr.bf16.mxu0 0
  %1041 = vmatpush1.bf16.msra.mxu0 0
  %1042 = vmatprep.subr.bf16.mxu0 0
  %1043 = vmatpush1.bf16.msra.mxu0 %v1009
  %1044 = vmatprep.subr.bf16.mxu0 0
  %1045 = vmatpush1.bf16.msra.mxu0 %v1008
  %1046 = vmatprep.subr.bf16.mxu0 0
  %1047 = vmatpush2.bf16.msra.mxu0 0
  %1048 = vmatprep.subr.bf16.mxu0 0
  %1049 = vmatpush2.bf16.msra.mxu0 0
  %1050 = vmatprep.subr.bf16.mxu0 0
  %1051 = vmatpush2.bf16.msra.mxu0 0
  %1052 = vmatprep.subr.bf16.mxu0 0
  %1053 = vmatpush2.bf16.msra.mxu0 0
  %1054 = vmatprep.subr.bf16.mxu0 0
  %1055 = vmatpush2.bf16.msra.mxu0 0
  %1056 = vmatprep.subr.bf16.mxu0 0
  %1057 = vmatpush2.bf16.msra.mxu0 0
  %1058 = vmatprep.subr.bf16.mxu0 0
  %1059 = vmatpush2.bf16.msra.mxu0 0
  %1060 = vmatprep.subr.bf16.mxu0 0
  %1061 = vmatpush2.bf16.msra.mxu0 0
  %1062 = vmatprep.mubr.bf16.mxu0 0
  %1063 = vmatmul.mubr.bf16.gmra.mxu0 %v1019
  %v1064 = vpop.f32.mrf.mxu0
  %v1065 = vadd.f32 0.0, %v1064
  %v1066 = vpop.f32.mrf.mxu0
  %v1067 = vpop.f32.mrf.mxu0
  %v1068 = vadd.f32 0.0, %v1067
  %v1069 = vpop.f32.mrf.mxu0
  %1070 = vmatprep.mubr.bf16.mxu0 0
  %1071 = vmatmul.mubr.bf16.gmra.mxu0 %v1022
  %v1072 = vpop.f32.mrf.mxu0
  %v1073 = vadd.f32 0.0, %v1072
  %v1074 = vpop.f32.mrf.mxu0
  %v1075 = vpop.f32.mrf.mxu0
  %v1076 = vadd.f32 0.0, %v1075
  %v1077 = vpop.f32.mrf.mxu0
  %1078 = vmatprep.mubr.bf16.mxu0 0
  %1079 = vmatmul.mubr.bf16.gmra.mxu0 %v1025
  %v1080 = vpop.f32.mrf.mxu0
  %v1081 = vadd.f32 0.0, %v1080
  %v1082 = vpop.f32.mrf.mxu0
  %v1083 = vpop.f32.mrf.mxu0
  %v1084 = vadd.f32 0.0, %v1083
  %v1085 = vpop.f32.mrf.mxu0
  %1086 = vmatprep.mubr.bf16.mxu0 0
  %1087 = vmatmul.mubr.bf16.gmra.mxu0 %v1028
  %v1088 = vpop.f32.mrf.mxu0
  %v1089 = vadd.f32 0.0, %v1088
  %v1090 = vpop.f32.mrf.mxu0
  %v1091 = vpop.f32.mrf.mxu0
  %v1092 = vadd.f32 0.0, %v1091
  %v1093 = vpop.f32.mrf.mxu0
  %1094 = vdwg.mxu0
  %v1095 = vadd.f32 %v674, %v1065
  %v1096 = vadd.f32 %v677, %v1068
  %v1097 = vadd.f32 %v682, %v1073
  %v1098 = vadd.f32 %v685, %v1076
  %v1099 = vadd.f32 %v690, %v1081
  %v1100 = vadd.f32 %v693, %v1084
  %v1101 = vadd.f32 %v698, %v1089
  %v1102 = vadd.f32 %v701, %v1092
  %v1103 = vld [vmem:[%s3 + $0x4] sm:$0xf]
  %v1104 = vld [vmem:[%s3 + $0xc] sm:$0xf]
  %v1105 = vld [vmem:[%s3 + $0x14] sm:$0xf]
  %v1106 = vld [vmem:[%s3 + $0x1c] sm:$0xf]
  %v1107 = vld [vmem:[%s3 + $0x24] sm:$0xf]
  %v1108 = vld [vmem:[%s3 + $0x2c] sm:$0xf]
  %v1109 = vld [vmem:[%s3 + $0x34] sm:$0xf]
  %v1110 = vld [vmem:[%s3 + $0x3c] sm:$0xf]
  %v1111 = vld [vmem:[%s3 + $0x44] sm:$0xf]
  %v1112 = vld [vmem:[%s3 + $0x4c] sm:$0xf]
  %v1113 = vld [vmem:[%s3 + $0x54] sm:$0xf]
  %v1114 = vld [vmem:[%s3 + $0x5c] sm:$0xf]
  %v1115 = vld [vmem:[%s3 + $0x64] sm:$0xf]
  %v1116 = vld [vmem:[%s3 + $0x6c] sm:$0xf]
  %v1117 = vld [vmem:[%s3 + $0x74] sm:$0xf]
  %v1118 = vld [vmem:[%s3 + $0x7c] sm:$0xf]
  %v1119 = vld [vmem:[%s3 + $0x84] sm:$0xf]
  %v1120 = vld [vmem:[%s3 + $0x8c] sm:$0xf]
  %v1121 = vld [vmem:[%s3 + $0x94] sm:$0xf]
  %v1122 = vld [vmem:[%s3 + $0x9c] sm:$0xf]
  %v1123 = vld [vmem:[%s3 + $0xa4] sm:$0xf]
  %v1124 = vld [vmem:[%s3 + $0xac] sm:$0xf]
  %v1125 = vld [vmem:[%s3 + $0xb4] sm:$0xf]
  %v1126 = vld [vmem:[%s3 + $0xbc] sm:$0xf]
  %v1127 = vld [vmem:[%s3 + $0xc4] sm:$0xf]
  %v1128 = vld [vmem:[%s3 + $0xcc] sm:$0xf]
  %v1129 = vld [vmem:[%s3 + $0xd4] sm:$0xf]
  %v1130 = vld [vmem:[%s3 + $0xdc] sm:$0xf]
  %v1131 = vld [vmem:[%s3 + $0xe4] sm:$0xf]
  %v1132 = vld [vmem:[%s3 + $0xec] sm:$0xf]
  %v1133 = vld [vmem:[%s3 + $0xf4] sm:$0x1]
  %v1165 = vunpack.c.l.b16 %v1103
  %v1166 = vunpack.c.l.b16 %v1104
  %v1167 = vunpack.c.l.b16 %v1105
  %v1168 = vunpack.c.l.b16 %v1106
  %v1169 = vunpack.c.l.b16 %v1107
  %v1170 = vunpack.c.l.b16 %v1108
  %v1171 = vunpack.c.l.b16 %v1109
  %v1172 = vunpack.c.l.b16 %v1110
  %v1173 = vunpack.c.l.b16 %v1111
  %v1174 = vunpack.c.l.b16 %v1112
  %v1175 = vunpack.c.l.b16 %v1113
  %v1176 = vunpack.c.l.b16 %v1114
  %v1177 = vunpack.c.l.b16 %v1115
  %v1178 = vunpack.c.l.b16 %v1116
  %v1179 = vunpack.c.l.b16 %v1117
  %v1180 = vunpack.c.l.b16 %v1118
  %v1181 = vunpack.c.l.b16 %v1119
  %v1182 = vunpack.c.l.b16 %v1120
  %v1183 = vunpack.c.l.b16 %v1121
  %v1184 = vunpack.c.l.b16 %v1122
  %v1185 = vunpack.c.l.b16 %v1123
  %v1186 = vunpack.c.l.b16 %v1124
  %v1187 = vunpack.c.l.b16 %v1125
  %v1188 = vunpack.c.l.b16 %v1126
  %v1189 = vunpack.c.l.b16 %v1127
  %v1190 = vunpack.c.l.b16 %v1128
  %v1191 = vunpack.c.l.b16 %v1129
  %v1192 = vunpack.c.l.b16 %v1130
  %v1193 = vunpack.c.l.b16 %v1131
  %v1194 = vunpack.c.l.b16 %v1132
  %v1195 = vunpack.c.l.b16 %v1133
  %v1196 = vpack.c.b16 %v1166, %v1165
  %v1197 = vpack.c.b16 %v1168, %v1167
  %v1198 = vpack.c.b16 %v1170, %v1169
  %v1199 = vpack.c.b16 %v1172, %v1171
  %v1200 = vpack.c.b16 %v1174, %v1173
  %v1201 = vpack.c.b16 %v1176, %v1175
  %v1202 = vpack.c.b16 %v1178, %v1177
  %v1203 = vpack.c.b16 %v1180, %v1179
  %v1204 = vpack.c.b16 %v1182, %v1181
  %v1205 = vpack.c.b16 %v1184, %v1183
  %v1206 = vpack.c.b16 %v1186, %v1185
  %v1207 = vpack.c.b16 %v1188, %v1187
  %v1208 = vpack.c.b16 %v1190, %v1189
  %v1209 = vpack.c.b16 %v1192, %v1191
  %v1210 = vpack.c.b16 %v1194, %v1193
  %v1211 = vpack.c.b16 %v1195, %v1195
  %1212 = vrot.lane.b32.xlu0 %v1196, 106
  %v1213 = vpop.permute.xlu0 %1212
  %1214 = vrot.lane.b32.xlu0 %v1197, 106
  %v1215 = vpop.permute.xlu0 %1214
  %1216 = vrot.lane.b32.xlu0 %v1198, 106
  %v1217 = vpop.permute.xlu0 %1216
  %1218 = vrot.lane.b32.xlu0 %v1199, 106
  %v1219 = vpop.permute.xlu0 %1218
  %1220 = vrot.lane.b32.xlu0 %v1200, 106
  %v1221 = vpop.permute.xlu0 %1220
  %1222 = vrot.lane.b32.xlu0 %v1201, 106
  %v1223 = vpop.permute.xlu0 %1222
  %1224 = vrot.lane.b32.xlu0 %v1202, 106
  %v1225 = vpop.permute.xlu0 %1224
  %1226 = vrot.lane.b32.xlu0 %v1203, 106
  %v1227 = vpop.permute.xlu0 %1226
  %1228 = vrot.lane.b32.xlu0 %v1204, 106
  %v1229 = vpop.permute.xlu0 %1228
  %1230 = vrot.lane.b32.xlu0 %v1205, 106
  %v1231 = vpop.permute.xlu0 %1230
  %1232 = vrot.lane.b32.xlu0 %v1206, 106
  %v1233 = vpop.permute.xlu0 %1232
  %1234 = vrot.lane.b32.xlu0 %v1207, 106
  %v1235 = vpop.permute.xlu0 %1234
  %1236 = vrot.lane.b32.xlu0 %v1208, 106
  %v1237 = vpop.permute.xlu0 %1236
  %1238 = vrot.lane.b32.xlu0 %v1209, 106
  %v1239 = vpop.permute.xlu0 %1238
  %1240 = vrot.lane.b32.xlu0 %v1210, 106
  %v1241 = vpop.permute.xlu0 %1240
  %1242 = vrot.lane.b32.xlu0 %v1211, 106
  %v1243 = vpop.permute.xlu0 %1242
  %v1260 = vsel %vm357, %v1243, 0
  %1262 = vmatprep.subr.bf16.mxu0 0
  %1263 = vmatpush1.bf16.msra.mxu0 %v1227
  %1264 = vmatprep.subr.bf16.mxu0 0
  %1265 = vmatpush1.bf16.msra.mxu0 %v1225
  %1266 = vmatprep.subr.bf16.mxu0 0
  %1267 = vmatpush1.bf16.msra.mxu0 %v1223
  %1268 = vmatprep.subr.bf16.mxu0 0
  %1269 = vmatpush1.bf16.msra.mxu0 %v1221
  %1270 = vmatprep.subr.bf16.mxu0 0
  %1271 = vmatpush1.bf16.msra.mxu0 %v1219
  %1272 = vmatprep.subr.bf16.mxu0 0
  %1273 = vmatpush1.bf16.msra.mxu0 %v1217
  %1274 = vmatprep.subr.bf16.mxu0 0
  %1275 = vmatpush1.bf16.msra.mxu0 %v1215
  %1276 = vmatprep.subr.bf16.mxu0 0
  %1277 = vmatpush1.bf16.msra.mxu0 %v1213
  %1278 = vmatprep.subr.bf16.mxu0 0
  %1279 = vmatpush2.bf16.msra.mxu0 %v1260
  %1280 = vmatprep.subr.bf16.mxu0 0
  %1281 = vmatpush2.bf16.msra.mxu0 %v1241
  %1282 = vmatprep.subr.bf16.mxu0 0
  %1283 = vmatpush2.bf16.msra.mxu0 %v1239
  %1284 = vmatprep.subr.bf16.mxu0 0
  %1285 = vmatpush2.bf16.msra.mxu0 %v1237
  %1286 = vmatprep.subr.bf16.mxu0 0
  %1287 = vmatpush2.bf16.msra.mxu0 %v1235
  %1288 = vmatprep.subr.bf16.mxu0 0
  %1289 = vmatpush2.bf16.msra.mxu0 %v1233
  %1290 = vmatprep.subr.bf16.mxu0 0
  %1291 = vmatpush2.bf16.msra.mxu0 %v1231
  %1292 = vmatprep.subr.bf16.mxu0 0
  %1293 = vmatpush2.bf16.msra.mxu0 %v1229
  %1294 = vmatprep.mubr.bf16.mxu0 %v352
  %1295 = vmatmul.mubr.bf16.gmra.mxu0 %v222
  %v1296 = vpop.f32.mrf.mxu0
  %v1297 = vadd.f32 0.0, %v1296
  %v1298 = vpop.f32.mrf.mxu0
  %v1299 = vpop.f32.mrf.mxu0
  %v1300 = vadd.f32 0.0, %v1299
  %v1301 = vpop.f32.mrf.mxu0
  %1302 = vmatprep.mubr.bf16.mxu0 %v355
  %1303 = vmatmul.mubr.bf16.gmra.mxu0 %v224
  %v1304 = vpop.f32.mrf.mxu0
  %v1305 = vadd.f32 0.0, %v1304
  %v1306 = vpop.f32.mrf.mxu0
  %v1307 = vpop.f32.mrf.mxu0
  %v1308 = vadd.f32 0.0, %v1307
  %v1309 = vpop.f32.mrf.mxu0
  %1310 = vdwg.mxu0
  %v1311 = vpack.c.bf16 %v1300, %v1297
  %v1312 = vpack.c.bf16 %v1308, %v1305
  %1313 = vrot.lane.b32.xlu0 %v537, 32
  %v1314 = vpop.permute.xlu0 %1313
  %1315 = vrot.lane.b32.xlu0 %v538, 32
  %v1316 = vpop.permute.xlu0 %1315
  %1317 = vrot.lane.b32.xlu0 %v539, 32
  %v1318 = vpop.permute.xlu0 %1317
  %1319 = vrot.lane.b32.xlu0 %v540, 32
  %v1320 = vpop.permute.xlu0 %1319
  %v1322 = vsel %vm549, %v1314, 0
  %v1325 = vsel %vm549, %v1316, 0
  %v1328 = vsel %vm549, %v1318, 0
  %v1331 = vsel %vm549, %v1320, 0
  %1333 = vmatprep.subr.bf16.mxu0 0
  %1334 = vmatpush1.bf16.msra.mxu0 0
  %1335 = vmatprep.subr.bf16.mxu0 0
  %1336 = vmatpush1.bf16.msra.mxu0 0
  %1337 = vmatprep.subr.bf16.mxu0 0
  %1338 = vmatpush1.bf16.msra.mxu0 0
  %1339 = vmatprep.subr.bf16.mxu0 0
  %1340 = vmatpush1.bf16.msra.mxu0 0
  %1341 = vmatprep.subr.bf16.mxu0 0
  %1342 = vmatpush1.bf16.msra.mxu0 0
  %1343 = vmatprep.subr.bf16.mxu0 0
  %1344 = vmatpush1.bf16.msra.mxu0 0
  %1345 = vmatprep.subr.bf16.mxu0 0
  %1346 = vmatpush1.bf16.msra.mxu0 %v1312
  %1347 = vmatprep.subr.bf16.mxu0 0
  %1348 = vmatpush1.bf16.msra.mxu0 %v1311
  %1349 = vmatprep.subr.bf16.mxu0 0
  %1350 = vmatpush2.bf16.msra.mxu0 0
  %1351 = vmatprep.subr.bf16.mxu0 0
  %1352 = vmatpush2.bf16.msra.mxu0 0
  %1353 = vmatprep.subr.bf16.mxu0 0
  %1354 = vmatpush2.bf16.msra.mxu0 0
  %1355 = vmatprep.subr.bf16.mxu0 0
  %1356 = vmatpush2.bf16.msra.mxu0 0
  %1357 = vmatprep.subr.bf16.mxu0 0
  %1358 = vmatpush2.bf16.msra.mxu0 0
  %1359 = vmatprep.subr.bf16.mxu0 0
  %1360 = vmatpush2.bf16.msra.mxu0 0
  %1361 = vmatprep.subr.bf16.mxu0 0
  %1362 = vmatpush2.bf16.msra.mxu0 0
  %1363 = vmatprep.subr.bf16.mxu0 0
  %1364 = vmatpush2.bf16.msra.mxu0 0
  %1365 = vmatprep.mubr.bf16.mxu0 0
  %1366 = vmatmul.mubr.bf16.gmra.mxu0 %v1322
  %v1367 = vpop.f32.mrf.mxu0
  %v1368 = vadd.f32 0.0, %v1367
  %v1369 = vpop.f32.mrf.mxu0
  %v1370 = vpop.f32.mrf.mxu0
  %v1371 = vadd.f32 0.0, %v1370
  %v1372 = vpop.f32.mrf.mxu0
  %1373 = vmatprep.mubr.bf16.mxu0 0
  %1374 = vmatmul.mubr.bf16.gmra.mxu0 %v1325
  %v1375 = vpop.f32.mrf.mxu0
  %v1376 = vadd.f32 0.0, %v1375
  %v1377 = vpop.f32.mrf.mxu0
  %v1378 = vpop.f32.mrf.mxu0
  %v1379 = vadd.f32 0.0, %v1378
  %v1380 = vpop.f32.mrf.mxu0
  %1381 = vmatprep.mubr.bf16.mxu0 0
  %1382 = vmatmul.mubr.bf16.gmra.mxu0 %v1328
  %v1383 = vpop.f32.mrf.mxu0
  %v1384 = vadd.f32 0.0, %v1383
  %v1385 = vpop.f32.mrf.mxu0
  %v1386 = vpop.f32.mrf.mxu0
  %v1387 = vadd.f32 0.0, %v1386
  %v1388 = vpop.f32.mrf.mxu0
  %1389 = vmatprep.mubr.bf16.mxu0 0
  %1390 = vmatmul.mubr.bf16.gmra.mxu0 %v1331
  %v1391 = vpop.f32.mrf.mxu0
  %v1392 = vadd.f32 0.0, %v1391
  %v1393 = vpop.f32.mrf.mxu0
  %v1394 = vpop.f32.mrf.mxu0
  %v1395 = vadd.f32 0.0, %v1394
  %v1396 = vpop.f32.mrf.mxu0
  %1397 = vdwg.mxu0
  %v1398 = vadd.f32 %v1095, %v1368
  %v1399 = vadd.f32 %v1096, %v1371
  %v1400 = vadd.f32 %v1097, %v1376
  %v1401 = vadd.f32 %v1098, %v1379
  %v1402 = vadd.f32 %v1099, %v1384
  %v1403 = vadd.f32 %v1100, %v1387
  %v1404 = vadd.f32 %v1101, %v1392
  %v1405 = vadd.f32 %v1102, %v1395
  %v1406 = vld [vmem:[%s5] sm:$0xff]
  %v1407 = vld [vmem:[%s5 + $0x8] sm:$0xff]
  %v1408 = vld [vmem:[%s5 + $0x10] sm:$0xff]
  %v1409 = vld [vmem:[%s5 + $0x18] sm:$0xff]
  %v1410 = vld [vmem:[%s5 + $0x20] sm:$0xff]
  %v1411 = vld [vmem:[%s5 + $0x28] sm:$0xff]
  %v1412 = vld [vmem:[%s5 + $0x30] sm:$0xff]
  %v1413 = vld [vmem:[%s5 + $0x38] sm:$0xff]
  %1415 = vset.pattern.permute.xlu0 0
  %1416 = vperm.xlu0 %1415, %v1406
  %v1417 = vpop.permute.xlu0 %1416
  %1420 = vset.pattern.permute.xlu0 0
  %1421 = vperm.xlu0 %1420, %v1407
  %v1422 = vpop.permute.xlu0 %1421
  %1425 = vset.pattern.permute.xlu0 0
  %1426 = vperm.xlu0 %1425, %v1408
  %v1427 = vpop.permute.xlu0 %1426
  %1430 = vset.pattern.permute.xlu0 0
  %1431 = vperm.xlu0 %1430, %v1409
  %v1432 = vpop.permute.xlu0 %1431
  %1435 = vset.pattern.permute.xlu0 0
  %1436 = vperm.xlu0 %1435, %v1410
  %v1437 = vpop.permute.xlu0 %1436
  %1440 = vset.pattern.permute.xlu0 0
  %1441 = vperm.xlu0 %1440, %v1411
  %v1442 = vpop.permute.xlu0 %1441
  %1445 = vset.pattern.permute.xlu0 0
  %1446 = vperm.xlu0 %1445, %v1412
  %v1447 = vpop.permute.xlu0 %1446
  %1450 = vset.pattern.permute.xlu0 0
  %1451 = vperm.xlu0 %1450, %v1413
  %v1452 = vpop.permute.xlu0 %1451
  %v1454 = vadd.f32 %v1398, %v1417
  %v1455 = vadd.f32 %v1399, %v1422
  %v1456 = vadd.f32 %v1400, %v1427
  %v1457 = vadd.f32 %v1401, %v1432
  %v1458 = vadd.f32 %v1402, %v1437
  %v1459 = vadd.f32 %v1403, %v1442
  %v1460 = vadd.f32 %v1404, %v1447
  %v1461 = vadd.f32 %v1405, %v1452
  %v1462 = vmax.f32 %v1454, 0.0
  %v1463 = vmax.f32 %v1455, 0.0
  %v1464 = vmax.f32 %v1456, 0.0
  %v1465 = vmax.f32 %v1457, 0.0
  %v1466 = vmax.f32 %v1458, 0.0
  %v1467 = vmax.f32 %v1459, 0.0
  %v1468 = vmax.f32 %v1460, 0.0
  %v1469 = vmax.f32 %v1461, 0.0
  %v1470 = vpack.c.bf16 %v1463, %v1462
  %v1471 = vpack.c.bf16 %v1465, %v1464
  %v1472 = vpack.c.bf16 %v1467, %v1466
  %v1473 = vpack.c.bf16 %v1469, %v1468
  %v1474 = vld [vmem:[%s6] sm:$0xf]
  %v1475 = vld [vmem:[%s6 + $0x8] sm:$0xf]
  %v1476 = vld [vmem:[%s6 + $0x10] sm:$0xf]
  %v1477 = vld [vmem:[%s6 + $0x18] sm:$0xf]
  %v1478 = vld [vmem:[%s6 + $0x20] sm:$0xf]
  %v1479 = vld [vmem:[%s6 + $0x28] sm:$0xf]
  %v1480 = vld [vmem:[%s6 + $0x30] sm:$0x1]
  %v1488 = vunpack.c.l.b16 %v1474
  %v1489 = vunpack.c.l.b16 %v1475
  %v1490 = vunpack.c.l.b16 %v1476
  %v1491 = vunpack.c.l.b16 %v1477
  %v1492 = vunpack.c.l.b16 %v1478
  %v1493 = vunpack.c.l.b16 %v1479
  %v1494 = vunpack.c.l.b16 %v1480
  %v1495 = vpack.c.b16 %v1489, %v1488
  %v1496 = vpack.c.b16 %v1491, %v1490
  %v1497 = vpack.c.b16 %v1493, %v1492
  %v1498 = vpack.c.b16 %v1494, %v1494
  %vm1502 = vcmask 408576
  %v1504 = vsel %vm1502, %v1470, 0
  %v1507 = vsel %vm1502, %v1471, 0
  %v1510 = vsel %vm1502, %v1472, 0
  %v1513 = vsel %vm1502, %v1473, 0
  %v1516 = vsel %vm357, %v1498, 0
  %1518 = vmatprep.subr.bf16.mxu0 0
  %1519 = vmatpush1.bf16.msra.mxu0 0
  %1520 = vmatprep.subr.bf16.mxu0 0
  %1521 = vmatpush1.bf16.msra.mxu0 0
  %1522 = vmatprep.subr.bf16.mxu0 0
  %1523 = vmatpush1.bf16.msra.mxu0 0
  %1524 = vmatprep.subr.bf16.mxu0 0
  %1525 = vmatpush1.bf16.msra.mxu0 0
  %1526 = vmatprep.subr.bf16.mxu0 0
  %1527 = vmatpush1.bf16.msra.mxu0 %v1516
  %1528 = vmatprep.subr.bf16.mxu0 0
  %1529 = vmatpush1.bf16.msra.mxu0 %v1497
  %1530 = vmatprep.subr.bf16.mxu0 0
  %1531 = vmatpush1.bf16.msra.mxu0 %v1496
  %1532 = vmatprep.subr.bf16.mxu0 0
  %1533 = vmatpush1.bf16.msra.mxu0 %v1495
  %1534 = vmatprep.subr.bf16.mxu0 0
  %1535 = vmatpush2.bf16.msra.mxu0 0
  %1536 = vmatprep.subr.bf16.mxu0 0
  %1537 = vmatpush2.bf16.msra.mxu0 0
  %1538 = vmatprep.subr.bf16.mxu0 0
  %1539 = vmatpush2.bf16.msra.mxu0 0
  %1540 = vmatprep.subr.bf16.mxu0 0
  %1541 = vmatpush2.bf16.msra.mxu0 0
  %1542 = vmatprep.subr.bf16.mxu0 0
  %1543 = vmatpush2.bf16.msra.mxu0 0
  %1544 = vmatprep.subr.bf16.mxu0 0
  %1545 = vmatpush2.bf16.msra.mxu0 0
  %1546 = vmatprep.subr.bf16.mxu0 0
  %1547 = vmatpush2.bf16.msra.mxu0 0
  %1548 = vmatprep.subr.bf16.mxu0 0
  %1549 = vmatpush2.bf16.msra.mxu0 0
  %1550 = vmatprep.mubr.bf16.mxu0 0
  %1551 = vmatmul.mubr.bf16.gmra.mxu0 %v1504
  %v1552 = vpop.f32.mrf.mxu0
  %v1553 = vadd.f32 0.0, %v1552
  %v1554 = vpop.f32.mrf.mxu0
  %v1555 = vpop.f32.mrf.mxu0
  %v1556 = vadd.f32 0.0, %v1555
  %v1557 = vpop.f32.mrf.mxu0
  %1558 = vmatprep.mubr.bf16.mxu0 0
  %1559 = vmatmul.mubr.bf16.gmra.mxu0 %v1507
  %v1560 = vpop.f32.mrf.mxu0
  %v1561 = vadd.f32 0.0, %v1560
  %v1562 = vpop.f32.mrf.mxu0
  %v1563 = vpop.f32.mrf.mxu0
  %v1564 = vadd.f32 0.0, %v1563
  %v1565 = vpop.f32.mrf.mxu0
  %1566 = vmatprep.mubr.bf16.mxu0 0
  %1567 = vmatmul.mubr.bf16.gmra.mxu0 %v1510
  %v1568 = vpop.f32.mrf.mxu0
  %v1569 = vadd.f32 0.0, %v1568
  %v1570 = vpop.f32.mrf.mxu0
  %v1571 = vpop.f32.mrf.mxu0
  %v1572 = vadd.f32 0.0, %v1571
  %v1573 = vpop.f32.mrf.mxu0
  %1574 = vmatprep.mubr.bf16.mxu0 0
  %1575 = vmatmul.mubr.bf16.gmra.mxu0 %v1513
  %v1576 = vpop.f32.mrf.mxu0
  %v1577 = vadd.f32 0.0, %v1576
  %v1578 = vpop.f32.mrf.mxu0
  %v1579 = vpop.f32.mrf.mxu0
  %v1580 = vadd.f32 0.0, %v1579
  %v1581 = vpop.f32.mrf.mxu0
  %1582 = vdwg.mxu0
  %v1583 = vld [vmem:[%s7] sm:$0xf]
  %v1584 = vld [vmem:[%s7 + $0x14] sm:$0xf]
  %v1585 = vld [vmem:[%s7 + $0x28] sm:$0xf]
  %v1586 = vld [vmem:[%s7 + $0x3c] sm:$0xf]
  %v1587 = vld [vmem:[%s7 + $0x50] sm:$0xf]
  %v1588 = vld [vmem:[%s7 + $0x64] sm:$0xf]
  %v1589 = vld [vmem:[%s7 + $0x78] sm:$0xf]
  %v1590 = vld [vmem:[%s7 + $0x8c] sm:$0xf]
  %v1591 = vld [vmem:[%s7 + $0xa0] sm:$0xf]
  %v1592 = vld [vmem:[%s7 + $0xb4] sm:$0xf]
  %v1593 = vld [vmem:[%s7 + $0xc8] sm:$0xf]
  %v1594 = vld [vmem:[%s7 + $0xdc] sm:$0xf]
  %v1595 = vld [vmem:[%s7 + $0xf0] sm:$0xf]
  %v1596 = vld [vmem:[%s7 + $0x104] sm:$0xf]
  %v1597 = vld [vmem:[%s7 + $0x118] sm:$0xf]
  %v1598 = vld [vmem:[%s7 + $0x12c] sm:$0xf]
  %v1599 = vpack.c.bf16 %v1556, %v1553
  %v1600 = vpack.c.bf16 %v1564, %v1561
  %v1601 = vpack.c.bf16 %v1572, %v1569
  %v1602 = vpack.c.bf16 %v1580, %v1577
  %1603 = vrot.lane.b32.xlu0 %v1495, 110
  %v1604 = vpop.permute.xlu0 %1603
  %1605 = vrot.lane.b32.xlu0 %v1496, 110
  %v1606 = vpop.permute.xlu0 %1605
  %1607 = vrot.lane.b32.xlu0 %v1497, 110
  %v1608 = vpop.permute.xlu0 %1607
  %1609 = vrot.lane.b32.xlu0 %v1498, 110
  %v1610 = vpop.permute.xlu0 %1609
  %v1615 = vsel %vm357, %v1610, 0
  %1617 = vmatprep.subr.bf16.mxu0 0
  %1618 = vmatpush1.bf16.msra.mxu0 0
  %1619 = vmatprep.subr.bf16.mxu0 0
  %1620 = vmatpush1.bf16.msra.mxu0 0
  %1621 = vmatprep.subr.bf16.mxu0 0
  %1622 = vmatpush1.bf16.msra.mxu0 0
  %1623 = vmatprep.subr.bf16.mxu0 0
  %1624 = vmatpush1.bf16.msra.mxu0 0
  %1625 = vmatprep.subr.bf16.mxu0 0
  %1626 = vmatpush1.bf16.msra.mxu0 %v1615
  %1627 = vmatprep.subr.bf16.mxu0 0
  %1628 = vmatpush1.bf16.msra.mxu0 %v1608
  %1629 = vmatprep.subr.bf16.mxu0 0
  %1630 = vmatpush1.bf16.msra.mxu0 %v1606
  %1631 = vmatprep.subr.bf16.mxu0 0
  %1632 = vmatpush1.bf16.msra.mxu0 %v1604
  %1633 = vmatprep.subr.bf16.mxu0 0
  %1634 = vmatpush2.bf16.msra.mxu0 0
  %1635 = vmatprep.subr.bf16.mxu0 0
  %1636 = vmatpush2.bf16.msra.mxu0 0
  %1637 = vmatprep.subr.bf16.mxu0 0
  %1638 = vmatpush2.bf16.msra.mxu0 0
  %1639 = vmatprep.subr.bf16.mxu0 0
  %1640 = vmatpush2.bf16.msra.mxu0 0
  %1641 = vmatprep.subr.bf16.mxu0 0
  %1642 = vmatpush2.bf16.msra.mxu0 0
  %1643 = vmatprep.subr.bf16.mxu0 0
  %1644 = vmatpush2.bf16.msra.mxu0 0
  %1645 = vmatprep.subr.bf16.mxu0 0
  %1646 = vmatpush2.bf16.msra.mxu0 0
  %1647 = vmatprep.subr.bf16.mxu0 0
  %1648 = vmatpush2.bf16.msra.mxu0 0
  %1649 = vmatprep.mubr.bf16.mxu0 0
  %1650 = vmatmul.mubr.bf16.gmra.mxu0 %v1504
  %v1651 = vpop.f32.mrf.mxu0
  %v1652 = vadd.f32 0.0, %v1651
  %v1653 = vpop.f32.mrf.mxu0
  %v1654 = vpop.f32.mrf.mxu0
  %v1655 = vadd.f32 0.0, %v1654
  %v1656 = vpop.f32.mrf.mxu0
  %1657 = vmatprep.mubr.bf16.mxu0 0
  %1658 = vmatmul.mubr.bf16.gmra.mxu0 %v1507
  %v1659 = vpop.f32.mrf.mxu0
  %v1660 = vadd.f32 0.0, %v1659
  %v1661 = vpop.f32.mrf.mxu0
  %v1662 = vpop.f32.mrf.mxu0
  %v1663 = vadd.f32 0.0, %v1662
  %v1664 = vpop.f32.mrf.mxu0
  %1665 = vmatprep.mubr.bf16.mxu0 0
  %1666 = vmatmul.mubr.bf16.gmra.mxu0 %v1510
  %v1667 = vpop.f32.mrf.mxu0
  %v1668 = vadd.f32 0.0, %v1667
  %v1669 = vpop.f32.mrf.mxu0
  %v1670 = vpop.f32.mrf.mxu0
  %v1671 = vadd.f32 0.0, %v1670
  %v1672 = vpop.f32.mrf.mxu0
  %1673 = vmatprep.mubr.bf16.mxu0 0
  %1674 = vmatmul.mubr.bf16.gmra.mxu0 %v1513
  %v1675 = vpop.f32.mrf.mxu0
  %v1676 = vadd.f32 0.0, %v1675
  %v1677 = vpop.f32.mrf.mxu0
  %v1678 = vpop.f32.mrf.mxu0
  %v1679 = vadd.f32 0.0, %v1678
  %v1680 = vpop.f32.mrf.mxu0
  %1681 = vdwg.mxu0
  %v1682 = vpack.c.bf16 %v1655, %v1652
  %v1683 = vpack.c.bf16 %v1663, %v1660
  %v1684 = vpack.c.bf16 %v1671, %v1668
  %v1685 = vpack.c.bf16 %v1679, %v1676
  %v1702 = vunpack.c.l.b16 %v1583
  %v1703 = vunpack.c.l.b16 %v1584
  %v1704 = vunpack.c.l.b16 %v1585
  %v1705 = vunpack.c.l.b16 %v1586
  %v1706 = vunpack.c.l.b16 %v1587
  %v1707 = vunpack.c.l.b16 %v1588
  %v1708 = vunpack.c.l.b16 %v1589
  %v1709 = vunpack.c.l.b16 %v1590
  %v1710 = vunpack.c.l.b16 %v1591
  %v1711 = vunpack.c.l.b16 %v1592
  %v1712 = vunpack.c.l.b16 %v1593
  %v1713 = vunpack.c.l.b16 %v1594
  %v1714 = vunpack.c.l.b16 %v1595
  %v1715 = vunpack.c.l.b16 %v1596
  %v1716 = vunpack.c.l.b16 %v1597
  %v1717 = vunpack.c.l.b16 %v1598
  %v1718 = vpack.c.b16 %v1703, %v1702
  %v1719 = vpack.c.b16 %v1705, %v1704
  %v1720 = vpack.c.b16 %v1707, %v1706
  %v1721 = vpack.c.b16 %v1709, %v1708
  %v1722 = vpack.c.b16 %v1711, %v1710
  %v1723 = vpack.c.b16 %v1713, %v1712
  %v1724 = vpack.c.b16 %v1715, %v1714
  %v1725 = vpack.c.b16 %v1717, %v1716
  %1726 = vrot.lane.b32.xlu0 %v1718, 64
  %v1727 = vpop.permute.xlu0 %1726
  %1728 = vrot.lane.b32.xlu0 %v1719, 64
  %v1729 = vpop.permute.xlu0 %1728
  %1730 = vrot.lane.b32.xlu0 %v1720, 64
  %v1731 = vpop.permute.xlu0 %1730
  %1732 = vrot.lane.b32.xlu0 %v1721, 64
  %v1733 = vpop.permute.xlu0 %1732
  %1734 = vrot.lane.b32.xlu0 %v1722, 64
  %v1735 = vpop.permute.xlu0 %1734
  %1736 = vrot.lane.b32.xlu0 %v1723, 64
  %v1737 = vpop.permute.xlu0 %1736
  %1738 = vrot.lane.b32.xlu0 %v1724, 64
  %v1739 = vpop.permute.xlu0 %1738
  %1740 = vrot.lane.b32.xlu0 %v1725, 64
  %v1741 = vpop.permute.xlu0 %1740
  %v1743 = vsel %vm154, %v1727, 0
  %v1746 = vsel %vm154, %v1729, 0
  %v1749 = vsel %vm154, %v1731, 0
  %v1752 = vsel %vm154, %v1733, 0
  %v1755 = vsel %vm154, %v1735, 0
  %v1758 = vsel %vm154, %v1737, 0
  %v1761 = vsel %vm154, %v1739, 0
  %v1764 = vsel %vm154, %v1741, 0
  %1766 = vmatprep.subr.bf16.mxu0 0
  %1767 = vmatpush1.bf16.msra.mxu0 0
  %1768 = vmatprep.subr.bf16.mxu0 0
  %1769 = vmatpush1.bf16.msra.mxu0 0
  %1770 = vmatprep.subr.bf16.mxu0 0
  %1771 = vmatpush1.bf16.msra.mxu0 0
  %1772 = vmatprep.subr.bf16.mxu0 0
  %1773 = vmatpush1.bf16.msra.mxu0 0
  %1774 = vmatprep.subr.bf16.mxu0 0
  %1775 = vmatpush1.bf16.msra.mxu0 %v1685
  %1776 = vmatprep.subr.bf16.mxu0 0
  %1777 = vmatpush1.bf16.msra.mxu0 %v1684
  %1778 = vmatprep.subr.bf16.mxu0 0
  %1779 = vmatpush1.bf16.msra.mxu0 %v1683
  %1780 = vmatprep.subr.bf16.mxu0 0
  %1781 = vmatpush1.bf16.msra.mxu0 %v1682
  %1782 = vmatprep.subr.bf16.mxu0 0
  %1783 = vmatpush2.bf16.msra.mxu0 0
  %1784 = vmatprep.subr.bf16.mxu0 0
  %1785 = vmatpush2.bf16.msra.mxu0 0
  %1786 = vmatprep.subr.bf16.mxu0 0
  %1787 = vmatpush2.bf16.msra.mxu0 0
  %1788 = vmatprep.subr.bf16.mxu0 0
  %1789 = vmatpush2.bf16.msra.mxu0 0
  %1790 = vmatprep.subr.bf16.mxu0 0
  %1791 = vmatpush2.bf16.msra.mxu0 0
  %1792 = vmatprep.subr.bf16.mxu0 0
  %1793 = vmatpush2.bf16.msra.mxu0 0
  %1794 = vmatprep.subr.bf16.mxu0 0
  %1795 = vmatpush2.bf16.msra.mxu0 0
  %1796 = vmatprep.subr.bf16.mxu0 0
  %1797 = vmatpush2.bf16.msra.mxu0 0
  %1798 = vmatprep.mubr.bf16.mxu0 0
  %1799 = vmatmul.mubr.bf16.gmra.mxu0 %v1743
  %v1800 = vpop.f32.mrf.mxu0
  %v1801 = vadd.f32 0.0, %v1800
  %v1802 = vpop.f32.mrf.mxu0
  %v1803 = vpop.f32.mrf.mxu0
  %v1804 = vadd.f32 0.0, %v1803
  %v1805 = vpop.f32.mrf.mxu0
  %1806 = vmatprep.mubr.bf16.mxu0 0
  %1807 = vmatmul.mubr.bf16.gmra.mxu0 %v1746
  %v1808 = vpop.f32.mrf.mxu0
  %v1809 = vadd.f32 0.0, %v1808
  %v1810 = vpop.f32.mrf.mxu0
  %v1811 = vpop.f32.mrf.mxu0
  %v1812 = vadd.f32 0.0, %v1811
  %v1813 = vpop.f32.mrf.mxu0
  %1814 = vmatprep.mubr.bf16.mxu0 0
  %1815 = vmatmul.mubr.bf16.gmra.mxu0 %v1749
  %v1816 = vpop.f32.mrf.mxu0
  %v1817 = vadd.f32 0.0, %v1816
  %v1818 = vpop.f32.mrf.mxu0
  %v1819 = vpop.f32.mrf.mxu0
  %v1820 = vadd.f32 0.0, %v1819
  %v1821 = vpop.f32.mrf.mxu0
  %1822 = vmatprep.mubr.bf16.mxu0 0
  %1823 = vmatmul.mubr.bf16.gmra.mxu0 %v1752
  %v1824 = vpop.f32.mrf.mxu0
  %v1825 = vadd.f32 0.0, %v1824
  %v1826 = vpop.f32.mrf.mxu0
  %v1827 = vpop.f32.mrf.mxu0
  %v1828 = vadd.f32 0.0, %v1827
  %v1829 = vpop.f32.mrf.mxu0
  %1830 = vmatprep.mubr.bf16.mxu0 0
  %1831 = vmatmul.mubr.bf16.gmra.mxu0 %v1755
  %v1832 = vpop.f32.mrf.mxu0
  %v1833 = vadd.f32 0.0, %v1832
  %v1834 = vpop.f32.mrf.mxu0
  %v1835 = vpop.f32.mrf.mxu0
  %v1836 = vadd.f32 0.0, %v1835
  %v1837 = vpop.f32.mrf.mxu0
  %1838 = vmatprep.mubr.bf16.mxu0 0
  %1839 = vmatmul.mubr.bf16.gmra.mxu0 %v1758
  %v1840 = vpop.f32.mrf.mxu0
  %v1841 = vadd.f32 0.0, %v1840
  %v1842 = vpop.f32.mrf.mxu0
  %v1843 = vpop.f32.mrf.mxu0
  %v1844 = vadd.f32 0.0, %v1843
  %v1845 = vpop.f32.mrf.mxu0
  %1846 = vmatprep.mubr.bf16.mxu0 0
  %1847 = vmatmul.mubr.bf16.gmra.mxu0 %v1761
  %v1848 = vpop.f32.mrf.mxu0
  %v1849 = vadd.f32 0.0, %v1848
  %v1850 = vpop.f32.mrf.mxu0
  %v1851 = vpop.f32.mrf.mxu0
  %v1852 = vadd.f32 0.0, %v1851
  %v1853 = vpop.f32.mrf.mxu0
  %1854 = vmatprep.mubr.bf16.mxu0 0
  %1855 = vmatmul.mubr.bf16.gmra.mxu0 %v1764
  %v1856 = vpop.f32.mrf.mxu0
  %v1857 = vadd.f32 0.0, %v1856
  %v1858 = vpop.f32.mrf.mxu0
  %v1859 = vpop.f32.mrf.mxu0
  %v1860 = vadd.f32 0.0, %v1859
  %v1861 = vpop.f32.mrf.mxu0
  %1862 = vdwg.mxu0
  %v1864 = vsel %vm154, %v1718, 0
  %v1867 = vsel %vm154, %v1719, 0
  %v1870 = vsel %vm154, %v1720, 0
  %v1873 = vsel %vm154, %v1721, 0
  %v1876 = vsel %vm154, %v1722, 0
  %v1879 = vsel %vm154, %v1723, 0
  %v1882 = vsel %vm154, %v1724, 0
  %v1885 = vsel %vm154, %v1725, 0
  %1887 = vmatprep.subr.bf16.mxu0 0
  %1888 = vmatpush1.bf16.msra.mxu0 0
  %1889 = vmatprep.subr.bf16.mxu0 0
  %1890 = vmatpush1.bf16.msra.mxu0 0
  %1891 = vmatprep.subr.bf16.mxu0 0
  %1892 = vmatpush1.bf16.msra.mxu0 0
  %1893 = vmatprep.subr.bf16.mxu0 0
  %1894 = vmatpush1.bf16.msra.mxu0 0
  %1895 = vmatprep.subr.bf16.mxu0 0
  %1896 = vmatpush1.bf16.msra.mxu0 %v1602
  %1897 = vmatprep.subr.bf16.mxu0 0
  %1898 = vmatpush1.bf16.msra.mxu0 %v1601
  %1899 = vmatprep.subr.bf16.mxu0 0
  %1900 = vmatpush1.bf16.msra.mxu0 %v1600
  %1901 = vmatprep.subr.bf16.mxu0 0
  %1902 = vmatpush1.bf16.msra.mxu0 %v1599
  %1903 = vmatprep.subr.bf16.mxu0 0
  %1904 = vmatpush2.bf16.msra.mxu0 0
  %1905 = vmatprep.subr.bf16.mxu0 0
  %1906 = vmatpush2.bf16.msra.mxu0 0
  %1907 = vmatprep.subr.bf16.mxu0 0
  %1908 = vmatpush2.bf16.msra.mxu0 0
  %1909 = vmatprep.subr.bf16.mxu0 0
  %1910 = vmatpush2.bf16.msra.mxu0 0
  %1911 = vmatprep.subr.bf16.mxu0 0
  %1912 = vmatpush2.bf16.msra.mxu0 0
  %1913 = vmatprep.subr.bf16.mxu0 0
  %1914 = vmatpush2.bf16.msra.mxu0 0
  %1915 = vmatprep.subr.bf16.mxu0 0
  %1916 = vmatpush2.bf16.msra.mxu0 0
  %1917 = vmatprep.subr.bf16.mxu0 0
  %1918 = vmatpush2.bf16.msra.mxu0 0
  %1919 = vmatprep.mubr.bf16.mxu0 0
  %1920 = vmatmul.mubr.bf16.gmra.mxu0 %v1864
  %v1921 = vpop.f32.mrf.mxu0
  %v1922 = vadd.f32 %v1801, %v1921
  %v1923 = vpop.f32.mrf.mxu0
  %v1924 = vpop.f32.mrf.mxu0
  %v1925 = vadd.f32 %v1804, %v1924
  %v1926 = vpop.f32.mrf.mxu0
  %1927 = vmatprep.mubr.bf16.mxu0 0
  %1928 = vmatmul.mubr.bf16.gmra.mxu0 %v1867
  %v1929 = vpop.f32.mrf.mxu0
  %v1930 = vadd.f32 %v1809, %v1929
  %v1931 = vpop.f32.mrf.mxu0
  %v1932 = vpop.f32.mrf.mxu0
  %v1933 = vadd.f32 %v1812, %v1932
  %v1934 = vpop.f32.mrf.mxu0
  %1935 = vmatprep.mubr.bf16.mxu0 0
  %1936 = vmatmul.mubr.bf16.gmra.mxu0 %v1870
  %v1937 = vpop.f32.mrf.mxu0
  %v1938 = vadd.f32 %v1817, %v1937
  %v1939 = vpop.f32.mrf.mxu0
  %v1940 = vpop.f32.mrf.mxu0
  %v1941 = vadd.f32 %v1820, %v1940
  %v1942 = vpop.f32.mrf.mxu0
  %1943 = vmatprep.mubr.bf16.mxu0 0
  %1944 = vmatmul.mubr.bf16.gmra.mxu0 %v1873
  %v1945 = vpop.f32.mrf.mxu0
  %v1946 = vadd.f32 %v1825, %v1945
  %v1947 = vpop.f32.mrf.mxu0
  %v1948 = vpop.f32.mrf.mxu0
  %v1949 = vadd.f32 %v1828, %v1948
  %v1950 = vpop.f32.mrf.mxu0
  %1951 = vmatprep.mubr.bf16.mxu0 0
  %1952 = vmatmul.mubr.bf16.gmra.mxu0 %v1876
  %v1953 = vpop.f32.mrf.mxu0
  %v1954 = vadd.f32 %v1833, %v1953
  %v1955 = vpop.f32.mrf.mxu0
  %v1956 = vpop.f32.mrf.mxu0
  %v1957 = vadd.f32 %v1836, %v1956
  %v1958 = vpop.f32.mrf.mxu0
  %1959 = vmatprep.mubr.bf16.mxu0 0
  %1960 = vmatmul.mubr.bf16.gmra.mxu0 %v1879
  %v1961 = vpop.f32.mrf.mxu0
  %v1962 = vadd.f32 %v1841, %v1961
  %v1963 = vpop.f32.mrf.mxu0
  %v1964 = vpop.f32.mrf.mxu0
  %v1965 = vadd.f32 %v1844, %v1964
  %v1966 = vpop.f32.mrf.mxu0
  %1967 = vmatprep.mubr.bf16.mxu0 0
  %1968 = vmatmul.mubr.bf16.gmra.mxu0 %v1882
  %v1969 = vpop.f32.mrf.mxu0
  %v1970 = vadd.f32 %v1849, %v1969
  %v1971 = vpop.f32.mrf.mxu0
  %v1972 = vpop.f32.mrf.mxu0
  %v1973 = vadd.f32 %v1852, %v1972
  %v1974 = vpop.f32.mrf.mxu0
  %1975 = vmatprep.mubr.bf16.mxu0 0
  %1976 = vmatmul.mubr.bf16.gmra.mxu0 %v1885
  %v1977 = vpop.f32.mrf.mxu0
  %v1978 = vadd.f32 %v1857, %v1977
  %v1979 = vpop.f32.mrf.mxu0
  %v1980 = vpop.f32.mrf.mxu0
  %v1981 = vadd.f32 %v1860, %v1980
  %v1982 = vpop.f32.mrf.mxu0
  %1983 = vdwg.mxu0
  %1984 = vrot.lane.b32.xlu0 %v1495, 92
  %v1985 = vpop.permute.xlu0 %1984
  %1986 = vrot.lane.b32.xlu0 %v1496, 92
  %v1987 = vpop.permute.xlu0 %1986
  %1988 = vrot.lane.b32.xlu0 %v1497, 92
  %v1989 = vpop.permute.xlu0 %1988
  %1990 = vrot.lane.b32.xlu0 %v1498, 92
  %v1991 = vpop.permute.xlu0 %1990
  %v1996 = vsel %vm357, %v1991, 0
  %1998 = vmatprep.subr.bf16.mxu0 0
  %1999 = vmatpush1.bf16.msra.mxu0 0
  %2000 = vmatprep.subr.bf16.mxu0 0
  %2001 = vmatpush1.bf16.msra.mxu0 0
  %2002 = vmatprep.subr.bf16.mxu0 0
  %2003 = vmatpush1.bf16.msra.mxu0 0
  %2004 = vmatprep.subr.bf16.mxu0 0
  %2005 = vmatpush1.bf16.msra.mxu0 0
  %2006 = vmatprep.subr.bf16.mxu0 0
  %2007 = vmatpush1.bf16.msra.mxu0 %v1996
  %2008 = vmatprep.subr.bf16.mxu0 0
  %2009 = vmatpush1.bf16.msra.mxu0 %v1989
  %2010 = vmatprep.subr.bf16.mxu0 0
  %2011 = vmatpush1.bf16.msra.mxu0 %v1987
  %2012 = vmatprep.subr.bf16.mxu0 0
  %2013 = vmatpush1.bf16.msra.mxu0 %v1985
  %2014 = vmatprep.subr.bf16.mxu0 0
  %2015 = vmatpush2.bf16.msra.mxu0 0
  %2016 = vmatprep.subr.bf16.mxu0 0
  %2017 = vmatpush2.bf16.msra.mxu0 0
  %2018 = vmatprep.subr.bf16.mxu0 0
  %2019 = vmatpush2.bf16.msra.mxu0 0
  %2020 = vmatprep.subr.bf16.mxu0 0
  %2021 = vmatpush2.bf16.msra.mxu0 0
  %2022 = vmatprep.subr.bf16.mxu0 0
  %2023 = vmatpush2.bf16.msra.mxu0 0
  %2024 = vmatprep.subr.bf16.mxu0 0
  %2025 = vmatpush2.bf16.msra.mxu0 0
  %2026 = vmatprep.subr.bf16.mxu0 0
  %2027 = vmatpush2.bf16.msra.mxu0 0
  %2028 = vmatprep.subr.bf16.mxu0 0
  %2029 = vmatpush2.bf16.msra.mxu0 0
  %2030 = vmatprep.mubr.bf16.mxu0 0
  %2031 = vmatmul.mubr.bf16.gmra.mxu0 %v1504
  %v2032 = vpop.f32.mrf.mxu0
  %v2033 = vadd.f32 0.0, %v2032
  %v2034 = vpop.f32.mrf.mxu0
  %v2035 = vpop.f32.mrf.mxu0
  %v2036 = vadd.f32 0.0, %v2035
  %v2037 = vpop.f32.mrf.mxu0
  %2038 = vmatprep.mubr.bf16.mxu0 0
  %2039 = vmatmul.mubr.bf16.gmra.mxu0 %v1507
  %v2040 = vpop.f32.mrf.mxu0
  %v2041 = vadd.f32 0.0, %v2040
  %v2042 = vpop.f32.mrf.mxu0
  %v2043 = vpop.f32.mrf.mxu0
  %v2044 = vadd.f32 0.0, %v2043
  %v2045 = vpop.f32.mrf.mxu0
  %2046 = vmatprep.mubr.bf16.mxu0 0
  %2047 = vmatmul.mubr.bf16.gmra.mxu0 %v1510
  %v2048 = vpop.f32.mrf.mxu0
  %v2049 = vadd.f32 0.0, %v2048
  %v2050 = vpop.f32.mrf.mxu0
  %v2051 = vpop.f32.mrf.mxu0
  %v2052 = vadd.f32 0.0, %v2051
  %v2053 = vpop.f32.mrf.mxu0
  %2054 = vmatprep.mubr.bf16.mxu0 0
  %2055 = vmatmul.mubr.bf16.gmra.mxu0 %v1513
  %v2056 = vpop.f32.mrf.mxu0
  %v2057 = vadd.f32 0.0, %v2056
  %v2058 = vpop.f32.mrf.mxu0
  %v2059 = vpop.f32.mrf.mxu0
  %v2060 = vadd.f32 0.0, %v2059
  %v2061 = vpop.f32.mrf.mxu0
  %2062 = vdwg.mxu0
  %v2063 = vld [vmem:[%s7 + $0x4] sm:$0xf]
  %v2064 = vld [vmem:[%s7 + $0x18] sm:$0xf]
  %v2065 = vld [vmem:[%s7 + $0x2c] sm:$0xf]
  %v2066 = vld [vmem:[%s7 + $0x40] sm:$0xf]
  %v2067 = vld [vmem:[%s7 + $0x54] sm:$0xf]
  %v2068 = vld [vmem:[%s7 + $0x68] sm:$0xf]
  %v2069 = vld [vmem:[%s7 + $0x7c] sm:$0xf]
  %v2070 = vld [vmem:[%s7 + $0x90] sm:$0xf]
  %v2071 = vld [vmem:[%s7 + $0xa4] sm:$0xf]
  %v2072 = vld [vmem:[%s7 + $0xb8] sm:$0xf]
  %v2073 = vld [vmem:[%s7 + $0xcc] sm:$0xf]
  %v2074 = vld [vmem:[%s7 + $0xe0] sm:$0xf]
  %v2075 = vld [vmem:[%s7 + $0xf4] sm:$0xf]
  %v2076 = vld [vmem:[%s7 + $0x108] sm:$0xf]
  %v2077 = vld [vmem:[%s7 + $0x11c] sm:$0xf]
  %v2078 = vld [vmem:[%s7 + $0x130] sm:$0xf]
  %v2079 = vpack.c.bf16 %v2036, %v2033
  %v2080 = vpack.c.bf16 %v2044, %v2041
  %v2081 = vpack.c.bf16 %v2052, %v2049
  %v2082 = vpack.c.bf16 %v2060, %v2057
  %v2099 = vunpack.c.l.b16 %v2063
  %v2100 = vunpack.c.l.b16 %v2064
  %v2101 = vunpack.c.l.b16 %v2065
  %v2102 = vunpack.c.l.b16 %v2066
  %v2103 = vunpack.c.l.b16 %v2067
  %v2104 = vunpack.c.l.b16 %v2068
  %v2105 = vunpack.c.l.b16 %v2069
  %v2106 = vunpack.c.l.b16 %v2070
  %v2107 = vunpack.c.l.b16 %v2071
  %v2108 = vunpack.c.l.b16 %v2072
  %v2109 = vunpack.c.l.b16 %v2073
  %v2110 = vunpack.c.l.b16 %v2074
  %v2111 = vunpack.c.l.b16 %v2075
  %v2112 = vunpack.c.l.b16 %v2076
  %v2113 = vunpack.c.l.b16 %v2077
  %v2114 = vunpack.c.l.b16 %v2078
  %v2115 = vpack.c.b16 %v2100, %v2099
  %v2116 = vpack.c.b16 %v2102, %v2101
  %v2117 = vpack.c.b16 %v2104, %v2103
  %v2118 = vpack.c.b16 %v2106, %v2105
  %v2119 = vpack.c.b16 %v2108, %v2107
  %v2120 = vpack.c.b16 %v2110, %v2109
  %v2121 = vpack.c.b16 %v2112, %v2111
  %v2122 = vpack.c.b16 %v2114, %v2113
  %v2124 = vsel %vm154, %v2115, 0
  %v2127 = vsel %vm154, %v2116, 0
  %v2130 = vsel %vm154, %v2117, 0
  %v2133 = vsel %vm154, %v2118, 0
  %v2136 = vsel %vm154, %v2119, 0
  %v2139 = vsel %vm154, %v2120, 0
  %v2142 = vsel %vm154, %v2121, 0
  %v2145 = vsel %vm154, %v2122, 0
  %2147 = vmatprep.subr.bf16.mxu0 0
  %2148 = vmatpush1.bf16.msra.mxu0 0
  %2149 = vmatprep.subr.bf16.mxu0 0
  %2150 = vmatpush1.bf16.msra.mxu0 0
  %2151 = vmatprep.subr.bf16.mxu0 0
  %2152 = vmatpush1.bf16.msra.mxu0 0
  %2153 = vmatprep.subr.bf16.mxu0 0
  %2154 = vmatpush1.bf16.msra.mxu0 0
  %2155 = vmatprep.subr.bf16.mxu0 0
  %2156 = vmatpush1.bf16.msra.mxu0 %v2082
  %2157 = vmatprep.subr.bf16.mxu0 0
  %2158 = vmatpush1.bf16.msra.mxu0 %v2081
  %2159 = vmatprep.subr.bf16.mxu0 0
  %2160 = vmatpush1.bf16.msra.mxu0 %v2080
  %2161 = vmatprep.subr.bf16.mxu0 0
  %2162 = vmatpush1.bf16.msra.mxu0 %v2079
  %2163 = vmatprep.subr.bf16.mxu0 0
  %2164 = vmatpush2.bf16.msra.mxu0 0
  %2165 = vmatprep.subr.bf16.mxu0 0
  %2166 = vmatpush2.bf16.msra.mxu0 0
  %2167 = vmatprep.subr.bf16.mxu0 0
  %2168 = vmatpush2.bf16.msra.mxu0 0
  %2169 = vmatprep.subr.bf16.mxu0 0
  %2170 = vmatpush2.bf16.msra.mxu0 0
  %2171 = vmatprep.subr.bf16.mxu0 0
  %2172 = vmatpush2.bf16.msra.mxu0 0
  %2173 = vmatprep.subr.bf16.mxu0 0
  %2174 = vmatpush2.bf16.msra.mxu0 0
  %2175 = vmatprep.subr.bf16.mxu0 0
  %2176 = vmatpush2.bf16.msra.mxu0 0
  %2177 = vmatprep.subr.bf16.mxu0 0
  %2178 = vmatpush2.bf16.msra.mxu0 0
  %2179 = vmatprep.mubr.bf16.mxu0 0
  %2180 = vmatmul.mubr.bf16.gmra.mxu0 %v2124
  %v2181 = vpop.f32.mrf.mxu0
  %v2182 = vadd.f32 0.0, %v2181
  %v2183 = vpop.f32.mrf.mxu0
  %v2184 = vpop.f32.mrf.mxu0
  %v2185 = vadd.f32 0.0, %v2184
  %v2186 = vpop.f32.mrf.mxu0
  %2187 = vmatprep.mubr.bf16.mxu0 0
  %2188 = vmatmul.mubr.bf16.gmra.mxu0 %v2127
  %v2189 = vpop.f32.mrf.mxu0
  %v2190 = vadd.f32 0.0, %v2189
  %v2191 = vpop.f32.mrf.mxu0
  %v2192 = vpop.f32.mrf.mxu0
  %v2193 = vadd.f32 0.0, %v2192
  %v2194 = vpop.f32.mrf.mxu0
  %2195 = vmatprep.mubr.bf16.mxu0 0
  %2196 = vmatmul.mubr.bf16.gmra.mxu0 %v2130
  %v2197 = vpop.f32.mrf.mxu0
  %v2198 = vadd.f32 0.0, %v2197
  %v2199 = vpop.f32.mrf.mxu0
  %v2200 = vpop.f32.mrf.mxu0
  %v2201 = vadd.f32 0.0, %v2200
  %v2202 = vpop.f32.mrf.mxu0
  %2203 = vmatprep.mubr.bf16.mxu0 0
  %2204 = vmatmul.mubr.bf16.gmra.mxu0 %v2133
  %v2205 = vpop.f32.mrf.mxu0
  %v2206 = vadd.f32 0.0, %v2205
  %v2207 = vpop.f32.mrf.mxu0
  %v2208 = vpop.f32.mrf.mxu0
  %v2209 = vadd.f32 0.0, %v2208
  %v2210 = vpop.f32.mrf.mxu0
  %2211 = vmatprep.mubr.bf16.mxu0 0
  %2212 = vmatmul.mubr.bf16.gmra.mxu0 %v2136
  %v2213 = vpop.f32.mrf.mxu0
  %v2214 = vadd.f32 0.0, %v2213
  %v2215 = vpop.f32.mrf.mxu0
  %v2216 = vpop.f32.mrf.mxu0
  %v2217 = vadd.f32 0.0, %v2216
  %v2218 = vpop.f32.mrf.mxu0
  %2219 = vmatprep.mubr.bf16.mxu0 0
  %2220 = vmatmul.mubr.bf16.gmra.mxu0 %v2139
  %v2221 = vpop.f32.mrf.mxu0
  %v2222 = vadd.f32 0.0, %v2221
  %v2223 = vpop.f32.mrf.mxu0
  %v2224 = vpop.f32.mrf.mxu0
  %v2225 = vadd.f32 0.0, %v2224
  %v2226 = vpop.f32.mrf.mxu0
  %2227 = vmatprep.mubr.bf16.mxu0 0
  %2228 = vmatmul.mubr.bf16.gmra.mxu0 %v2142
  %v2229 = vpop.f32.mrf.mxu0
  %v2230 = vadd.f32 0.0, %v2229
  %v2231 = vpop.f32.mrf.mxu0
  %v2232 = vpop.f32.mrf.mxu0
  %v2233 = vadd.f32 0.0, %v2232
  %v2234 = vpop.f32.mrf.mxu0
  %2235 = vmatprep.mubr.bf16.mxu0 0
  %2236 = vmatmul.mubr.bf16.gmra.mxu0 %v2145
  %v2237 = vpop.f32.mrf.mxu0
  %v2238 = vadd.f32 0.0, %v2237
  %v2239 = vpop.f32.mrf.mxu0
  %v2240 = vpop.f32.mrf.mxu0
  %v2241 = vadd.f32 0.0, %v2240
  %v2242 = vpop.f32.mrf.mxu0
  %2243 = vdwg.mxu0
  %v2244 = vadd.f32 %v1922, %v2182
  %v2245 = vadd.f32 %v1925, %v2185
  %v2246 = vadd.f32 %v1930, %v2190
  %v2247 = vadd.f32 %v1933, %v2193
  %v2248 = vadd.f32 %v1938, %v2198
  %v2249 = vadd.f32 %v1941, %v2201
  %v2250 = vadd.f32 %v1946, %v2206
  %v2251 = vadd.f32 %v1949, %v2209
  %v2252 = vadd.f32 %v1954, %v2214
  %v2253 = vadd.f32 %v1957, %v2217
  %v2254 = vadd.f32 %v1962, %v2222
  %v2255 = vadd.f32 %v1965, %v2225
  %v2256 = vadd.f32 %v1970, %v2230
  %v2257 = vadd.f32 %v1973, %v2233
  %v2258 = vadd.f32 %v1978, %v2238
  %v2259 = vadd.f32 %v1981, %v2241
  %2260 = vrot.lane.b32.xlu0 %v1495, 74
  %v2261 = vpop.permute.xlu0 %2260
  %2262 = vrot.lane.b32.xlu0 %v1496, 74
  %v2263 = vpop.permute.xlu0 %2262
  %2264 = vrot.lane.b32.xlu0 %v1497, 74
  %v2265 = vpop.permute.xlu0 %2264
  %2266 = vrot.lane.b32.xlu0 %v1498, 74
  %v2267 = vpop.permute.xlu0 %2266
  %v2272 = vsel %vm357, %v2267, 0
  %2274 = vmatprep.subr.bf16.mxu0 0
  %2275 = vmatpush1.bf16.msra.mxu0 0
  %2276 = vmatprep.subr.bf16.mxu0 0
  %2277 = vmatpush1.bf16.msra.mxu0 0
  %2278 = vmatprep.subr.bf16.mxu0 0
  %2279 = vmatpush1.bf16.msra.mxu0 0
  %2280 = vmatprep.subr.bf16.mxu0 0
  %2281 = vmatpush1.bf16.msra.mxu0 0
  %2282 = vmatprep.subr.bf16.mxu0 0
  %2283 = vmatpush1.bf16.msra.mxu0 %v2272
  %2284 = vmatprep.subr.bf16.mxu0 0
  %2285 = vmatpush1.bf16.msra.mxu0 %v2265
  %2286 = vmatprep.subr.bf16.mxu0 0
  %2287 = vmatpush1.bf16.msra.mxu0 %v2263
  %2288 = vmatprep.subr.bf16.mxu0 0
  %2289 = vmatpush1.bf16.msra.mxu0 %v2261
  %2290 = vmatprep.subr.bf16.mxu0 0
  %2291 = vmatpush2.bf16.msra.mxu0 0
  %2292 = vmatprep.subr.bf16.mxu0 0
  %2293 = vmatpush2.bf16.msra.mxu0 0
  %2294 = vmatprep.subr.bf16.mxu0 0
  %2295 = vmatpush2.bf16.msra.mxu0 0
  %2296 = vmatprep.subr.bf16.mxu0 0
  %2297 = vmatpush2.bf16.msra.mxu0 0
  %2298 = vmatprep.subr.bf16.mxu0 0
  %2299 = vmatpush2.bf16.msra.mxu0 0
  %2300 = vmatprep.subr.bf16.mxu0 0
  %2301 = vmatpush2.bf16.msra.mxu0 0
  %2302 = vmatprep.subr.bf16.mxu0 0
  %2303 = vmatpush2.bf16.msra.mxu0 0
  %2304 = vmatprep.subr.bf16.mxu0 0
  %2305 = vmatpush2.bf16.msra.mxu0 0
  %2306 = vmatprep.mubr.bf16.mxu0 0
  %2307 = vmatmul.mubr.bf16.gmra.mxu0 %v1504
  %v2308 = vpop.f32.mrf.mxu0
  %v2309 = vadd.f32 0.0, %v2308
  %v2310 = vpop.f32.mrf.mxu0
  %v2311 = vpop.f32.mrf.mxu0
  %v2312 = vadd.f32 0.0, %v2311
  %v2313 = vpop.f32.mrf.mxu0
  %2314 = vmatprep.mubr.bf16.mxu0 0
  %2315 = vmatmul.mubr.bf16.gmra.mxu0 %v1507
  %v2316 = vpop.f32.mrf.mxu0
  %v2317 = vadd.f32 0.0, %v2316
  %v2318 = vpop.f32.mrf.mxu0
  %v2319 = vpop.f32.mrf.mxu0
  %v2320 = vadd.f32 0.0, %v2319
  %v2321 = vpop.f32.mrf.mxu0
  %2322 = vmatprep.mubr.bf16.mxu0 0
  %2323 = vmatmul.mubr.bf16.gmra.mxu0 %v1510
  %v2324 = vpop.f32.mrf.mxu0
  %v2325 = vadd.f32 0.0, %v2324
  %v2326 = vpop.f32.mrf.mxu0
  %v2327 = vpop.f32.mrf.mxu0
  %v2328 = vadd.f32 0.0, %v2327
  %v2329 = vpop.f32.mrf.mxu0
  %2330 = vmatprep.mubr.bf16.mxu0 0
  %2331 = vmatmul.mubr.bf16.gmra.mxu0 %v1513
  %v2332 = vpop.f32.mrf.mxu0
  %v2333 = vadd.f32 0.0, %v2332
  %v2334 = vpop.f32.mrf.mxu0
  %v2335 = vpop.f32.mrf.mxu0
  %v2336 = vadd.f32 0.0, %v2335
  %v2337 = vpop.f32.mrf.mxu0
  %2338 = vdwg.mxu0
  %v2339 = vpack.c.bf16 %v2312, %v2309
  %v2340 = vpack.c.bf16 %v2320, %v2317
  %v2341 = vpack.c.bf16 %v2328, %v2325
  %v2342 = vpack.c.bf16 %v2336, %v2333
  %2343 = vrot.lane.b32.xlu0 %v2115, 64
  %v2344 = vpop.permute.xlu0 %2343
  %2345 = vrot.lane.b32.xlu0 %v2116, 64
  %v2346 = vpop.permute.xlu0 %2345
  %2347 = vrot.lane.b32.xlu0 %v2117, 64
  %v2348 = vpop.permute.xlu0 %2347
  %2349 = vrot.lane.b32.xlu0 %v2118, 64
  %v2350 = vpop.permute.xlu0 %2349
  %2351 = vrot.lane.b32.xlu0 %v2119, 64
  %v2352 = vpop.permute.xlu0 %2351
  %2353 = vrot.lane.b32.xlu0 %v2120, 64
  %v2354 = vpop.permute.xlu0 %2353
  %2355 = vrot.lane.b32.xlu0 %v2121, 64
  %v2356 = vpop.permute.xlu0 %2355
  %2357 = vrot.lane.b32.xlu0 %v2122, 64
  %v2358 = vpop.permute.xlu0 %2357
  %v2360 = vsel %vm154, %v2344, 0
  %v2363 = vsel %vm154, %v2346, 0
  %v2366 = vsel %vm154, %v2348, 0
  %v2369 = vsel %vm154, %v2350, 0
  %v2372 = vsel %vm154, %v2352, 0
  %v2375 = vsel %vm154, %v2354, 0
  %v2378 = vsel %vm154, %v2356, 0
  %v2381 = vsel %vm154, %v2358, 0
  %2383 = vmatprep.subr.bf16.mxu0 0
  %2384 = vmatpush1.bf16.msra.mxu0 0
  %2385 = vmatprep.subr.bf16.mxu0 0
  %2386 = vmatpush1.bf16.msra.mxu0 0
  %2387 = vmatprep.subr.bf16.mxu0 0
  %2388 = vmatpush1.bf16.msra.mxu0 0
  %2389 = vmatprep.subr.bf16.mxu0 0
  %2390 = vmatpush1.bf16.msra.mxu0 0
  %2391 = vmatprep.subr.bf16.mxu0 0
  %2392 = vmatpush1.bf16.msra.mxu0 %v2342
  %2393 = vmatprep.subr.bf16.mxu0 0
  %2394 = vmatpush1.bf16.msra.mxu0 %v2341
  %2395 = vmatprep.subr.bf16.mxu0 0
  %2396 = vmatpush1.bf16.msra.mxu0 %v2340
  %2397 = vmatprep.subr.bf16.mxu0 0
  %2398 = vmatpush1.bf16.msra.mxu0 %v2339
  %2399 = vmatprep.subr.bf16.mxu0 0
  %2400 = vmatpush2.bf16.msra.mxu0 0
  %2401 = vmatprep.subr.bf16.mxu0 0
  %2402 = vmatpush2.bf16.msra.mxu0 0
  %2403 = vmatprep.subr.bf16.mxu0 0
  %2404 = vmatpush2.bf16.msra.mxu0 0
  %2405 = vmatprep.subr.bf16.mxu0 0
  %2406 = vmatpush2.bf16.msra.mxu0 0
  %2407 = vmatprep.subr.bf16.mxu0 0
  %2408 = vmatpush2.bf16.msra.mxu0 0
  %2409 = vmatprep.subr.bf16.mxu0 0
  %2410 = vmatpush2.bf16.msra.mxu0 0
  %2411 = vmatprep.subr.bf16.mxu0 0
  %2412 = vmatpush2.bf16.msra.mxu0 0
  %2413 = vmatprep.subr.bf16.mxu0 0
  %2414 = vmatpush2.bf16.msra.mxu0 0
  %2415 = vmatprep.mubr.bf16.mxu0 0
  %2416 = vmatmul.mubr.bf16.gmra.mxu0 %v2360
  %v2417 = vpop.f32.mrf.mxu0
  %v2418 = vadd.f32 0.0, %v2417
  %v2419 = vpop.f32.mrf.mxu0
  %v2420 = vpop.f32.mrf.mxu0
  %v2421 = vadd.f32 0.0, %v2420
  %v2422 = vpop.f32.mrf.mxu0
  %2423 = vmatprep.mubr.bf16.mxu0 0
  %2424 = vmatmul.mubr.bf16.gmra.mxu0 %v2363
  %v2425 = vpop.f32.mrf.mxu0
  %v2426 = vadd.f32 0.0, %v2425
  %v2427 = vpop.f32.mrf.mxu0
  %v2428 = vpop.f32.mrf.mxu0
  %v2429 = vadd.f32 0.0, %v2428
  %v2430 = vpop.f32.mrf.mxu0
  %2431 = vmatprep.mubr.bf16.mxu0 0
  %2432 = vmatmul.mubr.bf16.gmra.mxu0 %v2366
  %v2433 = vpop.f32.mrf.mxu0
  %v2434 = vadd.f32 0.0, %v2433
  %v2435 = vpop.f32.mrf.mxu0
  %v2436 = vpop.f32.mrf.mxu0
  %v2437 = vadd.f32 0.0, %v2436
  %v2438 = vpop.f32.mrf.mxu0
  %2439 = vmatprep.mubr.bf16.mxu0 0
  %2440 = vmatmul.mubr.bf16.gmra.mxu0 %v2369
  %v2441 = vpop.f32.mrf.mxu0
  %v2442 = vadd.f32 0.0, %v2441
  %v2443 = vpop.f32.mrf.mxu0
  %v2444 = vpop.f32.mrf.mxu0
  %v2445 = vadd.f32 0.0, %v2444
  %v2446 = vpop.f32.mrf.mxu0
  %2447 = vmatprep.mubr.bf16.mxu0 0
  %2448 = vmatmul.mubr.bf16.gmra.mxu0 %v2372
  %v2449 = vpop.f32.mrf.mxu0
  %v2450 = vadd.f32 0.0, %v2449
  %v2451 = vpop.f32.mrf.mxu0
  %v2452 = vpop.f32.mrf.mxu0
  %v2453 = vadd.f32 0.0, %v2452
  %v2454 = vpop.f32.mrf.mxu0
  %2455 = vmatprep.mubr.bf16.mxu0 0
  %2456 = vmatmul.mubr.bf16.gmra.mxu0 %v2375
  %v2457 = vpop.f32.mrf.mxu0
  %v2458 = vadd.f32 0.0, %v2457
  %v2459 = vpop.f32.mrf.mxu0
  %v2460 = vpop.f32.mrf.mxu0
  %v2461 = vadd.f32 0.0, %v2460
  %v2462 = vpop.f32.mrf.mxu0
  %2463 = vmatprep.mubr.bf16.mxu0 0
  %2464 = vmatmul.mubr.bf16.gmra.mxu0 %v2378
  %v2465 = vpop.f32.mrf.mxu0
  %v2466 = vadd.f32 0.0, %v2465
  %v2467 = vpop.f32.mrf.mxu0
  %v2468 = vpop.f32.mrf.mxu0
  %v2469 = vadd.f32 0.0, %v2468
  %v2470 = vpop.f32.mrf.mxu0
  %2471 = vmatprep.mubr.bf16.mxu0 0
  %2472 = vmatmul.mubr.bf16.gmra.mxu0 %v2381
  %v2473 = vpop.f32.mrf.mxu0
  %v2474 = vadd.f32 0.0, %v2473
  %v2475 = vpop.f32.mrf.mxu0
  %v2476 = vpop.f32.mrf.mxu0
  %v2477 = vadd.f32 0.0, %v2476
  %v2478 = vpop.f32.mrf.mxu0
  %2479 = vdwg.mxu0
  %v2480 = vadd.f32 %v2244, %v2418
  %v2481 = vadd.f32 %v2245, %v2421
  %v2482 = vadd.f32 %v2246, %v2426
  %v2483 = vadd.f32 %v2247, %v2429
  %v2484 = vadd.f32 %v2248, %v2434
  %v2485 = vadd.f32 %v2249, %v2437
  %v2486 = vadd.f32 %v2250, %v2442
  %v2487 = vadd.f32 %v2251, %v2445
  %v2488 = vadd.f32 %v2252, %v2450
  %v2489 = vadd.f32 %v2253, %v2453
  %v2490 = vadd.f32 %v2254, %v2458
  %v2491 = vadd.f32 %v2255, %v2461
  %v2492 = vadd.f32 %v2256, %v2466
  %v2493 = vadd.f32 %v2257, %v2469
  %v2494 = vadd.f32 %v2258, %v2474
  %v2495 = vadd.f32 %v2259, %v2477
  %2496 = vrot.lane.b32.xlu0 %v1495, 56
  %v2497 = vpop.permute.xlu0 %2496
  %2498 = vrot.lane.b32.xlu0 %v1496, 56
  %v2499 = vpop.permute.xlu0 %2498
  %2500 = vrot.lane.b32.xlu0 %v1497, 56
  %v2501 = vpop.permute.xlu0 %2500
  %2502 = vrot.lane.b32.xlu0 %v1498, 56
  %v2503 = vpop.permute.xlu0 %2502
  %v2508 = vsel %vm357, %v2503, 0
  %2510 = vmatprep.subr.bf16.mxu0 0
  %2511 = vmatpush1.bf16.msra.mxu0 0
  %2512 = vmatprep.subr.bf16.mxu0 0
  %2513 = vmatpush1.bf16.msra.mxu0 0
  %2514 = vmatprep.subr.bf16.mxu0 0
  %2515 = vmatpush1.bf16.msra.mxu0 0
  %2516 = vmatprep.subr.bf16.mxu0 0
  %2517 = vmatpush1.bf16.msra.mxu0 0
  %2518 = vmatprep.subr.bf16.mxu0 0
  %2519 = vmatpush1.bf16.msra.mxu0 %v2508
  %2520 = vmatprep.subr.bf16.mxu0 0
  %2521 = vmatpush1.bf16.msra.mxu0 %v2501
  %2522 = vmatprep.subr.bf16.mxu0 0
  %2523 = vmatpush1.bf16.msra.mxu0 %v2499
  %2524 = vmatprep.subr.bf16.mxu0 0
  %2525 = vmatpush1.bf16.msra.mxu0 %v2497
  %2526 = vmatprep.subr.bf16.mxu0 0
  %2527 = vmatpush2.bf16.msra.mxu0 0
  %2528 = vmatprep.subr.bf16.mxu0 0
  %2529 = vmatpush2.bf16.msra.mxu0 0
  %2530 = vmatprep.subr.bf16.mxu0 0
  %2531 = vmatpush2.bf16.msra.mxu0 0
  %2532 = vmatprep.subr.bf16.mxu0 0
  %2533 = vmatpush2.bf16.msra.mxu0 0
  %2534 = vmatprep.subr.bf16.mxu0 0
  %2535 = vmatpush2.bf16.msra.mxu0 0
  %2536 = vmatprep.subr.bf16.mxu0 0
  %2537 = vmatpush2.bf16.msra.mxu0 0
  %2538 = vmatprep.subr.bf16.mxu0 0
  %2539 = vmatpush2.bf16.msra.mxu0 0
  %2540 = vmatprep.subr.bf16.mxu0 0
  %2541 = vmatpush2.bf16.msra.mxu0 0
  %2542 = vmatprep.mubr.bf16.mxu0 0
  %2543 = vmatmul.mubr.bf16.gmra.mxu0 %v1504
  %v2544 = vpop.f32.mrf.mxu0
  %v2545 = vadd.f32 0.0, %v2544
  %v2546 = vpop.f32.mrf.mxu0
  %v2547 = vpop.f32.mrf.mxu0
  %v2548 = vadd.f32 0.0, %v2547
  %v2549 = vpop.f32.mrf.mxu0
  %2550 = vmatprep.mubr.bf16.mxu0 0
  %2551 = vmatmul.mubr.bf16.gmra.mxu0 %v1507
  %v2552 = vpop.f32.mrf.mxu0
  %v2553 = vadd.f32 0.0, %v2552
  %v2554 = vpop.f32.mrf.mxu0
  %v2555 = vpop.f32.mrf.mxu0
  %v2556 = vadd.f32 0.0, %v2555
  %v2557 = vpop.f32.mrf.mxu0
  %2558 = vmatprep.mubr.bf16.mxu0 0
  %2559 = vmatmul.mubr.bf16.gmra.mxu0 %v1510
  %v2560 = vpop.f32.mrf.mxu0
  %v2561 = vadd.f32 0.0, %v2560
  %v2562 = vpop.f32.mrf.mxu0
  %v2563 = vpop.f32.mrf.mxu0
  %v2564 = vadd.f32 0.0, %v2563
  %v2565 = vpop.f32.mrf.mxu0
  %2566 = vmatprep.mubr.bf16.mxu0 0
  %2567 = vmatmul.mubr.bf16.gmra.mxu0 %v1513
  %v2568 = vpop.f32.mrf.mxu0
  %v2569 = vadd.f32 0.0, %v2568
  %v2570 = vpop.f32.mrf.mxu0
  %v2571 = vpop.f32.mrf.mxu0
  %v2572 = vadd.f32 0.0, %v2571
  %v2573 = vpop.f32.mrf.mxu0
  %2574 = vdwg.mxu0
  %v2575 = vld [vmem:[%s7 + $0x8] sm:$0xf]
  %v2576 = vld [vmem:[%s7 + $0x1c] sm:$0xf]
  %v2577 = vld [vmem:[%s7 + $0x30] sm:$0xf]
  %v2578 = vld [vmem:[%s7 + $0x44] sm:$0xf]
  %v2579 = vld [vmem:[%s7 + $0x58] sm:$0xf]
  %v2580 = vld [vmem:[%s7 + $0x6c] sm:$0xf]
  %v2581 = vld [vmem:[%s7 + $0x80] sm:$0xf]
  %v2582 = vld [vmem:[%s7 + $0x94] sm:$0xf]
  %v2583 = vld [vmem:[%s7 + $0xa8] sm:$0xf]
  %v2584 = vld [vmem:[%s7 + $0xbc] sm:$0xf]
  %v2585 = vld [vmem:[%s7 + $0xd0] sm:$0xf]
  %v2586 = vld [vmem:[%s7 + $0xe4] sm:$0xf]
  %v2587 = vld [vmem:[%s7 + $0xf8] sm:$0xf]
  %v2588 = vld [vmem:[%s7 + $0x10c] sm:$0xf]
  %v2589 = vld [vmem:[%s7 + $0x120] sm:$0xf]
  %v2590 = vld [vmem:[%s7 + $0x134] sm:$0xf]
  %v2591 = vpack.c.bf16 %v2548, %v2545
  %v2592 = vpack.c.bf16 %v2556, %v2553
  %v2593 = vpack.c.bf16 %v2564, %v2561
  %v2594 = vpack.c.bf16 %v2572, %v2569
  %v2611 = vunpack.c.l.b16 %v2575
  %v2612 = vunpack.c.l.b16 %v2576
  %v2613 = vunpack.c.l.b16 %v2577
  %v2614 = vunpack.c.l.b16 %v2578
  %v2615 = vunpack.c.l.b16 %v2579
  %v2616 = vunpack.c.l.b16 %v2580
  %v2617 = vunpack.c.l.b16 %v2581
  %v2618 = vunpack.c.l.b16 %v2582
  %v2619 = vunpack.c.l.b16 %v2583
  %v2620 = vunpack.c.l.b16 %v2584
  %v2621 = vunpack.c.l.b16 %v2585
  %v2622 = vunpack.c.l.b16 %v2586
  %v2623 = vunpack.c.l.b16 %v2587
  %v2624 = vunpack.c.l.b16 %v2588
  %v2625 = vunpack.c.l.b16 %v2589
  %v2626 = vunpack.c.l.b16 %v2590
  %v2627 = vpack.c.b16 %v2612, %v2611
  %v2628 = vpack.c.b16 %v2614, %v2613
  %v2629 = vpack.c.b16 %v2616, %v2615
  %v2630 = vpack.c.b16 %v2618, %v2617
  %v2631 = vpack.c.b16 %v2620, %v2619
  %v2632 = vpack.c.b16 %v2622, %v2621
  %v2633 = vpack.c.b16 %v2624, %v2623
  %v2634 = vpack.c.b16 %v2626, %v2625
  %v2636 = vsel %vm154, %v2627, 0
  %v2639 = vsel %vm154, %v2628, 0
  %v2642 = vsel %vm154, %v2629, 0
  %v2645 = vsel %vm154, %v2630, 0
  %v2648 = vsel %vm154, %v2631, 0
  %v2651 = vsel %vm154, %v2632, 0
  %v2654 = vsel %vm154, %v2633, 0
  %v2657 = vsel %vm154, %v2634, 0
  %2659 = vmatprep.subr.bf16.mxu0 0
  %2660 = vmatpush1.bf16.msra.mxu0 0
  %2661 = vmatprep.subr.bf16.mxu0 0
  %2662 = vmatpush1.bf16.msra.mxu0 0
  %2663 = vmatprep.subr.bf16.mxu0 0
  %2664 = vmatpush1.bf16.msra.mxu0 0
  %2665 = vmatprep.subr.bf16.mxu0 0
  %2666 = vmatpush1.bf16.msra.mxu0 0
  %2667 = vmatprep.subr.bf16.mxu0 0
  %2668 = vmatpush1.bf16.msra.mxu0 %v2594
  %2669 = vmatprep.subr.bf16.mxu0 0
  %2670 = vmatpush1.bf16.msra.mxu0 %v2593
  %2671 = vmatprep.subr.bf16.mxu0 0
  %2672 = vmatpush1.bf16.msra.mxu0 %v2592
  %2673 = vmatprep.subr.bf16.mxu0 0
  %2674 = vmatpush1.bf16.msra.mxu0 %v2591
  %2675 = vmatprep.subr.bf16.mxu0 0
  %2676 = vmatpush2.bf16.msra.mxu0 0
  %2677 = vmatprep.subr.bf16.mxu0 0
  %2678 = vmatpush2.bf16.msra.mxu0 0
  %2679 = vmatprep.subr.bf16.mxu0 0
  %2680 = vmatpush2.bf16.msra.mxu0 0
  %2681 = vmatprep.subr.bf16.mxu0 0
  %2682 = vmatpush2.bf16.msra.mxu0 0
  %2683 = vmatprep.subr.bf16.mxu0 0
  %2684 = vmatpush2.bf16.msra.mxu0 0
  %2685 = vmatprep.subr.bf16.mxu0 0
  %2686 = vmatpush2.bf16.msra.mxu0 0
  %2687 = vmatprep.subr.bf16.mxu0 0
  %2688 = vmatpush2.bf16.msra.mxu0 0
  %2689 = vmatprep.subr.bf16.mxu0 0
  %2690 = vmatpush2.bf16.msra.mxu0 0
  %2691 = vmatprep.mubr.bf16.mxu0 0
  %2692 = vmatmul.mubr.bf16.gmra.mxu0 %v2636
  %v2693 = vpop.f32.mrf.mxu0
  %v2694 = vadd.f32 0.0, %v2693
  %v2695 = vpop.f32.mrf.mxu0
  %v2696 = vpop.f32.mrf.mxu0
  %v2697 = vadd.f32 0.0, %v2696
  %v2698 = vpop.f32.mrf.mxu0
  %2699 = vmatprep.mubr.bf16.mxu0 0
  %2700 = vmatmul.mubr.bf16.gmra.mxu0 %v2639
  %v2701 = vpop.f32.mrf.mxu0
  %v2702 = vadd.f32 0.0, %v2701
  %v2703 = vpop.f32.mrf.mxu0
  %v2704 = vpop.f32.mrf.mxu0
  %v2705 = vadd.f32 0.0, %v2704
  %v2706 = vpop.f32.mrf.mxu0
  %2707 = vmatprep.mubr.bf16.mxu0 0
  %2708 = vmatmul.mubr.bf16.gmra.mxu0 %v2642
  %v2709 = vpop.f32.mrf.mxu0
  %v2710 = vadd.f32 0.0, %v2709
  %v2711 = vpop.f32.mrf.mxu0
  %v2712 = vpop.f32.mrf.mxu0
  %v2713 = vadd.f32 0.0, %v2712
  %v2714 = vpop.f32.mrf.mxu0
  %2715 = vmatprep.mubr.bf16.mxu0 0
  %2716 = vmatmul.mubr.bf16.gmra.mxu0 %v2645
  %v2717 = vpop.f32.mrf.mxu0
  %v2718 = vadd.f32 0.0, %v2717
  %v2719 = vpop.f32.mrf.mxu0
  %v2720 = vpop.f32.mrf.mxu0
  %v2721 = vadd.f32 0.0, %v2720
  %v2722 = vpop.f32.mrf.mxu0
  %2723 = vmatprep.mubr.bf16.mxu0 0
  %2724 = vmatmul.mubr.bf16.gmra.mxu0 %v2648
  %v2725 = vpop.f32.mrf.mxu0
  %v2726 = vadd.f32 0.0, %v2725
  %v2727 = vpop.f32.mrf.mxu0
  %v2728 = vpop.f32.mrf.mxu0
  %v2729 = vadd.f32 0.0, %v2728
  %v2730 = vpop.f32.mrf.mxu0
  %2731 = vmatprep.mubr.bf16.mxu0 0
  %2732 = vmatmul.mubr.bf16.gmra.mxu0 %v2651
  %v2733 = vpop.f32.mrf.mxu0
  %v2734 = vadd.f32 0.0, %v2733
  %v2735 = vpop.f32.mrf.mxu0
  %v2736 = vpop.f32.mrf.mxu0
  %v2737 = vadd.f32 0.0, %v2736
  %v2738 = vpop.f32.mrf.mxu0
  %2739 = vmatprep.mubr.bf16.mxu0 0
  %2740 = vmatmul.mubr.bf16.gmra.mxu0 %v2654
  %v2741 = vpop.f32.mrf.mxu0
  %v2742 = vadd.f32 0.0, %v2741
  %v2743 = vpop.f32.mrf.mxu0
  %v2744 = vpop.f32.mrf.mxu0
  %v2745 = vadd.f32 0.0, %v2744
  %v2746 = vpop.f32.mrf.mxu0
  %2747 = vmatprep.mubr.bf16.mxu0 0
  %2748 = vmatmul.mubr.bf16.gmra.mxu0 %v2657
  %v2749 = vpop.f32.mrf.mxu0
  %v2750 = vadd.f32 0.0, %v2749
  %v2751 = vpop.f32.mrf.mxu0
  %v2752 = vpop.f32.mrf.mxu0
  %v2753 = vadd.f32 0.0, %v2752
  %v2754 = vpop.f32.mrf.mxu0
  %2755 = vdwg.mxu0
  %v2756 = vadd.f32 %v2480, %v2694
  %v2757 = vadd.f32 %v2481, %v2697
  %v2758 = vadd.f32 %v2482, %v2702
  %v2759 = vadd.f32 %v2483, %v2705
  %v2760 = vadd.f32 %v2484, %v2710
  %v2761 = vadd.f32 %v2485, %v2713
  %v2762 = vadd.f32 %v2486, %v2718
  %v2763 = vadd.f32 %v2487, %v2721
  %v2764 = vadd.f32 %v2488, %v2726
  %v2765 = vadd.f32 %v2489, %v2729
  %v2766 = vadd.f32 %v2490, %v2734
  %v2767 = vadd.f32 %v2491, %v2737
  %v2768 = vadd.f32 %v2492, %v2742
  %v2769 = vadd.f32 %v2493, %v2745
  %v2770 = vadd.f32 %v2494, %v2750
  %v2771 = vadd.f32 %v2495, %v2753
  %2772 = vrot.lane.b32.xlu0 %v1495, 38
  %v2773 = vpop.permute.xlu0 %2772
  %2774 = vrot.lane.b32.xlu0 %v1496, 38
  %v2775 = vpop.permute.xlu0 %2774
  %2776 = vrot.lane.b32.xlu0 %v1497, 38
  %v2777 = vpop.permute.xlu0 %2776
  %2778 = vrot.lane.b32.xlu0 %v1498, 38
  %v2779 = vpop.permute.xlu0 %2778
  %v2784 = vsel %vm357, %v2779, 0
  %2786 = vmatprep.subr.bf16.mxu0 0
  %2787 = vmatpush1.bf16.msra.mxu0 0
  %2788 = vmatprep.subr.bf16.mxu0 0
  %2789 = vmatpush1.bf16.msra.mxu0 0
  %2790 = vmatprep.subr.bf16.mxu0 0
  %2791 = vmatpush1.bf16.msra.mxu0 0
  %2792 = vmatprep.subr.bf16.mxu0 0
  %2793 = vmatpush1.bf16.msra.mxu0 0
  %2794 = vmatprep.subr.bf16.mxu0 0
  %2795 = vmatpush1.bf16.msra.mxu0 %v2784
  %2796 = vmatprep.subr.bf16.mxu0 0
  %2797 = vmatpush1.bf16.msra.mxu0 %v2777
  %2798 = vmatprep.subr.bf16.mxu0 0
  %2799 = vmatpush1.bf16.msra.mxu0 %v2775
  %2800 = vmatprep.subr.bf16.mxu0 0
  %2801 = vmatpush1.bf16.msra.mxu0 %v2773
  %2802 = vmatprep.subr.bf16.mxu0 0
  %2803 = vmatpush2.bf16.msra.mxu0 0
  %2804 = vmatprep.subr.bf16.mxu0 0
  %2805 = vmatpush2.bf16.msra.mxu0 0
  %2806 = vmatprep.subr.bf16.mxu0 0
  %2807 = vmatpush2.bf16.msra.mxu0 0
  %2808 = vmatprep.subr.bf16.mxu0 0
  %2809 = vmatpush2.bf16.msra.mxu0 0
  %2810 = vmatprep.subr.bf16.mxu0 0
  %2811 = vmatpush2.bf16.msra.mxu0 0
  %2812 = vmatprep.subr.bf16.mxu0 0
  %2813 = vmatpush2.bf16.msra.mxu0 0
  %2814 = vmatprep.subr.bf16.mxu0 0
  %2815 = vmatpush2.bf16.msra.mxu0 0
  %2816 = vmatprep.subr.bf16.mxu0 0
  %2817 = vmatpush2.bf16.msra.mxu0 0
  %2818 = vmatprep.mubr.bf16.mxu0 0
  %2819 = vmatmul.mubr.bf16.gmra.mxu0 %v1504
  %v2820 = vpop.f32.mrf.mxu0
  %v2821 = vadd.f32 0.0, %v2820
  %v2822 = vpop.f32.mrf.mxu0
  %v2823 = vpop.f32.mrf.mxu0
  %v2824 = vadd.f32 0.0, %v2823
  %v2825 = vpop.f32.mrf.mxu0
  %2826 = vmatprep.mubr.bf16.mxu0 0
  %2827 = vmatmul.mubr.bf16.gmra.mxu0 %v1507
  %v2828 = vpop.f32.mrf.mxu0
  %v2829 = vadd.f32 0.0, %v2828
  %v2830 = vpop.f32.mrf.mxu0
  %v2831 = vpop.f32.mrf.mxu0
  %v2832 = vadd.f32 0.0, %v2831
  %v2833 = vpop.f32.mrf.mxu0
  %2834 = vmatprep.mubr.bf16.mxu0 0
  %2835 = vmatmul.mubr.bf16.gmra.mxu0 %v1510
  %v2836 = vpop.f32.mrf.mxu0
  %v2837 = vadd.f32 0.0, %v2836
  %v2838 = vpop.f32.mrf.mxu0
  %v2839 = vpop.f32.mrf.mxu0
  %v2840 = vadd.f32 0.0, %v2839
  %v2841 = vpop.f32.mrf.mxu0
  %2842 = vmatprep.mubr.bf16.mxu0 0
  %2843 = vmatmul.mubr.bf16.gmra.mxu0 %v1513
  %v2844 = vpop.f32.mrf.mxu0
  %v2845 = vadd.f32 0.0, %v2844
  %v2846 = vpop.f32.mrf.mxu0
  %v2847 = vpop.f32.mrf.mxu0
  %v2848 = vadd.f32 0.0, %v2847
  %v2849 = vpop.f32.mrf.mxu0
  %2850 = vdwg.mxu0
  %v2851 = vpack.c.bf16 %v2824, %v2821
  %v2852 = vpack.c.bf16 %v2832, %v2829
  %v2853 = vpack.c.bf16 %v2840, %v2837
  %v2854 = vpack.c.bf16 %v2848, %v2845
  %2855 = vrot.lane.b32.xlu0 %v2627, 64
  %v2856 = vpop.permute.xlu0 %2855
  %2857 = vrot.lane.b32.xlu0 %v2628, 64
  %v2858 = vpop.permute.xlu0 %2857
  %2859 = vrot.lane.b32.xlu0 %v2629, 64
  %v2860 = vpop.permute.xlu0 %2859
  %2861 = vrot.lane.b32.xlu0 %v2630, 64
  %v2862 = vpop.permute.xlu0 %2861
  %2863 = vrot.lane.b32.xlu0 %v2631, 64
  %v2864 = vpop.permute.xlu0 %2863
  %2865 = vrot.lane.b32.xlu0 %v2632, 64
  %v2866 = vpop.permute.xlu0 %2865
  %2867 = vrot.lane.b32.xlu0 %v2633, 64
  %v2868 = vpop.permute.xlu0 %2867
  %2869 = vrot.lane.b32.xlu0 %v2634, 64
  %v2870 = vpop.permute.xlu0 %2869
  %v2872 = vsel %vm154, %v2856, 0
  %v2875 = vsel %vm154, %v2858, 0
  %v2878 = vsel %vm154, %v2860, 0
  %v2881 = vsel %vm154, %v2862, 0
  %v2884 = vsel %vm154, %v2864, 0
  %v2887 = vsel %vm154, %v2866, 0
  %v2890 = vsel %vm154, %v2868, 0
  %v2893 = vsel %vm154, %v2870, 0
  %2895 = vmatprep.subr.bf16.mxu0 0
  %2896 = vmatpush1.bf16.msra.mxu0 0
  %2897 = vmatprep.subr.bf16.mxu0 0
  %2898 = vmatpush1.bf16.msra.mxu0 0
  %2899 = vmatprep.subr.bf16.mxu0 0
  %2900 = vmatpush1.bf16.msra.mxu0 0
  %2901 = vmatprep.subr.bf16.mxu0 0
  %2902 = vmatpush1.bf16.msra.mxu0 0
  %2903 = vmatprep.subr.bf16.mxu0 0
  %2904 = vmatpush1.bf16.msra.mxu0 %v2854
  %2905 = vmatprep.subr.bf16.mxu0 0
  %2906 = vmatpush1.bf16.msra.mxu0 %v2853
  %2907 = vmatprep.subr.bf16.mxu0 0
  %2908 = vmatpush1.bf16.msra.mxu0 %v2852
  %2909 = vmatprep.subr.bf16.mxu0 0
  %2910 = vmatpush1.bf16.msra.mxu0 %v2851
  %2911 = vmatprep.subr.bf16.mxu0 0
  %2912 = vmatpush2.bf16.msra.mxu0 0
  %2913 = vmatprep.subr.bf16.mxu0 0
  %2914 = vmatpush2.bf16.msra.mxu0 0
  %2915 = vmatprep.subr.bf16.mxu0 0
  %2916 = vmatpush2.bf16.msra.mxu0 0
  %2917 = vmatprep.subr.bf16.mxu0 0
  %2918 = vmatpush2.bf16.msra.mxu0 0
  %2919 = vmatprep.subr.bf16.mxu0 0
  %2920 = vmatpush2.bf16.msra.mxu0 0
  %2921 = vmatprep.subr.bf16.mxu0 0
  %2922 = vmatpush2.bf16.msra.mxu0 0
  %2923 = vmatprep.subr.bf16.mxu0 0
  %2924 = vmatpush2.bf16.msra.mxu0 0
  %2925 = vmatprep.subr.bf16.mxu0 0
  %2926 = vmatpush2.bf16.msra.mxu0 0
  %2927 = vmatprep.mubr.bf16.mxu0 0
  %2928 = vmatmul.mubr.bf16.gmra.mxu0 %v2872
  %v2929 = vpop.f32.mrf.mxu0
  %v2930 = vadd.f32 0.0, %v2929
  %v2931 = vpop.f32.mrf.mxu0
  %v2932 = vpop.f32.mrf.mxu0
  %v2933 = vadd.f32 0.0, %v2932
  %v2934 = vpop.f32.mrf.mxu0
  %2935 = vmatprep.mubr.bf16.mxu0 0
  %2936 = vmatmul.mubr.bf16.gmra.mxu0 %v2875
  %v2937 = vpop.f32.mrf.mxu0
  %v2938 = vadd.f32 0.0, %v2937
  %v2939 = vpop.f32.mrf.mxu0
  %v2940 = vpop.f32.mrf.mxu0
  %v2941 = vadd.f32 0.0, %v2940
  %v2942 = vpop.f32.mrf.mxu0
  %2943 = vmatprep.mubr.bf16.mxu0 0
  %2944 = vmatmul.mubr.bf16.gmra.mxu0 %v2878
  %v2945 = vpop.f32.mrf.mxu0
  %v2946 = vadd.f32 0.0, %v2945
  %v2947 = vpop.f32.mrf.mxu0
  %v2948 = vpop.f32.mrf.mxu0
  %v2949 = vadd.f32 0.0, %v2948
  %v2950 = vpop.f32.mrf.mxu0
  %2951 = vmatprep.mubr.bf16.mxu0 0
  %2952 = vmatmul.mubr.bf16.gmra.mxu0 %v2881
  %v2953 = vpop.f32.mrf.mxu0
  %v2954 = vadd.f32 0.0, %v2953
  %v2955 = vpop.f32.mrf.mxu0
  %v2956 = vpop.f32.mrf.mxu0
  %v2957 = vadd.f32 0.0, %v2956
  %v2958 = vpop.f32.mrf.mxu0
  %2959 = vmatprep.mubr.bf16.mxu0 0
  %2960 = vmatmul.mubr.bf16.gmra.mxu0 %v2884
  %v2961 = vpop.f32.mrf.mxu0
  %v2962 = vadd.f32 0.0, %v2961
  %v2963 = vpop.f32.mrf.mxu0
  %v2964 = vpop.f32.mrf.mxu0
  %v2965 = vadd.f32 0.0, %v2964
  %v2966 = vpop.f32.mrf.mxu0
  %2967 = vmatprep.mubr.bf16.mxu0 0
  %2968 = vmatmul.mubr.bf16.gmra.mxu0 %v2887
  %v2969 = vpop.f32.mrf.mxu0
  %v2970 = vadd.f32 0.0, %v2969
  %v2971 = vpop.f32.mrf.mxu0
  %v2972 = vpop.f32.mrf.mxu0
  %v2973 = vadd.f32 0.0, %v2972
  %v2974 = vpop.f32.mrf.mxu0
  %2975 = vmatprep.mubr.bf16.mxu0 0
  %2976 = vmatmul.mubr.bf16.gmra.mxu0 %v2890
  %v2977 = vpop.f32.mrf.mxu0
  %v2978 = vadd.f32 0.0, %v2977
  %v2979 = vpop.f32.mrf.mxu0
  %v2980 = vpop.f32.mrf.mxu0
  %v2981 = vadd.f32 0.0, %v2980
  %v2982 = vpop.f32.mrf.mxu0
  %2983 = vmatprep.mubr.bf16.mxu0 0
  %2984 = vmatmul.mubr.bf16.gmra.mxu0 %v2893
  %v2985 = vpop.f32.mrf.mxu0
  %v2986 = vadd.f32 0.0, %v2985
  %v2987 = vpop.f32.mrf.mxu0
  %v2988 = vpop.f32.mrf.mxu0
  %v2989 = vadd.f32 0.0, %v2988
  %v2990 = vpop.f32.mrf.mxu0
  %2991 = vdwg.mxu0
  %v2992 = vadd.f32 %v2756, %v2930
  %v2993 = vadd.f32 %v2757, %v2933
  %v2994 = vadd.f32 %v2758, %v2938
  %v2995 = vadd.f32 %v2759, %v2941
  %v2996 = vadd.f32 %v2760, %v2946
  %v2997 = vadd.f32 %v2761, %v2949
  %v2998 = vadd.f32 %v2762, %v2954
  %v2999 = vadd.f32 %v2763, %v2957
  %v3000 = vadd.f32 %v2764, %v2962
  %v3001 = vadd.f32 %v2765, %v2965
  %v3002 = vadd.f32 %v2766, %v2970
  %v3003 = vadd.f32 %v2767, %v2973
  %v3004 = vadd.f32 %v2768, %v2978
  %v3005 = vadd.f32 %v2769, %v2981
  %v3006 = vadd.f32 %v2770, %v2986
  %v3007 = vadd.f32 %v2771, %v2989
  %3008 = vrot.lane.b32.xlu0 %v1495, 20
  %v3009 = vpop.permute.xlu0 %3008
  %3010 = vrot.lane.b32.xlu0 %v1496, 20
  %v3011 = vpop.permute.xlu0 %3010
  %3012 = vrot.lane.b32.xlu0 %v1497, 20
  %v3013 = vpop.permute.xlu0 %3012
  %3014 = vrot.lane.b32.xlu0 %v1498, 20
  %v3015 = vpop.permute.xlu0 %3014
  %v3020 = vsel %vm357, %v3015, 0
  %3022 = vmatprep.subr.bf16.mxu0 0
  %3023 = vmatpush1.bf16.msra.mxu0 0
  %3024 = vmatprep.subr.bf16.mxu0 0
  %3025 = vmatpush1.bf16.msra.mxu0 0
  %3026 = vmatprep.subr.bf16.mxu0 0
  %3027 = vmatpush1.bf16.msra.mxu0 0
  %3028 = vmatprep.subr.bf16.mxu0 0
  %3029 = vmatpush1.bf16.msra.mxu0 0
  %3030 = vmatprep.subr.bf16.mxu0 0
  %3031 = vmatpush1.bf16.msra.mxu0 %v3020
  %3032 = vmatprep.subr.bf16.mxu0 0
  %3033 = vmatpush1.bf16.msra.mxu0 %v3013
  %3034 = vmatprep.subr.bf16.mxu0 0
  %3035 = vmatpush1.bf16.msra.mxu0 %v3011
  %3036 = vmatprep.subr.bf16.mxu0 0
  %3037 = vmatpush1.bf16.msra.mxu0 %v3009
  %3038 = vmatprep.subr.bf16.mxu0 0
  %3039 = vmatpush2.bf16.msra.mxu0 0
  %3040 = vmatprep.subr.bf16.mxu0 0
  %3041 = vmatpush2.bf16.msra.mxu0 0
  %3042 = vmatprep.subr.bf16.mxu0 0
  %3043 = vmatpush2.bf16.msra.mxu0 0
  %3044 = vmatprep.subr.bf16.mxu0 0
  %3045 = vmatpush2.bf16.msra.mxu0 0
  %3046 = vmatprep.subr.bf16.mxu0 0
  %3047 = vmatpush2.bf16.msra.mxu0 0
  %3048 = vmatprep.subr.bf16.mxu0 0
  %3049 = vmatpush2.bf16.msra.mxu0 0
  %3050 = vmatprep.subr.bf16.mxu0 0
  %3051 = vmatpush2.bf16.msra.mxu0 0
  %3052 = vmatprep.subr.bf16.mxu0 0
  %3053 = vmatpush2.bf16.msra.mxu0 0
  %3054 = vmatprep.mubr.bf16.mxu0 0
  %3055 = vmatmul.mubr.bf16.gmra.mxu0 %v1504
  %v3056 = vpop.f32.mrf.mxu0
  %v3057 = vadd.f32 0.0, %v3056
  %v3058 = vpop.f32.mrf.mxu0
  %v3059 = vpop.f32.mrf.mxu0
  %v3060 = vadd.f32 0.0, %v3059
  %v3061 = vpop.f32.mrf.mxu0
  %3062 = vmatprep.mubr.bf16.mxu0 0
  %3063 = vmatmul.mubr.bf16.gmra.mxu0 %v1507
  %v3064 = vpop.f32.mrf.mxu0
  %v3065 = vadd.f32 0.0, %v3064
  %v3066 = vpop.f32.mrf.mxu0
  %v3067 = vpop.f32.mrf.mxu0
  %v3068 = vadd.f32 0.0, %v3067
  %v3069 = vpop.f32.mrf.mxu0
  %3070 = vmatprep.mubr.bf16.mxu0 0
  %3071 = vmatmul.mubr.bf16.gmra.mxu0 %v1510
  %v3072 = vpop.f32.mrf.mxu0
  %v3073 = vadd.f32 0.0, %v3072
  %v3074 = vpop.f32.mrf.mxu0
  %v3075 = vpop.f32.mrf.mxu0
  %v3076 = vadd.f32 0.0, %v3075
  %v3077 = vpop.f32.mrf.mxu0
  %3078 = vmatprep.mubr.bf16.mxu0 0
  %3079 = vmatmul.mubr.bf16.gmra.mxu0 %v1513
  %v3080 = vpop.f32.mrf.mxu0
  %v3081 = vadd.f32 0.0, %v3080
  %v3082 = vpop.f32.mrf.mxu0
  %v3083 = vpop.f32.mrf.mxu0
  %v3084 = vadd.f32 0.0, %v3083
  %v3085 = vpop.f32.mrf.mxu0
  %3086 = vdwg.mxu0
  %v3087 = vld [vmem:[%s7 + $0xc] sm:$0xf]
  %v3088 = vld [vmem:[%s7 + $0x20] sm:$0xf]
  %v3089 = vld [vmem:[%s7 + $0x34] sm:$0xf]
  %v3090 = vld [vmem:[%s7 + $0x48] sm:$0xf]
  %v3091 = vld [vmem:[%s7 + $0x5c] sm:$0xf]
  %v3092 = vld [vmem:[%s7 + $0x70] sm:$0xf]
  %v3093 = vld [vmem:[%s7 + $0x84] sm:$0xf]
  %v3094 = vld [vmem:[%s7 + $0x98] sm:$0xf]
  %v3095 = vld [vmem:[%s7 + $0xac] sm:$0xf]
  %v3096 = vld [vmem:[%s7 + $0xc0] sm:$0xf]
  %v3097 = vld [vmem:[%s7 + $0xd4] sm:$0xf]
  %v3098 = vld [vmem:[%s7 + $0xe8] sm:$0xf]
  %v3099 = vld [vmem:[%s7 + $0xfc] sm:$0xf]
  %v3100 = vld [vmem:[%s7 + $0x110] sm:$0xf]
  %v3101 = vld [vmem:[%s7 + $0x124] sm:$0xf]
  %v3102 = vld [vmem:[%s7 + $0x138] sm:$0xf]
  %v3103 = vpack.c.bf16 %v3060, %v3057
  %v3104 = vpack.c.bf16 %v3068, %v3065
  %v3105 = vpack.c.bf16 %v3076, %v3073
  %v3106 = vpack.c.bf16 %v3084, %v3081
  %v3123 = vunpack.c.l.b16 %v3087
  %v3124 = vunpack.c.l.b16 %v3088
  %v3125 = vunpack.c.l.b16 %v3089
  %v3126 = vunpack.c.l.b16 %v3090
  %v3127 = vunpack.c.l.b16 %v3091
  %v3128 = vunpack.c.l.b16 %v3092
  %v3129 = vunpack.c.l.b16 %v3093
  %v3130 = vunpack.c.l.b16 %v3094
  %v3131 = vunpack.c.l.b16 %v3095
  %v3132 = vunpack.c.l.b16 %v3096
  %v3133 = vunpack.c.l.b16 %v3097
  %v3134 = vunpack.c.l.b16 %v3098
  %v3135 = vunpack.c.l.b16 %v3099
  %v3136 = vunpack.c.l.b16 %v3100
  %v3137 = vunpack.c.l.b16 %v3101
  %v3138 = vunpack.c.l.b16 %v3102
  %v3139 = vpack.c.b16 %v3124, %v3123
  %v3140 = vpack.c.b16 %v3126, %v3125
  %v3141 = vpack.c.b16 %v3128, %v3127
  %v3142 = vpack.c.b16 %v3130, %v3129
  %v3143 = vpack.c.b16 %v3132, %v3131
  %v3144 = vpack.c.b16 %v3134, %v3133
  %v3145 = vpack.c.b16 %v3136, %v3135
  %v3146 = vpack.c.b16 %v3138, %v3137
  %v3148 = vsel %vm154, %v3139, 0
  %v3151 = vsel %vm154, %v3140, 0
  %v3154 = vsel %vm154, %v3141, 0
  %v3157 = vsel %vm154, %v3142, 0
  %v3160 = vsel %vm154, %v3143, 0
  %v3163 = vsel %vm154, %v3144, 0
  %v3166 = vsel %vm154, %v3145, 0
  %v3169 = vsel %vm154, %v3146, 0
  %3171 = vmatprep.subr.bf16.mxu0 0
  %3172 = vmatpush1.bf16.msra.mxu0 0
  %3173 = vmatprep.subr.bf16.mxu0 0
  %3174 = vmatpush1.bf16.msra.mxu0 0
  %3175 = vmatprep.subr.bf16.mxu0 0
  %3176 = vmatpush1.bf16.msra.mxu0 0
  %3177 = vmatprep.subr.bf16.mxu0 0
  %3178 = vmatpush1.bf16.msra.mxu0 0
  %3179 = vmatprep.subr.bf16.mxu0 0
  %3180 = vmatpush1.bf16.msra.mxu0 %v3106
  %3181 = vmatprep.subr.bf16.mxu0 0
  %3182 = vmatpush1.bf16.msra.mxu0 %v3105
  %3183 = vmatprep.subr.bf16.mxu0 0
  %3184 = vmatpush1.bf16.msra.mxu0 %v3104
  %3185 = vmatprep.subr.bf16.mxu0 0
  %3186 = vmatpush1.bf16.msra.mxu0 %v3103
  %3187 = vmatprep.subr.bf16.mxu0 0
  %3188 = vmatpush2.bf16.msra.mxu0 0
  %3189 = vmatprep.subr.bf16.mxu0 0
  %3190 = vmatpush2.bf16.msra.mxu0 0
  %3191 = vmatprep.subr.bf16.mxu0 0
  %3192 = vmatpush2.bf16.msra.mxu0 0
  %3193 = vmatprep.subr.bf16.mxu0 0
  %3194 = vmatpush2.bf16.msra.mxu0 0
  %3195 = vmatprep.subr.bf16.mxu0 0
  %3196 = vmatpush2.bf16.msra.mxu0 0
  %3197 = vmatprep.subr.bf16.mxu0 0
  %3198 = vmatpush2.bf16.msra.mxu0 0
  %3199 = vmatprep.subr.bf16.mxu0 0
  %3200 = vmatpush2.bf16.msra.mxu0 0
  %3201 = vmatprep.subr.bf16.mxu0 0
  %3202 = vmatpush2.bf16.msra.mxu0 0
  %3203 = vmatprep.mubr.bf16.mxu0 0
  %3204 = vmatmul.mubr.bf16.gmra.mxu0 %v3148
  %v3205 = vpop.f32.mrf.mxu0
  %v3206 = vadd.f32 0.0, %v3205
  %v3207 = vpop.f32.mrf.mxu0
  %v3208 = vpop.f32.mrf.mxu0
  %v3209 = vadd.f32 0.0, %v3208
  %v3210 = vpop.f32.mrf.mxu0
  %3211 = vmatprep.mubr.bf16.mxu0 0
  %3212 = vmatmul.mubr.bf16.gmra.mxu0 %v3151
  %v3213 = vpop.f32.mrf.mxu0
  %v3214 = vadd.f32 0.0, %v3213
  %v3215 = vpop.f32.mrf.mxu0
  %v3216 = vpop.f32.mrf.mxu0
  %v3217 = vadd.f32 0.0, %v3216
  %v3218 = vpop.f32.mrf.mxu0
  %3219 = vmatprep.mubr.bf16.mxu0 0
  %3220 = vmatmul.mubr.bf16.gmra.mxu0 %v3154
  %v3221 = vpop.f32.mrf.mxu0
  %v3222 = vadd.f32 0.0, %v3221
  %v3223 = vpop.f32.mrf.mxu0
  %v3224 = vpop.f32.mrf.mxu0
  %v3225 = vadd.f32 0.0, %v3224
  %v3226 = vpop.f32.mrf.mxu0
  %3227 = vmatprep.mubr.bf16.mxu0 0
  %3228 = vmatmul.mubr.bf16.gmra.mxu0 %v3157
  %v3229 = vpop.f32.mrf.mxu0
  %v3230 = vadd.f32 0.0, %v3229
  %v3231 = vpop.f32.mrf.mxu0
  %v3232 = vpop.f32.mrf.mxu0
  %v3233 = vadd.f32 0.0, %v3232
  %v3234 = vpop.f32.mrf.mxu0
  %3235 = vmatprep.mubr.bf16.mxu0 0
  %3236 = vmatmul.mubr.bf16.gmra.mxu0 %v3160
  %v3237 = vpop.f32.mrf.mxu0
  %v3238 = vadd.f32 0.0, %v3237
  %v3239 = vpop.f32.mrf.mxu0
  %v3240 = vpop.f32.mrf.mxu0
  %v3241 = vadd.f32 0.0, %v3240
  %v3242 = vpop.f32.mrf.mxu0
  %3243 = vmatprep.mubr.bf16.mxu0 0
  %3244 = vmatmul.mubr.bf16.gmra.mxu0 %v3163
  %v3245 = vpop.f32.mrf.mxu0
  %v3246 = vadd.f32 0.0, %v3245
  %v3247 = vpop.f32.mrf.mxu0
  %v3248 = vpop.f32.mrf.mxu0
  %v3249 = vadd.f32 0.0, %v3248
  %v3250 = vpop.f32.mrf.mxu0
  %3251 = vmatprep.mubr.bf16.mxu0 0
  %3252 = vmatmul.mubr.bf16.gmra.mxu0 %v3166
  %v3253 = vpop.f32.mrf.mxu0
  %v3254 = vadd.f32 0.0, %v3253
  %v3255 = vpop.f32.mrf.mxu0
  %v3256 = vpop.f32.mrf.mxu0
  %v3257 = vadd.f32 0.0, %v3256
  %v3258 = vpop.f32.mrf.mxu0
  %3259 = vmatprep.mubr.bf16.mxu0 0
  %3260 = vmatmul.mubr.bf16.gmra.mxu0 %v3169
  %v3261 = vpop.f32.mrf.mxu0
  %v3262 = vadd.f32 0.0, %v3261
  %v3263 = vpop.f32.mrf.mxu0
  %v3264 = vpop.f32.mrf.mxu0
  %v3265 = vadd.f32 0.0, %v3264
  %v3266 = vpop.f32.mrf.mxu0
  %3267 = vdwg.mxu0
  %v3268 = vadd.f32 %v2992, %v3206
  %v3269 = vadd.f32 %v2993, %v3209
  %v3270 = vadd.f32 %v2994, %v3214
  %v3271 = vadd.f32 %v2995, %v3217
  %v3272 = vadd.f32 %v2996, %v3222
  %v3273 = vadd.f32 %v2997, %v3225
  %v3274 = vadd.f32 %v2998, %v3230
  %v3275 = vadd.f32 %v2999, %v3233
  %v3276 = vadd.f32 %v3000, %v3238
  %v3277 = vadd.f32 %v3001, %v3241
  %v3278 = vadd.f32 %v3002, %v3246
  %v3279 = vadd.f32 %v3003, %v3249
  %v3280 = vadd.f32 %v3004, %v3254
  %v3281 = vadd.f32 %v3005, %v3257
  %v3282 = vadd.f32 %v3006, %v3262
  %v3283 = vadd.f32 %v3007, %v3265
  %v3284 = vld [vmem:[%s6] sm:$0xff]
  %v3285 = vld [vmem:[%s6 + $0x8] sm:$0xff]
  %v3286 = vld [vmem:[%s6 + $0x10] sm:$0xff]
  %v3287 = vld [vmem:[%s6 + $0x18] sm:$0xff]
  %v3288 = vld [vmem:[%s6 + $0x20] sm:$0xff]
  %v3289 = vld [vmem:[%s6 + $0x28] sm:$0xff]
  %v3290 = vld [vmem:[%s6 + $0x30] sm:$0x11]
  %v3298 = vunpack.c.l.b16 %v3284
  %v3299 = vunpack.c.h.b16 %v3284
  %v3300 = vunpack.c.l.b16 %v3285
  %v3301 = vunpack.c.h.b16 %v3285
  %v3302 = vunpack.c.l.b16 %v3286
  %v3303 = vunpack.c.h.b16 %v3286
  %v3304 = vunpack.c.l.b16 %v3287
  %v3305 = vunpack.c.h.b16 %v3287
  %v3306 = vunpack.c.l.b16 %v3288
  %v3307 = vunpack.c.h.b16 %v3288
  %v3308 = vunpack.c.l.b16 %v3289
  %v3309 = vunpack.c.h.b16 %v3289
  %v3310 = vunpack.c.l.b16 %v3290
  %v3311 = vunpack.c.h.b16 %v3290
  %v3312 = vpack.c.b16 %v3300, %v3298
  %v3313 = vpack.c.b16 %v3301, %v3299
  %v3314 = vpack.c.b16 %v3304, %v3302
  %v3315 = vpack.c.b16 %v3305, %v3303
  %v3316 = vpack.c.b16 %v3308, %v3306
  %v3317 = vpack.c.b16 %v3309, %v3307
  %v3318 = vpack.c.b16 %v3310, %v3310
  %v3319 = vpack.c.b16 %v3311, %v3311
  %3320 = vrot.lane.b32.xlu0 %v3312, 2
  %v3321 = vpop.permute.xlu0 %3320
  %3322 = vrot.lane.b32.xlu0 %v3313, 2
  %v3323 = vpop.permute.xlu0 %3322
  %3324 = vrot.lane.b32.xlu0 %v3314, 2
  %v3325 = vpop.permute.xlu0 %3324
  %3326 = vrot.lane.b32.xlu0 %v3315, 2
  %v3327 = vpop.permute.xlu0 %3326
  %3328 = vrot.lane.b32.xlu0 %v3316, 2
  %v3329 = vpop.permute.xlu0 %3328
  %3330 = vrot.lane.b32.xlu0 %v3317, 2
  %v3331 = vpop.permute.xlu0 %3330
  %3332 = vrot.lane.b32.xlu0 %v3318, 2
  %v3333 = vpop.permute.xlu0 %3332
  %3334 = vrot.lane.b32.xlu0 %v3319, 2
  %v3335 = vpop.permute.xlu0 %3334
  %vm3336 = vcmask 15360
  %v3337 = vsel %vm3336, %v3321, %v3323
  %v3338 = vsel %vm3336, %v3325, %v3327
  %v3339 = vsel %vm3336, %v3329, %v3331
  %v3340 = vsel %vm3336, %v3333, %v3335
  %v3345 = vsel %vm357, %v3340, 0
  %3347 = vmatprep.subr.bf16.mxu0 0
  %3348 = vmatpush1.bf16.msra.mxu0 0
  %3349 = vmatprep.subr.bf16.mxu0 0
  %3350 = vmatpush1.bf16.msra.mxu0 0
  %3351 = vmatprep.subr.bf16.mxu0 0
  %3352 = vmatpush1.bf16.msra.mxu0 0
  %3353 = vmatprep.subr.bf16.mxu0 0
  %3354 = vmatpush1.bf16.msra.mxu0 0
  %3355 = vmatprep.subr.bf16.mxu0 0
  %3356 = vmatpush1.bf16.msra.mxu0 %v3345
  %3357 = vmatprep.subr.bf16.mxu0 0
  %3358 = vmatpush1.bf16.msra.mxu0 %v3339
  %3359 = vmatprep.subr.bf16.mxu0 0
  %3360 = vmatpush1.bf16.msra.mxu0 %v3338
  %3361 = vmatprep.subr.bf16.mxu0 0
  %3362 = vmatpush1.bf16.msra.mxu0 %v3337
  %3363 = vmatprep.subr.bf16.mxu0 0
  %3364 = vmatpush2.bf16.msra.mxu0 0
  %3365 = vmatprep.subr.bf16.mxu0 0
  %3366 = vmatpush2.bf16.msra.mxu0 0
  %3367 = vmatprep.subr.bf16.mxu0 0
  %3368 = vmatpush2.bf16.msra.mxu0 0
  %3369 = vmatprep.subr.bf16.mxu0 0
  %3370 = vmatpush2.bf16.msra.mxu0 0
  %3371 = vmatprep.subr.bf16.mxu0 0
  %3372 = vmatpush2.bf16.msra.mxu0 0
  %3373 = vmatprep.subr.bf16.mxu0 0
  %3374 = vmatpush2.bf16.msra.mxu0 0
  %3375 = vmatprep.subr.bf16.mxu0 0
  %3376 = vmatpush2.bf16.msra.mxu0 0
  %3377 = vmatprep.subr.bf16.mxu0 0
  %3378 = vmatpush2.bf16.msra.mxu0 0
  %3379 = vmatprep.mubr.bf16.mxu0 0
  %3380 = vmatmul.mubr.bf16.gmra.mxu0 %v1504
  %v3381 = vpop.f32.mrf.mxu0
  %v3382 = vadd.f32 0.0, %v3381
  %v3383 = vpop.f32.mrf.mxu0
  %v3384 = vpop.f32.mrf.mxu0
  %v3385 = vadd.f32 0.0, %v3384
  %v3386 = vpop.f32.mrf.mxu0
  %3387 = vmatprep.mubr.bf16.mxu0 0
  %3388 = vmatmul.mubr.bf16.gmra.mxu0 %v1507
  %v3389 = vpop.f32.mrf.mxu0
  %v3390 = vadd.f32 0.0, %v3389
  %v3391 = vpop.f32.mrf.mxu0
  %v3392 = vpop.f32.mrf.mxu0
  %v3393 = vadd.f32 0.0, %v3392
  %v3394 = vpop.f32.mrf.mxu0
  %3395 = vmatprep.mubr.bf16.mxu0 0
  %3396 = vmatmul.mubr.bf16.gmra.mxu0 %v1510
  %v3397 = vpop.f32.mrf.mxu0
  %v3398 = vadd.f32 0.0, %v3397
  %v3399 = vpop.f32.mrf.mxu0
  %v3400 = vpop.f32.mrf.mxu0
  %v3401 = vadd.f32 0.0, %v3400
  %v3402 = vpop.f32.mrf.mxu0
  %3403 = vmatprep.mubr.bf16.mxu0 0
  %3404 = vmatmul.mubr.bf16.gmra.mxu0 %v1513
  %v3405 = vpop.f32.mrf.mxu0
  %v3406 = vadd.f32 0.0, %v3405
  %v3407 = vpop.f32.mrf.mxu0
  %v3408 = vpop.f32.mrf.mxu0
  %v3409 = vadd.f32 0.0, %v3408
  %v3410 = vpop.f32.mrf.mxu0
  %3411 = vdwg.mxu0
  %v3412 = vpack.c.bf16 %v3385, %v3382
  %v3413 = vpack.c.bf16 %v3393, %v3390
  %v3414 = vpack.c.bf16 %v3401, %v3398
  %v3415 = vpack.c.bf16 %v3409, %v3406
  %3416 = vrot.lane.b32.xlu0 %v3139, 64
  %v3417 = vpop.permute.xlu0 %3416
  %3418 = vrot.lane.b32.xlu0 %v3140, 64
  %v3419 = vpop.permute.xlu0 %3418
  %3420 = vrot.lane.b32.xlu0 %v3141, 64
  %v3421 = vpop.permute.xlu0 %3420
  %3422 = vrot.lane.b32.xlu0 %v3142, 64
  %v3423 = vpop.permute.xlu0 %3422
  %3424 = vrot.lane.b32.xlu0 %v3143, 64
  %v3425 = vpop.permute.xlu0 %3424
  %3426 = vrot.lane.b32.xlu0 %v3144, 64
  %v3427 = vpop.permute.xlu0 %3426
  %3428 = vrot.lane.b32.xlu0 %v3145, 64
  %v3429 = vpop.permute.xlu0 %3428
  %3430 = vrot.lane.b32.xlu0 %v3146, 64
  %v3431 = vpop.permute.xlu0 %3430
  %v3433 = vsel %vm154, %v3417, 0
  %v3436 = vsel %vm154, %v3419, 0
  %v3439 = vsel %vm154, %v3421, 0
  %v3442 = vsel %vm154, %v3423, 0
  %v3445 = vsel %vm154, %v3425, 0
  %v3448 = vsel %vm154, %v3427, 0
  %v3451 = vsel %vm154, %v3429, 0
  %v3454 = vsel %vm154, %v3431, 0
  %3456 = vmatprep.subr.bf16.mxu0 0
  %3457 = vmatpush1.bf16.msra.mxu0 0
  %3458 = vmatprep.subr.bf16.mxu0 0
  %3459 = vmatpush1.bf16.msra.mxu0 0
  %3460 = vmatprep.subr.bf16.mxu0 0
  %3461 = vmatpush1.bf16.msra.mxu0 0
  %3462 = vmatprep.subr.bf16.mxu0 0
  %3463 = vmatpush1.bf16.msra.mxu0 0
  %3464 = vmatprep.subr.bf16.mxu0 0
  %3465 = vmatpush1.bf16.msra.mxu0 %v3415
  %3466 = vmatprep.subr.bf16.mxu0 0
  %3467 = vmatpush1.bf16.msra.mxu0 %v3414
  %3468 = vmatprep.subr.bf16.mxu0 0
  %3469 = vmatpush1.bf16.msra.mxu0 %v3413
  %3470 = vmatprep.subr.bf16.mxu0 0
  %3471 = vmatpush1.bf16.msra.mxu0 %v3412
  %3472 = vmatprep.subr.bf16.mxu0 0
  %3473 = vmatpush2.bf16.msra.mxu0 0
  %3474 = vmatprep.subr.bf16.mxu0 0
  %3475 = vmatpush2.bf16.msra.mxu0 0
  %3476 = vmatprep.subr.bf16.mxu0 0
  %3477 = vmatpush2.bf16.msra.mxu0 0
  %3478 = vmatprep.subr.bf16.mxu0 0
  %3479 = vmatpush2.bf16.msra.mxu0 0
  %3480 = vmatprep.subr.bf16.mxu0 0
  %3481 = vmatpush2.bf16.msra.mxu0 0
  %3482 = vmatprep.subr.bf16.mxu0 0
  %3483 = vmatpush2.bf16.msra.mxu0 0
  %3484 = vmatprep.subr.bf16.mxu0 0
  %3485 = vmatpush2.bf16.msra.mxu0 0
  %3486 = vmatprep.subr.bf16.mxu0 0
  %3487 = vmatpush2.bf16.msra.mxu0 0
  %3488 = vmatprep.mubr.bf16.mxu0 0
  %3489 = vmatmul.mubr.bf16.gmra.mxu0 %v3433
  %v3490 = vpop.f32.mrf.mxu0
  %v3491 = vadd.f32 0.0, %v3490
  %v3492 = vpop.f32.mrf.mxu0
  %v3493 = vpop.f32.mrf.mxu0
  %v3494 = vadd.f32 0.0, %v3493
  %v3495 = vpop.f32.mrf.mxu0
  %3496 = vmatprep.mubr.bf16.mxu0 0
  %3497 = vmatmul.mubr.bf16.gmra.mxu0 %v3436
  %v3498 = vpop.f32.mrf.mxu0
  %v3499 = vadd.f32 0.0, %v3498
  %v3500 = vpop.f32.mrf.mxu0
  %v3501 = vpop.f32.mrf.mxu0
  %v3502 = vadd.f32 0.0, %v3501
  %v3503 = vpop.f32.mrf.mxu0
  %3504 = vmatprep.mubr.bf16.mxu0 0
  %3505 = vmatmul.mubr.bf16.gmra.mxu0 %v3439
  %v3506 = vpop.f32.mrf.mxu0
  %v3507 = vadd.f32 0.0, %v3506
  %v3508 = vpop.f32.mrf.mxu0
  %v3509 = vpop.f32.mrf.mxu0
  %v3510 = vadd.f32 0.0, %v3509
  %v3511 = vpop.f32.mrf.mxu0
  %3512 = vmatprep.mubr.bf16.mxu0 0
  %3513 = vmatmul.mubr.bf16.gmra.mxu0 %v3442
  %v3514 = vpop.f32.mrf.mxu0
  %v3515 = vadd.f32 0.0, %v3514
  %v3516 = vpop.f32.mrf.mxu0
  %v3517 = vpop.f32.mrf.mxu0
  %v3518 = vadd.f32 0.0, %v3517
  %v3519 = vpop.f32.mrf.mxu0
  %3520 = vmatprep.mubr.bf16.mxu0 0
  %3521 = vmatmul.mubr.bf16.gmra.mxu0 %v3445
  %v3522 = vpop.f32.mrf.mxu0
  %v3523 = vadd.f32 0.0, %v3522
  %v3524 = vpop.f32.mrf.mxu0
  %v3525 = vpop.f32.mrf.mxu0
  %v3526 = vadd.f32 0.0, %v3525
  %v3527 = vpop.f32.mrf.mxu0
  %3528 = vmatprep.mubr.bf16.mxu0 0
  %3529 = vmatmul.mubr.bf16.gmra.mxu0 %v3448
  %v3530 = vpop.f32.mrf.mxu0
  %v3531 = vadd.f32 0.0, %v3530
  %v3532 = vpop.f32.mrf.mxu0
  %v3533 = vpop.f32.mrf.mxu0
  %v3534 = vadd.f32 0.0, %v3533
  %v3535 = vpop.f32.mrf.mxu0
  %3536 = vmatprep.mubr.bf16.mxu0 0
  %3537 = vmatmul.mubr.bf16.gmra.mxu0 %v3451
  %v3538 = vpop.f32.mrf.mxu0
  %v3539 = vadd.f32 0.0, %v3538
  %v3540 = vpop.f32.mrf.mxu0
  %v3541 = vpop.f32.mrf.mxu0
  %v3542 = vadd.f32 0.0, %v3541
  %v3543 = vpop.f32.mrf.mxu0
  %3544 = vmatprep.mubr.bf16.mxu0 0
  %3545 = vmatmul.mubr.bf16.gmra.mxu0 %v3454
  %v3546 = vpop.f32.mrf.mxu0
  %v3547 = vadd.f32 0.0, %v3546
  %v3548 = vpop.f32.mrf.mxu0
  %v3549 = vpop.f32.mrf.mxu0
  %v3550 = vadd.f32 0.0, %v3549
  %v3551 = vpop.f32.mrf.mxu0
  %3552 = vdwg.mxu0
  %v3553 = vadd.f32 %v3268, %v3491
  %v3554 = vadd.f32 %v3269, %v3494
  %v3555 = vadd.f32 %v3270, %v3499
  %v3556 = vadd.f32 %v3271, %v3502
  %v3557 = vadd.f32 %v3272, %v3507
  %v3558 = vadd.f32 %v3273, %v3510
  %v3559 = vadd.f32 %v3274, %v3515
  %v3560 = vadd.f32 %v3275, %v3518
  %v3561 = vadd.f32 %v3276, %v3523
  %v3562 = vadd.f32 %v3277, %v3526
  %v3563 = vadd.f32 %v3278, %v3531
  %v3564 = vadd.f32 %v3279, %v3534
  %v3565 = vadd.f32 %v3280, %v3539
  %v3566 = vadd.f32 %v3281, %v3542
  %v3567 = vadd.f32 %v3282, %v3547
  %v3568 = vadd.f32 %v3283, %v3550
  %v3569 = vld [vmem:[%s6 + $0x4] sm:$0xf]
  %v3570 = vld [vmem:[%s6 + $0xc] sm:$0xf]
  %v3571 = vld [vmem:[%s6 + $0x14] sm:$0xf]
  %v3572 = vld [vmem:[%s6 + $0x1c] sm:$0xf]
  %v3573 = vld [vmem:[%s6 + $0x24] sm:$0xf]
  %v3574 = vld [vmem:[%s6 + $0x2c] sm:$0xf]
  %v3575 = vld [vmem:[%s6 + $0x34] sm:$0x1]
  %v3583 = vunpack.c.l.b16 %v3569
  %v3584 = vunpack.c.l.b16 %v3570
  %v3585 = vunpack.c.l.b16 %v3571
  %v3586 = vunpack.c.l.b16 %v3572
  %v3587 = vunpack.c.l.b16 %v3573
  %v3588 = vunpack.c.l.b16 %v3574
  %v3589 = vunpack.c.l.b16 %v3575
  %v3590 = vpack.c.b16 %v3584, %v3583
  %v3591 = vpack.c.b16 %v3586, %v3585
  %v3592 = vpack.c.b16 %v3588, %v3587
  %v3593 = vpack.c.b16 %v3589, %v3589
  %3594 = vrot.lane.b32.xlu0 %v3590, 112
  %v3595 = vpop.permute.xlu0 %3594
  %3596 = vrot.lane.b32.xlu0 %v3591, 112
  %v3597 = vpop.permute.xlu0 %3596
  %3598 = vrot.lane.b32.xlu0 %v3592, 112
  %v3599 = vpop.permute.xlu0 %3598
  %3600 = vrot.lane.b32.xlu0 %v3593, 112
  %v3601 = vpop.permute.xlu0 %3600
  %v3606 = vsel %vm357, %v3601, 0
  %3608 = vmatprep.subr.bf16.mxu0 0
  %3609 = vmatpush1.bf16.msra.mxu0 0
  %3610 = vmatprep.subr.bf16.mxu0 0
  %3611 = vmatpush1.bf16.msra.mxu0 0
  %3612 = vmatprep.subr.bf16.mxu0 0
  %3613 = vmatpush1.bf16.msra.mxu0 0
  %3614 = vmatprep.subr.bf16.mxu0 0
  %3615 = vmatpush1.bf16.msra.mxu0 0
  %3616 = vmatprep.subr.bf16.mxu0 0
  %3617 = vmatpush1.bf16.msra.mxu0 %v3606
  %3618 = vmatprep.subr.bf16.mxu0 0
  %3619 = vmatpush1.bf16.msra.mxu0 %v3599
  %3620 = vmatprep.subr.bf16.mxu0 0
  %3621 = vmatpush1.bf16.msra.mxu0 %v3597
  %3622 = vmatprep.subr.bf16.mxu0 0
  %3623 = vmatpush1.bf16.msra.mxu0 %v3595
  %3624 = vmatprep.subr.bf16.mxu0 0
  %3625 = vmatpush2.bf16.msra.mxu0 0
  %3626 = vmatprep.subr.bf16.mxu0 0
  %3627 = vmatpush2.bf16.msra.mxu0 0
  %3628 = vmatprep.subr.bf16.mxu0 0
  %3629 = vmatpush2.bf16.msra.mxu0 0
  %3630 = vmatprep.subr.bf16.mxu0 0
  %3631 = vmatpush2.bf16.msra.mxu0 0
  %3632 = vmatprep.subr.bf16.mxu0 0
  %3633 = vmatpush2.bf16.msra.mxu0 0
  %3634 = vmatprep.subr.bf16.mxu0 0
  %3635 = vmatpush2.bf16.msra.mxu0 0
  %3636 = vmatprep.subr.bf16.mxu0 0
  %3637 = vmatpush2.bf16.msra.mxu0 0
  %3638 = vmatprep.subr.bf16.mxu0 0
  %3639 = vmatpush2.bf16.msra.mxu0 0
  %3640 = vmatprep.mubr.bf16.mxu0 0
  %3641 = vmatmul.mubr.bf16.gmra.mxu0 %v1504
  %v3642 = vpop.f32.mrf.mxu0
  %v3643 = vadd.f32 0.0, %v3642
  %v3644 = vpop.f32.mrf.mxu0
  %v3645 = vpop.f32.mrf.mxu0
  %v3646 = vadd.f32 0.0, %v3645
  %v3647 = vpop.f32.mrf.mxu0
  %3648 = vmatprep.mubr.bf16.mxu0 0
  %3649 = vmatmul.mubr.bf16.gmra.mxu0 %v1507
  %v3650 = vpop.f32.mrf.mxu0
  %v3651 = vadd.f32 0.0, %v3650
  %v3652 = vpop.f32.mrf.mxu0
  %v3653 = vpop.f32.mrf.mxu0
  %v3654 = vadd.f32 0.0, %v3653
  %v3655 = vpop.f32.mrf.mxu0
  %3656 = vmatprep.mubr.bf16.mxu0 0
  %3657 = vmatmul.mubr.bf16.gmra.mxu0 %v1510
  %v3658 = vpop.f32.mrf.mxu0
  %v3659 = vadd.f32 0.0, %v3658
  %v3660 = vpop.f32.mrf.mxu0
  %v3661 = vpop.f32.mrf.mxu0
  %v3662 = vadd.f32 0.0, %v3661
  %v3663 = vpop.f32.mrf.mxu0
  %3664 = vmatprep.mubr.bf16.mxu0 0
  %3665 = vmatmul.mubr.bf16.gmra.mxu0 %v1513
  %v3666 = vpop.f32.mrf.mxu0
  %v3667 = vadd.f32 0.0, %v3666
  %v3668 = vpop.f32.mrf.mxu0
  %v3669 = vpop.f32.mrf.mxu0
  %v3670 = vadd.f32 0.0, %v3669
  %v3671 = vpop.f32.mrf.mxu0
  %3672 = vdwg.mxu0
  %v3673 = vld [vmem:[%s7 + $0x10] sm:$0xf]
  %v3674 = vld [vmem:[%s7 + $0x24] sm:$0xf]
  %v3675 = vld [vmem:[%s7 + $0x38] sm:$0xf]
  %v3676 = vld [vmem:[%s7 + $0x4c] sm:$0xf]
  %v3677 = vld [vmem:[%s7 + $0x60] sm:$0xf]
  %v3678 = vld [vmem:[%s7 + $0x74] sm:$0xf]
  %v3679 = vld [vmem:[%s7 + $0x88] sm:$0xf]
  %v3680 = vld [vmem:[%s7 + $0x9c] sm:$0xf]
  %v3681 = vld [vmem:[%s7 + $0xb0] sm:$0xf]
  %v3682 = vld [vmem:[%s7 + $0xc4] sm:$0xf]
  %v3683 = vld [vmem:[%s7 + $0xd8] sm:$0xf]
  %v3684 = vld [vmem:[%s7 + $0xec] sm:$0xf]
  %v3685 = vld [vmem:[%s7 + $0x100] sm:$0xf]
  %v3686 = vld [vmem:[%s7 + $0x114] sm:$0xf]
  %v3687 = vld [vmem:[%s7 + $0x128] sm:$0xf]
  %v3688 = vld [vmem:[%s7 + $0x13c] sm:$0xf]
  %v3689 = vpack.c.bf16 %v3646, %v3643
  %v3690 = vpack.c.bf16 %v3654, %v3651
  %v3691 = vpack.c.bf16 %v3662, %v3659
  %v3692 = vpack.c.bf16 %v3670, %v3667
  %v3709 = vunpack.c.l.b16 %v3673
  %v3710 = vunpack.c.l.b16 %v3674
  %v3711 = vunpack.c.l.b16 %v3675
  %v3712 = vunpack.c.l.b16 %v3676
  %v3713 = vunpack.c.l.b16 %v3677
  %v3714 = vunpack.c.l.b16 %v3678
  %v3715 = vunpack.c.l.b16 %v3679
  %v3716 = vunpack.c.l.b16 %v3680
  %v3717 = vunpack.c.l.b16 %v3681
  %v3718 = vunpack.c.l.b16 %v3682
  %v3719 = vunpack.c.l.b16 %v3683
  %v3720 = vunpack.c.l.b16 %v3684
  %v3721 = vunpack.c.l.b16 %v3685
  %v3722 = vunpack.c.l.b16 %v3686
  %v3723 = vunpack.c.l.b16 %v3687
  %v3724 = vunpack.c.l.b16 %v3688
  %v3725 = vpack.c.b16 %v3710, %v3709
  %v3726 = vpack.c.b16 %v3712, %v3711
  %v3727 = vpack.c.b16 %v3714, %v3713
  %v3728 = vpack.c.b16 %v3716, %v3715
  %v3729 = vpack.c.b16 %v3718, %v3717
  %v3730 = vpack.c.b16 %v3720, %v3719
  %v3731 = vpack.c.b16 %v3722, %v3721
  %v3732 = vpack.c.b16 %v3724, %v3723
  %v3734 = vsel %vm154, %v3725, 0
  %v3737 = vsel %vm154, %v3726, 0
  %v3740 = vsel %vm154, %v3727, 0
  %v3743 = vsel %vm154, %v3728, 0
  %v3746 = vsel %vm154, %v3729, 0
  %v3749 = vsel %vm154, %v3730, 0
  %v3752 = vsel %vm154, %v3731, 0
  %v3755 = vsel %vm154, %v3732, 0
  %3757 = vmatprep.subr.bf16.mxu0 0
  %3758 = vmatpush1.bf16.msra.mxu0 0
  %3759 = vmatprep.subr.bf16.mxu0 0
  %3760 = vmatpush1.bf16.msra.mxu0 0
  %3761 = vmatprep.subr.bf16.mxu0 0
  %3762 = vmatpush1.bf16.msra.mxu0 0
  %3763 = vmatprep.subr.bf16.mxu0 0
  %3764 = vmatpush1.bf16.msra.mxu0 0
  %3765 = vmatprep.subr.bf16.mxu0 0
  %3766 = vmatpush1.bf16.msra.mxu0 %v3692
  %3767 = vmatprep.subr.bf16.mxu0 0
  %3768 = vmatpush1.bf16.msra.mxu0 %v3691
  %3769 = vmatprep.subr.bf16.mxu0 0
  %3770 = vmatpush1.bf16.msra.mxu0 %v3690
  %3771 = vmatprep.subr.bf16.mxu0 0
  %3772 = vmatpush1.bf16.msra.mxu0 %v3689
  %3773 = vmatprep.subr.bf16.mxu0 0
  %3774 = vmatpush2.bf16.msra.mxu0 0
  %3775 = vmatprep.subr.bf16.mxu0 0
  %3776 = vmatpush2.bf16.msra.mxu0 0
  %3777 = vmatprep.subr.bf16.mxu0 0
  %3778 = vmatpush2.bf16.msra.mxu0 0
  %3779 = vmatprep.subr.bf16.mxu0 0
  %3780 = vmatpush2.bf16.msra.mxu0 0
  %3781 = vmatprep.subr.bf16.mxu0 0
  %3782 = vmatpush2.bf16.msra.mxu0 0
  %3783 = vmatprep.subr.bf16.mxu0 0
  %3784 = vmatpush2.bf16.msra.mxu0 0
  %3785 = vmatprep.subr.bf16.mxu0 0
  %3786 = vmatpush2.bf16.msra.mxu0 0
  %3787 = vmatprep.subr.bf16.mxu0 0
  %3788 = vmatpush2.bf16.msra.mxu0 0
  %3789 = vmatprep.mubr.bf16.mxu0 0
  %3790 = vmatmul.mubr.bf16.gmra.mxu0 %v3734
  %v3791 = vpop.f32.mrf.mxu0
  %v3792 = vadd.f32 0.0, %v3791
  %v3793 = vpop.f32.mrf.mxu0
  %v3794 = vpop.f32.mrf.mxu0
  %v3795 = vadd.f32 0.0, %v3794
  %v3796 = vpop.f32.mrf.mxu0
  %3797 = vmatprep.mubr.bf16.mxu0 0
  %3798 = vmatmul.mubr.bf16.gmra.mxu0 %v3737
  %v3799 = vpop.f32.mrf.mxu0
  %v3800 = vadd.f32 0.0, %v3799
  %v3801 = vpop.f32.mrf.mxu0
  %v3802 = vpop.f32.mrf.mxu0
  %v3803 = vadd.f32 0.0, %v3802
  %v3804 = vpop.f32.mrf.mxu0
  %3805 = vmatprep.mubr.bf16.mxu0 0
  %3806 = vmatmul.mubr.bf16.gmra.mxu0 %v3740
  %v3807 = vpop.f32.mrf.mxu0
  %v3808 = vadd.f32 0.0, %v3807
  %v3809 = vpop.f32.mrf.mxu0
  %v3810 = vpop.f32.mrf.mxu0
  %v3811 = vadd.f32 0.0, %v3810
  %v3812 = vpop.f32.mrf.mxu0
  %3813 = vmatprep.mubr.bf16.mxu0 0
  %3814 = vmatmul.mubr.bf16.gmra.mxu0 %v3743
  %v3815 = vpop.f32.mrf.mxu0
  %v3816 = vadd.f32 0.0, %v3815
  %v3817 = vpop.f32.mrf.mxu0
  %v3818 = vpop.f32.mrf.mxu0
  %v3819 = vadd.f32 0.0, %v3818
  %v3820 = vpop.f32.mrf.mxu0
  %3821 = vmatprep.mubr.bf16.mxu0 0
  %3822 = vmatmul.mubr.bf16.gmra.mxu0 %v3746
  %v3823 = vpop.f32.mrf.mxu0
  %v3824 = vadd.f32 0.0, %v3823
  %v3825 = vpop.f32.mrf.mxu0
  %v3826 = vpop.f32.mrf.mxu0
  %v3827 = vadd.f32 0.0, %v3826
  %v3828 = vpop.f32.mrf.mxu0
  %3829 = vmatprep.mubr.bf16.mxu0 0
  %3830 = vmatmul.mubr.bf16.gmra.mxu0 %v3749
  %v3831 = vpop.f32.mrf.mxu0
  %v3832 = vadd.f32 0.0, %v3831
  %v3833 = vpop.f32.mrf.mxu0
  %v3834 = vpop.f32.mrf.mxu0
  %v3835 = vadd.f32 0.0, %v3834
  %v3836 = vpop.f32.mrf.mxu0
  %3837 = vmatprep.mubr.bf16.mxu0 0
  %3838 = vmatmul.mubr.bf16.gmra.mxu0 %v3752
  %v3839 = vpop.f32.mrf.mxu0
  %v3840 = vadd.f32 0.0, %v3839
  %v3841 = vpop.f32.mrf.mxu0
  %v3842 = vpop.f32.mrf.mxu0
  %v3843 = vadd.f32 0.0, %v3842
  %v3844 = vpop.f32.mrf.mxu0
  %3845 = vmatprep.mubr.bf16.mxu0 0
  %3846 = vmatmul.mubr.bf16.gmra.mxu0 %v3755
  %v3847 = vpop.f32.mrf.mxu0
  %v3848 = vadd.f32 0.0, %v3847
  %v3849 = vpop.f32.mrf.mxu0
  %v3850 = vpop.f32.mrf.mxu0
  %v3851 = vadd.f32 0.0, %v3850
  %v3852 = vpop.f32.mrf.mxu0
  %3853 = vdwg.mxu0
  %v3854 = vadd.f32 %v3553, %v3792
  %v3855 = vadd.f32 %v3554, %v3795
  %v3856 = vadd.f32 %v3555, %v3800
  %v3857 = vadd.f32 %v3556, %v3803
  %v3858 = vadd.f32 %v3557, %v3808
  %v3859 = vadd.f32 %v3558, %v3811
  %v3860 = vadd.f32 %v3559, %v3816
  %v3861 = vadd.f32 %v3560, %v3819
  %v3862 = vadd.f32 %v3561, %v3824
  %v3863 = vadd.f32 %v3562, %v3827
  %v3864 = vadd.f32 %v3563, %v3832
  %v3865 = vadd.f32 %v3564, %v3835
  %v3866 = vadd.f32 %v3565, %v3840
  %v3867 = vadd.f32 %v3566, %v3843
  %v3868 = vadd.f32 %v3567, %v3848
  %v3869 = vadd.f32 %v3568, %v3851
  %v3870 = vld [vmem:[%s8] sm:$0xff]
  %v3871 = vld [vmem:[%s8 + $0x8] sm:$0xff]
  %v3872 = vld [vmem:[%s8 + $0x10] sm:$0xff]
  %v3873 = vld [vmem:[%s8 + $0x18] sm:$0xff]
  %v3874 = vld [vmem:[%s8 + $0x20] sm:$0xff]
  %v3875 = vld [vmem:[%s8 + $0x28] sm:$0xff]
  %v3876 = vld [vmem:[%s8 + $0x30] sm:$0xff]
  %v3877 = vld [vmem:[%s8 + $0x38] sm:$0xff]
  %v3878 = vld [vmem:[%s8 + $0x40] sm:$0xff]
  %v3879 = vld [vmem:[%s8 + $0x48] sm:$0xff]
  %v3880 = vld [vmem:[%s8 + $0x50] sm:$0xff]
  %v3881 = vld [vmem:[%s8 + $0x58] sm:$0xff]
  %v3882 = vld [vmem:[%s8 + $0x60] sm:$0xff]
  %v3883 = vld [vmem:[%s8 + $0x68] sm:$0xff]
  %v3884 = vld [vmem:[%s8 + $0x70] sm:$0xff]
  %v3885 = vld [vmem:[%s8 + $0x78] sm:$0xff]
  %3887 = vset.pattern.permute.xlu0 0
  %3888 = vperm.xlu0 %3887, %v3870
  %v3889 = vpop.permute.xlu0 %3888
  %3892 = vset.pattern.permute.xlu0 0
  %3893 = vperm.xlu0 %3892, %v3871
  %v3894 = vpop.permute.xlu0 %3893
  %3897 = vset.pattern.permute.xlu0 0
  %3898 = vperm.xlu0 %3897, %v3872
  %v3899 = vpop.permute.xlu0 %3898
  %3902 = vset.pattern.permute.xlu0 0
  %3903 = vperm.xlu0 %3902, %v3873
  %v3904 = vpop.permute.xlu0 %3903
  %3907 = vset.pattern.permute.xlu0 0
  %3908 = vperm.xlu0 %3907, %v3874
  %v3909 = vpop.permute.xlu0 %3908
  %3912 = vset.pattern.permute.xlu0 0
  %3913 = vperm.xlu0 %3912, %v3875
  %v3914 = vpop.permute.xlu0 %3913
  %3917 = vset.pattern.permute.xlu0 0
  %3918 = vperm.xlu0 %3917, %v3876
  %v3919 = vpop.permute.xlu0 %3918
  %3922 = vset.pattern.permute.xlu0 0
  %3923 = vperm.xlu0 %3922, %v3877
  %v3924 = vpop.permute.xlu0 %3923
  %3927 = vset.pattern.permute.xlu0 0
  %3928 = vperm.xlu0 %3927, %v3878
  %v3929 = vpop.permute.xlu0 %3928
  %3932 = vset.pattern.permute.xlu0 0
  %3933 = vperm.xlu0 %3932, %v3879
  %v3934 = vpop.permute.xlu0 %3933
  %3937 = vset.pattern.permute.xlu0 0
  %3938 = vperm.xlu0 %3937, %v3880
  %v3939 = vpop.permute.xlu0 %3938
  %3942 = vset.pattern.permute.xlu0 0
  %3943 = vperm.xlu0 %3942, %v3881
  %v3944 = vpop.permute.xlu0 %3943
  %3947 = vset.pattern.permute.xlu0 0
  %3948 = vperm.xlu0 %3947, %v3882
  %v3949 = vpop.permute.xlu0 %3948
  %3952 = vset.pattern.permute.xlu0 0
  %3953 = vperm.xlu0 %3952, %v3883
  %v3954 = vpop.permute.xlu0 %3953
  %3957 = vset.pattern.permute.xlu0 0
  %3958 = vperm.xlu0 %3957, %v3884
  %v3959 = vpop.permute.xlu0 %3958
  %3962 = vset.pattern.permute.xlu0 0
  %3963 = vperm.xlu0 %3962, %v3885
  %v3964 = vpop.permute.xlu0 %3963
  %v3966 = vadd.f32 %v3854, %v3889
  %v3967 = vadd.f32 %v3855, %v3894
  %v3968 = vadd.f32 %v3856, %v3899
  %v3969 = vadd.f32 %v3857, %v3904
  %v3970 = vadd.f32 %v3858, %v3909
  %v3971 = vadd.f32 %v3859, %v3914
  %v3972 = vadd.f32 %v3860, %v3919
  %v3973 = vadd.f32 %v3861, %v3924
  %v3974 = vadd.f32 %v3862, %v3929
  %v3975 = vadd.f32 %v3863, %v3934
  %v3976 = vadd.f32 %v3864, %v3939
  %v3977 = vadd.f32 %v3865, %v3944
  %v3978 = vadd.f32 %v3866, %v3949
  %v3979 = vadd.f32 %v3867, %v3954
  %v3980 = vadd.f32 %v3868, %v3959
  %v3981 = vadd.f32 %v3869, %v3964
  %v3982 = vmax.f32 %v3966, 0.0
  %v3983 = vmax.f32 %v3967, 0.0
  %v3984 = vmax.f32 %v3968, 0.0
  %v3985 = vmax.f32 %v3969, 0.0
  %v3986 = vmax.f32 %v3970, 0.0
  %v3987 = vmax.f32 %v3971, 0.0
  %v3988 = vmax.f32 %v3972, 0.0
  %v3989 = vmax.f32 %v3973, 0.0
  %v3990 = vmax.f32 %v3974, 0.0
  %v3991 = vmax.f32 %v3975, 0.0
  %v3992 = vmax.f32 %v3976, 0.0
  %v3993 = vmax.f32 %v3977, 0.0
  %v3994 = vmax.f32 %v3978, 0.0
  %v3995 = vmax.f32 %v3979, 0.0
  %v3996 = vmax.f32 %v3980, 0.0
  %v3997 = vmax.f32 %v3981, 0.0
  %v3998 = vpack.c.bf16 %v3983, %v3982
  %v3999 = vpack.c.bf16 %v3985, %v3984
  %v4000 = vpack.c.bf16 %v3987, %v3986
  %v4001 = vpack.c.bf16 %v3989, %v3988
  %v4002 = vpack.c.bf16 %v3991, %v3990
  %v4003 = vpack.c.bf16 %v3993, %v3992
  %v4004 = vpack.c.bf16 %v3995, %v3994
  %v4005 = vpack.c.bf16 %v3997, %v3996
  %v4006 = vld [vmem:[%s9] sm:$0xf]
  %v4007 = vld [vmem:[%s9 + $0x4] sm:$0xf]
  %v4008 = vld [vmem:[%s9 + $0x8] sm:$0x1]
  %v4012 = vunpack.c.l.b16 %v4006
  %v4013 = vunpack.c.l.b16 %v4007
  %v4014 = vunpack.c.l.b16 %v4008
  %v4015 = vpack.c.b16 %v4013, %v4012
  %v4016 = vpack.c.b16 %v4014, %v4014
  %vm4018 = vcmask 146432
  %v4020 = vsel %vm4018, %v3998, 0
  %v4023 = vsel %vm4018, %v3999, 0
  %v4026 = vsel %vm4018, %v4000, 0
  %v4029 = vsel %vm4018, %v4001, 0
  %v4032 = vsel %vm4018, %v4002, 0
  %v4035 = vsel %vm4018, %v4003, 0
  %v4038 = vsel %vm4018, %v4004, 0
  %v4041 = vsel %vm4018, %v4005, 0
  %v4044 = vsel %vm357, %v4016, 0
  %4046 = vmatprep.subr.bf16.mxu0 0
  %4047 = vmatpush1.bf16.msra.mxu0 0
  %4048 = vmatprep.subr.bf16.mxu0 0
  %4049 = vmatpush1.bf16.msra.mxu0 0
  %4050 = vmatprep.subr.bf16.mxu0 0
  %4051 = vmatpush1.bf16.msra.mxu0 0
  %4052 = vmatprep.subr.bf16.mxu0 0
  %4053 = vmatpush1.bf16.msra.mxu0 0
  %4054 = vmatprep.subr.bf16.mxu0 0
  %4055 = vmatpush1.bf16.msra.mxu0 0
  %4056 = vmatprep.subr.bf16.mxu0 0
  %4057 = vmatpush1.bf16.msra.mxu0 0
  %4058 = vmatprep.subr.bf16.mxu0 0
  %4059 = vmatpush1.bf16.msra.mxu0 %v4044
  %4060 = vmatprep.subr.bf16.mxu0 0
  %4061 = vmatpush1.bf16.msra.mxu0 %v4015
  %4062 = vmatprep.subr.bf16.mxu0 0
  %4063 = vmatpush2.bf16.msra.mxu0 0
  %4064 = vmatprep.subr.bf16.mxu0 0
  %4065 = vmatpush2.bf16.msra.mxu0 0
  %4066 = vmatprep.subr.bf16.mxu0 0
  %4067 = vmatpush2.bf16.msra.mxu0 0
  %4068 = vmatprep.subr.bf16.mxu0 0
  %4069 = vmatpush2.bf16.msra.mxu0 0
  %4070 = vmatprep.subr.bf16.mxu0 0
  %4071 = vmatpush2.bf16.msra.mxu0 0
  %4072 = vmatprep.subr.bf16.mxu0 0
  %4073 = vmatpush2.bf16.msra.mxu0 0
  %4074 = vmatprep.subr.bf16.mxu0 0
  %4075 = vmatpush2.bf16.msra.mxu0 0
  %4076 = vmatprep.subr.bf16.mxu0 0
  %4077 = vmatpush2.bf16.msra.mxu0 0
  %4078 = vmatprep.mubr.bf16.mxu0 0
  %4079 = vmatmul.mubr.bf16.gmra.mxu0 %v4020
  %v4080 = vpop.f32.mrf.mxu0
  %v4081 = vadd.f32 0.0, %v4080
  %v4082 = vpop.f32.mrf.mxu0
  %v4083 = vpop.f32.mrf.mxu0
  %v4084 = vadd.f32 0.0, %v4083
  %v4085 = vpop.f32.mrf.mxu0
  %4086 = vmatprep.mubr.bf16.mxu0 0
  %4087 = vmatmul.mubr.bf16.gmra.mxu0 %v4023
  %v4088 = vpop.f32.mrf.mxu0
  %v4089 = vadd.f32 0.0, %v4088
  %v4090 = vpop.f32.mrf.mxu0
  %v4091 = vpop.f32.mrf.mxu0
  %v4092 = vadd.f32 0.0, %v4091
  %v4093 = vpop.f32.mrf.mxu0
  %4094 = vmatprep.mubr.bf16.mxu0 0
  %4095 = vmatmul.mubr.bf16.gmra.mxu0 %v4026
  %v4096 = vpop.f32.mrf.mxu0
  %v4097 = vadd.f32 0.0, %v4096
  %v4098 = vpop.f32.mrf.mxu0
  %v4099 = vpop.f32.mrf.mxu0
  %v4100 = vadd.f32 0.0, %v4099
  %v4101 = vpop.f32.mrf.mxu0
  %4102 = vmatprep.mubr.bf16.mxu0 0
  %4103 = vmatmul.mubr.bf16.gmra.mxu0 %v4029
  %v4104 = vpop.f32.mrf.mxu0
  %v4105 = vadd.f32 0.0, %v4104
  %v4106 = vpop.f32.mrf.mxu0
  %v4107 = vpop.f32.mrf.mxu0
  %v4108 = vadd.f32 0.0, %v4107
  %v4109 = vpop.f32.mrf.mxu0
  %4110 = vmatprep.mubr.bf16.mxu0 0
  %4111 = vmatmul.mubr.bf16.gmra.mxu0 %v4032
  %v4112 = vpop.f32.mrf.mxu0
  %v4113 = vadd.f32 0.0, %v4112
  %v4114 = vpop.f32.mrf.mxu0
  %v4115 = vpop.f32.mrf.mxu0
  %v4116 = vadd.f32 0.0, %v4115
  %v4117 = vpop.f32.mrf.mxu0
  %4118 = vmatprep.mubr.bf16.mxu0 0
  %4119 = vmatmul.mubr.bf16.gmra.mxu0 %v4035
  %v4120 = vpop.f32.mrf.mxu0
  %v4121 = vadd.f32 0.0, %v4120
  %v4122 = vpop.f32.mrf.mxu0
  %v4123 = vpop.f32.mrf.mxu0
  %v4124 = vadd.f32 0.0, %v4123
  %v4125 = vpop.f32.mrf.mxu0
  %4126 = vmatprep.mubr.bf16.mxu0 0
  %4127 = vmatmul.mubr.bf16.gmra.mxu0 %v4038
  %v4128 = vpop.f32.mrf.mxu0
  %v4129 = vadd.f32 0.0, %v4128
  %v4130 = vpop.f32.mrf.mxu0
  %v4131 = vpop.f32.mrf.mxu0
  %v4132 = vadd.f32 0.0, %v4131
  %v4133 = vpop.f32.mrf.mxu0
  %4134 = vmatprep.mubr.bf16.mxu0 0
  %4135 = vmatmul.mubr.bf16.gmra.mxu0 %v4041
  %v4136 = vpop.f32.mrf.mxu0
  %v4137 = vadd.f32 0.0, %v4136
  %v4138 = vpop.f32.mrf.mxu0
  %v4139 = vpop.f32.mrf.mxu0
  %v4140 = vadd.f32 0.0, %v4139
  %v4141 = vpop.f32.mrf.mxu0
  %4142 = vdwg.mxu0
  %v4143 = vld [vmem:[%s10] sm:$0xf]
  %v4144 = vld [vmem:[%s10 + $0x24] sm:$0xf]
  %v4145 = vld [vmem:[%s10 + $0x48] sm:$0xf]
  %v4146 = vld [vmem:[%s10 + $0x6c] sm:$0xf]
  %v4147 = vld [vmem:[%s10 + $0x90] sm:$0xf]
  %v4148 = vld [vmem:[%s10 + $0xb4] sm:$0xf]
  %v4149 = vld [vmem:[%s10 + $0xd8] sm:$0xf]
  %v4150 = vld [vmem:[%s10 + $0xfc] sm:$0xf]
  %v4151 = vld [vmem:[%s10 + $0x120] sm:$0xf]
  %v4152 = vld [vmem:[%s10 + $0x144] sm:$0xf]
  %v4153 = vld [vmem:[%s10 + $0x168] sm:$0xf]
  %v4154 = vld [vmem:[%s10 + $0x18c] sm:$0xf]
  %v4155 = vld [vmem:[%s10 + $0x1b0] sm:$0xf]
  %v4156 = vld [vmem:[%s10 + $0x1d4] sm:$0xf]
  %v4157 = vld [vmem:[%s10 + $0x1f8] sm:$0xf]
  %v4158 = vld [vmem:[%s10 + $0x21c] sm:$0xf]
  %v4159 = vld [vmem:[%s10 + $0x240] sm:$0xf]
  %v4160 = vld [vmem:[%s10 + $0x264] sm:$0xf]
  %v4161 = vld [vmem:[%s10 + $0x288] sm:$0xf]
  %v4162 = vld [vmem:[%s10 + $0x2ac] sm:$0xf]
  %v4163 = vld [vmem:[%s10 + $0x2d0] sm:$0xf]
  %v4164 = vld [vmem:[%s10 + $0x2f4] sm:$0xf]
  %v4165 = vld [vmem:[%s10 + $0x318] sm:$0xf]
  %v4166 = vld [vmem:[%s10 + $0x33c] sm:$0xf]
  %v4167 = vld [vmem:[%s10 + $0x360] sm:$0xf]
  %v4168 = vld [vmem:[%s10 + $0x384] sm:$0xf]
  %v4169 = vld [vmem:[%s10 + $0x3a8] sm:$0xf]
  %v4170 = vld [vmem:[%s10 + $0x3cc] sm:$0xf]
  %v4171 = vld [vmem:[%s10 + $0x3f0] sm:$0xf]
  %v4172 = vld [vmem:[%s10 + $0x414] sm:$0xf]
  %v4173 = vld [vmem:[%s10 + $0x438] sm:$0xf]
  %v4174 = vld [vmem:[%s10 + $0x45c] sm:$0xf]
  %v4175 = vpack.c.bf16 %v4084, %v4081
  %v4176 = vpack.c.bf16 %v4092, %v4089
  %v4177 = vpack.c.bf16 %v4100, %v4097
  %v4178 = vpack.c.bf16 %v4108, %v4105
  %v4179 = vpack.c.bf16 %v4116, %v4113
  %v4180 = vpack.c.bf16 %v4124, %v4121
  %v4181 = vpack.c.bf16 %v4132, %v4129
  %v4182 = vpack.c.bf16 %v4140, %v4137
  %4183 = vrot.lane.b32.xlu0 %v4015, 126
  %v4184 = vpop.permute.xlu0 %4183
  %4185 = vrot.lane.b32.xlu0 %v4016, 126
  %v4186 = vpop.permute.xlu0 %4185
  %v4189 = vsel %vm357, %v4186, 0
  %4191 = vmatprep.subr.bf16.mxu0 0
  %4192 = vmatpush1.bf16.msra.mxu0 0
  %4193 = vmatprep.subr.bf16.mxu0 0
  %4194 = vmatpush1.bf16.msra.mxu0 0
  %4195 = vmatprep.subr.bf16.mxu0 0
  %4196 = vmatpush1.bf16.msra.mxu0 0
  %4197 = vmatprep.subr.bf16.mxu0 0
  %4198 = vmatpush1.bf16.msra.mxu0 0
  %4199 = vmatprep.subr.bf16.mxu0 0
  %4200 = vmatpush1.bf16.msra.mxu0 0
  %4201 = vmatprep.subr.bf16.mxu0 0
  %4202 = vmatpush1.bf16.msra.mxu0 0
  %4203 = vmatprep.subr.bf16.mxu0 0
  %4204 = vmatpush1.bf16.msra.mxu0 %v4189
  %4205 = vmatprep.subr.bf16.mxu0 0
  %4206 = vmatpush1.bf16.msra.mxu0 %v4184
  %4207 = vmatprep.subr.bf16.mxu0 0
  %4208 = vmatpush2.bf16.msra.mxu0 0
  %4209 = vmatprep.subr.bf16.mxu0 0
  %4210 = vmatpush2.bf16.msra.mxu0 0
  %4211 = vmatprep.subr.bf16.mxu0 0
  %4212 = vmatpush2.bf16.msra.mxu0 0
  %4213 = vmatprep.subr.bf16.mxu0 0
  %4214 = vmatpush2.bf16.msra.mxu0 0
  %4215 = vmatprep.subr.bf16.mxu0 0
  %4216 = vmatpush2.bf16.msra.mxu0 0
  %4217 = vmatprep.subr.bf16.mxu0 0
  %4218 = vmatpush2.bf16.msra.mxu0 0
  %4219 = vmatprep.subr.bf16.mxu0 0
  %4220 = vmatpush2.bf16.msra.mxu0 0
  %4221 = vmatprep.subr.bf16.mxu0 0
  %4222 = vmatpush2.bf16.msra.mxu0 0
  %4223 = vmatprep.mubr.bf16.mxu0 0
  %4224 = vmatmul.mubr.bf16.gmra.mxu0 %v4020
  %v4225 = vpop.f32.mrf.mxu0
  %v4226 = vadd.f32 0.0, %v4225
  %v4227 = vpop.f32.mrf.mxu0
  %v4228 = vpop.f32.mrf.mxu0
  %v4229 = vadd.f32 0.0, %v4228
  %v4230 = vpop.f32.mrf.mxu0
  %4231 = vmatprep.mubr.bf16.mxu0 0
  %4232 = vmatmul.mubr.bf16.gmra.mxu0 %v4023
  %v4233 = vpop.f32.mrf.mxu0
  %v4234 = vadd.f32 0.0, %v4233
  %v4235 = vpop.f32.mrf.mxu0
  %v4236 = vpop.f32.mrf.mxu0
  %v4237 = vadd.f32 0.0, %v4236
  %v4238 = vpop.f32.mrf.mxu0
  %4239 = vmatprep.mubr.bf16.mxu0 0
  %4240 = vmatmul.mubr.bf16.gmra.mxu0 %v4026
  %v4241 = vpop.f32.mrf.mxu0
  %v4242 = vadd.f32 0.0, %v4241
  %v4243 = vpop.f32.mrf.mxu0
  %v4244 = vpop.f32.mrf.mxu0
  %v4245 = vadd.f32 0.0, %v4244
  %v4246 = vpop.f32.mrf.mxu0
  %4247 = vmatprep.mubr.bf16.mxu0 0
  %4248 = vmatmul.mubr.bf16.gmra.mxu0 %v4029
  %v4249 = vpop.f32.mrf.mxu0
  %v4250 = vadd.f32 0.0, %v4249
  %v4251 = vpop.f32.mrf.mxu0
  %v4252 = vpop.f32.mrf.mxu0
  %v4253 = vadd.f32 0.0, %v4252
  %v4254 = vpop.f32.mrf.mxu0
  %4255 = vmatprep.mubr.bf16.mxu0 0
  %4256 = vmatmul.mubr.bf16.gmra.mxu0 %v4032
  %v4257 = vpop.f32.mrf.mxu0
  %v4258 = vadd.f32 0.0, %v4257
  %v4259 = vpop.f32.mrf.mxu0
  %v4260 = vpop.f32.mrf.mxu0
  %v4261 = vadd.f32 0.0, %v4260
  %v4262 = vpop.f32.mrf.mxu0
  %4263 = vmatprep.mubr.bf16.mxu0 0
  %4264 = vmatmul.mubr.bf16.gmra.mxu0 %v4035
  %v4265 = vpop.f32.mrf.mxu0
  %v4266 = vadd.f32 0.0, %v4265
  %v4267 = vpop.f32.mrf.mxu0
  %v4268 = vpop.f32.mrf.mxu0
  %v4269 = vadd.f32 0.0, %v4268
  %v4270 = vpop.f32.mrf.mxu0
  %4271 = vmatprep.mubr.bf16.mxu0 0
  %4272 = vmatmul.mubr.bf16.gmra.mxu0 %v4038
  %v4273 = vpop.f32.mrf.mxu0
  %v4274 = vadd.f32 0.0, %v4273
  %v4275 = vpop.f32.mrf.mxu0
  %v4276 = vpop.f32.mrf.mxu0
  %v4277 = vadd.f32 0.0, %v4276
  %v4278 = vpop.f32.mrf.mxu0
  %4279 = vmatprep.mubr.bf16.mxu0 0
  %4280 = vmatmul.mubr.bf16.gmra.mxu0 %v4041
  %v4281 = vpop.f32.mrf.mxu0
  %v4282 = vadd.f32 0.0, %v4281
  %v4283 = vpop.f32.mrf.mxu0
  %v4284 = vpop.f32.mrf.mxu0
  %v4285 = vadd.f32 0.0, %v4284
  %v4286 = vpop.f32.mrf.mxu0
  %4287 = vdwg.mxu0
  %v4288 = vld [vmem:[%s10 + $0x4] sm:$0xf]
  %v4289 = vld [vmem:[%s10 + $0x28] sm:$0xf]
  %v4290 = vld [vmem:[%s10 + $0x4c] sm:$0xf]
  %v4291 = vld [vmem:[%s10 + $0x70] sm:$0xf]
  %v4292 = vld [vmem:[%s10 + $0x94] sm:$0xf]
  %v4293 = vld [vmem:[%s10 + $0xb8] sm:$0xf]
  %v4294 = vld [vmem:[%s10 + $0xdc] sm:$0xf]
  %v4295 = vld [vmem:[%s10 + $0x100] sm:$0xf]
  %v4296 = vld [vmem:[%s10 + $0x124] sm:$0xf]
  %v4297 = vld [vmem:[%s10 + $0x148] sm:$0xf]
  %v4298 = vld [vmem:[%s10 + $0x16c] sm:$0xf]
  %v4299 = vld [vmem:[%s10 + $0x190] sm:$0xf]
  %v4300 = vld [vmem:[%s10 + $0x1b4] sm:$0xf]
  %v4301 = vld [vmem:[%s10 + $0x1d8] sm:$0xf]
  %v4302 = vld [vmem:[%s10 + $0x1fc] sm:$0xf]
  %v4303 = vld [vmem:[%s10 + $0x220] sm:$0xf]
  %v4304 = vld [vmem:[%s10 + $0x244] sm:$0xf]
  %v4305 = vld [vmem:[%s10 + $0x268] sm:$0xf]
  %v4306 = vld [vmem:[%s10 + $0x28c] sm:$0xf]
  %v4307 = vld [vmem:[%s10 + $0x2b0] sm:$0xf]
  %v4308 = vld [vmem:[%s10 + $0x2d4] sm:$0xf]
  %v4309 = vld [vmem:[%s10 + $0x2f8] sm:$0xf]
  %v4310 = vld [vmem:[%s10 + $0x31c] sm:$0xf]
  %v4311 = vld [vmem:[%s10 + $0x340] sm:$0xf]
  %v4312 = vld [vmem:[%s10 + $0x364] sm:$0xf]
  %v4313 = vld [vmem:[%s10 + $0x388] sm:$0xf]
  %v4314 = vld [vmem:[%s10 + $0x3ac] sm:$0xf]
  %v4315 = vld [vmem:[%s10 + $0x3d0] sm:$0xf]
  %v4316 = vld [vmem:[%s10 + $0x3f4] sm:$0xf]
  %v4317 = vld [vmem:[%s10 + $0x418] sm:$0xf]
  %v4318 = vld [vmem:[%s10 + $0x43c] sm:$0xf]
  %v4319 = vld [vmem:[%s10 + $0x460] sm:$0xf]
  %v4320 = vpack.c.bf16 %v4229, %v4226
  %v4321 = vpack.c.bf16 %v4237, %v4234
  %v4322 = vpack.c.bf16 %v4245, %v4242
  %v4323 = vpack.c.bf16 %v4253, %v4250
  %v4324 = vpack.c.bf16 %v4261, %v4258
  %v4325 = vpack.c.bf16 %v4269, %v4266
  %v4326 = vpack.c.bf16 %v4277, %v4274
  %v4327 = vpack.c.bf16 %v4285, %v4282
  %v4360 = vunpack.c.l.b16 %v4288
  %v4361 = vunpack.c.l.b16 %v4289
  %v4362 = vunpack.c.l.b16 %v4290
  %v4363 = vunpack.c.l.b16 %v4291
  %v4364 = vunpack.c.l.b16 %v4292
  %v4365 = vunpack.c.l.b16 %v4293
  %v4366 = vunpack.c.l.b16 %v4294
  %v4367 = vunpack.c.l.b16 %v4295
  %v4368 = vunpack.c.l.b16 %v4296
  %v4369 = vunpack.c.l.b16 %v4297
  %v4370 = vunpack.c.l.b16 %v4298
  %v4371 = vunpack.c.l.b16 %v4299
  %v4372 = vunpack.c.l.b16 %v4300
  %v4373 = vunpack.c.l.b16 %v4301
  %v4374 = vunpack.c.l.b16 %v4302
  %v4375 = vunpack.c.l.b16 %v4303
  %v4376 = vunpack.c.l.b16 %v4304
  %v4377 = vunpack.c.l.b16 %v4305
  %v4378 = vunpack.c.l.b16 %v4306
  %v4379 = vunpack.c.l.b16 %v4307
  %v4380 = vunpack.c.l.b16 %v4308
  %v4381 = vunpack.c.l.b16 %v4309
  %v4382 = vunpack.c.l.b16 %v4310
  %v4383 = vunpack.c.l.b16 %v4311
  %v4384 = vunpack.c.l.b16 %v4312
  %v4385 = vunpack.c.l.b16 %v4313
  %v4386 = vunpack.c.l.b16 %v4314
  %v4387 = vunpack.c.l.b16 %v4315
  %v4388 = vunpack.c.l.b16 %v4316
  %v4389 = vunpack.c.l.b16 %v4317
  %v4390 = vunpack.c.l.b16 %v4318
  %v4391 = vunpack.c.l.b16 %v4319
  %v4392 = vpack.c.b16 %v4361, %v4360
  %v4393 = vpack.c.b16 %v4363, %v4362
  %v4394 = vpack.c.b16 %v4365, %v4364
  %v4395 = vpack.c.b16 %v4367, %v4366
  %v4396 = vpack.c.b16 %v4369, %v4368
  %v4397 = vpack.c.b16 %v4371, %v4370
  %v4398 = vpack.c.b16 %v4373, %v4372
  %v4399 = vpack.c.b16 %v4375, %v4374
  %v4400 = vpack.c.b16 %v4377, %v4376
  %v4401 = vpack.c.b16 %v4379, %v4378
  %v4402 = vpack.c.b16 %v4381, %v4380
  %v4403 = vpack.c.b16 %v4383, %v4382
  %v4404 = vpack.c.b16 %v4385, %v4384
  %v4405 = vpack.c.b16 %v4387, %v4386
  %v4406 = vpack.c.b16 %v4389, %v4388
  %v4407 = vpack.c.b16 %v4391, %v4390
  %4424 = vmatprep.subr.bf16.mxu0 0
  %4425 = vmatpush1.bf16.msra.mxu0 %v4327
  %4426 = vmatprep.subr.bf16.mxu0 0
  %4427 = vmatpush1.bf16.msra.mxu0 %v4326
  %4428 = vmatprep.subr.bf16.mxu0 0
  %4429 = vmatpush1.bf16.msra.mxu0 %v4325
  %4430 = vmatprep.subr.bf16.mxu0 0
  %4431 = vmatpush1.bf16.msra.mxu0 %v4324
  %4432 = vmatprep.subr.bf16.mxu0 0
  %4433 = vmatpush1.bf16.msra.mxu0 %v4323
  %4434 = vmatprep.subr.bf16.mxu0 0
  %4435 = vmatpush1.bf16.msra.mxu0 %v4322
  %4436 = vmatprep.subr.bf16.mxu0 0
  %4437 = vmatpush1.bf16.msra.mxu0 %v4321
  %4438 = vmatprep.subr.bf16.mxu0 0
  %4439 = vmatpush1.bf16.msra.mxu0 %v4320
  %4440 = vmatprep.subr.bf16.mxu0 0
  %4441 = vmatpush2.bf16.msra.mxu0 0
  %4442 = vmatprep.subr.bf16.mxu0 0
  %4443 = vmatpush2.bf16.msra.mxu0 0
  %4444 = vmatprep.subr.bf16.mxu0 0
  %4445 = vmatpush2.bf16.msra.mxu0 0
  %4446 = vmatprep.subr.bf16.mxu0 0
  %4447 = vmatpush2.bf16.msra.mxu0 0
  %4448 = vmatprep.subr.bf16.mxu0 0
  %4449 = vmatpush2.bf16.msra.mxu0 0
  %4450 = vmatprep.subr.bf16.mxu0 0
  %4451 = vmatpush2.bf16.msra.mxu0 0
  %4452 = vmatprep.subr.bf16.mxu0 0
  %4453 = vmatpush2.bf16.msra.mxu0 0
  %4454 = vmatprep.subr.bf16.mxu0 0
  %4455 = vmatpush2.bf16.msra.mxu0 0
  %4456 = vmatprep.mubr.bf16.mxu0 0
  %4457 = vmatmul.mubr.bf16.gmra.mxu0 %v4392
  %v4458 = vpop.f32.mrf.mxu0
  %v4459 = vadd.f32 0.0, %v4458
  %v4460 = vpop.f32.mrf.mxu0
  %v4461 = vpop.f32.mrf.mxu0
  %v4462 = vadd.f32 0.0, %v4461
  %v4463 = vpop.f32.mrf.mxu0
  %4464 = vmatprep.mubr.bf16.mxu0 0
  %4465 = vmatmul.mubr.bf16.gmra.mxu0 %v4393
  %v4466 = vpop.f32.mrf.mxu0
  %v4467 = vadd.f32 0.0, %v4466
  %v4468 = vpop.f32.mrf.mxu0
  %v4469 = vpop.f32.mrf.mxu0
  %v4470 = vadd.f32 0.0, %v4469
  %v4471 = vpop.f32.mrf.mxu0
  %4472 = vmatprep.mubr.bf16.mxu0 0
  %4473 = vmatmul.mubr.bf16.gmra.mxu0 %v4394
  %v4474 = vpop.f32.mrf.mxu0
  %v4475 = vadd.f32 0.0, %v4474
  %v4476 = vpop.f32.mrf.mxu0
  %v4477 = vpop.f32.mrf.mxu0
  %v4478 = vadd.f32 0.0, %v4477
  %v4479 = vpop.f32.mrf.mxu0
  %4480 = vmatprep.mubr.bf16.mxu0 0
  %4481 = vmatmul.mubr.bf16.gmra.mxu0 %v4395
  %v4482 = vpop.f32.mrf.mxu0
  %v4483 = vadd.f32 0.0, %v4482
  %v4484 = vpop.f32.mrf.mxu0
  %v4485 = vpop.f32.mrf.mxu0
  %v4486 = vadd.f32 0.0, %v4485
  %v4487 = vpop.f32.mrf.mxu0
  %4488 = vmatprep.mubr.bf16.mxu0 0
  %4489 = vmatmul.mubr.bf16.gmra.mxu0 %v4396
  %v4490 = vpop.f32.mrf.mxu0
  %v4491 = vadd.f32 0.0, %v4490
  %v4492 = vpop.f32.mrf.mxu0
  %v4493 = vpop.f32.mrf.mxu0
  %v4494 = vadd.f32 0.0, %v4493
  %v4495 = vpop.f32.mrf.mxu0
  %4496 = vmatprep.mubr.bf16.mxu0 0
  %4497 = vmatmul.mubr.bf16.gmra.mxu0 %v4397
  %v4498 = vpop.f32.mrf.mxu0
  %v4499 = vadd.f32 0.0, %v4498
  %v4500 = vpop.f32.mrf.mxu0
  %v4501 = vpop.f32.mrf.mxu0
  %v4502 = vadd.f32 0.0, %v4501
  %v4503 = vpop.f32.mrf.mxu0
  %4504 = vmatprep.mubr.bf16.mxu0 0
  %4505 = vmatmul.mubr.bf16.gmra.mxu0 %v4398
  %v4506 = vpop.f32.mrf.mxu0
  %v4507 = vadd.f32 0.0, %v4506
  %v4508 = vpop.f32.mrf.mxu0
  %v4509 = vpop.f32.mrf.mxu0
  %v4510 = vadd.f32 0.0, %v4509
  %v4511 = vpop.f32.mrf.mxu0
  %4512 = vmatprep.mubr.bf16.mxu0 0
  %4513 = vmatmul.mubr.bf16.gmra.mxu0 %v4399
  %v4514 = vpop.f32.mrf.mxu0
  %v4515 = vadd.f32 0.0, %v4514
  %v4516 = vpop.f32.mrf.mxu0
  %v4517 = vpop.f32.mrf.mxu0
  %v4518 = vadd.f32 0.0, %v4517
  %v4519 = vpop.f32.mrf.mxu0
  %4520 = vmatprep.mubr.bf16.mxu0 0
  %4521 = vmatmul.mubr.bf16.gmra.mxu0 %v4400
  %v4522 = vpop.f32.mrf.mxu0
  %v4523 = vadd.f32 0.0, %v4522
  %v4524 = vpop.f32.mrf.mxu0
  %v4525 = vpop.f32.mrf.mxu0
  %v4526 = vadd.f32 0.0, %v4525
  %v4527 = vpop.f32.mrf.mxu0
  %4528 = vmatprep.mubr.bf16.mxu0 0
  %4529 = vmatmul.mubr.bf16.gmra.mxu0 %v4401
  %v4530 = vpop.f32.mrf.mxu0
  %v4531 = vadd.f32 0.0, %v4530
  %v4532 = vpop.f32.mrf.mxu0
  %v4533 = vpop.f32.mrf.mxu0
  %v4534 = vadd.f32 0.0, %v4533
  %v4535 = vpop.f32.mrf.mxu0
  %4536 = vmatprep.mubr.bf16.mxu0 0
  %4537 = vmatmul.mubr.bf16.gmra.mxu0 %v4402
  %v4538 = vpop.f32.mrf.mxu0
  %v4539 = vadd.f32 0.0, %v4538
  %v4540 = vpop.f32.mrf.mxu0
  %v4541 = vpop.f32.mrf.mxu0
  %v4542 = vadd.f32 0.0, %v4541
  %v4543 = vpop.f32.mrf.mxu0
  %4544 = vmatprep.mubr.bf16.mxu0 0
  %4545 = vmatmul.mubr.bf16.gmra.mxu0 %v4403
  %v4546 = vpop.f32.mrf.mxu0
  %v4547 = vadd.f32 0.0, %v4546
  %v4548 = vpop.f32.mrf.mxu0
  %v4549 = vpop.f32.mrf.mxu0
  %v4550 = vadd.f32 0.0, %v4549
  %v4551 = vpop.f32.mrf.mxu0
  %4552 = vmatprep.mubr.bf16.mxu0 0
  %4553 = vmatmul.mubr.bf16.gmra.mxu0 %v4404
  %v4554 = vpop.f32.mrf.mxu0
  %v4555 = vadd.f32 0.0, %v4554
  %v4556 = vpop.f32.mrf.mxu0
  %v4557 = vpop.f32.mrf.mxu0
  %v4558 = vadd.f32 0.0, %v4557
  %v4559 = vpop.f32.mrf.mxu0
  %4560 = vmatprep.mubr.bf16.mxu0 0
  %4561 = vmatmul.mubr.bf16.gmra.mxu0 %v4405
  %v4562 = vpop.f32.mrf.mxu0
  %v4563 = vadd.f32 0.0, %v4562
  %v4564 = vpop.f32.mrf.mxu0
  %v4565 = vpop.f32.mrf.mxu0
  %v4566 = vadd.f32 0.0, %v4565
  %v4567 = vpop.f32.mrf.mxu0
  %4568 = vmatprep.mubr.bf16.mxu0 0
  %4569 = vmatmul.mubr.bf16.gmra.mxu0 %v4406
  %v4570 = vpop.f32.mrf.mxu0
  %v4571 = vadd.f32 0.0, %v4570
  %v4572 = vpop.f32.mrf.mxu0
  %v4573 = vpop.f32.mrf.mxu0
  %v4574 = vadd.f32 0.0, %v4573
  %v4575 = vpop.f32.mrf.mxu0
  %4576 = vmatprep.mubr.bf16.mxu0 0
  %4577 = vmatmul.mubr.bf16.gmra.mxu0 %v4407
  %v4578 = vpop.f32.mrf.mxu0
  %v4579 = vadd.f32 0.0, %v4578
  %v4580 = vpop.f32.mrf.mxu0
  %v4581 = vpop.f32.mrf.mxu0
  %v4582 = vadd.f32 0.0, %v4581
  %v4583 = vpop.f32.mrf.mxu0
  %4584 = vdwg.mxu0
  %v4617 = vunpack.c.l.b16 %v4143
  %v4618 = vunpack.c.l.b16 %v4144
  %v4619 = vunpack.c.l.b16 %v4145
  %v4620 = vunpack.c.l.b16 %v4146
  %v4621 = vunpack.c.l.b16 %v4147
  %v4622 = vunpack.c.l.b16 %v4148
  %v4623 = vunpack.c.l.b16 %v4149
  %v4624 = vunpack.c.l.b16 %v4150
  %v4625 = vunpack.c.l.b16 %v4151
  %v4626 = vunpack.c.l.b16 %v4152
  %v4627 = vunpack.c.l.b16 %v4153
  %v4628 = vunpack.c.l.b16 %v4154
  %v4629 = vunpack.c.l.b16 %v4155
  %v4630 = vunpack.c.l.b16 %v4156
  %v4631 = vunpack.c.l.b16 %v4157
  %v4632 = vunpack.c.l.b16 %v4158
  %v4633 = vunpack.c.l.b16 %v4159
  %v4634 = vunpack.c.l.b16 %v4160
  %v4635 = vunpack.c.l.b16 %v4161
  %v4636 = vunpack.c.l.b16 %v4162
  %v4637 = vunpack.c.l.b16 %v4163
  %v4638 = vunpack.c.l.b16 %v4164
  %v4639 = vunpack.c.l.b16 %v4165
  %v4640 = vunpack.c.l.b16 %v4166
  %v4641 = vunpack.c.l.b16 %v4167
  %v4642 = vunpack.c.l.b16 %v4168
  %v4643 = vunpack.c.l.b16 %v4169
  %v4644 = vunpack.c.l.b16 %v4170
  %v4645 = vunpack.c.l.b16 %v4171
  %v4646 = vunpack.c.l.b16 %v4172
  %v4647 = vunpack.c.l.b16 %v4173
  %v4648 = vunpack.c.l.b16 %v4174
  %v4649 = vpack.c.b16 %v4618, %v4617
  %v4650 = vpack.c.b16 %v4620, %v4619
  %v4651 = vpack.c.b16 %v4622, %v4621
  %v4652 = vpack.c.b16 %v4624, %v4623
  %v4653 = vpack.c.b16 %v4626, %v4625
  %v4654 = vpack.c.b16 %v4628, %v4627
  %v4655 = vpack.c.b16 %v4630, %v4629
  %v4656 = vpack.c.b16 %v4632, %v4631
  %v4657 = vpack.c.b16 %v4634, %v4633
  %v4658 = vpack.c.b16 %v4636, %v4635
  %v4659 = vpack.c.b16 %v4638, %v4637
  %v4660 = vpack.c.b16 %v4640, %v4639
  %v4661 = vpack.c.b16 %v4642, %v4641
  %v4662 = vpack.c.b16 %v4644, %v4643
  %v4663 = vpack.c.b16 %v4646, %v4645
  %v4664 = vpack.c.b16 %v4648, %v4647
  %4681 = vmatprep.subr.bf16.mxu0 0
  %4682 = vmatpush1.bf16.msra.mxu0 %v4182
  %4683 = vmatprep.subr.bf16.mxu0 0
  %4684 = vmatpush1.bf16.msra.mxu0 %v4181
  %4685 = vmatprep.subr.bf16.mxu0 0
  %4686 = vmatpush1.bf16.msra.mxu0 %v4180
  %4687 = vmatprep.subr.bf16.mxu0 0
  %4688 = vmatpush1.bf16.msra.mxu0 %v4179
  %4689 = vmatprep.subr.bf16.mxu0 0
  %4690 = vmatpush1.bf16.msra.mxu0 %v4178
  %4691 = vmatprep.subr.bf16.mxu0 0
  %4692 = vmatpush1.bf16.msra.mxu0 %v4177
  %4693 = vmatprep.subr.bf16.mxu0 0
  %4694 = vmatpush1.bf16.msra.mxu0 %v4176
  %4695 = vmatprep.subr.bf16.mxu0 0
  %4696 = vmatpush1.bf16.msra.mxu0 %v4175
  %4697 = vmatprep.subr.bf16.mxu0 0
  %4698 = vmatpush2.bf16.msra.mxu0 0
  %4699 = vmatprep.subr.bf16.mxu0 0
  %4700 = vmatpush2.bf16.msra.mxu0 0
  %4701 = vmatprep.subr.bf16.mxu0 0
  %4702 = vmatpush2.bf16.msra.mxu0 0
  %4703 = vmatprep.subr.bf16.mxu0 0
  %4704 = vmatpush2.bf16.msra.mxu0 0
  %4705 = vmatprep.subr.bf16.mxu0 0
  %4706 = vmatpush2.bf16.msra.mxu0 0
  %4707 = vmatprep.subr.bf16.mxu0 0
  %4708 = vmatpush2.bf16.msra.mxu0 0
  %4709 = vmatprep.subr.bf16.mxu0 0
  %4710 = vmatpush2.bf16.msra.mxu0 0
  %4711 = vmatprep.subr.bf16.mxu0 0
  %4712 = vmatpush2.bf16.msra.mxu0 0
  %4713 = vmatprep.mubr.bf16.mxu0 0
  %4714 = vmatmul.mubr.bf16.gmra.mxu0 %v4649
  %v4715 = vpop.f32.mrf.mxu0
  %v4716 = vadd.f32 %v4459, %v4715
  %v4717 = vpop.f32.mrf.mxu0
  %v4718 = vpop.f32.mrf.mxu0
  %v4719 = vadd.f32 %v4462, %v4718
  %v4720 = vpop.f32.mrf.mxu0
  %4721 = vmatprep.mubr.bf16.mxu0 0
  %4722 = vmatmul.mubr.bf16.gmra.mxu0 %v4650
  %v4723 = vpop.f32.mrf.mxu0
  %v4724 = vadd.f32 %v4467, %v4723
  %v4725 = vpop.f32.mrf.mxu0
  %v4726 = vpop.f32.mrf.mxu0
  %v4727 = vadd.f32 %v4470, %v4726
  %v4728 = vpop.f32.mrf.mxu0
  %4729 = vmatprep.mubr.bf16.mxu0 0
  %4730 = vmatmul.mubr.bf16.gmra.mxu0 %v4651
  %v4731 = vpop.f32.mrf.mxu0
  %v4732 = vadd.f32 %v4475, %v4731
  %v4733 = vpop.f32.mrf.mxu0
  %v4734 = vpop.f32.mrf.mxu0
  %v4735 = vadd.f32 %v4478, %v4734
  %v4736 = vpop.f32.mrf.mxu0
  %4737 = vmatprep.mubr.bf16.mxu0 0
  %4738 = vmatmul.mubr.bf16.gmra.mxu0 %v4652
  %v4739 = vpop.f32.mrf.mxu0
  %v4740 = vadd.f32 %v4483, %v4739
  %v4741 = vpop.f32.mrf.mxu0
  %v4742 = vpop.f32.mrf.mxu0
  %v4743 = vadd.f32 %v4486, %v4742
  %v4744 = vpop.f32.mrf.mxu0
  %4745 = vmatprep.mubr.bf16.mxu0 0
  %4746 = vmatmul.mubr.bf16.gmra.mxu0 %v4653
  %v4747 = vpop.f32.mrf.mxu0
  %v4748 = vadd.f32 %v4491, %v4747
  %v4749 = vpop.f32.mrf.mxu0
  %v4750 = vpop.f32.mrf.mxu0
  %v4751 = vadd.f32 %v4494, %v4750
  %v4752 = vpop.f32.mrf.mxu0
  %4753 = vmatprep.mubr.bf16.mxu0 0
  %4754 = vmatmul.mubr.bf16.gmra.mxu0 %v4654
  %v4755 = vpop.f32.mrf.mxu0
  %v4756 = vadd.f32 %v4499, %v4755
  %v4757 = vpop.f32.mrf.mxu0
  %v4758 = vpop.f32.mrf.mxu0
  %v4759 = vadd.f32 %v4502, %v4758
  %v4760 = vpop.f32.mrf.mxu0
  %4761 = vmatprep.mubr.bf16.mxu0 0
  %4762 = vmatmul.mubr.bf16.gmra.mxu0 %v4655
  %v4763 = vpop.f32.mrf.mxu0
  %v4764 = vadd.f32 %v4507, %v4763
  %v4765 = vpop.f32.mrf.mxu0
  %v4766 = vpop.f32.mrf.mxu0
  %v4767 = vadd.f32 %v4510, %v4766
  %v4768 = vpop.f32.mrf.mxu0
  %4769 = vmatprep.mubr.bf16.mxu0 0
  %4770 = vmatmul.mubr.bf16.gmra.mxu0 %v4656
  %v4771 = vpop.f32.mrf.mxu0
  %v4772 = vadd.f32 %v4515, %v4771
  %v4773 = vpop.f32.mrf.mxu0
  %v4774 = vpop.f32.mrf.mxu0
  %v4775 = vadd.f32 %v4518, %v4774
  %v4776 = vpop.f32.mrf.mxu0
  %4777 = vmatprep.mubr.bf16.mxu0 0
  %4778 = vmatmul.mubr.bf16.gmra.mxu0 %v4657
  %v4779 = vpop.f32.mrf.mxu0
  %v4780 = vadd.f32 %v4523, %v4779
  %v4781 = vpop.f32.mrf.mxu0
  %v4782 = vpop.f32.mrf.mxu0
  %v4783 = vadd.f32 %v4526, %v4782
  %v4784 = vpop.f32.mrf.mxu0
  %4785 = vmatprep.mubr.bf16.mxu0 0
  %4786 = vmatmul.mubr.bf16.gmra.mxu0 %v4658
  %v4787 = vpop.f32.mrf.mxu0
  %v4788 = vadd.f32 %v4531, %v4787
  %v4789 = vpop.f32.mrf.mxu0
  %v4790 = vpop.f32.mrf.mxu0
  %v4791 = vadd.f32 %v4534, %v4790
  %v4792 = vpop.f32.mrf.mxu0
  %4793 = vmatprep.mubr.bf16.mxu0 0
  %4794 = vmatmul.mubr.bf16.gmra.mxu0 %v4659
  %v4795 = vpop.f32.mrf.mxu0
  %v4796 = vadd.f32 %v4539, %v4795
  %v4797 = vpop.f32.mrf.mxu0
  %v4798 = vpop.f32.mrf.mxu0
  %v4799 = vadd.f32 %v4542, %v4798
  %v4800 = vpop.f32.mrf.mxu0
  %4801 = vmatprep.mubr.bf16.mxu0 0
  %4802 = vmatmul.mubr.bf16.gmra.mxu0 %v4660
  %v4803 = vpop.f32.mrf.mxu0
  %v4804 = vadd.f32 %v4547, %v4803
  %v4805 = vpop.f32.mrf.mxu0
  %v4806 = vpop.f32.mrf.mxu0
  %v4807 = vadd.f32 %v4550, %v4806
  %v4808 = vpop.f32.mrf.mxu0
  %4809 = vmatprep.mubr.bf16.mxu0 0
  %4810 = vmatmul.mubr.bf16.gmra.mxu0 %v4661
  %v4811 = vpop.f32.mrf.mxu0
  %v4812 = vadd.f32 %v4555, %v4811
  %v4813 = vpop.f32.mrf.mxu0
  %v4814 = vpop.f32.mrf.mxu0
  %v4815 = vadd.f32 %v4558, %v4814
  %v4816 = vpop.f32.mrf.mxu0
  %4817 = vmatprep.mubr.bf16.mxu0 0
  %4818 = vmatmul.mubr.bf16.gmra.mxu0 %v4662
  %v4819 = vpop.f32.mrf.mxu0
  %v4820 = vadd.f32 %v4563, %v4819
  %v4821 = vpop.f32.mrf.mxu0
  %v4822 = vpop.f32.mrf.mxu0
  %v4823 = vadd.f32 %v4566, %v4822
  %v4824 = vpop.f32.mrf.mxu0
  %4825 = vmatprep.mubr.bf16.mxu0 0
  %4826 = vmatmul.mubr.bf16.gmra.mxu0 %v4663
  %v4827 = vpop.f32.mrf.mxu0
  %v4828 = vadd.f32 %v4571, %v4827
  %v4829 = vpop.f32.mrf.mxu0
  %v4830 = vpop.f32.mrf.mxu0
  %v4831 = vadd.f32 %v4574, %v4830
  %v4832 = vpop.f32.mrf.mxu0
  %4833 = vmatprep.mubr.bf16.mxu0 0
  %4834 = vmatmul.mubr.bf16.gmra.mxu0 %v4664
  %v4835 = vpop.f32.mrf.mxu0
  %v4836 = vadd.f32 %v4579, %v4835
  %v4837 = vpop.f32.mrf.mxu0
  %v4838 = vpop.f32.mrf.mxu0
  %v4839 = vadd.f32 %v4582, %v4838
  %v4840 = vpop.f32.mrf.mxu0
  %4841 = vdwg.mxu0
  %4842 = vrot.lane.b32.xlu0 %v4015, 124
  %v4843 = vpop.permute.xlu0 %4842
  %4844 = vrot.lane.b32.xlu0 %v4016, 124
  %v4845 = vpop.permute.xlu0 %4844
  %v4848 = vsel %vm357, %v4845, 0
  %4850 = vmatprep.subr.bf16.mxu0 0
  %4851 = vmatpush1.bf16.msra.mxu0 0
  %4852 = vmatprep.subr.bf16.mxu0 0
  %4853 = vmatpush1.bf16.msra.mxu0 0
  %4854 = vmatprep.subr.bf16.mxu0 0
  %4855 = vmatpush1.bf16.msra.mxu0 0
  %4856 = vmatprep.subr.bf16.mxu0 0
  %4857 = vmatpush1.bf16.msra.mxu0 0
  %4858 = vmatprep.subr.bf16.mxu0 0
  %4859 = vmatpush1.bf16.msra.mxu0 0
  %4860 = vmatprep.subr.bf16.mxu0 0
  %4861 = vmatpush1.bf16.msra.mxu0 0
  %4862 = vmatprep.subr.bf16.mxu0 0
  %4863 = vmatpush1.bf16.msra.mxu0 %v4848
  %4864 = vmatprep.subr.bf16.mxu0 0
  %4865 = vmatpush1.bf16.msra.mxu0 %v4843
  %4866 = vmatprep.subr.bf16.mxu0 0
  %4867 = vmatpush2.bf16.msra.mxu0 0
  %4868 = vmatprep.subr.bf16.mxu0 0
  %4869 = vmatpush2.bf16.msra.mxu0 0
  %4870 = vmatprep.subr.bf16.mxu0 0
  %4871 = vmatpush2.bf16.msra.mxu0 0
  %4872 = vmatprep.subr.bf16.mxu0 0
  %4873 = vmatpush2.bf16.msra.mxu0 0
  %4874 = vmatprep.subr.bf16.mxu0 0
  %4875 = vmatpush2.bf16.msra.mxu0 0
  %4876 = vmatprep.subr.bf16.mxu0 0
  %4877 = vmatpush2.bf16.msra.mxu0 0
  %4878 = vmatprep.subr.bf16.mxu0 0
  %4879 = vmatpush2.bf16.msra.mxu0 0
  %4880 = vmatprep.subr.bf16.mxu0 0
  %4881 = vmatpush2.bf16.msra.mxu0 0
  %4882 = vmatprep.mubr.bf16.mxu0 0
  %4883 = vmatmul.mubr.bf16.gmra.mxu0 %v4020
  %v4884 = vpop.f32.mrf.mxu0
  %v4885 = vadd.f32 0.0, %v4884
  %v4886 = vpop.f32.mrf.mxu0
  %v4887 = vpop.f32.mrf.mxu0
  %v4888 = vadd.f32 0.0, %v4887
  %v4889 = vpop.f32.mrf.mxu0
  %4890 = vmatprep.mubr.bf16.mxu0 0
  %4891 = vmatmul.mubr.bf16.gmra.mxu0 %v4023
  %v4892 = vpop.f32.mrf.mxu0
  %v4893 = vadd.f32 0.0, %v4892
  %v4894 = vpop.f32.mrf.mxu0
  %v4895 = vpop.f32.mrf.mxu0
  %v4896 = vadd.f32 0.0, %v4895
  %v4897 = vpop.f32.mrf.mxu0
  %4898 = vmatprep.mubr.bf16.mxu0 0
  %4899 = vmatmul.mubr.bf16.gmra.mxu0 %v4026
  %v4900 = vpop.f32.mrf.mxu0
  %v4901 = vadd.f32 0.0, %v4900
  %v4902 = vpop.f32.mrf.mxu0
  %v4903 = vpop.f32.mrf.mxu0
  %v4904 = vadd.f32 0.0, %v4903
  %v4905 = vpop.f32.mrf.mxu0
  %4906 = vmatprep.mubr.bf16.mxu0 0
  %4907 = vmatmul.mubr.bf16.gmra.mxu0 %v4029
  %v4908 = vpop.f32.mrf.mxu0
  %v4909 = vadd.f32 0.0, %v4908
  %v4910 = vpop.f32.mrf.mxu0
  %v4911 = vpop.f32.mrf.mxu0
  %v4912 = vadd.f32 0.0, %v4911
  %v4913 = vpop.f32.mrf.mxu0
  %4914 = vmatprep.mubr.bf16.mxu0 0
  %4915 = vmatmul.mubr.bf16.gmra.mxu0 %v4032
  %v4916 = vpop.f32.mrf.mxu0
  %v4917 = vadd.f32 0.0, %v4916
  %v4918 = vpop.f32.mrf.mxu0
  %v4919 = vpop.f32.mrf.mxu0
  %v4920 = vadd.f32 0.0, %v4919
  %v4921 = vpop.f32.mrf.mxu0
  %4922 = vmatprep.mubr.bf16.mxu0 0
  %4923 = vmatmul.mubr.bf16.gmra.mxu0 %v4035
  %v4924 = vpop.f32.mrf.mxu0
  %v4925 = vadd.f32 0.0, %v4924
  %v4926 = vpop.f32.mrf.mxu0
  %v4927 = vpop.f32.mrf.mxu0
  %v4928 = vadd.f32 0.0, %v4927
  %v4929 = vpop.f32.mrf.mxu0
  %4930 = vmatprep.mubr.bf16.mxu0 0
  %4931 = vmatmul.mubr.bf16.gmra.mxu0 %v4038
  %v4932 = vpop.f32.mrf.mxu0
  %v4933 = vadd.f32 0.0, %v4932
  %v4934 = vpop.f32.mrf.mxu0
  %v4935 = vpop.f32.mrf.mxu0
  %v4936 = vadd.f32 0.0, %v4935
  %v4937 = vpop.f32.mrf.mxu0
  %4938 = vmatprep.mubr.bf16.mxu0 0
  %4939 = vmatmul.mubr.bf16.gmra.mxu0 %v4041
  %v4940 = vpop.f32.mrf.mxu0
  %v4941 = vadd.f32 0.0, %v4940
  %v4942 = vpop.f32.mrf.mxu0
  %v4943 = vpop.f32.mrf.mxu0
  %v4944 = vadd.f32 0.0, %v4943
  %v4945 = vpop.f32.mrf.mxu0
  %4946 = vdwg.mxu0
  %v4947 = vld [vmem:[%s10 + $0x8] sm:$0xf]
  %v4948 = vld [vmem:[%s10 + $0x2c] sm:$0xf]
  %v4949 = vld [vmem:[%s10 + $0x50] sm:$0xf]
  %v4950 = vld [vmem:[%s10 + $0x74] sm:$0xf]
  %v4951 = vld [vmem:[%s10 + $0x98] sm:$0xf]
  %v4952 = vld [vmem:[%s10 + $0xbc] sm:$0xf]
  %v4953 = vld [vmem:[%s10 + $0xe0] sm:$0xf]
  %v4954 = vld [vmem:[%s10 + $0x104] sm:$0xf]
  %v4955 = vld [vmem:[%s10 + $0x128] sm:$0xf]
  %v4956 = vld [vmem:[%s10 + $0x14c] sm:$0xf]
  %v4957 = vld [vmem:[%s10 + $0x170] sm:$0xf]
  %v4958 = vld [vmem:[%s10 + $0x194] sm:$0xf]
  %v4959 = vld [vmem:[%s10 + $0x1b8] sm:$0xf]
  %v4960 = vld [vmem:[%s10 + $0x1dc] sm:$0xf]
  %v4961 = vld [vmem:[%s10 + $0x200] sm:$0xf]
  %v4962 = vld [vmem:[%s10 + $0x224] sm:$0xf]
  %v4963 = vld [vmem:[%s10 + $0x248] sm:$0xf]
  %v4964 = vld [vmem:[%s10 + $0x26c] sm:$0xf]
  %v4965 = vld [vmem:[%s10 + $0x290] sm:$0xf]
  %v4966 = vld [vmem:[%s10 + $0x2b4] sm:$0xf]
  %v4967 = vld [vmem:[%s10 + $0x2d8] sm:$0xf]
  %v4968 = vld [vmem:[%s10 + $0x2fc] sm:$0xf]
  %v4969 = vld [vmem:[%s10 + $0x320] sm:$0xf]
  %v4970 = vld [vmem:[%s10 + $0x344] sm:$0xf]
  %v4971 = vld [vmem:[%s10 + $0x368] sm:$0xf]
  %v4972 = vld [vmem:[%s10 + $0x38c] sm:$0xf]
  %v4973 = vld [vmem:[%s10 + $0x3b0] sm:$0xf]
  %v4974 = vld [vmem:[%s10 + $0x3d4] sm:$0xf]
  %v4975 = vld [vmem:[%s10 + $0x3f8] sm:$0xf]
  %v4976 = vld [vmem:[%s10 + $0x41c] sm:$0xf]
  %v4977 = vld [vmem:[%s10 + $0x440] sm:$0xf]
  %v4978 = vld [vmem:[%s10 + $0x464] sm:$0xf]
  %v4979 = vpack.c.bf16 %v4888, %v4885
  %v4980 = vpack.c.bf16 %v4896, %v4893
  %v4981 = vpack.c.bf16 %v4904, %v4901
  %v4982 = vpack.c.bf16 %v4912, %v4909
  %v4983 = vpack.c.bf16 %v4920, %v4917
  %v4984 = vpack.c.bf16 %v4928, %v4925
  %v4985 = vpack.c.bf16 %v4936, %v4933
  %v4986 = vpack.c.bf16 %v4944, %v4941
  %v5019 = vunpack.c.l.b16 %v4947
  %v5020 = vunpack.c.l.b16 %v4948
  %v5021 = vunpack.c.l.b16 %v4949
  %v5022 = vunpack.c.l.b16 %v4950
  %v5023 = vunpack.c.l.b16 %v4951
  %v5024 = vunpack.c.l.b16 %v4952
  %v5025 = vunpack.c.l.b16 %v4953
  %v5026 = vunpack.c.l.b16 %v4954
  %v5027 = vunpack.c.l.b16 %v4955
  %v5028 = vunpack.c.l.b16 %v4956
  %v5029 = vunpack.c.l.b16 %v4957
  %v5030 = vunpack.c.l.b16 %v4958
  %v5031 = vunpack.c.l.b16 %v4959
  %v5032 = vunpack.c.l.b16 %v4960
  %v5033 = vunpack.c.l.b16 %v4961
  %v5034 = vunpack.c.l.b16 %v4962
  %v5035 = vunpack.c.l.b16 %v4963
  %v5036 = vunpack.c.l.b16 %v4964
  %v5037 = vunpack.c.l.b16 %v4965
  %v5038 = vunpack.c.l.b16 %v4966
  %v5039 = vunpack.c.l.b16 %v4967
  %v5040 = vunpack.c.l.b16 %v4968
  %v5041 = vunpack.c.l.b16 %v4969
  %v5042 = vunpack.c.l.b16 %v4970
  %v5043 = vunpack.c.l.b16 %v4971
  %v5044 = vunpack.c.l.b16 %v4972
  %v5045 = vunpack.c.l.b16 %v4973
  %v5046 = vunpack.c.l.b16 %v4974
  %v5047 = vunpack.c.l.b16 %v4975
  %v5048 = vunpack.c.l.b16 %v4976
  %v5049 = vunpack.c.l.b16 %v4977
  %v5050 = vunpack.c.l.b16 %v4978
  %v5051 = vpack.c.b16 %v5020, %v5019
  %v5052 = vpack.c.b16 %v5022, %v5021
  %v5053 = vpack.c.b16 %v5024, %v5023
  %v5054 = vpack.c.b16 %v5026, %v5025
  %v5055 = vpack.c.b16 %v5028, %v5027
  %v5056 = vpack.c.b16 %v5030, %v5029
  %v5057 = vpack.c.b16 %v5032, %v5031
  %v5058 = vpack.c.b16 %v5034, %v5033
  %v5059 = vpack.c.b16 %v5036, %v5035
  %v5060 = vpack.c.b16 %v5038, %v5037
  %v5061 = vpack.c.b16 %v5040, %v5039
  %v5062 = vpack.c.b16 %v5042, %v5041
  %v5063 = vpack.c.b16 %v5044, %v5043
  %v5064 = vpack.c.b16 %v5046, %v5045
  %v5065 = vpack.c.b16 %v5048, %v5047
  %v5066 = vpack.c.b16 %v5050, %v5049
  %5083 = vmatprep.subr.bf16.mxu0 0
  %5084 = vmatpush1.bf16.msra.mxu0 %v4986
  %5085 = vmatprep.subr.bf16.mxu0 0
  %5086 = vmatpush1.bf16.msra.mxu0 %v4985
  %5087 = vmatprep.subr.bf16.mxu0 0
  %5088 = vmatpush1.bf16.msra.mxu0 %v4984
  %5089 = vmatprep.subr.bf16.mxu0 0
  %5090 = vmatpush1.bf16.msra.mxu0 %v4983
  %5091 = vmatprep.subr.bf16.mxu0 0
  %5092 = vmatpush1.bf16.msra.mxu0 %v4982
  %5093 = vmatprep.subr.bf16.mxu0 0
  %5094 = vmatpush1.bf16.msra.mxu0 %v4981
  %5095 = vmatprep.subr.bf16.mxu0 0
  %5096 = vmatpush1.bf16.msra.mxu0 %v4980
  %5097 = vmatprep.subr.bf16.mxu0 0
  %5098 = vmatpush1.bf16.msra.mxu0 %v4979
  %5099 = vmatprep.subr.bf16.mxu0 0
  %5100 = vmatpush2.bf16.msra.mxu0 0
  %5101 = vmatprep.subr.bf16.mxu0 0
  %5102 = vmatpush2.bf16.msra.mxu0 0
  %5103 = vmatprep.subr.bf16.mxu0 0
  %5104 = vmatpush2.bf16.msra.mxu0 0
  %5105 = vmatprep.subr.bf16.mxu0 0
  %5106 = vmatpush2.bf16.msra.mxu0 0
  %5107 = vmatprep.subr.bf16.mxu0 0
  %5108 = vmatpush2.bf16.msra.mxu0 0
  %5109 = vmatprep.subr.bf16.mxu0 0
  %5110 = vmatpush2.bf16.msra.mxu0 0
  %5111 = vmatprep.subr.bf16.mxu0 0
  %5112 = vmatpush2.bf16.msra.mxu0 0
  %5113 = vmatprep.subr.bf16.mxu0 0
  %5114 = vmatpush2.bf16.msra.mxu0 0
  %5115 = vmatprep.mubr.bf16.mxu0 0
  %5116 = vmatmul.mubr.bf16.gmra.mxu0 %v5051
  %v5117 = vpop.f32.mrf.mxu0
  %v5118 = vadd.f32 0.0, %v5117
  %v5119 = vpop.f32.mrf.mxu0
  %v5120 = vpop.f32.mrf.mxu0
  %v5121 = vadd.f32 0.0, %v5120
  %v5122 = vpop.f32.mrf.mxu0
  %5123 = vmatprep.mubr.bf16.mxu0 0
  %5124 = vmatmul.mubr.bf16.gmra.mxu0 %v5052
  %v5125 = vpop.f32.mrf.mxu0
  %v5126 = vadd.f32 0.0, %v5125
  %v5127 = vpop.f32.mrf.mxu0
  %v5128 = vpop.f32.mrf.mxu0
  %v5129 = vadd.f32 0.0, %v5128
  %v5130 = vpop.f32.mrf.mxu0
  %5131 = vmatprep.mubr.bf16.mxu0 0
  %5132 = vmatmul.mubr.bf16.gmra.mxu0 %v5053
  %v5133 = vpop.f32.mrf.mxu0
  %v5134 = vadd.f32 0.0, %v5133
  %v5135 = vpop.f32.mrf.mxu0
  %v5136 = vpop.f32.mrf.mxu0
  %v5137 = vadd.f32 0.0, %v5136
  %v5138 = vpop.f32.mrf.mxu0
  %5139 = vmatprep.mubr.bf16.mxu0 0
  %5140 = vmatmul.mubr.bf16.gmra.mxu0 %v5054
  %v5141 = vpop.f32.mrf.mxu0
  %v5142 = vadd.f32 0.0, %v5141
  %v5143 = vpop.f32.mrf.mxu0
  %v5144 = vpop.f32.mrf.mxu0
  %v5145 = vadd.f32 0.0, %v5144
  %v5146 = vpop.f32.mrf.mxu0
  %5147 = vmatprep.mubr.bf16.mxu0 0
  %5148 = vmatmul.mubr.bf16.gmra.mxu0 %v5055
  %v5149 = vpop.f32.mrf.mxu0
  %v5150 = vadd.f32 0.0, %v5149
  %v5151 = vpop.f32.mrf.mxu0
  %v5152 = vpop.f32.mrf.mxu0
  %v5153 = vadd.f32 0.0, %v5152
  %v5154 = vpop.f32.mrf.mxu0
  %5155 = vmatprep.mubr.bf16.mxu0 0
  %5156 = vmatmul.mubr.bf16.gmra.mxu0 %v5056
  %v5157 = vpop.f32.mrf.mxu0
  %v5158 = vadd.f32 0.0, %v5157
  %v5159 = vpop.f32.mrf.mxu0
  %v5160 = vpop.f32.mrf.mxu0
  %v5161 = vadd.f32 0.0, %v5160
  %v5162 = vpop.f32.mrf.mxu0
  %5163 = vmatprep.mubr.bf16.mxu0 0
  %5164 = vmatmul.mubr.bf16.gmra.mxu0 %v5057
  %v5165 = vpop.f32.mrf.mxu0
  %v5166 = vadd.f32 0.0, %v5165
  %v5167 = vpop.f32.mrf.mxu0
  %v5168 = vpop.f32.mrf.mxu0
  %v5169 = vadd.f32 0.0, %v5168
  %v5170 = vpop.f32.mrf.mxu0
  %5171 = vmatprep.mubr.bf16.mxu0 0
  %5172 = vmatmul.mubr.bf16.gmra.mxu0 %v5058
  %v5173 = vpop.f32.mrf.mxu0
  %v5174 = vadd.f32 0.0, %v5173
  %v5175 = vpop.f32.mrf.mxu0
  %v5176 = vpop.f32.mrf.mxu0
  %v5177 = vadd.f32 0.0, %v5176
  %v5178 = vpop.f32.mrf.mxu0
  %5179 = vmatprep.mubr.bf16.mxu0 0
  %5180 = vmatmul.mubr.bf16.gmra.mxu0 %v5059
  %v5181 = vpop.f32.mrf.mxu0
  %v5182 = vadd.f32 0.0, %v5181
  %v5183 = vpop.f32.mrf.mxu0
  %v5184 = vpop.f32.mrf.mxu0
  %v5185 = vadd.f32 0.0, %v5184
  %v5186 = vpop.f32.mrf.mxu0
  %5187 = vmatprep.mubr.bf16.mxu0 0
  %5188 = vmatmul.mubr.bf16.gmra.mxu0 %v5060
  %v5189 = vpop.f32.mrf.mxu0
  %v5190 = vadd.f32 0.0, %v5189
  %v5191 = vpop.f32.mrf.mxu0
  %v5192 = vpop.f32.mrf.mxu0
  %v5193 = vadd.f32 0.0, %v5192
  %v5194 = vpop.f32.mrf.mxu0
  %5195 = vmatprep.mubr.bf16.mxu0 0
  %5196 = vmatmul.mubr.bf16.gmra.mxu0 %v5061
  %v5197 = vpop.f32.mrf.mxu0
  %v5198 = vadd.f32 0.0, %v5197
  %v5199 = vpop.f32.mrf.mxu0
  %v5200 = vpop.f32.mrf.mxu0
  %v5201 = vadd.f32 0.0, %v5200
  %v5202 = vpop.f32.mrf.mxu0
  %5203 = vmatprep.mubr.bf16.mxu0 0
  %5204 = vmatmul.mubr.bf16.gmra.mxu0 %v5062
  %v5205 = vpop.f32.mrf.mxu0
  %v5206 = vadd.f32 0.0, %v5205
  %v5207 = vpop.f32.mrf.mxu0
  %v5208 = vpop.f32.mrf.mxu0
  %v5209 = vadd.f32 0.0, %v5208
  %v5210 = vpop.f32.mrf.mxu0
  %5211 = vmatprep.mubr.bf16.mxu0 0
  %5212 = vmatmul.mubr.bf16.gmra.mxu0 %v5063
  %v5213 = vpop.f32.mrf.mxu0
  %v5214 = vadd.f32 0.0, %v5213
  %v5215 = vpop.f32.mrf.mxu0
  %v5216 = vpop.f32.mrf.mxu0
  %v5217 = vadd.f32 0.0, %v5216
  %v5218 = vpop.f32.mrf.mxu0
  %5219 = vmatprep.mubr.bf16.mxu0 0
  %5220 = vmatmul.mubr.bf16.gmra.mxu0 %v5064
  %v5221 = vpop.f32.mrf.mxu0
  %v5222 = vadd.f32 0.0, %v5221
  %v5223 = vpop.f32.mrf.mxu0
  %v5224 = vpop.f32.mrf.mxu0
  %v5225 = vadd.f32 0.0, %v5224
  %v5226 = vpop.f32.mrf.mxu0
  %5227 = vmatprep.mubr.bf16.mxu0 0
  %5228 = vmatmul.mubr.bf16.gmra.mxu0 %v5065
  %v5229 = vpop.f32.mrf.mxu0
  %v5230 = vadd.f32 0.0, %v5229
  %v5231 = vpop.f32.mrf.mxu0
  %v5232 = vpop.f32.mrf.mxu0
  %v5233 = vadd.f32 0.0, %v5232
  %v5234 = vpop.f32.mrf.mxu0
  %5235 = vmatprep.mubr.bf16.mxu0 0
  %5236 = vmatmul.mubr.bf16.gmra.mxu0 %v5066
  %v5237 = vpop.f32.mrf.mxu0
  %v5238 = vadd.f32 0.0, %v5237
  %v5239 = vpop.f32.mrf.mxu0
  %v5240 = vpop.f32.mrf.mxu0
  %v5241 = vadd.f32 0.0, %v5240
  %v5242 = vpop.f32.mrf.mxu0
  %5243 = vdwg.mxu0
  %v5244 = vadd.f32 %v4716, %v5118
  %v5245 = vadd.f32 %v4719, %v5121
  %v5246 = vadd.f32 %v4724, %v5126
  %v5247 = vadd.f32 %v4727, %v5129
  %v5248 = vadd.f32 %v4732, %v5134
  %v5249 = vadd.f32 %v4735, %v5137
  %v5250 = vadd.f32 %v4740, %v5142
  %v5251 = vadd.f32 %v4743, %v5145
  %v5252 = vadd.f32 %v4748, %v5150
  %v5253 = vadd.f32 %v4751, %v5153
  %v5254 = vadd.f32 %v4756, %v5158
  %v5255 = vadd.f32 %v4759, %v5161
  %v5256 = vadd.f32 %v4764, %v5166
  %v5257 = vadd.f32 %v4767, %v5169
  %v5258 = vadd.f32 %v4772, %v5174
  %v5259 = vadd.f32 %v4775, %v5177
  %v5260 = vadd.f32 %v4780, %v5182
  %v5261 = vadd.f32 %v4783, %v5185
  %v5262 = vadd.f32 %v4788, %v5190
  %v5263 = vadd.f32 %v4791, %v5193
  %v5264 = vadd.f32 %v4796, %v5198
  %v5265 = vadd.f32 %v4799, %v5201
  %v5266 = vadd.f32 %v4804, %v5206
  %v5267 = vadd.f32 %v4807, %v5209
  %v5268 = vadd.f32 %v4812, %v5214
  %v5269 = vadd.f32 %v4815, %v5217
  %v5270 = vadd.f32 %v4820, %v5222
  %v5271 = vadd.f32 %v4823, %v5225
  %v5272 = vadd.f32 %v4828, %v5230
  %v5273 = vadd.f32 %v4831, %v5233
  %v5274 = vadd.f32 %v4836, %v5238
  %v5275 = vadd.f32 %v4839, %v5241
  %5276 = vrot.lane.b32.xlu0 %v4015, 122
  %v5277 = vpop.permute.xlu0 %5276
  %5278 = vrot.lane.b32.xlu0 %v4016, 122
  %v5279 = vpop.permute.xlu0 %5278
  %v5282 = vsel %vm357, %v5279, 0
  %5284 = vmatprep.subr.bf16.mxu0 0
  %5285 = vmatpush1.bf16.msra.mxu0 0
  %5286 = vmatprep.subr.bf16.mxu0 0
  %5287 = vmatpush1.bf16.msra.mxu0 0
  %5288 = vmatprep.subr.bf16.mxu0 0
  %5289 = vmatpush1.bf16.msra.mxu0 0
  %5290 = vmatprep.subr.bf16.mxu0 0
  %5291 = vmatpush1.bf16.msra.mxu0 0
  %5292 = vmatprep.subr.bf16.mxu0 0
  %5293 = vmatpush1.bf16.msra.mxu0 0
  %5294 = vmatprep.subr.bf16.mxu0 0
  %5295 = vmatpush1.bf16.msra.mxu0 0
  %5296 = vmatprep.subr.bf16.mxu0 0
  %5297 = vmatpush1.bf16.msra.mxu0 %v5282
  %5298 = vmatprep.subr.bf16.mxu0 0
  %5299 = vmatpush1.bf16.msra.mxu0 %v5277
  %5300 = vmatprep.subr.bf16.mxu0 0
  %5301 = vmatpush2.bf16.msra.mxu0 0
  %5302 = vmatprep.subr.bf16.mxu0 0
  %5303 = vmatpush2.bf16.msra.mxu0 0
  %5304 = vmatprep.subr.bf16.mxu0 0
  %5305 = vmatpush2.bf16.msra.mxu0 0
  %5306 = vmatprep.subr.bf16.mxu0 0
  %5307 = vmatpush2.bf16.msra.mxu0 0
  %5308 = vmatprep.subr.bf16.mxu0 0
  %5309 = vmatpush2.bf16.msra.mxu0 0
  %5310 = vmatprep.subr.bf16.mxu0 0
  %5311 = vmatpush2.bf16.msra.mxu0 0
  %5312 = vmatprep.subr.bf16.mxu0 0
  %5313 = vmatpush2.bf16.msra.mxu0 0
  %5314 = vmatprep.subr.bf16.mxu0 0
  %5315 = vmatpush2.bf16.msra.mxu0 0
  %5316 = vmatprep.mubr.bf16.mxu0 0
  %5317 = vmatmul.mubr.bf16.gmra.mxu0 %v4020
  %v5318 = vpop.f32.mrf.mxu0
  %v5319 = vadd.f32 0.0, %v5318
  %v5320 = vpop.f32.mrf.mxu0
  %v5321 = vpop.f32.mrf.mxu0
  %v5322 = vadd.f32 0.0, %v5321
  %v5323 = vpop.f32.mrf.mxu0
  %5324 = vmatprep.mubr.bf16.mxu0 0
  %5325 = vmatmul.mubr.bf16.gmra.mxu0 %v4023
  %v5326 = vpop.f32.mrf.mxu0
  %v5327 = vadd.f32 0.0, %v5326
  %v5328 = vpop.f32.mrf.mxu0
  %v5329 = vpop.f32.mrf.mxu0
  %v5330 = vadd.f32 0.0, %v5329
  %v5331 = vpop.f32.mrf.mxu0
  %5332 = vmatprep.mubr.bf16.mxu0 0
  %5333 = vmatmul.mubr.bf16.gmra.mxu0 %v4026
  %v5334 = vpop.f32.mrf.mxu0
  %v5335 = vadd.f32 0.0, %v5334
  %v5336 = vpop.f32.mrf.mxu0
  %v5337 = vpop.f32.mrf.mxu0
  %v5338 = vadd.f32 0.0, %v5337
  %v5339 = vpop.f32.mrf.mxu0
  %5340 = vmatprep.mubr.bf16.mxu0 0
  %5341 = vmatmul.mubr.bf16.gmra.mxu0 %v4029
  %v5342 = vpop.f32.mrf.mxu0
  %v5343 = vadd.f32 0.0, %v5342
  %v5344 = vpop.f32.mrf.mxu0
  %v5345 = vpop.f32.mrf.mxu0
  %v5346 = vadd.f32 0.0, %v5345
  %v5347 = vpop.f32.mrf.mxu0
  %5348 = vmatprep.mubr.bf16.mxu0 0
  %5349 = vmatmul.mubr.bf16.gmra.mxu0 %v4032
  %v5350 = vpop.f32.mrf.mxu0
  %v5351 = vadd.f32 0.0, %v5350
  %v5352 = vpop.f32.mrf.mxu0
  %v5353 = vpop.f32.mrf.mxu0
  %v5354 = vadd.f32 0.0, %v5353
  %v5355 = vpop.f32.mrf.mxu0
  %5356 = vmatprep.mubr.bf16.mxu0 0
  %5357 = vmatmul.mubr.bf16.gmra.mxu0 %v4035
  %v5358 = vpop.f32.mrf.mxu0
  %v5359 = vadd.f32 0.0, %v5358
  %v5360 = vpop.f32.mrf.mxu0
  %v5361 = vpop.f32.mrf.mxu0
  %v5362 = vadd.f32 0.0, %v5361
  %v5363 = vpop.f32.mrf.mxu0
  %5364 = vmatprep.mubr.bf16.mxu0 0
  %5365 = vmatmul.mubr.bf16.gmra.mxu0 %v4038
  %v5366 = vpop.f32.mrf.mxu0
  %v5367 = vadd.f32 0.0, %v5366
  %v5368 = vpop.f32.mrf.mxu0
  %v5369 = vpop.f32.mrf.mxu0
  %v5370 = vadd.f32 0.0, %v5369
  %v5371 = vpop.f32.mrf.mxu0
  %5372 = vmatprep.mubr.bf16.mxu0 0
  %5373 = vmatmul.mubr.bf16.gmra.mxu0 %v4041
  %v5374 = vpop.f32.mrf.mxu0
  %v5375 = vadd.f32 0.0, %v5374
  %v5376 = vpop.f32.mrf.mxu0
  %v5377 = vpop.f32.mrf.mxu0
  %v5378 = vadd.f32 0.0, %v5377
  %v5379 = vpop.f32.mrf.mxu0
  %5380 = vdwg.mxu0
  %v5381 = vld [vmem:[%s10 + $0xc] sm:$0xf]
  %v5382 = vld [vmem:[%s10 + $0x30] sm:$0xf]
  %v5383 = vld [vmem:[%s10 + $0x54] sm:$0xf]
  %v5384 = vld [vmem:[%s10 + $0x78] sm:$0xf]
  %v5385 = vld [vmem:[%s10 + $0x9c] sm:$0xf]
  %v5386 = vld [vmem:[%s10 + $0xc0] sm:$0xf]
  %v5387 = vld [vmem:[%s10 + $0xe4] sm:$0xf]
  %v5388 = vld [vmem:[%s10 + $0x108] sm:$0xf]
  %v5389 = vld [vmem:[%s10 + $0x12c] sm:$0xf]
  %v5390 = vld [vmem:[%s10 + $0x150] sm:$0xf]
  %v5391 = vld [vmem:[%s10 + $0x174] sm:$0xf]
  %v5392 = vld [vmem:[%s10 + $0x198] sm:$0xf]
  %v5393 = vld [vmem:[%s10 + $0x1bc] sm:$0xf]
  %v5394 = vld [vmem:[%s10 + $0x1e0] sm:$0xf]
  %v5395 = vld [vmem:[%s10 + $0x204] sm:$0xf]
  %v5396 = vld [vmem:[%s10 + $0x228] sm:$0xf]
  %v5397 = vld [vmem:[%s10 + $0x24c] sm:$0xf]
  %v5398 = vld [vmem:[%s10 + $0x270] sm:$0xf]
  %v5399 = vld [vmem:[%s10 + $0x294] sm:$0xf]
  %v5400 = vld [vmem:[%s10 + $0x2b8] sm:$0xf]
  %v5401 = vld [vmem:[%s10 + $0x2dc] sm:$0xf]
  %v5402 = vld [vmem:[%s10 + $0x300] sm:$0xf]
  %v5403 = vld [vmem:[%s10 + $0x324] sm:$0xf]
  %v5404 = vld [vmem:[%s10 + $0x348] sm:$0xf]
  %v5405 = vld [vmem:[%s10 + $0x36c] sm:$0xf]
  %v5406 = vld [vmem:[%s10 + $0x390] sm:$0xf]
  %v5407 = vld [vmem:[%s10 + $0x3b4] sm:$0xf]
  %v5408 = vld [vmem:[%s10 + $0x3d8] sm:$0xf]
  %v5409 = vld [vmem:[%s10 + $0x3fc] sm:$0xf]
  %v5410 = vld [vmem:[%s10 + $0x420] sm:$0xf]
  %v5411 = vld [vmem:[%s10 + $0x444] sm:$0xf]
  %v5412 = vld [vmem:[%s10 + $0x468] sm:$0xf]
  %v5413 = vpack.c.bf16 %v5322, %v5319
  %v5414 = vpack.c.bf16 %v5330, %v5327
  %v5415 = vpack.c.bf16 %v5338, %v5335
  %v5416 = vpack.c.bf16 %v5346, %v5343
  %v5417 = vpack.c.bf16 %v5354, %v5351
  %v5418 = vpack.c.bf16 %v5362, %v5359
  %v5419 = vpack.c.bf16 %v5370, %v5367
  %v5420 = vpack.c.bf16 %v5378, %v5375
  %v5453 = vunpack.c.l.b16 %v5381
  %v5454 = vunpack.c.l.b16 %v5382
  %v5455 = vunpack.c.l.b16 %v5383
  %v5456 = vunpack.c.l.b16 %v5384
  %v5457 = vunpack.c.l.b16 %v5385
  %v5458 = vunpack.c.l.b16 %v5386
  %v5459 = vunpack.c.l.b16 %v5387
  %v5460 = vunpack.c.l.b16 %v5388
  %v5461 = vunpack.c.l.b16 %v5389
  %v5462 = vunpack.c.l.b16 %v5390
  %v5463 = vunpack.c.l.b16 %v5391
  %v5464 = vunpack.c.l.b16 %v5392
  %v5465 = vunpack.c.l.b16 %v5393
  %v5466 = vunpack.c.l.b16 %v5394
  %v5467 = vunpack.c.l.b16 %v5395
  %v5468 = vunpack.c.l.b16 %v5396
  %v5469 = vunpack.c.l.b16 %v5397
  %v5470 = vunpack.c.l.b16 %v5398
  %v5471 = vunpack.c.l.b16 %v5399
  %v5472 = vunpack.c.l.b16 %v5400
  %v5473 = vunpack.c.l.b16 %v5401
  %v5474 = vunpack.c.l.b16 %v5402
  %v5475 = vunpack.c.l.b16 %v5403
  %v5476 = vunpack.c.l.b16 %v5404
  %v5477 = vunpack.c.l.b16 %v5405
  %v5478 = vunpack.c.l.b16 %v5406
  %v5479 = vunpack.c.l.b16 %v5407
  %v5480 = vunpack.c.l.b16 %v5408
  %v5481 = vunpack.c.l.b16 %v5409
  %v5482 = vunpack.c.l.b16 %v5410
  %v5483 = vunpack.c.l.b16 %v5411
  %v5484 = vunpack.c.l.b16 %v5412
  %v5485 = vpack.c.b16 %v5454, %v5453
  %v5486 = vpack.c.b16 %v5456, %v5455
  %v5487 = vpack.c.b16 %v5458, %v5457
  %v5488 = vpack.c.b16 %v5460, %v5459
  %v5489 = vpack.c.b16 %v5462, %v5461
  %v5490 = vpack.c.b16 %v5464, %v5463
  %v5491 = vpack.c.b16 %v5466, %v5465
  %v5492 = vpack.c.b16 %v5468, %v5467
  %v5493 = vpack.c.b16 %v5470, %v5469
  %v5494 = vpack.c.b16 %v5472, %v5471
  %v5495 = vpack.c.b16 %v5474, %v5473
  %v5496 = vpack.c.b16 %v5476, %v5475
  %v5497 = vpack.c.b16 %v5478, %v5477
  %v5498 = vpack.c.b16 %v5480, %v5479
  %v5499 = vpack.c.b16 %v5482, %v5481
  %v5500 = vpack.c.b16 %v5484, %v5483
  %5517 = vmatprep.subr.bf16.mxu0 0
  %5518 = vmatpush1.bf16.msra.mxu0 %v5420
  %5519 = vmatprep.subr.bf16.mxu0 0
  %5520 = vmatpush1.bf16.msra.mxu0 %v5419
  %5521 = vmatprep.subr.bf16.mxu0 0
  %5522 = vmatpush1.bf16.msra.mxu0 %v5418
  %5523 = vmatprep.subr.bf16.mxu0 0
  %5524 = vmatpush1.bf16.msra.mxu0 %v5417
  %5525 = vmatprep.subr.bf16.mxu0 0
  %5526 = vmatpush1.bf16.msra.mxu0 %v5416
  %5527 = vmatprep.subr.bf16.mxu0 0
  %5528 = vmatpush1.bf16.msra.mxu0 %v5415
  %5529 = vmatprep.subr.bf16.mxu0 0
  %5530 = vmatpush1.bf16.msra.mxu0 %v5414
  %5531 = vmatprep.subr.bf16.mxu0 0
  %5532 = vmatpush1.bf16.msra.mxu0 %v5413
  %5533 = vmatprep.subr.bf16.mxu0 0
  %5534 = vmatpush2.bf16.msra.mxu0 0
  %5535 = vmatprep.subr.bf16.mxu0 0
  %5536 = vmatpush2.bf16.msra.mxu0 0
  %5537 = vmatprep.subr.bf16.mxu0 0
  %5538 = vmatpush2.bf16.msra.mxu0 0
  %5539 = vmatprep.subr.bf16.mxu0 0
  %5540 = vmatpush2.bf16.msra.mxu0 0
  %5541 = vmatprep.subr.bf16.mxu0 0
  %5542 = vmatpush2.bf16.msra.mxu0 0
  %5543 = vmatprep.subr.bf16.mxu0 0
  %5544 = vmatpush2.bf16.msra.mxu0 0
  %5545 = vmatprep.subr.bf16.mxu0 0
  %5546 = vmatpush2.bf16.msra.mxu0 0
  %5547 = vmatprep.subr.bf16.mxu0 0
  %5548 = vmatpush2.bf16.msra.mxu0 0
  %5549 = vmatprep.mubr.bf16.mxu0 0
  %5550 = vmatmul.mubr.bf16.gmra.mxu0 %v5485
  %v5551 = vpop.f32.mrf.mxu0
  %v5552 = vadd.f32 0.0, %v5551
  %v5553 = vpop.f32.mrf.mxu0
  %v5554 = vpop.f32.mrf.mxu0
  %v5555 = vadd.f32 0.0, %v5554
  %v5556 = vpop.f32.mrf.mxu0
  %5557 = vmatprep.mubr.bf16.mxu0 0
  %5558 = vmatmul.mubr.bf16.gmra.mxu0 %v5486
  %v5559 = vpop.f32.mrf.mxu0
  %v5560 = vadd.f32 0.0, %v5559
  %v5561 = vpop.f32.mrf.mxu0
  %v5562 = vpop.f32.mrf.mxu0
  %v5563 = vadd.f32 0.0, %v5562
  %v5564 = vpop.f32.mrf.mxu0
  %5565 = vmatprep.mubr.bf16.mxu0 0
  %5566 = vmatmul.mubr.bf16.gmra.mxu0 %v5487
  %v5567 = vpop.f32.mrf.mxu0
  %v5568 = vadd.f32 0.0, %v5567
  %v5569 = vpop.f32.mrf.mxu0
  %v5570 = vpop.f32.mrf.mxu0
  %v5571 = vadd.f32 0.0, %v5570
  %v5572 = vpop.f32.mrf.mxu0
  %5573 = vmatprep.mubr.bf16.mxu0 0
  %5574 = vmatmul.mubr.bf16.gmra.mxu0 %v5488
  %v5575 = vpop.f32.mrf.mxu0
  %v5576 = vadd.f32 0.0, %v5575
  %v5577 = vpop.f32.mrf.mxu0
  %v5578 = vpop.f32.mrf.mxu0
  %v5579 = vadd.f32 0.0, %v5578
  %v5580 = vpop.f32.mrf.mxu0
  %5581 = vmatprep.mubr.bf16.mxu0 0
  %5582 = vmatmul.mubr.bf16.gmra.mxu0 %v5489
  %v5583 = vpop.f32.mrf.mxu0
  %v5584 = vadd.f32 0.0, %v5583
  %v5585 = vpop.f32.mrf.mxu0
  %v5586 = vpop.f32.mrf.mxu0
  %v5587 = vadd.f32 0.0, %v5586
  %v5588 = vpop.f32.mrf.mxu0
  %5589 = vmatprep.mubr.bf16.mxu0 0
  %5590 = vmatmul.mubr.bf16.gmra.mxu0 %v5490
  %v5591 = vpop.f32.mrf.mxu0
  %v5592 = vadd.f32 0.0, %v5591
  %v5593 = vpop.f32.mrf.mxu0
  %v5594 = vpop.f32.mrf.mxu0
  %v5595 = vadd.f32 0.0, %v5594
  %v5596 = vpop.f32.mrf.mxu0
  %5597 = vmatprep.mubr.bf16.mxu0 0
  %5598 = vmatmul.mubr.bf16.gmra.mxu0 %v5491
  %v5599 = vpop.f32.mrf.mxu0
  %v5600 = vadd.f32 0.0, %v5599
  %v5601 = vpop.f32.mrf.mxu0
  %v5602 = vpop.f32.mrf.mxu0
  %v5603 = vadd.f32 0.0, %v5602
  %v5604 = vpop.f32.mrf.mxu0
  %5605 = vmatprep.mubr.bf16.mxu0 0
  %5606 = vmatmul.mubr.bf16.gmra.mxu0 %v5492
  %v5607 = vpop.f32.mrf.mxu0
  %v5608 = vadd.f32 0.0, %v5607
  %v5609 = vpop.f32.mrf.mxu0
  %v5610 = vpop.f32.mrf.mxu0
  %v5611 = vadd.f32 0.0, %v5610
  %v5612 = vpop.f32.mrf.mxu0
  %5613 = vmatprep.mubr.bf16.mxu0 0
  %5614 = vmatmul.mubr.bf16.gmra.mxu0 %v5493
  %v5615 = vpop.f32.mrf.mxu0
  %v5616 = vadd.f32 0.0, %v5615
  %v5617 = vpop.f32.mrf.mxu0
  %v5618 = vpop.f32.mrf.mxu0
  %v5619 = vadd.f32 0.0, %v5618
  %v5620 = vpop.f32.mrf.mxu0
  %5621 = vmatprep.mubr.bf16.mxu0 0
  %5622 = vmatmul.mubr.bf16.gmra.mxu0 %v5494
  %v5623 = vpop.f32.mrf.mxu0
  %v5624 = vadd.f32 0.0, %v5623
  %v5625 = vpop.f32.mrf.mxu0
  %v5626 = vpop.f32.mrf.mxu0
  %v5627 = vadd.f32 0.0, %v5626
  %v5628 = vpop.f32.mrf.mxu0
  %5629 = vmatprep.mubr.bf16.mxu0 0
  %5630 = vmatmul.mubr.bf16.gmra.mxu0 %v5495
  %v5631 = vpop.f32.mrf.mxu0
  %v5632 = vadd.f32 0.0, %v5631
  %v5633 = vpop.f32.mrf.mxu0
  %v5634 = vpop.f32.mrf.mxu0
  %v5635 = vadd.f32 0.0, %v5634
  %v5636 = vpop.f32.mrf.mxu0
  %5637 = vmatprep.mubr.bf16.mxu0 0
  %5638 = vmatmul.mubr.bf16.gmra.mxu0 %v5496
  %v5639 = vpop.f32.mrf.mxu0
  %v5640 = vadd.f32 0.0, %v5639
  %v5641 = vpop.f32.mrf.mxu0
  %v5642 = vpop.f32.mrf.mxu0
  %v5643 = vadd.f32 0.0, %v5642
  %v5644 = vpop.f32.mrf.mxu0
  %5645 = vmatprep.mubr.bf16.mxu0 0
  %5646 = vmatmul.mubr.bf16.gmra.mxu0 %v5497
  %v5647 = vpop.f32.mrf.mxu0
  %v5648 = vadd.f32 0.0, %v5647
  %v5649 = vpop.f32.mrf.mxu0
  %v5650 = vpop.f32.mrf.mxu0
  %v5651 = vadd.f32 0.0, %v5650
  %v5652 = vpop.f32.mrf.mxu0
  %5653 = vmatprep.mubr.bf16.mxu0 0
  %5654 = vmatmul.mubr.bf16.gmra.mxu0 %v5498
  %v5655 = vpop.f32.mrf.mxu0
  %v5656 = vadd.f32 0.0, %v5655
  %v5657 = vpop.f32.mrf.mxu0
  %v5658 = vpop.f32.mrf.mxu0
  %v5659 = vadd.f32 0.0, %v5658
  %v5660 = vpop.f32.mrf.mxu0
  %5661 = vmatprep.mubr.bf16.mxu0 0
  %5662 = vmatmul.mubr.bf16.gmra.mxu0 %v5499
  %v5663 = vpop.f32.mrf.mxu0
  %v5664 = vadd.f32 0.0, %v5663
  %v5665 = vpop.f32.mrf.mxu0
  %v5666 = vpop.f32.mrf.mxu0
  %v5667 = vadd.f32 0.0, %v5666
  %v5668 = vpop.f32.mrf.mxu0
  %5669 = vmatprep.mubr.bf16.mxu0 0
  %5670 = vmatmul.mubr.bf16.gmra.mxu0 %v5500
  %v5671 = vpop.f32.mrf.mxu0
  %v5672 = vadd.f32 0.0, %v5671
  %v5673 = vpop.f32.mrf.mxu0
  %v5674 = vpop.f32.mrf.mxu0
  %v5675 = vadd.f32 0.0, %v5674
  %v5676 = vpop.f32.mrf.mxu0
  %5677 = vdwg.mxu0
  %v5678 = vadd.f32 %v5244, %v5552
  %v5679 = vadd.f32 %v5245, %v5555
  %v5680 = vadd.f32 %v5246, %v5560
  %v5681 = vadd.f32 %v5247, %v5563
  %v5682 = vadd.f32 %v5248, %v5568
  %v5683 = vadd.f32 %v5249, %v5571
  %v5684 = vadd.f32 %v5250, %v5576
  %v5685 = vadd.f32 %v5251, %v5579
  %v5686 = vadd.f32 %v5252, %v5584
  %v5687 = vadd.f32 %v5253, %v5587
  %v5688 = vadd.f32 %v5254, %v5592
  %v5689 = vadd.f32 %v5255, %v5595
  %v5690 = vadd.f32 %v5256, %v5600
  %v5691 = vadd.f32 %v5257, %v5603
  %v5692 = vadd.f32 %v5258, %v5608
  %v5693 = vadd.f32 %v5259, %v5611
  %v5694 = vadd.f32 %v5260, %v5616
  %v5695 = vadd.f32 %v5261, %v5619
  %v5696 = vadd.f32 %v5262, %v5624
  %v5697 = vadd.f32 %v5263, %v5627
  %v5698 = vadd.f32 %v5264, %v5632
  %v5699 = vadd.f32 %v5265, %v5635
  %v5700 = vadd.f32 %v5266, %v5640
  %v5701 = vadd.f32 %v5267, %v5643
  %v5702 = vadd.f32 %v5268, %v5648
  %v5703 = vadd.f32 %v5269, %v5651
  %v5704 = vadd.f32 %v5270, %v5656
  %v5705 = vadd.f32 %v5271, %v5659
  %v5706 = vadd.f32 %v5272, %v5664
  %v5707 = vadd.f32 %v5273, %v5667
  %v5708 = vadd.f32 %v5274, %v5672
  %v5709 = vadd.f32 %v5275, %v5675
  %5710 = vrot.lane.b32.xlu0 %v4015, 120
  %v5711 = vpop.permute.xlu0 %5710
  %5712 = vrot.lane.b32.xlu0 %v4016, 120
  %v5713 = vpop.permute.xlu0 %5712
  %v5716 = vsel %vm357, %v5713, 0
  %5718 = vmatprep.subr.bf16.mxu0 0
  %5719 = vmatpush1.bf16.msra.mxu0 0
  %5720 = vmatprep.subr.bf16.mxu0 0
  %5721 = vmatpush1.bf16.msra.mxu0 0
  %5722 = vmatprep.subr.bf16.mxu0 0
  %5723 = vmatpush1.bf16.msra.mxu0 0
  %5724 = vmatprep.subr.bf16.mxu0 0
  %5725 = vmatpush1.bf16.msra.mxu0 0
  %5726 = vmatprep.subr.bf16.mxu0 0
  %5727 = vmatpush1.bf16.msra.mxu0 0
  %5728 = vmatprep.subr.bf16.mxu0 0
  %5729 = vmatpush1.bf16.msra.mxu0 0
  %5730 = vmatprep.subr.bf16.mxu0 0
  %5731 = vmatpush1.bf16.msra.mxu0 %v5716
  %5732 = vmatprep.subr.bf16.mxu0 0
  %5733 = vmatpush1.bf16.msra.mxu0 %v5711
  %5734 = vmatprep.subr.bf16.mxu0 0
  %5735 = vmatpush2.bf16.msra.mxu0 0
  %5736 = vmatprep.subr.bf16.mxu0 0
  %5737 = vmatpush2.bf16.msra.mxu0 0
  %5738 = vmatprep.subr.bf16.mxu0 0
  %5739 = vmatpush2.bf16.msra.mxu0 0
  %5740 = vmatprep.subr.bf16.mxu0 0
  %5741 = vmatpush2.bf16.msra.mxu0 0
  %5742 = vmatprep.subr.bf16.mxu0 0
  %5743 = vmatpush2.bf16.msra.mxu0 0
  %5744 = vmatprep.subr.bf16.mxu0 0
  %5745 = vmatpush2.bf16.msra.mxu0 0
  %5746 = vmatprep.subr.bf16.mxu0 0
  %5747 = vmatpush2.bf16.msra.mxu0 0
  %5748 = vmatprep.subr.bf16.mxu0 0
  %5749 = vmatpush2.bf16.msra.mxu0 0
  %5750 = vmatprep.mubr.bf16.mxu0 0
  %5751 = vmatmul.mubr.bf16.gmra.mxu0 %v4020
  %v5752 = vpop.f32.mrf.mxu0
  %v5753 = vadd.f32 0.0, %v5752
  %v5754 = vpop.f32.mrf.mxu0
  %v5755 = vpop.f32.mrf.mxu0
  %v5756 = vadd.f32 0.0, %v5755
  %v5757 = vpop.f32.mrf.mxu0
  %5758 = vmatprep.mubr.bf16.mxu0 0
  %5759 = vmatmul.mubr.bf16.gmra.mxu0 %v4023
  %v5760 = vpop.f32.mrf.mxu0
  %v5761 = vadd.f32 0.0, %v5760
  %v5762 = vpop.f32.mrf.mxu0
  %v5763 = vpop.f32.mrf.mxu0
  %v5764 = vadd.f32 0.0, %v5763
  %v5765 = vpop.f32.mrf.mxu0
  %5766 = vmatprep.mubr.bf16.mxu0 0
  %5767 = vmatmul.mubr.bf16.gmra.mxu0 %v4026
  %v5768 = vpop.f32.mrf.mxu0
  %v5769 = vadd.f32 0.0, %v5768
  %v5770 = vpop.f32.mrf.mxu0
  %v5771 = vpop.f32.mrf.mxu0
  %v5772 = vadd.f32 0.0, %v5771
  %v5773 = vpop.f32.mrf.mxu0
  %5774 = vmatprep.mubr.bf16.mxu0 0
  %5775 = vmatmul.mubr.bf16.gmra.mxu0 %v4029
  %v5776 = vpop.f32.mrf.mxu0
  %v5777 = vadd.f32 0.0, %v5776
  %v5778 = vpop.f32.mrf.mxu0
  %v5779 = vpop.f32.mrf.mxu0
  %v5780 = vadd.f32 0.0, %v5779
  %v5781 = vpop.f32.mrf.mxu0
  %5782 = vmatprep.mubr.bf16.mxu0 0
  %5783 = vmatmul.mubr.bf16.gmra.mxu0 %v4032
  %v5784 = vpop.f32.mrf.mxu0
  %v5785 = vadd.f32 0.0, %v5784
  %v5786 = vpop.f32.mrf.mxu0
  %v5787 = vpop.f32.mrf.mxu0
  %v5788 = vadd.f32 0.0, %v5787
  %v5789 = vpop.f32.mrf.mxu0
  %5790 = vmatprep.mubr.bf16.mxu0 0
  %5791 = vmatmul.mubr.bf16.gmra.mxu0 %v4035
  %v5792 = vpop.f32.mrf.mxu0
  %v5793 = vadd.f32 0.0, %v5792
  %v5794 = vpop.f32.mrf.mxu0
  %v5795 = vpop.f32.mrf.mxu0
  %v5796 = vadd.f32 0.0, %v5795
  %v5797 = vpop.f32.mrf.mxu0
  %5798 = vmatprep.mubr.bf16.mxu0 0
  %5799 = vmatmul.mubr.bf16.gmra.mxu0 %v4038
  %v5800 = vpop.f32.mrf.mxu0
  %v5801 = vadd.f32 0.0, %v5800
  %v5802 = vpop.f32.mrf.mxu0
  %v5803 = vpop.f32.mrf.mxu0
  %v5804 = vadd.f32 0.0, %v5803
  %v5805 = vpop.f32.mrf.mxu0
  %5806 = vmatprep.mubr.bf16.mxu0 0
  %5807 = vmatmul.mubr.bf16.gmra.mxu0 %v4041
  %v5808 = vpop.f32.mrf.mxu0
  %v5809 = vadd.f32 0.0, %v5808
  %v5810 = vpop.f32.mrf.mxu0
  %v5811 = vpop.f32.mrf.mxu0
  %v5812 = vadd.f32 0.0, %v5811
  %v5813 = vpop.f32.mrf.mxu0
  %5814 = vdwg.mxu0
  %v5815 = vld [vmem:[%s10 + $0x10] sm:$0xf]
  %v5816 = vld [vmem:[%s10 + $0x34] sm:$0xf]
  %v5817 = vld [vmem:[%s10 + $0x58] sm:$0xf]
  %v5818 = vld [vmem:[%s10 + $0x7c] sm:$0xf]
  %v5819 = vld [vmem:[%s10 + $0xa0] sm:$0xf]
  %v5820 = vld [vmem:[%s10 + $0xc4] sm:$0xf]
  %v5821 = vld [vmem:[%s10 + $0xe8] sm:$0xf]
  %v5822 = vld [vmem:[%s10 + $0x10c] sm:$0xf]
  %v5823 = vld [vmem:[%s10 + $0x130] sm:$0xf]
  %v5824 = vld [vmem:[%s10 + $0x154] sm:$0xf]
  %v5825 = vld [vmem:[%s10 + $0x178] sm:$0xf]
  %v5826 = vld [vmem:[%s10 + $0x19c] sm:$0xf]
  %v5827 = vld [vmem:[%s10 + $0x1c0] sm:$0xf]
  %v5828 = vld [vmem:[%s10 + $0x1e4] sm:$0xf]
  %v5829 = vld [vmem:[%s10 + $0x208] sm:$0xf]
  %v5830 = vld [vmem:[%s10 + $0x22c] sm:$0xf]
  %v5831 = vld [vmem:[%s10 + $0x250] sm:$0xf]
  %v5832 = vld [vmem:[%s10 + $0x274] sm:$0xf]
  %v5833 = vld [vmem:[%s10 + $0x298] sm:$0xf]
  %v5834 = vld [vmem:[%s10 + $0x2bc] sm:$0xf]
  %v5835 = vld [vmem:[%s10 + $0x2e0] sm:$0xf]
  %v5836 = vld [vmem:[%s10 + $0x304] sm:$0xf]
  %v5837 = vld [vmem:[%s10 + $0x328] sm:$0xf]
  %v5838 = vld [vmem:[%s10 + $0x34c] sm:$0xf]
  %v5839 = vld [vmem:[%s10 + $0x370] sm:$0xf]
  %v5840 = vld [vmem:[%s10 + $0x394] sm:$0xf]
  %v5841 = vld [vmem:[%s10 + $0x3b8] sm:$0xf]
  %v5842 = vld [vmem:[%s10 + $0x3dc] sm:$0xf]
  %v5843 = vld [vmem:[%s10 + $0x400] sm:$0xf]
  %v5844 = vld [vmem:[%s10 + $0x424] sm:$0xf]
  %v5845 = vld [vmem:[%s10 + $0x448] sm:$0xf]
  %v5846 = vld [vmem:[%s10 + $0x46c] sm:$0xf]
  %v5847 = vpack.c.bf16 %v5756, %v5753
  %v5848 = vpack.c.bf16 %v5764, %v5761
  %v5849 = vpack.c.bf16 %v5772, %v5769
  %v5850 = vpack.c.bf16 %v5780, %v5777
  %v5851 = vpack.c.bf16 %v5788, %v5785
  %v5852 = vpack.c.bf16 %v5796, %v5793
  %v5853 = vpack.c.bf16 %v5804, %v5801
  %v5854 = vpack.c.bf16 %v5812, %v5809
  %v5887 = vunpack.c.l.b16 %v5815
  %v5888 = vunpack.c.l.b16 %v5816
  %v5889 = vunpack.c.l.b16 %v5817
  %v5890 = vunpack.c.l.b16 %v5818
  %v5891 = vunpack.c.l.b16 %v5819
  %v5892 = vunpack.c.l.b16 %v5820
  %v5893 = vunpack.c.l.b16 %v5821
  %v5894 = vunpack.c.l.b16 %v5822
  %v5895 = vunpack.c.l.b16 %v5823
  %v5896 = vunpack.c.l.b16 %v5824
  %v5897 = vunpack.c.l.b16 %v5825
  %v5898 = vunpack.c.l.b16 %v5826
  %v5899 = vunpack.c.l.b16 %v5827
  %v5900 = vunpack.c.l.b16 %v5828
  %v5901 = vunpack.c.l.b16 %v5829
  %v5902 = vunpack.c.l.b16 %v5830
  %v5903 = vunpack.c.l.b16 %v5831
  %v5904 = vunpack.c.l.b16 %v5832
  %v5905 = vunpack.c.l.b16 %v5833
  %v5906 = vunpack.c.l.b16 %v5834
  %v5907 = vunpack.c.l.b16 %v5835
  %v5908 = vunpack.c.l.b16 %v5836
  %v5909 = vunpack.c.l.b16 %v5837
  %v5910 = vunpack.c.l.b16 %v5838
  %v5911 = vunpack.c.l.b16 %v5839
  %v5912 = vunpack.c.l.b16 %v5840
  %v5913 = vunpack.c.l.b16 %v5841
  %v5914 = vunpack.c.l.b16 %v5842
  %v5915 = vunpack.c.l.b16 %v5843
  %v5916 = vunpack.c.l.b16 %v5844
  %v5917 = vunpack.c.l.b16 %v5845
  %v5918 = vunpack.c.l.b16 %v5846
  %v5919 = vpack.c.b16 %v5888, %v5887
  %v5920 = vpack.c.b16 %v5890, %v5889
  %v5921 = vpack.c.b16 %v5892, %v5891
  %v5922 = vpack.c.b16 %v5894, %v5893
  %v5923 = vpack.c.b16 %v5896, %v5895
  %v5924 = vpack.c.b16 %v5898, %v5897
  %v5925 = vpack.c.b16 %v5900, %v5899
  %v5926 = vpack.c.b16 %v5902, %v5901
  %v5927 = vpack.c.b16 %v5904, %v5903
  %v5928 = vpack.c.b16 %v5906, %v5905
  %v5929 = vpack.c.b16 %v5908, %v5907
  %v5930 = vpack.c.b16 %v5910, %v5909
  %v5931 = vpack.c.b16 %v5912, %v5911
  %v5932 = vpack.c.b16 %v5914, %v5913
  %v5933 = vpack.c.b16 %v5916, %v5915
  %v5934 = vpack.c.b16 %v5918, %v5917
  %5951 = vmatprep.subr.bf16.mxu0 0
  %5952 = vmatpush1.bf16.msra.mxu0 %v5854
  %5953 = vmatprep.subr.bf16.mxu0 0
  %5954 = vmatpush1.bf16.msra.mxu0 %v5853
  %5955 = vmatprep.subr.bf16.mxu0 0
  %5956 = vmatpush1.bf16.msra.mxu0 %v5852
  %5957 = vmatprep.subr.bf16.mxu0 0
  %5958 = vmatpush1.bf16.msra.mxu0 %v5851
  %5959 = vmatprep.subr.bf16.mxu0 0
  %5960 = vmatpush1.bf16.msra.mxu0 %v5850
  %5961 = vmatprep.subr.bf16.mxu0 0
  %5962 = vmatpush1.bf16.msra.mxu0 %v5849
  %5963 = vmatprep.subr.bf16.mxu0 0
  %5964 = vmatpush1.bf16.msra.mxu0 %v5848
  %5965 = vmatprep.subr.bf16.mxu0 0
  %5966 = vmatpush1.bf16.msra.mxu0 %v5847
  %5967 = vmatprep.subr.bf16.mxu0 0
  %5968 = vmatpush2.bf16.msra.mxu0 0
  %5969 = vmatprep.subr.bf16.mxu0 0
  %5970 = vmatpush2.bf16.msra.mxu0 0
  %5971 = vmatprep.subr.bf16.mxu0 0
  %5972 = vmatpush2.bf16.msra.mxu0 0
  %5973 = vmatprep.subr.bf16.mxu0 0
  %5974 = vmatpush2.bf16.msra.mxu0 0
  %5975 = vmatprep.subr.bf16.mxu0 0
  %5976 = vmatpush2.bf16.msra.mxu0 0
  %5977 = vmatprep.subr.bf16.mxu0 0
  %5978 = vmatpush2.bf16.msra.mxu0 0
  %5979 = vmatprep.subr.bf16.mxu0 0
  %5980 = vmatpush2.bf16.msra.mxu0 0
  %5981 = vmatprep.subr.bf16.mxu0 0
  %5982 = vmatpush2.bf16.msra.mxu0 0
  %5983 = vmatprep.mubr.bf16.mxu0 0
  %5984 = vmatmul.mubr.bf16.gmra.mxu0 %v5919
  %v5985 = vpop.f32.mrf.mxu0
  %v5986 = vadd.f32 0.0, %v5985
  %v5987 = vpop.f32.mrf.mxu0
  %v5988 = vpop.f32.mrf.mxu0
  %v5989 = vadd.f32 0.0, %v5988
  %v5990 = vpop.f32.mrf.mxu0
  %5991 = vmatprep.mubr.bf16.mxu0 0
  %5992 = vmatmul.mubr.bf16.gmra.mxu0 %v5920
  %v5993 = vpop.f32.mrf.mxu0
  %v5994 = vadd.f32 0.0, %v5993
  %v5995 = vpop.f32.mrf.mxu0
  %v5996 = vpop.f32.mrf.mxu0
  %v5997 = vadd.f32 0.0, %v5996
  %v5998 = vpop.f32.mrf.mxu0
  %5999 = vmatprep.mubr.bf16.mxu0 0
  %6000 = vmatmul.mubr.bf16.gmra.mxu0 %v5921
  %v6001 = vpop.f32.mrf.mxu0
  %v6002 = vadd.f32 0.0, %v6001
  %v6003 = vpop.f32.mrf.mxu0
  %v6004 = vpop.f32.mrf.mxu0
  %v6005 = vadd.f32 0.0, %v6004
  %v6006 = vpop.f32.mrf.mxu0
  %6007 = vmatprep.mubr.bf16.mxu0 0
  %6008 = vmatmul.mubr.bf16.gmra.mxu0 %v5922
  %v6009 = vpop.f32.mrf.mxu0
  %v6010 = vadd.f32 0.0, %v6009
  %v6011 = vpop.f32.mrf.mxu0
  %v6012 = vpop.f32.mrf.mxu0
  %v6013 = vadd.f32 0.0, %v6012
  %v6014 = vpop.f32.mrf.mxu0
  %6015 = vmatprep.mubr.bf16.mxu0 0
  %6016 = vmatmul.mubr.bf16.gmra.mxu0 %v5923
  %v6017 = vpop.f32.mrf.mxu0
  %v6018 = vadd.f32 0.0, %v6017
  %v6019 = vpop.f32.mrf.mxu0
  %v6020 = vpop.f32.mrf.mxu0
  %v6021 = vadd.f32 0.0, %v6020
  %v6022 = vpop.f32.mrf.mxu0
  %6023 = vmatprep.mubr.bf16.mxu0 0
  %6024 = vmatmul.mubr.bf16.gmra.mxu0 %v5924
  %v6025 = vpop.f32.mrf.mxu0
  %v6026 = vadd.f32 0.0, %v6025
  %v6027 = vpop.f32.mrf.mxu0
  %v6028 = vpop.f32.mrf.mxu0
  %v6029 = vadd.f32 0.0, %v6028
  %v6030 = vpop.f32.mrf.mxu0
  %6031 = vmatprep.mubr.bf16.mxu0 0
  %6032 = vmatmul.mubr.bf16.gmra.mxu0 %v5925
  %v6033 = vpop.f32.mrf.mxu0
  %v6034 = vadd.f32 0.0, %v6033
  %v6035 = vpop.f32.mrf.mxu0
  %v6036 = vpop.f32.mrf.mxu0
  %v6037 = vadd.f32 0.0, %v6036
  %v6038 = vpop.f32.mrf.mxu0
  %6039 = vmatprep.mubr.bf16.mxu0 0
  %6040 = vmatmul.mubr.bf16.gmra.mxu0 %v5926
  %v6041 = vpop.f32.mrf.mxu0
  %v6042 = vadd.f32 0.0, %v6041
  %v6043 = vpop.f32.mrf.mxu0
  %v6044 = vpop.f32.mrf.mxu0
  %v6045 = vadd.f32 0.0, %v6044
  %v6046 = vpop.f32.mrf.mxu0
  %6047 = vmatprep.mubr.bf16.mxu0 0
  %6048 = vmatmul.mubr.bf16.gmra.mxu0 %v5927
  %v6049 = vpop.f32.mrf.mxu0
  %v6050 = vadd.f32 0.0, %v6049
  %v6051 = vpop.f32.mrf.mxu0
  %v6052 = vpop.f32.mrf.mxu0
  %v6053 = vadd.f32 0.0, %v6052
  %v6054 = vpop.f32.mrf.mxu0
  %6055 = vmatprep.mubr.bf16.mxu0 0
  %6056 = vmatmul.mubr.bf16.gmra.mxu0 %v5928
  %v6057 = vpop.f32.mrf.mxu0
  %v6058 = vadd.f32 0.0, %v6057
  %v6059 = vpop.f32.mrf.mxu0
  %v6060 = vpop.f32.mrf.mxu0
  %v6061 = vadd.f32 0.0, %v6060
  %v6062 = vpop.f32.mrf.mxu0
  %6063 = vmatprep.mubr.bf16.mxu0 0
  %6064 = vmatmul.mubr.bf16.gmra.mxu0 %v5929
  %v6065 = vpop.f32.mrf.mxu0
  %v6066 = vadd.f32 0.0, %v6065
  %v6067 = vpop.f32.mrf.mxu0
  %v6068 = vpop.f32.mrf.mxu0
  %v6069 = vadd.f32 0.0, %v6068
  %v6070 = vpop.f32.mrf.mxu0
  %6071 = vmatprep.mubr.bf16.mxu0 0
  %6072 = vmatmul.mubr.bf16.gmra.mxu0 %v5930
  %v6073 = vpop.f32.mrf.mxu0
  %v6074 = vadd.f32 0.0, %v6073
  %v6075 = vpop.f32.mrf.mxu0
  %v6076 = vpop.f32.mrf.mxu0
  %v6077 = vadd.f32 0.0, %v6076
  %v6078 = vpop.f32.mrf.mxu0
  %6079 = vmatprep.mubr.bf16.mxu0 0
  %6080 = vmatmul.mubr.bf16.gmra.mxu0 %v5931
  %v6081 = vpop.f32.mrf.mxu0
  %v6082 = vadd.f32 0.0, %v6081
  %v6083 = vpop.f32.mrf.mxu0
  %v6084 = vpop.f32.mrf.mxu0
  %v6085 = vadd.f32 0.0, %v6084
  %v6086 = vpop.f32.mrf.mxu0
  %6087 = vmatprep.mubr.bf16.mxu0 0
  %6088 = vmatmul.mubr.bf16.gmra.mxu0 %v5932
  %v6089 = vpop.f32.mrf.mxu0
  %v6090 = vadd.f32 0.0, %v6089
  %v6091 = vpop.f32.mrf.mxu0
  %v6092 = vpop.f32.mrf.mxu0
  %v6093 = vadd.f32 0.0, %v6092
  %v6094 = vpop.f32.mrf.mxu0
  %6095 = vmatprep.mubr.bf16.mxu0 0
  %6096 = vmatmul.mubr.bf16.gmra.mxu0 %v5933
  %v6097 = vpop.f32.mrf.mxu0
  %v6098 = vadd.f32 0.0, %v6097
  %v6099 = vpop.f32.mrf.mxu0
  %v6100 = vpop.f32.mrf.mxu0
  %v6101 = vadd.f32 0.0, %v6100
  %v6102 = vpop.f32.mrf.mxu0
  %6103 = vmatprep.mubr.bf16.mxu0 0
  %6104 = vmatmul.mubr.bf16.gmra.mxu0 %v5934
  %v6105 = vpop.f32.mrf.mxu0
  %v6106 = vadd.f32 0.0, %v6105
  %v6107 = vpop.f32.mrf.mxu0
  %v6108 = vpop.f32.mrf.mxu0
  %v6109 = vadd.f32 0.0, %v6108
  %v6110 = vpop.f32.mrf.mxu0
  %6111 = vdwg.mxu0
  %v6112 = vadd.f32 %v5678, %v5986
  %v6113 = vadd.f32 %v5679, %v5989
  %v6114 = vadd.f32 %v5680, %v5994
  %v6115 = vadd.f32 %v5681, %v5997
  %v6116 = vadd.f32 %v5682, %v6002
  %v6117 = vadd.f32 %v5683, %v6005
  %v6118 = vadd.f32 %v5684, %v6010
  %v6119 = vadd.f32 %v5685, %v6013
  %v6120 = vadd.f32 %v5686, %v6018
  %v6121 = vadd.f32 %v5687, %v6021
  %v6122 = vadd.f32 %v5688, %v6026
  %v6123 = vadd.f32 %v5689, %v6029
  %v6124 = vadd.f32 %v5690, %v6034
  %v6125 = vadd.f32 %v5691, %v6037
  %v6126 = vadd.f32 %v5692, %v6042
  %v6127 = vadd.f32 %v5693, %v6045
  %v6128 = vadd.f32 %v5694, %v6050
  %v6129 = vadd.f32 %v5695, %v6053
  %v6130 = vadd.f32 %v5696, %v6058
  %v6131 = vadd.f32 %v5697, %v6061
  %v6132 = vadd.f32 %v5698, %v6066
  %v6133 = vadd.f32 %v5699, %v6069
  %v6134 = vadd.f32 %v5700, %v6074
  %v6135 = vadd.f32 %v5701, %v6077
  %v6136 = vadd.f32 %v5702, %v6082
  %v6137 = vadd.f32 %v5703, %v6085
  %v6138 = vadd.f32 %v5704, %v6090
  %v6139 = vadd.f32 %v5705, %v6093
  %v6140 = vadd.f32 %v5706, %v6098
  %v6141 = vadd.f32 %v5707, %v6101
  %v6142 = vadd.f32 %v5708, %v6106
  %v6143 = vadd.f32 %v5709, %v6109
  %6144 = vrot.lane.b32.xlu0 %v4015, 118
  %v6145 = vpop.permute.xlu0 %6144
  %6146 = vrot.lane.b32.xlu0 %v4016, 118
  %v6147 = vpop.permute.xlu0 %6146
  %v6150 = vsel %vm357, %v6147, 0
  %6152 = vmatprep.subr.bf16.mxu0 0
  %6153 = vmatpush1.bf16.msra.mxu0 0
  %6154 = vmatprep.subr.bf16.mxu0 0
  %6155 = vmatpush1.bf16.msra.mxu0 0
  %6156 = vmatprep.subr.bf16.mxu0 0
  %6157 = vmatpush1.bf16.msra.mxu0 0
  %6158 = vmatprep.subr.bf16.mxu0 0
  %6159 = vmatpush1.bf16.msra.mxu0 0
  %6160 = vmatprep.subr.bf16.mxu0 0
  %6161 = vmatpush1.bf16.msra.mxu0 0
  %6162 = vmatprep.subr.bf16.mxu0 0
  %6163 = vmatpush1.bf16.msra.mxu0 0
  %6164 = vmatprep.subr.bf16.mxu0 0
  %6165 = vmatpush1.bf16.msra.mxu0 %v6150
  %6166 = vmatprep.subr.bf16.mxu0 0
  %6167 = vmatpush1.bf16.msra.mxu0 %v6145
  %6168 = vmatprep.subr.bf16.mxu0 0
  %6169 = vmatpush2.bf16.msra.mxu0 0
  %6170 = vmatprep.subr.bf16.mxu0 0
  %6171 = vmatpush2.bf16.msra.mxu0 0
  %6172 = vmatprep.subr.bf16.mxu0 0
  %6173 = vmatpush2.bf16.msra.mxu0 0
  %6174 = vmatprep.subr.bf16.mxu0 0
  %6175 = vmatpush2.bf16.msra.mxu0 0
  %6176 = vmatprep.subr.bf16.mxu0 0
  %6177 = vmatpush2.bf16.msra.mxu0 0
  %6178 = vmatprep.subr.bf16.mxu0 0
  %6179 = vmatpush2.bf16.msra.mxu0 0
  %6180 = vmatprep.subr.bf16.mxu0 0
  %6181 = vmatpush2.bf16.msra.mxu0 0
  %6182 = vmatprep.subr.bf16.mxu0 0
  %6183 = vmatpush2.bf16.msra.mxu0 0
  %6184 = vmatprep.mubr.bf16.mxu0 0
  %6185 = vmatmul.mubr.bf16.gmra.mxu0 %v4020
  %v6186 = vpop.f32.mrf.mxu0
  %v6187 = vadd.f32 0.0, %v6186
  %v6188 = vpop.f32.mrf.mxu0
  %v6189 = vpop.f32.mrf.mxu0
  %v6190 = vadd.f32 0.0, %v6189
  %v6191 = vpop.f32.mrf.mxu0
  %6192 = vmatprep.mubr.bf16.mxu0 0
  %6193 = vmatmul.mubr.bf16.gmra.mxu0 %v4023
  %v6194 = vpop.f32.mrf.mxu0
  %v6195 = vadd.f32 0.0, %v6194
  %v6196 = vpop.f32.mrf.mxu0
  %v6197 = vpop.f32.mrf.mxu0
  %v6198 = vadd.f32 0.0, %v6197
  %v6199 = vpop.f32.mrf.mxu0
  %6200 = vmatprep.mubr.bf16.mxu0 0
  %6201 = vmatmul.mubr.bf16.gmra.mxu0 %v4026
  %v6202 = vpop.f32.mrf.mxu0
  %v6203 = vadd.f32 0.0, %v6202
  %v6204 = vpop.f32.mrf.mxu0
  %v6205 = vpop.f32.mrf.mxu0
  %v6206 = vadd.f32 0.0, %v6205
  %v6207 = vpop.f32.mrf.mxu0
  %6208 = vmatprep.mubr.bf16.mxu0 0
  %6209 = vmatmul.mubr.bf16.gmra.mxu0 %v4029
  %v6210 = vpop.f32.mrf.mxu0
  %v6211 = vadd.f32 0.0, %v6210
  %v6212 = vpop.f32.mrf.mxu0
  %v6213 = vpop.f32.mrf.mxu0
  %v6214 = vadd.f32 0.0, %v6213
  %v6215 = vpop.f32.mrf.mxu0
  %6216 = vmatprep.mubr.bf16.mxu0 0
  %6217 = vmatmul.mubr.bf16.gmra.mxu0 %v4032
  %v6218 = vpop.f32.mrf.mxu0
  %v6219 = vadd.f32 0.0, %v6218
  %v6220 = vpop.f32.mrf.mxu0
  %v6221 = vpop.f32.mrf.mxu0
  %v6222 = vadd.f32 0.0, %v6221
  %v6223 = vpop.f32.mrf.mxu0
  %6224 = vmatprep.mubr.bf16.mxu0 0
  %6225 = vmatmul.mubr.bf16.gmra.mxu0 %v4035
  %v6226 = vpop.f32.mrf.mxu0
  %v6227 = vadd.f32 0.0, %v6226
  %v6228 = vpop.f32.mrf.mxu0
  %v6229 = vpop.f32.mrf.mxu0
  %v6230 = vadd.f32 0.0, %v6229
  %v6231 = vpop.f32.mrf.mxu0
  %6232 = vmatprep.mubr.bf16.mxu0 0
  %6233 = vmatmul.mubr.bf16.gmra.mxu0 %v4038
  %v6234 = vpop.f32.mrf.mxu0
  %v6235 = vadd.f32 0.0, %v6234
  %v6236 = vpop.f32.mrf.mxu0
  %v6237 = vpop.f32.mrf.mxu0
  %v6238 = vadd.f32 0.0, %v6237
  %v6239 = vpop.f32.mrf.mxu0
  %6240 = vmatprep.mubr.bf16.mxu0 0
  %6241 = vmatmul.mubr.bf16.gmra.mxu0 %v4041
  %v6242 = vpop.f32.mrf.mxu0
  %v6243 = vadd.f32 0.0, %v6242
  %v6244 = vpop.f32.mrf.mxu0
  %v6245 = vpop.f32.mrf.mxu0
  %v6246 = vadd.f32 0.0, %v6245
  %v6247 = vpop.f32.mrf.mxu0
  %6248 = vdwg.mxu0
  %v6249 = vld [vmem:[%s10 + $0x14] sm:$0xf]
  %v6250 = vld [vmem:[%s10 + $0x38] sm:$0xf]
  %v6251 = vld [vmem:[%s10 + $0x5c] sm:$0xf]
  %v6252 = vld [vmem:[%s10 + $0x80] sm:$0xf]
  %v6253 = vld [vmem:[%s10 + $0xa4] sm:$0xf]
  %v6254 = vld [vmem:[%s10 + $0xc8] sm:$0xf]
  %v6255 = vld [vmem:[%s10 + $0xec] sm:$0xf]
  %v6256 = vld [vmem:[%s10 + $0x110] sm:$0xf]
  %v6257 = vld [vmem:[%s10 + $0x134] sm:$0xf]
  %v6258 = vld [vmem:[%s10 + $0x158] sm:$0xf]
  %v6259 = vld [vmem:[%s10 + $0x17c] sm:$0xf]
  %v6260 = vld [vmem:[%s10 + $0x1a0] sm:$0xf]
  %v6261 = vld [vmem:[%s10 + $0x1c4] sm:$0xf]
  %v6262 = vld [vmem:[%s10 + $0x1e8] sm:$0xf]
  %v6263 = vld [vmem:[%s10 + $0x20c] sm:$0xf]
  %v6264 = vld [vmem:[%s10 + $0x230] sm:$0xf]
  %v6265 = vld [vmem:[%s10 + $0x254] sm:$0xf]
  %v6266 = vld [vmem:[%s10 + $0x278] sm:$0xf]
  %v6267 = vld [vmem:[%s10 + $0x29c] sm:$0xf]
  %v6268 = vld [vmem:[%s10 + $0x2c0] sm:$0xf]
  %v6269 = vld [vmem:[%s10 + $0x2e4] sm:$0xf]
  %v6270 = vld [vmem:[%s10 + $0x308] sm:$0xf]
  %v6271 = vld [vmem:[%s10 + $0x32c] sm:$0xf]
  %v6272 = vld [vmem:[%s10 + $0x350] sm:$0xf]
  %v6273 = vld [vmem:[%s10 + $0x374] sm:$0xf]
  %v6274 = vld [vmem:[%s10 + $0x398] sm:$0xf]
  %v6275 = vld [vmem:[%s10 + $0x3bc] sm:$0xf]
  %v6276 = vld [vmem:[%s10 + $0x3e0] sm:$0xf]
  %v6277 = vld [vmem:[%s10 + $0x404] sm:$0xf]
  %v6278 = vld [vmem:[%s10 + $0x428] sm:$0xf]
  %v6279 = vld [vmem:[%s10 + $0x44c] sm:$0xf]
  %v6280 = vld [vmem:[%s10 + $0x470] sm:$0xf]
  %v6281 = vpack.c.bf16 %v6190, %v6187
  %v6282 = vpack.c.bf16 %v6198, %v6195
  %v6283 = vpack.c.bf16 %v6206, %v6203
  %v6284 = vpack.c.bf16 %v6214, %v6211
  %v6285 = vpack.c.bf16 %v6222, %v6219
  %v6286 = vpack.c.bf16 %v6230, %v6227
  %v6287 = vpack.c.bf16 %v6238, %v6235
  %v6288 = vpack.c.bf16 %v6246, %v6243
  %v6321 = vunpack.c.l.b16 %v6249
  %v6322 = vunpack.c.l.b16 %v6250
  %v6323 = vunpack.c.l.b16 %v6251
  %v6324 = vunpack.c.l.b16 %v6252
  %v6325 = vunpack.c.l.b16 %v6253
  %v6326 = vunpack.c.l.b16 %v6254
  %v6327 = vunpack.c.l.b16 %v6255
  %v6328 = vunpack.c.l.b16 %v6256
  %v6329 = vunpack.c.l.b16 %v6257
  %v6330 = vunpack.c.l.b16 %v6258
  %v6331 = vunpack.c.l.b16 %v6259
  %v6332 = vunpack.c.l.b16 %v6260
  %v6333 = vunpack.c.l.b16 %v6261
  %v6334 = vunpack.c.l.b16 %v6262
  %v6335 = vunpack.c.l.b16 %v6263
  %v6336 = vunpack.c.l.b16 %v6264
  %v6337 = vunpack.c.l.b16 %v6265
  %v6338 = vunpack.c.l.b16 %v6266
  %v6339 = vunpack.c.l.b16 %v6267
  %v6340 = vunpack.c.l.b16 %v6268
  %v6341 = vunpack.c.l.b16 %v6269
  %v6342 = vunpack.c.l.b16 %v6270
  %v6343 = vunpack.c.l.b16 %v6271
  %v6344 = vunpack.c.l.b16 %v6272
  %v6345 = vunpack.c.l.b16 %v6273
  %v6346 = vunpack.c.l.b16 %v6274
  %v6347 = vunpack.c.l.b16 %v6275
  %v6348 = vunpack.c.l.b16 %v6276
  %v6349 = vunpack.c.l.b16 %v6277
  %v6350 = vunpack.c.l.b16 %v6278
  %v6351 = vunpack.c.l.b16 %v6279
  %v6352 = vunpack.c.l.b16 %v6280
  %v6353 = vpack.c.b16 %v6322, %v6321
  %v6354 = vpack.c.b16 %v6324, %v6323
  %v6355 = vpack.c.b16 %v6326, %v6325
  %v6356 = vpack.c.b16 %v6328, %v6327
  %v6357 = vpack.c.b16 %v6330, %v6329
  %v6358 = vpack.c.b16 %v6332, %v6331
  %v6359 = vpack.c.b16 %v6334, %v6333
  %v6360 = vpack.c.b16 %v6336, %v6335
  %v6361 = vpack.c.b16 %v6338, %v6337
  %v6362 = vpack.c.b16 %v6340, %v6339
  %v6363 = vpack.c.b16 %v6342, %v6341
  %v6364 = vpack.c.b16 %v6344, %v6343
  %v6365 = vpack.c.b16 %v6346, %v6345
  %v6366 = vpack.c.b16 %v6348, %v6347
  %v6367 = vpack.c.b16 %v6350, %v6349
  %v6368 = vpack.c.b16 %v6352, %v6351
  %6385 = vmatprep.subr.bf16.mxu0 0
  %6386 = vmatpush1.bf16.msra.mxu0 %v6288
  %6387 = vmatprep.subr.bf16.mxu0 0
  %6388 = vmatpush1.bf16.msra.mxu0 %v6287
  %6389 = vmatprep.subr.bf16.mxu0 0
  %6390 = vmatpush1.bf16.msra.mxu0 %v6286
  %6391 = vmatprep.subr.bf16.mxu0 0
  %6392 = vmatpush1.bf16.msra.mxu0 %v6285
  %6393 = vmatprep.subr.bf16.mxu0 0
  %6394 = vmatpush1.bf16.msra.mxu0 %v6284
  %6395 = vmatprep.subr.bf16.mxu0 0
  %6396 = vmatpush1.bf16.msra.mxu0 %v6283
  %6397 = vmatprep.subr.bf16.mxu0 0
  %6398 = vmatpush1.bf16.msra.mxu0 %v6282
  %6399 = vmatprep.subr.bf16.mxu0 0
  %6400 = vmatpush1.bf16.msra.mxu0 %v6281
  %6401 = vmatprep.subr.bf16.mxu0 0
  %6402 = vmatpush2.bf16.msra.mxu0 0
  %6403 = vmatprep.subr.bf16.mxu0 0
  %6404 = vmatpush2.bf16.msra.mxu0 0
  %6405 = vmatprep.subr.bf16.mxu0 0
  %6406 = vmatpush2.bf16.msra.mxu0 0
  %6407 = vmatprep.subr.bf16.mxu0 0
  %6408 = vmatpush2.bf16.msra.mxu0 0
  %6409 = vmatprep.subr.bf16.mxu0 0
  %6410 = vmatpush2.bf16.msra.mxu0 0
  %6411 = vmatprep.subr.bf16.mxu0 0
  %6412 = vmatpush2.bf16.msra.mxu0 0
  %6413 = vmatprep.subr.bf16.mxu0 0
  %6414 = vmatpush2.bf16.msra.mxu0 0
  %6415 = vmatprep.subr.bf16.mxu0 0
  %6416 = vmatpush2.bf16.msra.mxu0 0
  %6417 = vmatprep.mubr.bf16.mxu0 0
  %6418 = vmatmul.mubr.bf16.gmra.mxu0 %v6353
  %v6419 = vpop.f32.mrf.mxu0
  %v6420 = vadd.f32 0.0, %v6419
  %v6421 = vpop.f32.mrf.mxu0
  %v6422 = vpop.f32.mrf.mxu0
  %v6423 = vadd.f32 0.0, %v6422
  %v6424 = vpop.f32.mrf.mxu0
  %6425 = vmatprep.mubr.bf16.mxu0 0
  %6426 = vmatmul.mubr.bf16.gmra.mxu0 %v6354
  %v6427 = vpop.f32.mrf.mxu0
  %v6428 = vadd.f32 0.0, %v6427
  %v6429 = vpop.f32.mrf.mxu0
  %v6430 = vpop.f32.mrf.mxu0
  %v6431 = vadd.f32 0.0, %v6430
  %v6432 = vpop.f32.mrf.mxu0
  %6433 = vmatprep.mubr.bf16.mxu0 0
  %6434 = vmatmul.mubr.bf16.gmra.mxu0 %v6355
  %v6435 = vpop.f32.mrf.mxu0
  %v6436 = vadd.f32 0.0, %v6435
  %v6437 = vpop.f32.mrf.mxu0
  %v6438 = vpop.f32.mrf.mxu0
  %v6439 = vadd.f32 0.0, %v6438
  %v6440 = vpop.f32.mrf.mxu0
  %6441 = vmatprep.mubr.bf16.mxu0 0
  %6442 = vmatmul.mubr.bf16.gmra.mxu0 %v6356
  %v6443 = vpop.f32.mrf.mxu0
  %v6444 = vadd.f32 0.0, %v6443
  %v6445 = vpop.f32.mrf.mxu0
  %v6446 = vpop.f32.mrf.mxu0
  %v6447 = vadd.f32 0.0, %v6446
  %v6448 = vpop.f32.mrf.mxu0
  %6449 = vmatprep.mubr.bf16.mxu0 0
  %6450 = vmatmul.mubr.bf16.gmra.mxu0 %v6357
  %v6451 = vpop.f32.mrf.mxu0
  %v6452 = vadd.f32 0.0, %v6451
  %v6453 = vpop.f32.mrf.mxu0
  %v6454 = vpop.f32.mrf.mxu0
  %v6455 = vadd.f32 0.0, %v6454
  %v6456 = vpop.f32.mrf.mxu0
  %6457 = vmatprep.mubr.bf16.mxu0 0
  %6458 = vmatmul.mubr.bf16.gmra.mxu0 %v6358
  %v6459 = vpop.f32.mrf.mxu0
  %v6460 = vadd.f32 0.0, %v6459
  %v6461 = vpop.f32.mrf.mxu0
  %v6462 = vpop.f32.mrf.mxu0
  %v6463 = vadd.f32 0.0, %v6462
  %v6464 = vpop.f32.mrf.mxu0
  %6465 = vmatprep.mubr.bf16.mxu0 0
  %6466 = vmatmul.mubr.bf16.gmra.mxu0 %v6359
  %v6467 = vpop.f32.mrf.mxu0
  %v6468 = vadd.f32 0.0, %v6467
  %v6469 = vpop.f32.mrf.mxu0
  %v6470 = vpop.f32.mrf.mxu0
  %v6471 = vadd.f32 0.0, %v6470
  %v6472 = vpop.f32.mrf.mxu0
  %6473 = vmatprep.mubr.bf16.mxu0 0
  %6474 = vmatmul.mubr.bf16.gmra.mxu0 %v6360
  %v6475 = vpop.f32.mrf.mxu0
  %v6476 = vadd.f32 0.0, %v6475
  %v6477 = vpop.f32.mrf.mxu0
  %v6478 = vpop.f32.mrf.mxu0
  %v6479 = vadd.f32 0.0, %v6478
  %v6480 = vpop.f32.mrf.mxu0
  %6481 = vmatprep.mubr.bf16.mxu0 0
  %6482 = vmatmul.mubr.bf16.gmra.mxu0 %v6361
  %v6483 = vpop.f32.mrf.mxu0
  %v6484 = vadd.f32 0.0, %v6483
  %v6485 = vpop.f32.mrf.mxu0
  %v6486 = vpop.f32.mrf.mxu0
  %v6487 = vadd.f32 0.0, %v6486
  %v6488 = vpop.f32.mrf.mxu0
  %6489 = vmatprep.mubr.bf16.mxu0 0
  %6490 = vmatmul.mubr.bf16.gmra.mxu0 %v6362
  %v6491 = vpop.f32.mrf.mxu0
  %v6492 = vadd.f32 0.0, %v6491
  %v6493 = vpop.f32.mrf.mxu0
  %v6494 = vpop.f32.mrf.mxu0
  %v6495 = vadd.f32 0.0, %v6494
  %v6496 = vpop.f32.mrf.mxu0
  %6497 = vmatprep.mubr.bf16.mxu0 0
  %6498 = vmatmul.mubr.bf16.gmra.mxu0 %v6363
  %v6499 = vpop.f32.mrf.mxu0
  %v6500 = vadd.f32 0.0, %v6499
  %v6501 = vpop.f32.mrf.mxu0
  %v6502 = vpop.f32.mrf.mxu0
  %v6503 = vadd.f32 0.0, %v6502
  %v6504 = vpop.f32.mrf.mxu0
  %6505 = vmatprep.mubr.bf16.mxu0 0
  %6506 = vmatmul.mubr.bf16.gmra.mxu0 %v6364
  %v6507 = vpop.f32.mrf.mxu0
  %v6508 = vadd.f32 0.0, %v6507
  %v6509 = vpop.f32.mrf.mxu0
  %v6510 = vpop.f32.mrf.mxu0
  %v6511 = vadd.f32 0.0, %v6510
  %v6512 = vpop.f32.mrf.mxu0
  %6513 = vmatprep.mubr.bf16.mxu0 0
  %6514 = vmatmul.mubr.bf16.gmra.mxu0 %v6365
  %v6515 = vpop.f32.mrf.mxu0
  %v6516 = vadd.f32 0.0, %v6515
  %v6517 = vpop.f32.mrf.mxu0
  %v6518 = vpop.f32.mrf.mxu0
  %v6519 = vadd.f32 0.0, %v6518
  %v6520 = vpop.f32.mrf.mxu0
  %6521 = vmatprep.mubr.bf16.mxu0 0
  %6522 = vmatmul.mubr.bf16.gmra.mxu0 %v6366
  %v6523 = vpop.f32.mrf.mxu0
  %v6524 = vadd.f32 0.0, %v6523
  %v6525 = vpop.f32.mrf.mxu0
  %v6526 = vpop.f32.mrf.mxu0
  %v6527 = vadd.f32 0.0, %v6526
  %v6528 = vpop.f32.mrf.mxu0
  %6529 = vmatprep.mubr.bf16.mxu0 0
  %6530 = vmatmul.mubr.bf16.gmra.mxu0 %v6367
  %v6531 = vpop.f32.mrf.mxu0
  %v6532 = vadd.f32 0.0, %v6531
  %v6533 = vpop.f32.mrf.mxu0
  %v6534 = vpop.f32.mrf.mxu0
  %v6535 = vadd.f32 0.0, %v6534
  %v6536 = vpop.f32.mrf.mxu0
  %6537 = vmatprep.mubr.bf16.mxu0 0
  %6538 = vmatmul.mubr.bf16.gmra.mxu0 %v6368
  %v6539 = vpop.f32.mrf.mxu0
  %v6540 = vadd.f32 0.0, %v6539
  %v6541 = vpop.f32.mrf.mxu0
  %v6542 = vpop.f32.mrf.mxu0
  %v6543 = vadd.f32 0.0, %v6542
  %v6544 = vpop.f32.mrf.mxu0
  %6545 = vdwg.mxu0
  %v6546 = vadd.f32 %v6112, %v6420
  %v6547 = vadd.f32 %v6113, %v6423
  %v6548 = vadd.f32 %v6114, %v6428
  %v6549 = vadd.f32 %v6115, %v6431
  %v6550 = vadd.f32 %v6116, %v6436
  %v6551 = vadd.f32 %v6117, %v6439
  %v6552 = vadd.f32 %v6118, %v6444
  %v6553 = vadd.f32 %v6119, %v6447
  %v6554 = vadd.f32 %v6120, %v6452
  %v6555 = vadd.f32 %v6121, %v6455
  %v6556 = vadd.f32 %v6122, %v6460
  %v6557 = vadd.f32 %v6123, %v6463
  %v6558 = vadd.f32 %v6124, %v6468
  %v6559 = vadd.f32 %v6125, %v6471
  %v6560 = vadd.f32 %v6126, %v6476
  %v6561 = vadd.f32 %v6127, %v6479
  %v6562 = vadd.f32 %v6128, %v6484
  %v6563 = vadd.f32 %v6129, %v6487
  %v6564 = vadd.f32 %v6130, %v6492
  %v6565 = vadd.f32 %v6131, %v6495
  %v6566 = vadd.f32 %v6132, %v6500
  %v6567 = vadd.f32 %v6133, %v6503
  %v6568 = vadd.f32 %v6134, %v6508
  %v6569 = vadd.f32 %v6135, %v6511
  %v6570 = vadd.f32 %v6136, %v6516
  %v6571 = vadd.f32 %v6137, %v6519
  %v6572 = vadd.f32 %v6138, %v6524
  %v6573 = vadd.f32 %v6139, %v6527
  %v6574 = vadd.f32 %v6140, %v6532
  %v6575 = vadd.f32 %v6141, %v6535
  %v6576 = vadd.f32 %v6142, %v6540
  %v6577 = vadd.f32 %v6143, %v6543
  %6578 = vrot.lane.b32.xlu0 %v4015, 116
  %v6579 = vpop.permute.xlu0 %6578
  %6580 = vrot.lane.b32.xlu0 %v4016, 116
  %v6581 = vpop.permute.xlu0 %6580
  %v6584 = vsel %vm357, %v6581, 0
  %6586 = vmatprep.subr.bf16.mxu0 0
  %6587 = vmatpush1.bf16.msra.mxu0 0
  %6588 = vmatprep.subr.bf16.mxu0 0
  %6589 = vmatpush1.bf16.msra.mxu0 0
  %6590 = vmatprep.subr.bf16.mxu0 0
  %6591 = vmatpush1.bf16.msra.mxu0 0
  %6592 = vmatprep.subr.bf16.mxu0 0
  %6593 = vmatpush1.bf16.msra.mxu0 0
  %6594 = vmatprep.subr.bf16.mxu0 0
  %6595 = vmatpush1.bf16.msra.mxu0 0
  %6596 = vmatprep.subr.bf16.mxu0 0
  %6597 = vmatpush1.bf16.msra.mxu0 0
  %6598 = vmatprep.subr.bf16.mxu0 0
  %6599 = vmatpush1.bf16.msra.mxu0 %v6584
  %6600 = vmatprep.subr.bf16.mxu0 0
  %6601 = vmatpush1.bf16.msra.mxu0 %v6579
  %6602 = vmatprep.subr.bf16.mxu0 0
  %6603 = vmatpush2.bf16.msra.mxu0 0
  %6604 = vmatprep.subr.bf16.mxu0 0
  %6605 = vmatpush2.bf16.msra.mxu0 0
  %6606 = vmatprep.subr.bf16.mxu0 0
  %6607 = vmatpush2.bf16.msra.mxu0 0
  %6608 = vmatprep.subr.bf16.mxu0 0
  %6609 = vmatpush2.bf16.msra.mxu0 0
  %6610 = vmatprep.subr.bf16.mxu0 0
  %6611 = vmatpush2.bf16.msra.mxu0 0
  %6612 = vmatprep.subr.bf16.mxu0 0
  %6613 = vmatpush2.bf16.msra.mxu0 0
  %6614 = vmatprep.subr.bf16.mxu0 0
  %6615 = vmatpush2.bf16.msra.mxu0 0
  %6616 = vmatprep.subr.bf16.mxu0 0
  %6617 = vmatpush2.bf16.msra.mxu0 0
  %6618 = vmatprep.mubr.bf16.mxu0 0
  %6619 = vmatmul.mubr.bf16.gmra.mxu0 %v4020
  %v6620 = vpop.f32.mrf.mxu0
  %v6621 = vadd.f32 0.0, %v6620
  %v6622 = vpop.f32.mrf.mxu0
  %v6623 = vpop.f32.mrf.mxu0
  %v6624 = vadd.f32 0.0, %v6623
  %v6625 = vpop.f32.mrf.mxu0
  %6626 = vmatprep.mubr.bf16.mxu0 0
  %6627 = vmatmul.mubr.bf16.gmra.mxu0 %v4023
  %v6628 = vpop.f32.mrf.mxu0
  %v6629 = vadd.f32 0.0, %v6628
  %v6630 = vpop.f32.mrf.mxu0
  %v6631 = vpop.f32.mrf.mxu0
  %v6632 = vadd.f32 0.0, %v6631
  %v6633 = vpop.f32.mrf.mxu0
  %6634 = vmatprep.mubr.bf16.mxu0 0
  %6635 = vmatmul.mubr.bf16.gmra.mxu0 %v4026
  %v6636 = vpop.f32.mrf.mxu0
  %v6637 = vadd.f32 0.0, %v6636
  %v6638 = vpop.f32.mrf.mxu0
  %v6639 = vpop.f32.mrf.mxu0
  %v6640 = vadd.f32 0.0, %v6639
  %v6641 = vpop.f32.mrf.mxu0
  %6642 = vmatprep.mubr.bf16.mxu0 0
  %6643 = vmatmul.mubr.bf16.gmra.mxu0 %v4029
  %v6644 = vpop.f32.mrf.mxu0
  %v6645 = vadd.f32 0.0, %v6644
  %v6646 = vpop.f32.mrf.mxu0
  %v6647 = vpop.f32.mrf.mxu0
  %v6648 = vadd.f32 0.0, %v6647
  %v6649 = vpop.f32.mrf.mxu0
  %6650 = vmatprep.mubr.bf16.mxu0 0
  %6651 = vmatmul.mubr.bf16.gmra.mxu0 %v4032
  %v6652 = vpop.f32.mrf.mxu0
  %v6653 = vadd.f32 0.0, %v6652
  %v6654 = vpop.f32.mrf.mxu0
  %v6655 = vpop.f32.mrf.mxu0
  %v6656 = vadd.f32 0.0, %v6655
  %v6657 = vpop.f32.mrf.mxu0
  %6658 = vmatprep.mubr.bf16.mxu0 0
  %6659 = vmatmul.mubr.bf16.gmra.mxu0 %v4035
  %v6660 = vpop.f32.mrf.mxu0
  %v6661 = vadd.f32 0.0, %v6660
  %v6662 = vpop.f32.mrf.mxu0
  %v6663 = vpop.f32.mrf.mxu0
  %v6664 = vadd.f32 0.0, %v6663
  %v6665 = vpop.f32.mrf.mxu0
  %6666 = vmatprep.mubr.bf16.mxu0 0
  %6667 = vmatmul.mubr.bf16.gmra.mxu0 %v4038
  %v6668 = vpop.f32.mrf.mxu0
  %v6669 = vadd.f32 0.0, %v6668
  %v6670 = vpop.f32.mrf.mxu0
  %v6671 = vpop.f32.mrf.mxu0
  %v6672 = vadd.f32 0.0, %v6671
  %v6673 = vpop.f32.mrf.mxu0
  %6674 = vmatprep.mubr.bf16.mxu0 0
  %6675 = vmatmul.mubr.bf16.gmra.mxu0 %v4041
  %v6676 = vpop.f32.mrf.mxu0
  %v6677 = vadd.f32 0.0, %v6676
  %v6678 = vpop.f32.mrf.mxu0
  %v6679 = vpop.f32.mrf.mxu0
  %v6680 = vadd.f32 0.0, %v6679
  %v6681 = vpop.f32.mrf.mxu0
  %6682 = vdwg.mxu0
  %v6683 = vld [vmem:[%s10 + $0x18] sm:$0xf]
  %v6684 = vld [vmem:[%s10 + $0x3c] sm:$0xf]
  %v6685 = vld [vmem:[%s10 + $0x60] sm:$0xf]
  %v6686 = vld [vmem:[%s10 + $0x84] sm:$0xf]
  %v6687 = vld [vmem:[%s10 + $0xa8] sm:$0xf]
  %v6688 = vld [vmem:[%s10 + $0xcc] sm:$0xf]
  %v6689 = vld [vmem:[%s10 + $0xf0] sm:$0xf]
  %v6690 = vld [vmem:[%s10 + $0x114] sm:$0xf]
  %v6691 = vld [vmem:[%s10 + $0x138] sm:$0xf]
  %v6692 = vld [vmem:[%s10 + $0x15c] sm:$0xf]
  %v6693 = vld [vmem:[%s10 + $0x180] sm:$0xf]
  %v6694 = vld [vmem:[%s10 + $0x1a4] sm:$0xf]
  %v6695 = vld [vmem:[%s10 + $0x1c8] sm:$0xf]
  %v6696 = vld [vmem:[%s10 + $0x1ec] sm:$0xf]
  %v6697 = vld [vmem:[%s10 + $0x210] sm:$0xf]
  %v6698 = vld [vmem:[%s10 + $0x234] sm:$0xf]
  %v6699 = vld [vmem:[%s10 + $0x258] sm:$0xf]
  %v6700 = vld [vmem:[%s10 + $0x27c] sm:$0xf]
  %v6701 = vld [vmem:[%s10 + $0x2a0] sm:$0xf]
  %v6702 = vld [vmem:[%s10 + $0x2c4] sm:$0xf]
  %v6703 = vld [vmem:[%s10 + $0x2e8] sm:$0xf]
  %v6704 = vld [vmem:[%s10 + $0x30c] sm:$0xf]
  %v6705 = vld [vmem:[%s10 + $0x330] sm:$0xf]
  %v6706 = vld [vmem:[%s10 + $0x354] sm:$0xf]
  %v6707 = vld [vmem:[%s10 + $0x378] sm:$0xf]
  %v6708 = vld [vmem:[%s10 + $0x39c] sm:$0xf]
  %v6709 = vld [vmem:[%s10 + $0x3c0] sm:$0xf]
  %v6710 = vld [vmem:[%s10 + $0x3e4] sm:$0xf]
  %v6711 = vld [vmem:[%s10 + $0x408] sm:$0xf]
  %v6712 = vld [vmem:[%s10 + $0x42c] sm:$0xf]
  %v6713 = vld [vmem:[%s10 + $0x450] sm:$0xf]
  %v6714 = vld [vmem:[%s10 + $0x474] sm:$0xf]
  %v6715 = vpack.c.bf16 %v6624, %v6621
  %v6716 = vpack.c.bf16 %v6632, %v6629
  %v6717 = vpack.c.bf16 %v6640, %v6637
  %v6718 = vpack.c.bf16 %v6648, %v6645
  %v6719 = vpack.c.bf16 %v6656, %v6653
  %v6720 = vpack.c.bf16 %v6664, %v6661
  %v6721 = vpack.c.bf16 %v6672, %v6669
  %v6722 = vpack.c.bf16 %v6680, %v6677
  %v6755 = vunpack.c.l.b16 %v6683
  %v6756 = vunpack.c.l.b16 %v6684
  %v6757 = vunpack.c.l.b16 %v6685
  %v6758 = vunpack.c.l.b16 %v6686
  %v6759 = vunpack.c.l.b16 %v6687
  %v6760 = vunpack.c.l.b16 %v6688
  %v6761 = vunpack.c.l.b16 %v6689
  %v6762 = vunpack.c.l.b16 %v6690
  %v6763 = vunpack.c.l.b16 %v6691
  %v6764 = vunpack.c.l.b16 %v6692
  %v6765 = vunpack.c.l.b16 %v6693
  %v6766 = vunpack.c.l.b16 %v6694
  %v6767 = vunpack.c.l.b16 %v6695
  %v6768 = vunpack.c.l.b16 %v6696
  %v6769 = vunpack.c.l.b16 %v6697
  %v6770 = vunpack.c.l.b16 %v6698
  %v6771 = vunpack.c.l.b16 %v6699
  %v6772 = vunpack.c.l.b16 %v6700
  %v6773 = vunpack.c.l.b16 %v6701
  %v6774 = vunpack.c.l.b16 %v6702
  %v6775 = vunpack.c.l.b16 %v6703
  %v6776 = vunpack.c.l.b16 %v6704
  %v6777 = vunpack.c.l.b16 %v6705
  %v6778 = vunpack.c.l.b16 %v6706
  %v6779 = vunpack.c.l.b16 %v6707
  %v6780 = vunpack.c.l.b16 %v6708
  %v6781 = vunpack.c.l.b16 %v6709
  %v6782 = vunpack.c.l.b16 %v6710
  %v6783 = vunpack.c.l.b16 %v6711
  %v6784 = vunpack.c.l.b16 %v6712
  %v6785 = vunpack.c.l.b16 %v6713
  %v6786 = vunpack.c.l.b16 %v6714
  %v6787 = vpack.c.b16 %v6756, %v6755
  %v6788 = vpack.c.b16 %v6758, %v6757
  %v6789 = vpack.c.b16 %v6760, %v6759
  %v6790 = vpack.c.b16 %v6762, %v6761
  %v6791 = vpack.c.b16 %v6764, %v6763
  %v6792 = vpack.c.b16 %v6766, %v6765
  %v6793 = vpack.c.b16 %v6768, %v6767
  %v6794 = vpack.c.b16 %v6770, %v6769
  %v6795 = vpack.c.b16 %v6772, %v6771
  %v6796 = vpack.c.b16 %v6774, %v6773
  %v6797 = vpack.c.b16 %v6776, %v6775
  %v6798 = vpack.c.b16 %v6778, %v6777
  %v6799 = vpack.c.b16 %v6780, %v6779
  %v6800 = vpack.c.b16 %v6782, %v6781
  %v6801 = vpack.c.b16 %v6784, %v6783
  %v6802 = vpack.c.b16 %v6786, %v6785
  %6819 = vmatprep.subr.bf16.mxu0 0
  %6820 = vmatpush1.bf16.msra.mxu0 %v6722
  %6821 = vmatprep.subr.bf16.mxu0 0
  %6822 = vmatpush1.bf16.msra.mxu0 %v6721
  %6823 = vmatprep.subr.bf16.mxu0 0
  %6824 = vmatpush1.bf16.msra.mxu0 %v6720
  %6825 = vmatprep.subr.bf16.mxu0 0
  %6826 = vmatpush1.bf16.msra.mxu0 %v6719
  %6827 = vmatprep.subr.bf16.mxu0 0
  %6828 = vmatpush1.bf16.msra.mxu0 %v6718
  %6829 = vmatprep.subr.bf16.mxu0 0
  %6830 = vmatpush1.bf16.msra.mxu0 %v6717
  %6831 = vmatprep.subr.bf16.mxu0 0
  %6832 = vmatpush1.bf16.msra.mxu0 %v6716
  %6833 = vmatprep.subr.bf16.mxu0 0
  %6834 = vmatpush1.bf16.msra.mxu0 %v6715
  %6835 = vmatprep.subr.bf16.mxu0 0
  %6836 = vmatpush2.bf16.msra.mxu0 0
  %6837 = vmatprep.subr.bf16.mxu0 0
  %6838 = vmatpush2.bf16.msra.mxu0 0
  %6839 = vmatprep.subr.bf16.mxu0 0
  %6840 = vmatpush2.bf16.msra.mxu0 0
  %6841 = vmatprep.subr.bf16.mxu0 0
  %6842 = vmatpush2.bf16.msra.mxu0 0
  %6843 = vmatprep.subr.bf16.mxu0 0
  %6844 = vmatpush2.bf16.msra.mxu0 0
  %6845 = vmatprep.subr.bf16.mxu0 0
  %6846 = vmatpush2.bf16.msra.mxu0 0
  %6847 = vmatprep.subr.bf16.mxu0 0
  %6848 = vmatpush2.bf16.msra.mxu0 0
  %6849 = vmatprep.subr.bf16.mxu0 0
  %6850 = vmatpush2.bf16.msra.mxu0 0
  %6851 = vmatprep.mubr.bf16.mxu0 0
  %6852 = vmatmul.mubr.bf16.gmra.mxu0 %v6787
  %v6853 = vpop.f32.mrf.mxu0
  %v6854 = vadd.f32 0.0, %v6853
  %v6855 = vpop.f32.mrf.mxu0
  %v6856 = vpop.f32.mrf.mxu0
  %v6857 = vadd.f32 0.0, %v6856
  %v6858 = vpop.f32.mrf.mxu0
  %6859 = vmatprep.mubr.bf16.mxu0 0
  %6860 = vmatmul.mubr.bf16.gmra.mxu0 %v6788
  %v6861 = vpop.f32.mrf.mxu0
  %v6862 = vadd.f32 0.0, %v6861
  %v6863 = vpop.f32.mrf.mxu0
  %v6864 = vpop.f32.mrf.mxu0
  %v6865 = vadd.f32 0.0, %v6864
  %v6866 = vpop.f32.mrf.mxu0
  %6867 = vmatprep.mubr.bf16.mxu0 0
  %6868 = vmatmul.mubr.bf16.gmra.mxu0 %v6789
  %v6869 = vpop.f32.mrf.mxu0
  %v6870 = vadd.f32 0.0, %v6869
  %v6871 = vpop.f32.mrf.mxu0
  %v6872 = vpop.f32.mrf.mxu0
  %v6873 = vadd.f32 0.0, %v6872
  %v6874 = vpop.f32.mrf.mxu0
  %6875 = vmatprep.mubr.bf16.mxu0 0
  %6876 = vmatmul.mubr.bf16.gmra.mxu0 %v6790
  %v6877 = vpop.f32.mrf.mxu0
  %v6878 = vadd.f32 0.0, %v6877
  %v6879 = vpop.f32.mrf.mxu0
  %v6880 = vpop.f32.mrf.mxu0
  %v6881 = vadd.f32 0.0, %v6880
  %v6882 = vpop.f32.mrf.mxu0
  %6883 = vmatprep.mubr.bf16.mxu0 0
  %6884 = vmatmul.mubr.bf16.gmra.mxu0 %v6791
  %v6885 = vpop.f32.mrf.mxu0
  %v6886 = vadd.f32 0.0, %v6885
  %v6887 = vpop.f32.mrf.mxu0
  %v6888 = vpop.f32.mrf.mxu0
  %v6889 = vadd.f32 0.0, %v6888
  %v6890 = vpop.f32.mrf.mxu0
  %6891 = vmatprep.mubr.bf16.mxu0 0
  %6892 = vmatmul.mubr.bf16.gmra.mxu0 %v6792
  %v6893 = vpop.f32.mrf.mxu0
  %v6894 = vadd.f32 0.0, %v6893
  %v6895 = vpop.f32.mrf.mxu0
  %v6896 = vpop.f32.mrf.mxu0
  %v6897 = vadd.f32 0.0, %v6896
  %v6898 = vpop.f32.mrf.mxu0
  %6899 = vmatprep.mubr.bf16.mxu0 0
  %6900 = vmatmul.mubr.bf16.gmra.mxu0 %v6793
  %v6901 = vpop.f32.mrf.mxu0
  %v6902 = vadd.f32 0.0, %v6901
  %v6903 = vpop.f32.mrf.mxu0
  %v6904 = vpop.f32.mrf.mxu0
  %v6905 = vadd.f32 0.0, %v6904
  %v6906 = vpop.f32.mrf.mxu0
  %6907 = vmatprep.mubr.bf16.mxu0 0
  %6908 = vmatmul.mubr.bf16.gmra.mxu0 %v6794
  %v6909 = vpop.f32.mrf.mxu0
  %v6910 = vadd.f32 0.0, %v6909
  %v6911 = vpop.f32.mrf.mxu0
  %v6912 = vpop.f32.mrf.mxu0
  %v6913 = vadd.f32 0.0, %v6912
  %v6914 = vpop.f32.mrf.mxu0
  %6915 = vmatprep.mubr.bf16.mxu0 0
  %6916 = vmatmul.mubr.bf16.gmra.mxu0 %v6795
  %v6917 = vpop.f32.mrf.mxu0
  %v6918 = vadd.f32 0.0, %v6917
  %v6919 = vpop.f32.mrf.mxu0
  %v6920 = vpop.f32.mrf.mxu0
  %v6921 = vadd.f32 0.0, %v6920
  %v6922 = vpop.f32.mrf.mxu0
  %6923 = vmatprep.mubr.bf16.mxu0 0
  %6924 = vmatmul.mubr.bf16.gmra.mxu0 %v6796
  %v6925 = vpop.f32.mrf.mxu0
  %v6926 = vadd.f32 0.0, %v6925
  %v6927 = vpop.f32.mrf.mxu0
  %v6928 = vpop.f32.mrf.mxu0
  %v6929 = vadd.f32 0.0, %v6928
  %v6930 = vpop.f32.mrf.mxu0
  %6931 = vmatprep.mubr.bf16.mxu0 0
  %6932 = vmatmul.mubr.bf16.gmra.mxu0 %v6797
  %v6933 = vpop.f32.mrf.mxu0
  %v6934 = vadd.f32 0.0, %v6933
  %v6935 = vpop.f32.mrf.mxu0
  %v6936 = vpop.f32.mrf.mxu0
  %v6937 = vadd.f32 0.0, %v6936
  %v6938 = vpop.f32.mrf.mxu0
  %6939 = vmatprep.mubr.bf16.mxu0 0
  %6940 = vmatmul.mubr.bf16.gmra.mxu0 %v6798
  %v6941 = vpop.f32.mrf.mxu0
  %v6942 = vadd.f32 0.0, %v6941
  %v6943 = vpop.f32.mrf.mxu0
  %v6944 = vpop.f32.mrf.mxu0
  %v6945 = vadd.f32 0.0, %v6944
  %v6946 = vpop.f32.mrf.mxu0
  %6947 = vmatprep.mubr.bf16.mxu0 0
  %6948 = vmatmul.mubr.bf16.gmra.mxu0 %v6799
  %v6949 = vpop.f32.mrf.mxu0
  %v6950 = vadd.f32 0.0, %v6949
  %v6951 = vpop.f32.mrf.mxu0
  %v6952 = vpop.f32.mrf.mxu0
  %v6953 = vadd.f32 0.0, %v6952
  %v6954 = vpop.f32.mrf.mxu0
  %6955 = vmatprep.mubr.bf16.mxu0 0
  %6956 = vmatmul.mubr.bf16.gmra.mxu0 %v6800
  %v6957 = vpop.f32.mrf.mxu0
  %v6958 = vadd.f32 0.0, %v6957
  %v6959 = vpop.f32.mrf.mxu0
  %v6960 = vpop.f32.mrf.mxu0
  %v6961 = vadd.f32 0.0, %v6960
  %v6962 = vpop.f32.mrf.mxu0
  %6963 = vmatprep.mubr.bf16.mxu0 0
  %6964 = vmatmul.mubr.bf16.gmra.mxu0 %v6801
  %v6965 = vpop.f32.mrf.mxu0
  %v6966 = vadd.f32 0.0, %v6965
  %v6967 = vpop.f32.mrf.mxu0
  %v6968 = vpop.f32.mrf.mxu0
  %v6969 = vadd.f32 0.0, %v6968
  %v6970 = vpop.f32.mrf.mxu0
  %6971 = vmatprep.mubr.bf16.mxu0 0
  %6972 = vmatmul.mubr.bf16.gmra.mxu0 %v6802
  %v6973 = vpop.f32.mrf.mxu0
  %v6974 = vadd.f32 0.0, %v6973
  %v6975 = vpop.f32.mrf.mxu0
  %v6976 = vpop.f32.mrf.mxu0
  %v6977 = vadd.f32 0.0, %v6976
  %v6978 = vpop.f32.mrf.mxu0
  %6979 = vdwg.mxu0
  %v6980 = vadd.f32 %v6546, %v6854
  %v6981 = vadd.f32 %v6547, %v6857
  %v6982 = vadd.f32 %v6548, %v6862
  %v6983 = vadd.f32 %v6549, %v6865
  %v6984 = vadd.f32 %v6550, %v6870
  %v6985 = vadd.f32 %v6551, %v6873
  %v6986 = vadd.f32 %v6552, %v6878
  %v6987 = vadd.f32 %v6553, %v6881
  %v6988 = vadd.f32 %v6554, %v6886
  %v6989 = vadd.f32 %v6555, %v6889
  %v6990 = vadd.f32 %v6556, %v6894
  %v6991 = vadd.f32 %v6557, %v6897
  %v6992 = vadd.f32 %v6558, %v6902
  %v6993 = vadd.f32 %v6559, %v6905
  %v6994 = vadd.f32 %v6560, %v6910
  %v6995 = vadd.f32 %v6561, %v6913
  %v6996 = vadd.f32 %v6562, %v6918
  %v6997 = vadd.f32 %v6563, %v6921
  %v6998 = vadd.f32 %v6564, %v6926
  %v6999 = vadd.f32 %v6565, %v6929
  %v7000 = vadd.f32 %v6566, %v6934
  %v7001 = vadd.f32 %v6567, %v6937
  %v7002 = vadd.f32 %v6568, %v6942
  %v7003 = vadd.f32 %v6569, %v6945
  %v7004 = vadd.f32 %v6570, %v6950
  %v7005 = vadd.f32 %v6571, %v6953
  %v7006 = vadd.f32 %v6572, %v6958
  %v7007 = vadd.f32 %v6573, %v6961
  %v7008 = vadd.f32 %v6574, %v6966
  %v7009 = vadd.f32 %v6575, %v6969
  %v7010 = vadd.f32 %v6576, %v6974
  %v7011 = vadd.f32 %v6577, %v6977
  %7012 = vrot.lane.b32.xlu0 %v4015, 114
  %v7013 = vpop.permute.xlu0 %7012
  %7014 = vrot.lane.b32.xlu0 %v4016, 114
  %v7015 = vpop.permute.xlu0 %7014
  %v7018 = vsel %vm357, %v7015, 0
  %7020 = vmatprep.subr.bf16.mxu0 0
  %7021 = vmatpush1.bf16.msra.mxu0 0
  %7022 = vmatprep.subr.bf16.mxu0 0
  %7023 = vmatpush1.bf16.msra.mxu0 0
  %7024 = vmatprep.subr.bf16.mxu0 0
  %7025 = vmatpush1.bf16.msra.mxu0 0
  %7026 = vmatprep.subr.bf16.mxu0 0
  %7027 = vmatpush1.bf16.msra.mxu0 0
  %7028 = vmatprep.subr.bf16.mxu0 0
  %7029 = vmatpush1.bf16.msra.mxu0 0
  %7030 = vmatprep.subr.bf16.mxu0 0
  %7031 = vmatpush1.bf16.msra.mxu0 0
  %7032 = vmatprep.subr.bf16.mxu0 0
  %7033 = vmatpush1.bf16.msra.mxu0 %v7018
  %7034 = vmatprep.subr.bf16.mxu0 0
  %7035 = vmatpush1.bf16.msra.mxu0 %v7013
  %7036 = vmatprep.subr.bf16.mxu0 0
  %7037 = vmatpush2.bf16.msra.mxu0 0
  %7038 = vmatprep.subr.bf16.mxu0 0
  %7039 = vmatpush2.bf16.msra.mxu0 0
  %7040 = vmatprep.subr.bf16.mxu0 0
  %7041 = vmatpush2.bf16.msra.mxu0 0
  %7042 = vmatprep.subr.bf16.mxu0 0
  %7043 = vmatpush2.bf16.msra.mxu0 0
  %7044 = vmatprep.subr.bf16.mxu0 0
  %7045 = vmatpush2.bf16.msra.mxu0 0
  %7046 = vmatprep.subr.bf16.mxu0 0
  %7047 = vmatpush2.bf16.msra.mxu0 0
  %7048 = vmatprep.subr.bf16.mxu0 0
  %7049 = vmatpush2.bf16.msra.mxu0 0
  %7050 = vmatprep.subr.bf16.mxu0 0
  %7051 = vmatpush2.bf16.msra.mxu0 0
  %7052 = vmatprep.mubr.bf16.mxu0 0
  %7053 = vmatmul.mubr.bf16.gmra.mxu0 %v4020
  %v7054 = vpop.f32.mrf.mxu0
  %v7055 = vadd.f32 0.0, %v7054
  %v7056 = vpop.f32.mrf.mxu0
  %v7057 = vpop.f32.mrf.mxu0
  %v7058 = vadd.f32 0.0, %v7057
  %v7059 = vpop.f32.mrf.mxu0
  %7060 = vmatprep.mubr.bf16.mxu0 0
  %7061 = vmatmul.mubr.bf16.gmra.mxu0 %v4023
  %v7062 = vpop.f32.mrf.mxu0
  %v7063 = vadd.f32 0.0, %v7062
  %v7064 = vpop.f32.mrf.mxu0
  %v7065 = vpop.f32.mrf.mxu0
  %v7066 = vadd.f32 0.0, %v7065
  %v7067 = vpop.f32.mrf.mxu0
  %7068 = vmatprep.mubr.bf16.mxu0 0
  %7069 = vmatmul.mubr.bf16.gmra.mxu0 %v4026
  %v7070 = vpop.f32.mrf.mxu0
  %v7071 = vadd.f32 0.0, %v7070
  %v7072 = vpop.f32.mrf.mxu0
  %v7073 = vpop.f32.mrf.mxu0
  %v7074 = vadd.f32 0.0, %v7073
  %v7075 = vpop.f32.mrf.mxu0
  %7076 = vmatprep.mubr.bf16.mxu0 0
  %7077 = vmatmul.mubr.bf16.gmra.mxu0 %v4029
  %v7078 = vpop.f32.mrf.mxu0
  %v7079 = vadd.f32 0.0, %v7078
  %v7080 = vpop.f32.mrf.mxu0
  %v7081 = vpop.f32.mrf.mxu0
  %v7082 = vadd.f32 0.0, %v7081
  %v7083 = vpop.f32.mrf.mxu0
  %7084 = vmatprep.mubr.bf16.mxu0 0
  %7085 = vmatmul.mubr.bf16.gmra.mxu0 %v4032
  %v7086 = vpop.f32.mrf.mxu0
  %v7087 = vadd.f32 0.0, %v7086
  %v7088 = vpop.f32.mrf.mxu0
  %v7089 = vpop.f32.mrf.mxu0
  %v7090 = vadd.f32 0.0, %v7089
  %v7091 = vpop.f32.mrf.mxu0
  %7092 = vmatprep.mubr.bf16.mxu0 0
  %7093 = vmatmul.mubr.bf16.gmra.mxu0 %v4035
  %v7094 = vpop.f32.mrf.mxu0
  %v7095 = vadd.f32 0.0, %v7094
  %v7096 = vpop.f32.mrf.mxu0
  %v7097 = vpop.f32.mrf.mxu0
  %v7098 = vadd.f32 0.0, %v7097
  %v7099 = vpop.f32.mrf.mxu0
  %7100 = vmatprep.mubr.bf16.mxu0 0
  %7101 = vmatmul.mubr.bf16.gmra.mxu0 %v4038
  %v7102 = vpop.f32.mrf.mxu0
  %v7103 = vadd.f32 0.0, %v7102
  %v7104 = vpop.f32.mrf.mxu0
  %v7105 = vpop.f32.mrf.mxu0
  %v7106 = vadd.f32 0.0, %v7105
  %v7107 = vpop.f32.mrf.mxu0
  %7108 = vmatprep.mubr.bf16.mxu0 0
  %7109 = vmatmul.mubr.bf16.gmra.mxu0 %v4041
  %v7110 = vpop.f32.mrf.mxu0
  %v7111 = vadd.f32 0.0, %v7110
  %v7112 = vpop.f32.mrf.mxu0
  %v7113 = vpop.f32.mrf.mxu0
  %v7114 = vadd.f32 0.0, %v7113
  %v7115 = vpop.f32.mrf.mxu0
  %7116 = vdwg.mxu0
  %v7117 = vld [vmem:[%s10 + $0x1c] sm:$0xf]
  %v7118 = vld [vmem:[%s10 + $0x40] sm:$0xf]
  %v7119 = vld [vmem:[%s10 + $0x64] sm:$0xf]
  %v7120 = vld [vmem:[%s10 + $0x88] sm:$0xf]
  %v7121 = vld [vmem:[%s10 + $0xac] sm:$0xf]
  %v7122 = vld [vmem:[%s10 + $0xd0] sm:$0xf]
  %v7123 = vld [vmem:[%s10 + $0xf4] sm:$0xf]
  %v7124 = vld [vmem:[%s10 + $0x118] sm:$0xf]
  %v7125 = vld [vmem:[%s10 + $0x13c] sm:$0xf]
  %v7126 = vld [vmem:[%s10 + $0x160] sm:$0xf]
  %v7127 = vld [vmem:[%s10 + $0x184] sm:$0xf]
  %v7128 = vld [vmem:[%s10 + $0x1a8] sm:$0xf]
  %v7129 = vld [vmem:[%s10 + $0x1cc] sm:$0xf]
  %v7130 = vld [vmem:[%s10 + $0x1f0] sm:$0xf]
  %v7131 = vld [vmem:[%s10 + $0x214] sm:$0xf]
  %v7132 = vld [vmem:[%s10 + $0x238] sm:$0xf]
  %v7133 = vld [vmem:[%s10 + $0x25c] sm:$0xf]
  %v7134 = vld [vmem:[%s10 + $0x280] sm:$0xf]
  %v7135 = vld [vmem:[%s10 + $0x2a4] sm:$0xf]
  %v7136 = vld [vmem:[%s10 + $0x2c8] sm:$0xf]
  %v7137 = vld [vmem:[%s10 + $0x2ec] sm:$0xf]
  %v7138 = vld [vmem:[%s10 + $0x310] sm:$0xf]
  %v7139 = vld [vmem:[%s10 + $0x334] sm:$0xf]
  %v7140 = vld [vmem:[%s10 + $0x358] sm:$0xf]
  %v7141 = vld [vmem:[%s10 + $0x37c] sm:$0xf]
  %v7142 = vld [vmem:[%s10 + $0x3a0] sm:$0xf]
  %v7143 = vld [vmem:[%s10 + $0x3c4] sm:$0xf]
  %v7144 = vld [vmem:[%s10 + $0x3e8] sm:$0xf]
  %v7145 = vld [vmem:[%s10 + $0x40c] sm:$0xf]
  %v7146 = vld [vmem:[%s10 + $0x430] sm:$0xf]
  %v7147 = vld [vmem:[%s10 + $0x454] sm:$0xf]
  %v7148 = vld [vmem:[%s10 + $0x478] sm:$0xf]
  %v7149 = vpack.c.bf16 %v7058, %v7055
  %v7150 = vpack.c.bf16 %v7066, %v7063
  %v7151 = vpack.c.bf16 %v7074, %v7071
  %v7152 = vpack.c.bf16 %v7082, %v7079
  %v7153 = vpack.c.bf16 %v7090, %v7087
  %v7154 = vpack.c.bf16 %v7098, %v7095
  %v7155 = vpack.c.bf16 %v7106, %v7103
  %v7156 = vpack.c.bf16 %v7114, %v7111
  %v7189 = vunpack.c.l.b16 %v7117
  %v7190 = vunpack.c.l.b16 %v7118
  %v7191 = vunpack.c.l.b16 %v7119
  %v7192 = vunpack.c.l.b16 %v7120
  %v7193 = vunpack.c.l.b16 %v7121
  %v7194 = vunpack.c.l.b16 %v7122
  %v7195 = vunpack.c.l.b16 %v7123
  %v7196 = vunpack.c.l.b16 %v7124
  %v7197 = vunpack.c.l.b16 %v7125
  %v7198 = vunpack.c.l.b16 %v7126
  %v7199 = vunpack.c.l.b16 %v7127
  %v7200 = vunpack.c.l.b16 %v7128
  %v7201 = vunpack.c.l.b16 %v7129
  %v7202 = vunpack.c.l.b16 %v7130
  %v7203 = vunpack.c.l.b16 %v7131
  %v7204 = vunpack.c.l.b16 %v7132
  %v7205 = vunpack.c.l.b16 %v7133
  %v7206 = vunpack.c.l.b16 %v7134
  %v7207 = vunpack.c.l.b16 %v7135
  %v7208 = vunpack.c.l.b16 %v7136
  %v7209 = vunpack.c.l.b16 %v7137
  %v7210 = vunpack.c.l.b16 %v7138
  %v7211 = vunpack.c.l.b16 %v7139
  %v7212 = vunpack.c.l.b16 %v7140
  %v7213 = vunpack.c.l.b16 %v7141
  %v7214 = vunpack.c.l.b16 %v7142
  %v7215 = vunpack.c.l.b16 %v7143
  %v7216 = vunpack.c.l.b16 %v7144
  %v7217 = vunpack.c.l.b16 %v7145
  %v7218 = vunpack.c.l.b16 %v7146
  %v7219 = vunpack.c.l.b16 %v7147
  %v7220 = vunpack.c.l.b16 %v7148
  %v7221 = vpack.c.b16 %v7190, %v7189
  %v7222 = vpack.c.b16 %v7192, %v7191
  %v7223 = vpack.c.b16 %v7194, %v7193
  %v7224 = vpack.c.b16 %v7196, %v7195
  %v7225 = vpack.c.b16 %v7198, %v7197
  %v7226 = vpack.c.b16 %v7200, %v7199
  %v7227 = vpack.c.b16 %v7202, %v7201
  %v7228 = vpack.c.b16 %v7204, %v7203
  %v7229 = vpack.c.b16 %v7206, %v7205
  %v7230 = vpack.c.b16 %v7208, %v7207
  %v7231 = vpack.c.b16 %v7210, %v7209
  %v7232 = vpack.c.b16 %v7212, %v7211
  %v7233 = vpack.c.b16 %v7214, %v7213
  %v7234 = vpack.c.b16 %v7216, %v7215
  %v7235 = vpack.c.b16 %v7218, %v7217
  %v7236 = vpack.c.b16 %v7220, %v7219
  %7253 = vmatprep.subr.bf16.mxu0 0
  %7254 = vmatpush1.bf16.msra.mxu0 %v7156
  %7255 = vmatprep.subr.bf16.mxu0 0
  %7256 = vmatpush1.bf16.msra.mxu0 %v7155
  %7257 = vmatprep.subr.bf16.mxu0 0
  %7258 = vmatpush1.bf16.msra.mxu0 %v7154
  %7259 = vmatprep.subr.bf16.mxu0 0
  %7260 = vmatpush1.bf16.msra.mxu0 %v7153
  %7261 = vmatprep.subr.bf16.mxu0 0
  %7262 = vmatpush1.bf16.msra.mxu0 %v7152
  %7263 = vmatprep.subr.bf16.mxu0 0
  %7264 = vmatpush1.bf16.msra.mxu0 %v7151
  %7265 = vmatprep.subr.bf16.mxu0 0
  %7266 = vmatpush1.bf16.msra.mxu0 %v7150
  %7267 = vmatprep.subr.bf16.mxu0 0
  %7268 = vmatpush1.bf16.msra.mxu0 %v7149
  %7269 = vmatprep.subr.bf16.mxu0 0
  %7270 = vmatpush2.bf16.msra.mxu0 0
  %7271 = vmatprep.subr.bf16.mxu0 0
  %7272 = vmatpush2.bf16.msra.mxu0 0
  %7273 = vmatprep.subr.bf16.mxu0 0
  %7274 = vmatpush2.bf16.msra.mxu0 0
  %7275 = vmatprep.subr.bf16.mxu0 0
  %7276 = vmatpush2.bf16.msra.mxu0 0
  %7277 = vmatprep.subr.bf16.mxu0 0
  %7278 = vmatpush2.bf16.msra.mxu0 0
  %7279 = vmatprep.subr.bf16.mxu0 0
  %7280 = vmatpush2.bf16.msra.mxu0 0
  %7281 = vmatprep.subr.bf16.mxu0 0
  %7282 = vmatpush2.bf16.msra.mxu0 0
  %7283 = vmatprep.subr.bf16.mxu0 0
  %7284 = vmatpush2.bf16.msra.mxu0 0
  %7285 = vmatprep.mubr.bf16.mxu0 0
  %7286 = vmatmul.mubr.bf16.gmra.mxu0 %v7221
  %v7287 = vpop.f32.mrf.mxu0
  %v7288 = vadd.f32 0.0, %v7287
  %v7289 = vpop.f32.mrf.mxu0
  %v7290 = vpop.f32.mrf.mxu0
  %v7291 = vadd.f32 0.0, %v7290
  %v7292 = vpop.f32.mrf.mxu0
  %7293 = vmatprep.mubr.bf16.mxu0 0
  %7294 = vmatmul.mubr.bf16.gmra.mxu0 %v7222
  %v7295 = vpop.f32.mrf.mxu0
  %v7296 = vadd.f32 0.0, %v7295
  %v7297 = vpop.f32.mrf.mxu0
  %v7298 = vpop.f32.mrf.mxu0
  %v7299 = vadd.f32 0.0, %v7298
  %v7300 = vpop.f32.mrf.mxu0
  %7301 = vmatprep.mubr.bf16.mxu0 0
  %7302 = vmatmul.mubr.bf16.gmra.mxu0 %v7223
  %v7303 = vpop.f32.mrf.mxu0
  %v7304 = vadd.f32 0.0, %v7303
  %v7305 = vpop.f32.mrf.mxu0
  %v7306 = vpop.f32.mrf.mxu0
  %v7307 = vadd.f32 0.0, %v7306
  %v7308 = vpop.f32.mrf.mxu0
  %7309 = vmatprep.mubr.bf16.mxu0 0
  %7310 = vmatmul.mubr.bf16.gmra.mxu0 %v7224
  %v7311 = vpop.f32.mrf.mxu0
  %v7312 = vadd.f32 0.0, %v7311
  %v7313 = vpop.f32.mrf.mxu0
  %v7314 = vpop.f32.mrf.mxu0
  %v7315 = vadd.f32 0.0, %v7314
  %v7316 = vpop.f32.mrf.mxu0
  %7317 = vmatprep.mubr.bf16.mxu0 0
  %7318 = vmatmul.mubr.bf16.gmra.mxu0 %v7225
  %v7319 = vpop.f32.mrf.mxu0
  %v7320 = vadd.f32 0.0, %v7319
  %v7321 = vpop.f32.mrf.mxu0
  %v7322 = vpop.f32.mrf.mxu0
  %v7323 = vadd.f32 0.0, %v7322
  %v7324 = vpop.f32.mrf.mxu0
  %7325 = vmatprep.mubr.bf16.mxu0 0
  %7326 = vmatmul.mubr.bf16.gmra.mxu0 %v7226
  %v7327 = vpop.f32.mrf.mxu0
  %v7328 = vadd.f32 0.0, %v7327
  %v7329 = vpop.f32.mrf.mxu0
  %v7330 = vpop.f32.mrf.mxu0
  %v7331 = vadd.f32 0.0, %v7330
  %v7332 = vpop.f32.mrf.mxu0
  %7333 = vmatprep.mubr.bf16.mxu0 0
  %7334 = vmatmul.mubr.bf16.gmra.mxu0 %v7227
  %v7335 = vpop.f32.mrf.mxu0
  %v7336 = vadd.f32 0.0, %v7335
  %v7337 = vpop.f32.mrf.mxu0
  %v7338 = vpop.f32.mrf.mxu0
  %v7339 = vadd.f32 0.0, %v7338
  %v7340 = vpop.f32.mrf.mxu0
  %7341 = vmatprep.mubr.bf16.mxu0 0
  %7342 = vmatmul.mubr.bf16.gmra.mxu0 %v7228
  %v7343 = vpop.f32.mrf.mxu0
  %v7344 = vadd.f32 0.0, %v7343
  %v7345 = vpop.f32.mrf.mxu0
  %v7346 = vpop.f32.mrf.mxu0
  %v7347 = vadd.f32 0.0, %v7346
  %v7348 = vpop.f32.mrf.mxu0
  %7349 = vmatprep.mubr.bf16.mxu0 0
  %7350 = vmatmul.mubr.bf16.gmra.mxu0 %v7229
  %v7351 = vpop.f32.mrf.mxu0
  %v7352 = vadd.f32 0.0, %v7351
  %v7353 = vpop.f32.mrf.mxu0
  %v7354 = vpop.f32.mrf.mxu0
  %v7355 = vadd.f32 0.0, %v7354
  %v7356 = vpop.f32.mrf.mxu0
  %7357 = vmatprep.mubr.bf16.mxu0 0
  %7358 = vmatmul.mubr.bf16.gmra.mxu0 %v7230
  %v7359 = vpop.f32.mrf.mxu0
  %v7360 = vadd.f32 0.0, %v7359
  %v7361 = vpop.f32.mrf.mxu0
  %v7362 = vpop.f32.mrf.mxu0
  %v7363 = vadd.f32 0.0, %v7362
  %v7364 = vpop.f32.mrf.mxu0
  %7365 = vmatprep.mubr.bf16.mxu0 0
  %7366 = vmatmul.mubr.bf16.gmra.mxu0 %v7231
  %v7367 = vpop.f32.mrf.mxu0
  %v7368 = vadd.f32 0.0, %v7367
  %v7369 = vpop.f32.mrf.mxu0
  %v7370 = vpop.f32.mrf.mxu0
  %v7371 = vadd.f32 0.0, %v7370
  %v7372 = vpop.f32.mrf.mxu0
  %7373 = vmatprep.mubr.bf16.mxu0 0
  %7374 = vmatmul.mubr.bf16.gmra.mxu0 %v7232
  %v7375 = vpop.f32.mrf.mxu0
  %v7376 = vadd.f32 0.0, %v7375
  %v7377 = vpop.f32.mrf.mxu0
  %v7378 = vpop.f32.mrf.mxu0
  %v7379 = vadd.f32 0.0, %v7378
  %v7380 = vpop.f32.mrf.mxu0
  %7381 = vmatprep.mubr.bf16.mxu0 0
  %7382 = vmatmul.mubr.bf16.gmra.mxu0 %v7233
  %v7383 = vpop.f32.mrf.mxu0
  %v7384 = vadd.f32 0.0, %v7383
  %v7385 = vpop.f32.mrf.mxu0
  %v7386 = vpop.f32.mrf.mxu0
  %v7387 = vadd.f32 0.0, %v7386
  %v7388 = vpop.f32.mrf.mxu0
  %7389 = vmatprep.mubr.bf16.mxu0 0
  %7390 = vmatmul.mubr.bf16.gmra.mxu0 %v7234
  %v7391 = vpop.f32.mrf.mxu0
  %v7392 = vadd.f32 0.0, %v7391
  %v7393 = vpop.f32.mrf.mxu0
  %v7394 = vpop.f32.mrf.mxu0
  %v7395 = vadd.f32 0.0, %v7394
  %v7396 = vpop.f32.mrf.mxu0
  %7397 = vmatprep.mubr.bf16.mxu0 0
  %7398 = vmatmul.mubr.bf16.gmra.mxu0 %v7235
  %v7399 = vpop.f32.mrf.mxu0
  %v7400 = vadd.f32 0.0, %v7399
  %v7401 = vpop.f32.mrf.mxu0
  %v7402 = vpop.f32.mrf.mxu0
  %v7403 = vadd.f32 0.0, %v7402
  %v7404 = vpop.f32.mrf.mxu0
  %7405 = vmatprep.mubr.bf16.mxu0 0
  %7406 = vmatmul.mubr.bf16.gmra.mxu0 %v7236
  %v7407 = vpop.f32.mrf.mxu0
  %v7408 = vadd.f32 0.0, %v7407
  %v7409 = vpop.f32.mrf.mxu0
  %v7410 = vpop.f32.mrf.mxu0
  %v7411 = vadd.f32 0.0, %v7410
  %v7412 = vpop.f32.mrf.mxu0
  %7413 = vdwg.mxu0
  %v7414 = vadd.f32 %v6980, %v7288
  %v7415 = vadd.f32 %v6981, %v7291
  %v7416 = vadd.f32 %v6982, %v7296
  %v7417 = vadd.f32 %v6983, %v7299
  %v7418 = vadd.f32 %v6984, %v7304
  %v7419 = vadd.f32 %v6985, %v7307
  %v7420 = vadd.f32 %v6986, %v7312
  %v7421 = vadd.f32 %v6987, %v7315
  %v7422 = vadd.f32 %v6988, %v7320
  %v7423 = vadd.f32 %v6989, %v7323
  %v7424 = vadd.f32 %v6990, %v7328
  %v7425 = vadd.f32 %v6991, %v7331
  %v7426 = vadd.f32 %v6992, %v7336
  %v7427 = vadd.f32 %v6993, %v7339
  %v7428 = vadd.f32 %v6994, %v7344
  %v7429 = vadd.f32 %v6995, %v7347
  %v7430 = vadd.f32 %v6996, %v7352
  %v7431 = vadd.f32 %v6997, %v7355
  %v7432 = vadd.f32 %v6998, %v7360
  %v7433 = vadd.f32 %v6999, %v7363
  %v7434 = vadd.f32 %v7000, %v7368
  %v7435 = vadd.f32 %v7001, %v7371
  %v7436 = vadd.f32 %v7002, %v7376
  %v7437 = vadd.f32 %v7003, %v7379
  %v7438 = vadd.f32 %v7004, %v7384
  %v7439 = vadd.f32 %v7005, %v7387
  %v7440 = vadd.f32 %v7006, %v7392
  %v7441 = vadd.f32 %v7007, %v7395
  %v7442 = vadd.f32 %v7008, %v7400
  %v7443 = vadd.f32 %v7009, %v7403
  %v7444 = vadd.f32 %v7010, %v7408
  %v7445 = vadd.f32 %v7011, %v7411
  %7446 = vrot.lane.b32.xlu0 %v4015, 112
  %v7447 = vpop.permute.xlu0 %7446
  %7448 = vrot.lane.b32.xlu0 %v4016, 112
  %v7449 = vpop.permute.xlu0 %7448
  %v7452 = vsel %vm357, %v7449, 0
  %7454 = vmatprep.subr.bf16.mxu0 0
  %7455 = vmatpush1.bf16.msra.mxu0 0
  %7456 = vmatprep.subr.bf16.mxu0 0
  %7457 = vmatpush1.bf16.msra.mxu0 0
  %7458 = vmatprep.subr.bf16.mxu0 0
  %7459 = vmatpush1.bf16.msra.mxu0 0
  %7460 = vmatprep.subr.bf16.mxu0 0
  %7461 = vmatpush1.bf16.msra.mxu0 0
  %7462 = vmatprep.subr.bf16.mxu0 0
  %7463 = vmatpush1.bf16.msra.mxu0 0
  %7464 = vmatprep.subr.bf16.mxu0 0
  %7465 = vmatpush1.bf16.msra.mxu0 0
  %7466 = vmatprep.subr.bf16.mxu0 0
  %7467 = vmatpush1.bf16.msra.mxu0 %v7452
  %7468 = vmatprep.subr.bf16.mxu0 0
  %7469 = vmatpush1.bf16.msra.mxu0 %v7447
  %7470 = vmatprep.subr.bf16.mxu0 0
  %7471 = vmatpush2.bf16.msra.mxu0 0
  %7472 = vmatprep.subr.bf16.mxu0 0
  %7473 = vmatpush2.bf16.msra.mxu0 0
  %7474 = vmatprep.subr.bf16.mxu0 0
  %7475 = vmatpush2.bf16.msra.mxu0 0
  %7476 = vmatprep.subr.bf16.mxu0 0
  %7477 = vmatpush2.bf16.msra.mxu0 0
  %7478 = vmatprep.subr.bf16.mxu0 0
  %7479 = vmatpush2.bf16.msra.mxu0 0
  %7480 = vmatprep.subr.bf16.mxu0 0
  %7481 = vmatpush2.bf16.msra.mxu0 0
  %7482 = vmatprep.subr.bf16.mxu0 0
  %7483 = vmatpush2.bf16.msra.mxu0 0
  %7484 = vmatprep.subr.bf16.mxu0 0
  %7485 = vmatpush2.bf16.msra.mxu0 0
  %7486 = vmatprep.mubr.bf16.mxu0 0
  %7487 = vmatmul.mubr.bf16.gmra.mxu0 %v4020
  %v7488 = vpop.f32.mrf.mxu0
  %v7489 = vadd.f32 0.0, %v7488
  %v7490 = vpop.f32.mrf.mxu0
  %v7491 = vpop.f32.mrf.mxu0
  %v7492 = vadd.f32 0.0, %v7491
  %v7493 = vpop.f32.mrf.mxu0
  %7494 = vmatprep.mubr.bf16.mxu0 0
  %7495 = vmatmul.mubr.bf16.gmra.mxu0 %v4023
  %v7496 = vpop.f32.mrf.mxu0
  %v7497 = vadd.f32 0.0, %v7496
  %v7498 = vpop.f32.mrf.mxu0
  %v7499 = vpop.f32.mrf.mxu0
  %v7500 = vadd.f32 0.0, %v7499
  %v7501 = vpop.f32.mrf.mxu0
  %7502 = vmatprep.mubr.bf16.mxu0 0
  %7503 = vmatmul.mubr.bf16.gmra.mxu0 %v4026
  %v7504 = vpop.f32.mrf.mxu0
  %v7505 = vadd.f32 0.0, %v7504
  %v7506 = vpop.f32.mrf.mxu0
  %v7507 = vpop.f32.mrf.mxu0
  %v7508 = vadd.f32 0.0, %v7507
  %v7509 = vpop.f32.mrf.mxu0
  %7510 = vmatprep.mubr.bf16.mxu0 0
  %7511 = vmatmul.mubr.bf16.gmra.mxu0 %v4029
  %v7512 = vpop.f32.mrf.mxu0
  %v7513 = vadd.f32 0.0, %v7512
  %v7514 = vpop.f32.mrf.mxu0
  %v7515 = vpop.f32.mrf.mxu0
  %v7516 = vadd.f32 0.0, %v7515
  %v7517 = vpop.f32.mrf.mxu0
  %7518 = vmatprep.mubr.bf16.mxu0 0
  %7519 = vmatmul.mubr.bf16.gmra.mxu0 %v4032
  %v7520 = vpop.f32.mrf.mxu0
  %v7521 = vadd.f32 0.0, %v7520
  %v7522 = vpop.f32.mrf.mxu0
  %v7523 = vpop.f32.mrf.mxu0
  %v7524 = vadd.f32 0.0, %v7523
  %v7525 = vpop.f32.mrf.mxu0
  %7526 = vmatprep.mubr.bf16.mxu0 0
  %7527 = vmatmul.mubr.bf16.gmra.mxu0 %v4035
  %v7528 = vpop.f32.mrf.mxu0
  %v7529 = vadd.f32 0.0, %v7528
  %v7530 = vpop.f32.mrf.mxu0
  %v7531 = vpop.f32.mrf.mxu0
  %v7532 = vadd.f32 0.0, %v7531
  %v7533 = vpop.f32.mrf.mxu0
  %7534 = vmatprep.mubr.bf16.mxu0 0
  %7535 = vmatmul.mubr.bf16.gmra.mxu0 %v4038
  %v7536 = vpop.f32.mrf.mxu0
  %v7537 = vadd.f32 0.0, %v7536
  %v7538 = vpop.f32.mrf.mxu0
  %v7539 = vpop.f32.mrf.mxu0
  %v7540 = vadd.f32 0.0, %v7539
  %v7541 = vpop.f32.mrf.mxu0
  %7542 = vmatprep.mubr.bf16.mxu0 0
  %7543 = vmatmul.mubr.bf16.gmra.mxu0 %v4041
  %v7544 = vpop.f32.mrf.mxu0
  %v7545 = vadd.f32 0.0, %v7544
  %v7546 = vpop.f32.mrf.mxu0
  %v7547 = vpop.f32.mrf.mxu0
  %v7548 = vadd.f32 0.0, %v7547
  %v7549 = vpop.f32.mrf.mxu0
  %7550 = vdwg.mxu0
  %v7551 = vld [vmem:[%s10 + $0x20] sm:$0xf]
  %v7552 = vld [vmem:[%s10 + $0x44] sm:$0xf]
  %v7553 = vld [vmem:[%s10 + $0x68] sm:$0xf]
  %v7554 = vld [vmem:[%s10 + $0x8c] sm:$0xf]
  %v7555 = vld [vmem:[%s10 + $0xb0] sm:$0xf]
  %v7556 = vld [vmem:[%s10 + $0xd4] sm:$0xf]
  %v7557 = vld [vmem:[%s10 + $0xf8] sm:$0xf]
  %v7558 = vld [vmem:[%s10 + $0x11c] sm:$0xf]
  %v7559 = vld [vmem:[%s10 + $0x140] sm:$0xf]
  %v7560 = vld [vmem:[%s10 + $0x164] sm:$0xf]
  %v7561 = vld [vmem:[%s10 + $0x188] sm:$0xf]
  %v7562 = vld [vmem:[%s10 + $0x1ac] sm:$0xf]
  %v7563 = vld [vmem:[%s10 + $0x1d0] sm:$0xf]
  %v7564 = vld [vmem:[%s10 + $0x1f4] sm:$0xf]
  %v7565 = vld [vmem:[%s10 + $0x218] sm:$0xf]
  %v7566 = vld [vmem:[%s10 + $0x23c] sm:$0xf]
  %v7567 = vld [vmem:[%s10 + $0x260] sm:$0xf]
  %v7568 = vld [vmem:[%s10 + $0x284] sm:$0xf]
  %v7569 = vld [vmem:[%s10 + $0x2a8] sm:$0xf]
  %v7570 = vld [vmem:[%s10 + $0x2cc] sm:$0xf]
  %v7571 = vld [vmem:[%s10 + $0x2f0] sm:$0xf]
  %v7572 = vld [vmem:[%s10 + $0x314] sm:$0xf]
  %v7573 = vld [vmem:[%s10 + $0x338] sm:$0xf]
  %v7574 = vld [vmem:[%s10 + $0x35c] sm:$0xf]
  %v7575 = vld [vmem:[%s10 + $0x380] sm:$0xf]
  %v7576 = vld [vmem:[%s10 + $0x3a4] sm:$0xf]
  %v7577 = vld [vmem:[%s10 + $0x3c8] sm:$0xf]
  %v7578 = vld [vmem:[%s10 + $0x3ec] sm:$0xf]
  %v7579 = vld [vmem:[%s10 + $0x410] sm:$0xf]
  %v7580 = vld [vmem:[%s10 + $0x434] sm:$0xf]
  %v7581 = vld [vmem:[%s10 + $0x458] sm:$0xf]
  %v7582 = vld [vmem:[%s10 + $0x47c] sm:$0xf]
  %v7583 = vpack.c.bf16 %v7492, %v7489
  %v7584 = vpack.c.bf16 %v7500, %v7497
  %v7585 = vpack.c.bf16 %v7508, %v7505
  %v7586 = vpack.c.bf16 %v7516, %v7513
  %v7587 = vpack.c.bf16 %v7524, %v7521
  %v7588 = vpack.c.bf16 %v7532, %v7529
  %v7589 = vpack.c.bf16 %v7540, %v7537
  %v7590 = vpack.c.bf16 %v7548, %v7545
  %v7623 = vunpack.c.l.b16 %v7551
  %v7624 = vunpack.c.l.b16 %v7552
  %v7625 = vunpack.c.l.b16 %v7553
  %v7626 = vunpack.c.l.b16 %v7554
  %v7627 = vunpack.c.l.b16 %v7555
  %v7628 = vunpack.c.l.b16 %v7556
  %v7629 = vunpack.c.l.b16 %v7557
  %v7630 = vunpack.c.l.b16 %v7558
  %v7631 = vunpack.c.l.b16 %v7559
  %v7632 = vunpack.c.l.b16 %v7560
  %v7633 = vunpack.c.l.b16 %v7561
  %v7634 = vunpack.c.l.b16 %v7562
  %v7635 = vunpack.c.l.b16 %v7563
  %v7636 = vunpack.c.l.b16 %v7564
  %v7637 = vunpack.c.l.b16 %v7565
  %v7638 = vunpack.c.l.b16 %v7566
  %v7639 = vunpack.c.l.b16 %v7567
  %v7640 = vunpack.c.l.b16 %v7568
  %v7641 = vunpack.c.l.b16 %v7569
  %v7642 = vunpack.c.l.b16 %v7570
  %v7643 = vunpack.c.l.b16 %v7571
  %v7644 = vunpack.c.l.b16 %v7572
  %v7645 = vunpack.c.l.b16 %v7573
  %v7646 = vunpack.c.l.b16 %v7574
  %v7647 = vunpack.c.l.b16 %v7575
  %v7648 = vunpack.c.l.b16 %v7576
  %v7649 = vunpack.c.l.b16 %v7577
  %v7650 = vunpack.c.l.b16 %v7578
  %v7651 = vunpack.c.l.b16 %v7579
  %v7652 = vunpack.c.l.b16 %v7580
  %v7653 = vunpack.c.l.b16 %v7581
  %v7654 = vunpack.c.l.b16 %v7582
  %v7655 = vpack.c.b16 %v7624, %v7623
  %v7656 = vpack.c.b16 %v7626, %v7625
  %v7657 = vpack.c.b16 %v7628, %v7627
  %v7658 = vpack.c.b16 %v7630, %v7629
  %v7659 = vpack.c.b16 %v7632, %v7631
  %v7660 = vpack.c.b16 %v7634, %v7633
  %v7661 = vpack.c.b16 %v7636, %v7635
  %v7662 = vpack.c.b16 %v7638, %v7637
  %v7663 = vpack.c.b16 %v7640, %v7639
  %v7664 = vpack.c.b16 %v7642, %v7641
  %v7665 = vpack.c.b16 %v7644, %v7643
  %v7666 = vpack.c.b16 %v7646, %v7645
  %v7667 = vpack.c.b16 %v7648, %v7647
  %v7668 = vpack.c.b16 %v7650, %v7649
  %v7669 = vpack.c.b16 %v7652, %v7651
  %v7670 = vpack.c.b16 %v7654, %v7653
  %7687 = vmatprep.subr.bf16.mxu0 0
  %7688 = vmatpush1.bf16.msra.mxu0 %v7590
  %7689 = vmatprep.subr.bf16.mxu0 0
  %7690 = vmatpush1.bf16.msra.mxu0 %v7589
  %7691 = vmatprep.subr.bf16.mxu0 0
  %7692 = vmatpush1.bf16.msra.mxu0 %v7588
  %7693 = vmatprep.subr.bf16.mxu0 0
  %7694 = vmatpush1.bf16.msra.mxu0 %v7587
  %7695 = vmatprep.subr.bf16.mxu0 0
  %7696 = vmatpush1.bf16.msra.mxu0 %v7586
  %7697 = vmatprep.subr.bf16.mxu0 0
  %7698 = vmatpush1.bf16.msra.mxu0 %v7585
  %7699 = vmatprep.subr.bf16.mxu0 0
  %7700 = vmatpush1.bf16.msra.mxu0 %v7584
  %7701 = vmatprep.subr.bf16.mxu0 0
  %7702 = vmatpush1.bf16.msra.mxu0 %v7583
  %7703 = vmatprep.subr.bf16.mxu0 0
  %7704 = vmatpush2.bf16.msra.mxu0 0
  %7705 = vmatprep.subr.bf16.mxu0 0
  %7706 = vmatpush2.bf16.msra.mxu0 0
  %7707 = vmatprep.subr.bf16.mxu0 0
  %7708 = vmatpush2.bf16.msra.mxu0 0
  %7709 = vmatprep.subr.bf16.mxu0 0
  %7710 = vmatpush2.bf16.msra.mxu0 0
  %7711 = vmatprep.subr.bf16.mxu0 0
  %7712 = vmatpush2.bf16.msra.mxu0 0
  %7713 = vmatprep.subr.bf16.mxu0 0
  %7714 = vmatpush2.bf16.msra.mxu0 0
  %7715 = vmatprep.subr.bf16.mxu0 0
  %7716 = vmatpush2.bf16.msra.mxu0 0
  %7717 = vmatprep.subr.bf16.mxu0 0
  %7718 = vmatpush2.bf16.msra.mxu0 0
  %7719 = vmatprep.mubr.bf16.mxu0 0
  %7720 = vmatmul.mubr.bf16.gmra.mxu0 %v7655
  %v7721 = vpop.f32.mrf.mxu0
  %v7722 = vadd.f32 0.0, %v7721
  %v7723 = vpop.f32.mrf.mxu0
  %v7724 = vpop.f32.mrf.mxu0
  %v7725 = vadd.f32 0.0, %v7724
  %v7726 = vpop.f32.mrf.mxu0
  %7727 = vmatprep.mubr.bf16.mxu0 0
  %7728 = vmatmul.mubr.bf16.gmra.mxu0 %v7656
  %v7729 = vpop.f32.mrf.mxu0
  %v7730 = vadd.f32 0.0, %v7729
  %v7731 = vpop.f32.mrf.mxu0
  %v7732 = vpop.f32.mrf.mxu0
  %v7733 = vadd.f32 0.0, %v7732
  %v7734 = vpop.f32.mrf.mxu0
  %7735 = vmatprep.mubr.bf16.mxu0 0
  %7736 = vmatmul.mubr.bf16.gmra.mxu0 %v7657
  %v7737 = vpop.f32.mrf.mxu0
  %v7738 = vadd.f32 0.0, %v7737
  %v7739 = vpop.f32.mrf.mxu0
  %v7740 = vpop.f32.mrf.mxu0
  %v7741 = vadd.f32 0.0, %v7740
  %v7742 = vpop.f32.mrf.mxu0
  %7743 = vmatprep.mubr.bf16.mxu0 0
  %7744 = vmatmul.mubr.bf16.gmra.mxu0 %v7658
  %v7745 = vpop.f32.mrf.mxu0
  %v7746 = vadd.f32 0.0, %v7745
  %v7747 = vpop.f32.mrf.mxu0
  %v7748 = vpop.f32.mrf.mxu0
  %v7749 = vadd.f32 0.0, %v7748
  %v7750 = vpop.f32.mrf.mxu0
  %7751 = vmatprep.mubr.bf16.mxu0 0
  %7752 = vmatmul.mubr.bf16.gmra.mxu0 %v7659
  %v7753 = vpop.f32.mrf.mxu0
  %v7754 = vadd.f32 0.0, %v7753
  %v7755 = vpop.f32.mrf.mxu0
  %v7756 = vpop.f32.mrf.mxu0
  %v7757 = vadd.f32 0.0, %v7756
  %v7758 = vpop.f32.mrf.mxu0
  %7759 = vmatprep.mubr.bf16.mxu0 0
  %7760 = vmatmul.mubr.bf16.gmra.mxu0 %v7660
  %v7761 = vpop.f32.mrf.mxu0
  %v7762 = vadd.f32 0.0, %v7761
  %v7763 = vpop.f32.mrf.mxu0
  %v7764 = vpop.f32.mrf.mxu0
  %v7765 = vadd.f32 0.0, %v7764
  %v7766 = vpop.f32.mrf.mxu0
  %7767 = vmatprep.mubr.bf16.mxu0 0
  %7768 = vmatmul.mubr.bf16.gmra.mxu0 %v7661
  %v7769 = vpop.f32.mrf.mxu0
  %v7770 = vadd.f32 0.0, %v7769
  %v7771 = vpop.f32.mrf.mxu0
  %v7772 = vpop.f32.mrf.mxu0
  %v7773 = vadd.f32 0.0, %v7772
  %v7774 = vpop.f32.mrf.mxu0
  %7775 = vmatprep.mubr.bf16.mxu0 0
  %7776 = vmatmul.mubr.bf16.gmra.mxu0 %v7662
  %v7777 = vpop.f32.mrf.mxu0
  %v7778 = vadd.f32 0.0, %v7777
  %v7779 = vpop.f32.mrf.mxu0
  %v7780 = vpop.f32.mrf.mxu0
  %v7781 = vadd.f32 0.0, %v7780
  %v7782 = vpop.f32.mrf.mxu0
  %7783 = vmatprep.mubr.bf16.mxu0 0
  %7784 = vmatmul.mubr.bf16.gmra.mxu0 %v7663
  %v7785 = vpop.f32.mrf.mxu0
  %v7786 = vadd.f32 0.0, %v7785
  %v7787 = vpop.f32.mrf.mxu0
  %v7788 = vpop.f32.mrf.mxu0
  %v7789 = vadd.f32 0.0, %v7788
  %v7790 = vpop.f32.mrf.mxu0
  %7791 = vmatprep.mubr.bf16.mxu0 0
  %7792 = vmatmul.mubr.bf16.gmra.mxu0 %v7664
  %v7793 = vpop.f32.mrf.mxu0
  %v7794 = vadd.f32 0.0, %v7793
  %v7795 = vpop.f32.mrf.mxu0
  %v7796 = vpop.f32.mrf.mxu0
  %v7797 = vadd.f32 0.0, %v7796
  %v7798 = vpop.f32.mrf.mxu0
  %7799 = vmatprep.mubr.bf16.mxu0 0
  %7800 = vmatmul.mubr.bf16.gmra.mxu0 %v7665
  %v7801 = vpop.f32.mrf.mxu0
  %v7802 = vadd.f32 0.0, %v7801
  %v7803 = vpop.f32.mrf.mxu0
  %v7804 = vpop.f32.mrf.mxu0
  %v7805 = vadd.f32 0.0, %v7804
  %v7806 = vpop.f32.mrf.mxu0
  %7807 = vmatprep.mubr.bf16.mxu0 0
  %7808 = vmatmul.mubr.bf16.gmra.mxu0 %v7666
  %v7809 = vpop.f32.mrf.mxu0
  %v7810 = vadd.f32 0.0, %v7809
  %v7811 = vpop.f32.mrf.mxu0
  %v7812 = vpop.f32.mrf.mxu0
  %v7813 = vadd.f32 0.0, %v7812
  %v7814 = vpop.f32.mrf.mxu0
  %7815 = vmatprep.mubr.bf16.mxu0 0
  %7816 = vmatmul.mubr.bf16.gmra.mxu0 %v7667
  %v7817 = vpop.f32.mrf.mxu0
  %v7818 = vadd.f32 0.0, %v7817
  %v7819 = vpop.f32.mrf.mxu0
  %v7820 = vpop.f32.mrf.mxu0
  %v7821 = vadd.f32 0.0, %v7820
  %v7822 = vpop.f32.mrf.mxu0
  %7823 = vmatprep.mubr.bf16.mxu0 0
  %7824 = vmatmul.mubr.bf16.gmra.mxu0 %v7668
  %v7825 = vpop.f32.mrf.mxu0
  %v7826 = vadd.f32 0.0, %v7825
  %v7827 = vpop.f32.mrf.mxu0
  %v7828 = vpop.f32.mrf.mxu0
  %v7829 = vadd.f32 0.0, %v7828
  %v7830 = vpop.f32.mrf.mxu0
  %7831 = vmatprep.mubr.bf16.mxu0 0
  %7832 = vmatmul.mubr.bf16.gmra.mxu0 %v7669
  %v7833 = vpop.f32.mrf.mxu0
  %v7834 = vadd.f32 0.0, %v7833
  %v7835 = vpop.f32.mrf.mxu0
  %v7836 = vpop.f32.mrf.mxu0
  %v7837 = vadd.f32 0.0, %v7836
  %v7838 = vpop.f32.mrf.mxu0
  %7839 = vmatprep.mubr.bf16.mxu0 0
  %7840 = vmatmul.mubr.bf16.gmra.mxu0 %v7670
  %v7841 = vpop.f32.mrf.mxu0
  %v7842 = vadd.f32 0.0, %v7841
  %v7843 = vpop.f32.mrf.mxu0
  %v7844 = vpop.f32.mrf.mxu0
  %v7845 = vadd.f32 0.0, %v7844
  %v7846 = vpop.f32.mrf.mxu0
  %7847 = vdwg.mxu0
  %v7848 = vadd.f32 %v7414, %v7722
  %v7849 = vadd.f32 %v7415, %v7725
  %v7850 = vadd.f32 %v7416, %v7730
  %v7851 = vadd.f32 %v7417, %v7733
  %v7852 = vadd.f32 %v7418, %v7738
  %v7853 = vadd.f32 %v7419, %v7741
  %v7854 = vadd.f32 %v7420, %v7746
  %v7855 = vadd.f32 %v7421, %v7749
  %v7856 = vadd.f32 %v7422, %v7754
  %v7857 = vadd.f32 %v7423, %v7757
  %v7858 = vadd.f32 %v7424, %v7762
  %v7859 = vadd.f32 %v7425, %v7765
  %v7860 = vadd.f32 %v7426, %v7770
  %v7861 = vadd.f32 %v7427, %v7773
  %v7862 = vadd.f32 %v7428, %v7778
  %v7863 = vadd.f32 %v7429, %v7781
  %v7864 = vadd.f32 %v7430, %v7786
  %v7865 = vadd.f32 %v7431, %v7789
  %v7866 = vadd.f32 %v7432, %v7794
  %v7867 = vadd.f32 %v7433, %v7797
  %v7868 = vadd.f32 %v7434, %v7802
  %v7869 = vadd.f32 %v7435, %v7805
  %v7870 = vadd.f32 %v7436, %v7810
  %v7871 = vadd.f32 %v7437, %v7813
  %v7872 = vadd.f32 %v7438, %v7818
  %v7873 = vadd.f32 %v7439, %v7821
  %v7874 = vadd.f32 %v7440, %v7826
  %v7875 = vadd.f32 %v7441, %v7829
  %v7876 = vadd.f32 %v7442, %v7834
  %v7877 = vadd.f32 %v7443, %v7837
  %v7878 = vadd.f32 %v7444, %v7842
  %v7879 = vadd.f32 %v7445, %v7845
  %v7880 = vld [vmem:[%s11] sm:$0xff]
  %v7881 = vld [vmem:[%s11 + $0x8] sm:$0xff]
  %v7882 = vld [vmem:[%s11 + $0x10] sm:$0xff]
  %v7883 = vld [vmem:[%s11 + $0x18] sm:$0xff]
  %v7884 = vld [vmem:[%s11 + $0x20] sm:$0xff]
  %v7885 = vld [vmem:[%s11 + $0x28] sm:$0xff]
  %v7886 = vld [vmem:[%s11 + $0x30] sm:$0xff]
  %v7887 = vld [vmem:[%s11 + $0x38] sm:$0xff]
  %v7888 = vld [vmem:[%s11 + $0x40] sm:$0xff]
  %v7889 = vld [vmem:[%s11 + $0x48] sm:$0xff]
  %v7890 = vld [vmem:[%s11 + $0x50] sm:$0xff]
  %v7891 = vld [vmem:[%s11 + $0x58] sm:$0xff]
  %v7892 = vld [vmem:[%s11 + $0x60] sm:$0xff]
  %v7893 = vld [vmem:[%s11 + $0x68] sm:$0xff]
  %v7894 = vld [vmem:[%s11 + $0x70] sm:$0xff]
  %v7895 = vld [vmem:[%s11 + $0x78] sm:$0xff]
  %v7896 = vld [vmem:[%s11 + $0x80] sm:$0xff]
  %v7897 = vld [vmem:[%s11 + $0x88] sm:$0xff]
  %v7898 = vld [vmem:[%s11 + $0x90] sm:$0xff]
  %v7899 = vld [vmem:[%s11 + $0x98] sm:$0xff]
  %v7900 = vld [vmem:[%s11 + $0xa0] sm:$0xff]
  %v7901 = vld [vmem:[%s11 + $0xa8] sm:$0xff]
  %v7902 = vld [vmem:[%s11 + $0xb0] sm:$0xff]
  %v7903 = vld [vmem:[%s11 + $0xb8] sm:$0xff]
  %v7904 = vld [vmem:[%s11 + $0xc0] sm:$0xff]
  %v7905 = vld [vmem:[%s11 + $0xc8] sm:$0xff]
  %v7906 = vld [vmem:[%s11 + $0xd0] sm:$0xff]
  %v7907 = vld [vmem:[%s11 + $0xd8] sm:$0xff]
  %v7908 = vld [vmem:[%s11 + $0xe0] sm:$0xff]
  %v7909 = vld [vmem:[%s11 + $0xe8] sm:$0xff]
  %v7910 = vld [vmem:[%s11 + $0xf0] sm:$0xff]
  %v7911 = vld [vmem:[%s11 + $0xf8] sm:$0xff]
  %7913 = vset.pattern.permute.xlu0 0
  %7914 = vperm.xlu0 %7913, %v7880
  %v7915 = vpop.permute.xlu0 %7914
  %7918 = vset.pattern.permute.xlu0 0
  %7919 = vperm.xlu0 %7918, %v7881
  %v7920 = vpop.permute.xlu0 %7919
  %7923 = vset.pattern.permute.xlu0 0
  %7924 = vperm.xlu0 %7923, %v7882
  %v7925 = vpop.permute.xlu0 %7924
  %7928 = vset.pattern.permute.xlu0 0
  %7929 = vperm.xlu0 %7928, %v7883
  %v7930 = vpop.permute.xlu0 %7929
  %7933 = vset.pattern.permute.xlu0 0
  %7934 = vperm.xlu0 %7933, %v7884
  %v7935 = vpop.permute.xlu0 %7934
  %7938 = vset.pattern.permute.xlu0 0
  %7939 = vperm.xlu0 %7938, %v7885
  %v7940 = vpop.permute.xlu0 %7939
  %7943 = vset.pattern.permute.xlu0 0
  %7944 = vperm.xlu0 %7943, %v7886
  %v7945 = vpop.permute.xlu0 %7944
  %7948 = vset.pattern.permute.xlu0 0
  %7949 = vperm.xlu0 %7948, %v7887
  %v7950 = vpop.permute.xlu0 %7949
  %7953 = vset.pattern.permute.xlu0 0
  %7954 = vperm.xlu0 %7953, %v7888
  %v7955 = vpop.permute.xlu0 %7954
  %7958 = vset.pattern.permute.xlu0 0
  %7959 = vperm.xlu0 %7958, %v7889
  %v7960 = vpop.permute.xlu0 %7959
  %7963 = vset.pattern.permute.xlu0 0
  %7964 = vperm.xlu0 %7963, %v7890
  %v7965 = vpop.permute.xlu0 %7964
  %7968 = vset.pattern.permute.xlu0 0
  %7969 = vperm.xlu0 %7968, %v7891
  %v7970 = vpop.permute.xlu0 %7969
  %7973 = vset.pattern.permute.xlu0 0
  %7974 = vperm.xlu0 %7973, %v7892
  %v7975 = vpop.permute.xlu0 %7974
  %7978 = vset.pattern.permute.xlu0 0
  %7979 = vperm.xlu0 %7978, %v7893
  %v7980 = vpop.permute.xlu0 %7979
  %7983 = vset.pattern.permute.xlu0 0
  %7984 = vperm.xlu0 %7983, %v7894
  %v7985 = vpop.permute.xlu0 %7984
  %7988 = vset.pattern.permute.xlu0 0
  %7989 = vperm.xlu0 %7988, %v7895
  %v7990 = vpop.permute.xlu0 %7989
  %7993 = vset.pattern.permute.xlu0 0
  %7994 = vperm.xlu0 %7993, %v7896
  %v7995 = vpop.permute.xlu0 %7994
  %7998 = vset.pattern.permute.xlu0 0
  %7999 = vperm.xlu0 %7998, %v7897
  %v8000 = vpop.permute.xlu0 %7999
  %8003 = vset.pattern.permute.xlu0 0
  %8004 = vperm.xlu0 %8003, %v7898
  %v8005 = vpop.permute.xlu0 %8004
  %8008 = vset.pattern.permute.xlu0 0
  %8009 = vperm.xlu0 %8008, %v7899
  %v8010 = vpop.permute.xlu0 %8009
  %8013 = vset.pattern.permute.xlu0 0
  %8014 = vperm.xlu0 %8013, %v7900
  %v8015 = vpop.permute.xlu0 %8014
  %8018 = vset.pattern.permute.xlu0 0
  %8019 = vperm.xlu0 %8018, %v7901
  %v8020 = vpop.permute.xlu0 %8019
  %8023 = vset.pattern.permute.xlu0 0
  %8024 = vperm.xlu0 %8023, %v7902
  %v8025 = vpop.permute.xlu0 %8024
  %8028 = vset.pattern.permute.xlu0 0
  %8029 = vperm.xlu0 %8028, %v7903
  %v8030 = vpop.permute.xlu0 %8029
  %8033 = vset.pattern.permute.xlu0 0
  %8034 = vperm.xlu0 %8033, %v7904
  %v8035 = vpop.permute.xlu0 %8034
  %8038 = vset.pattern.permute.xlu0 0
  %8039 = vperm.xlu0 %8038, %v7905
  %v8040 = vpop.permute.xlu0 %8039
  %8043 = vset.pattern.permute.xlu0 0
  %8044 = vperm.xlu0 %8043, %v7906
  %v8045 = vpop.permute.xlu0 %8044
  %8048 = vset.pattern.permute.xlu0 0
  %8049 = vperm.xlu0 %8048, %v7907
  %v8050 = vpop.permute.xlu0 %8049
  %8053 = vset.pattern.permute.xlu0 0
  %8054 = vperm.xlu0 %8053, %v7908
  %v8055 = vpop.permute.xlu0 %8054
  %8058 = vset.pattern.permute.xlu0 0
  %8059 = vperm.xlu0 %8058, %v7909
  %v8060 = vpop.permute.xlu0 %8059
  %8063 = vset.pattern.permute.xlu0 0
  %8064 = vperm.xlu0 %8063, %v7910
  %v8065 = vpop.permute.xlu0 %8064
  %8068 = vset.pattern.permute.xlu0 0
  %8069 = vperm.xlu0 %8068, %v7911
  %v8070 = vpop.permute.xlu0 %8069
  %v8072 = vadd.f32 %v7848, %v7915
  %v8073 = vadd.f32 %v7849, %v7920
  %v8074 = vadd.f32 %v7850, %v7925
  %v8075 = vadd.f32 %v7851, %v7930
  %v8076 = vadd.f32 %v7852, %v7935
  %v8077 = vadd.f32 %v7853, %v7940
  %v8078 = vadd.f32 %v7854, %v7945
  %v8079 = vadd.f32 %v7855, %v7950
  %v8080 = vadd.f32 %v7856, %v7955
  %v8081 = vadd.f32 %v7857, %v7960
  %v8082 = vadd.f32 %v7858, %v7965
  %v8083 = vadd.f32 %v7859, %v7970
  %v8084 = vadd.f32 %v7860, %v7975
  %v8085 = vadd.f32 %v7861, %v7980
  %v8086 = vadd.f32 %v7862, %v7985
  %v8087 = vadd.f32 %v7863, %v7990
  %v8088 = vadd.f32 %v7864, %v7995
  %v8089 = vadd.f32 %v7865, %v8000
  %v8090 = vadd.f32 %v7866, %v8005
  %v8091 = vadd.f32 %v7867, %v8010
  %v8092 = vadd.f32 %v7868, %v8015
  %v8093 = vadd.f32 %v7869, %v8020
  %v8094 = vadd.f32 %v7870, %v8025
  %v8095 = vadd.f32 %v7871, %v8030
  %v8096 = vadd.f32 %v7872, %v8035
  %v8097 = vadd.f32 %v7873, %v8040
  %v8098 = vadd.f32 %v7874, %v8045
  %v8099 = vadd.f32 %v7875, %v8050
  %v8100 = vadd.f32 %v7876, %v8055
  %v8101 = vadd.f32 %v7877, %v8060
  %v8102 = vadd.f32 %v7878, %v8065
  %v8103 = vadd.f32 %v7879, %v8070
  %v8104 = vmax.f32 %v8072, 0.0
  %v8105 = vmax.f32 %v8073, 0.0
  %v8106 = vmax.f32 %v8074, 0.0
  %v8107 = vmax.f32 %v8075, 0.0
  %v8108 = vmax.f32 %v8076, 0.0
  %v8109 = vmax.f32 %v8077, 0.0
  %v8110 = vmax.f32 %v8078, 0.0
  %v8111 = vmax.f32 %v8079, 0.0
  %v8112 = vmax.f32 %v8080, 0.0
  %v8113 = vmax.f32 %v8081, 0.0
  %v8114 = vmax.f32 %v8082, 0.0
  %v8115 = vmax.f32 %v8083, 0.0
  %v8116 = vmax.f32 %v8084, 0.0
  %v8117 = vmax.f32 %v8085, 0.0
  %v8118 = vmax.f32 %v8086, 0.0
  %v8119 = vmax.f32 %v8087, 0.0
  %v8120 = vmax.f32 %v8088, 0.0
  %v8121 = vmax.f32 %v8089, 0.0
  %v8122 = vmax.f32 %v8090, 0.0
  %v8123 = vmax.f32 %v8091, 0.0
  %v8124 = vmax.f32 %v8092, 0.0
  %v8125 = vmax.f32 %v8093, 0.0
  %v8126 = vmax.f32 %v8094, 0.0
  %v8127 = vmax.f32 %v8095, 0.0
  %v8128 = vmax.f32 %v8096, 0.0
  %v8129 = vmax.f32 %v8097, 0.0
  %v8130 = vmax.f32 %v8098, 0.0
  %v8131 = vmax.f32 %v8099, 0.0
  %v8132 = vmax.f32 %v8100, 0.0
  %v8133 = vmax.f32 %v8101, 0.0
  %v8134 = vmax.f32 %v8102, 0.0
  %v8135 = vmax.f32 %v8103, 0.0
  %v8136 = vpack.c.bf16 %v8105, %v8104
  %v8137 = vpack.c.bf16 %v8107, %v8106
  %v8138 = vpack.c.bf16 %v8109, %v8108
  %v8139 = vpack.c.bf16 %v8111, %v8110
  %v8140 = vpack.c.bf16 %v8113, %v8112
  %v8141 = vpack.c.bf16 %v8115, %v8114
  %v8142 = vpack.c.bf16 %v8117, %v8116
  %v8143 = vpack.c.bf16 %v8119, %v8118
  %v8144 = vpack.c.bf16 %v8121, %v8120
  %v8145 = vpack.c.bf16 %v8123, %v8122
  %v8146 = vpack.c.bf16 %v8125, %v8124
  %v8147 = vpack.c.bf16 %v8127, %v8126
  %v8148 = vpack.c.bf16 %v8129, %v8128
  %v8149 = vpack.c.bf16 %v8131, %v8130
  %v8150 = vpack.c.bf16 %v8133, %v8132
  %v8151 = vpack.c.bf16 %v8135, %v8134
  %v8152 = vld [vmem:[%s12] sm:$0xff]
  %v8153 = vld [vmem:[%s12 + $0x8] sm:$0xff]
  %v8154 = vld [vmem:[%s12 + $0x10] sm:$0xff]
  %v8155 = vld [vmem:[%s12 + $0x18] sm:$0xff]
  %v8156 = vld [vmem:[%s12 + $0x20] sm:$0xff]
  %v8157 = vld [vmem:[%s12 + $0x28] sm:$0xff]
  %v8158 = vld [vmem:[%s12 + $0x30] sm:$0xff]
  %v8159 = vld [vmem:[%s12 + $0x38] sm:$0xff]
  %v8160 = vld [vmem:[%s12 + $0x40] sm:$0xff]
  %v8161 = vld [vmem:[%s12 + $0x48] sm:$0xff]
  %v8162 = vld [vmem:[%s12 + $0x50] sm:$0xff]
  %v8163 = vld [vmem:[%s12 + $0x58] sm:$0xff]
  %v8164 = vld [vmem:[%s12 + $0x60] sm:$0x33]
  %v8165 = vld [vmem:[%s13] sm:$0xff]
  %v8166 = vld [vmem:[%s13 + $0x8] sm:$0xff]
  %v8167 = vld [vmem:[%s13 + $0x10] sm:$0xff]
  %v8168 = vld [vmem:[%s13 + $0x18] sm:$0xff]
  %v8169 = vld [vmem:[%s13 + $0x20] sm:$0xff]
  %v8170 = vld [vmem:[%s13 + $0x28] sm:$0xff]
  %v8171 = vld [vmem:[%s13 + $0x30] sm:$0xff]
  %v8172 = vld [vmem:[%s13 + $0x38] sm:$0xff]
  %v8173 = vld [vmem:[%s13 + $0x40] sm:$0xff]
  %v8174 = vld [vmem:[%s13 + $0x48] sm:$0xff]
  %v8175 = vld [vmem:[%s13 + $0x50] sm:$0xff]
  %v8176 = vld [vmem:[%s13 + $0x58] sm:$0xff]
  %v8177 = vld [vmem:[%s13 + $0x60] sm:$0xf]
  %8179 = vset.pattern.permute.xlu0 0
  %8180 = vperm.xlu0 %8179, %v8165
  %v8181 = vpop.permute.xlu0 %8180
  %8184 = vset.pattern.permute.xlu0 0
  %8185 = vperm.xlu0 %8184, %v8166
  %v8186 = vpop.permute.xlu0 %8185
  %8189 = vset.pattern.permute.xlu0 0
  %8190 = vperm.xlu0 %8189, %v8167
  %v8191 = vpop.permute.xlu0 %8190
  %8194 = vset.pattern.permute.xlu0 0
  %8195 = vperm.xlu0 %8194, %v8168
  %v8196 = vpop.permute.xlu0 %8195
  %8199 = vset.pattern.permute.xlu0 0
  %8200 = vperm.xlu0 %8199, %v8169
  %v8201 = vpop.permute.xlu0 %8200
  %8204 = vset.pattern.permute.xlu0 0
  %8205 = vperm.xlu0 %8204, %v8170
  %v8206 = vpop.permute.xlu0 %8205
  %8209 = vset.pattern.permute.xlu0 0
  %8210 = vperm.xlu0 %8209, %v8171
  %v8211 = vpop.permute.xlu0 %8210
  %8214 = vset.pattern.permute.xlu0 0
  %8215 = vperm.xlu0 %8214, %v8172
  %v8216 = vpop.permute.xlu0 %8215
  %8219 = vset.pattern.permute.xlu0 0
  %8220 = vperm.xlu0 %8219, %v8173
  %v8221 = vpop.permute.xlu0 %8220
  %8224 = vset.pattern.permute.xlu0 0
  %8225 = vperm.xlu0 %8224, %v8174
  %v8226 = vpop.permute.xlu0 %8225
  %8229 = vset.pattern.permute.xlu0 0
  %8230 = vperm.xlu0 %8229, %v8175
  %v8231 = vpop.permute.xlu0 %8230
  %8234 = vset.pattern.permute.xlu0 0
  %8235 = vperm.xlu0 %8234, %v8176
  %v8236 = vpop.permute.xlu0 %8235
  %8239 = vset.pattern.permute.xlu0 0
  %8240 = vperm.xlu0 %8239, %v8177
  %v8241 = vpop.permute.xlu0 %8240
  %v8256 = vunpack.c.l.b16 %v8152
  %v8257 = vunpack.c.h.b16 %v8152
  %v8258 = vunpack.c.l.b16 %v8153
  %v8259 = vunpack.c.h.b16 %v8153
  %v8260 = vunpack.c.l.b16 %v8154
  %v8261 = vunpack.c.h.b16 %v8154
  %v8262 = vunpack.c.l.b16 %v8155
  %v8263 = vunpack.c.h.b16 %v8155
  %v8264 = vunpack.c.l.b16 %v8156
  %v8265 = vunpack.c.h.b16 %v8156
  %v8266 = vunpack.c.l.b16 %v8157
  %v8267 = vunpack.c.h.b16 %v8157
  %v8268 = vunpack.c.l.b16 %v8158
  %v8269 = vunpack.c.h.b16 %v8158
  %v8270 = vunpack.c.l.b16 %v8159
  %v8271 = vunpack.c.h.b16 %v8159
  %v8272 = vunpack.c.l.b16 %v8160
  %v8273 = vunpack.c.h.b16 %v8160
  %v8274 = vunpack.c.l.b16 %v8161
  %v8275 = vunpack.c.h.b16 %v8161
  %v8276 = vunpack.c.l.b16 %v8162
  %v8277 = vunpack.c.h.b16 %v8162
  %v8278 = vunpack.c.l.b16 %v8163
  %v8279 = vunpack.c.h.b16 %v8163
  %v8280 = vunpack.c.l.b16 %v8164
  %v8281 = vunpack.c.h.b16 %v8164
  %v8282 = vpack.c.b16 %v8258, %v8256
  %v8283 = vpack.c.b16 %v8259, %v8257
  %v8284 = vpack.c.b16 %v8262, %v8260
  %v8285 = vpack.c.b16 %v8263, %v8261
  %v8286 = vpack.c.b16 %v8266, %v8264
  %v8287 = vpack.c.b16 %v8267, %v8265
  %v8288 = vpack.c.b16 %v8270, %v8268
  %v8289 = vpack.c.b16 %v8271, %v8269
  %v8290 = vpack.c.b16 %v8274, %v8272
  %v8291 = vpack.c.b16 %v8275, %v8273
  %v8292 = vpack.c.b16 %v8278, %v8276
  %v8293 = vpack.c.b16 %v8279, %v8277
  %v8294 = vpack.c.b16 %v8280, %v8280
  %v8295 = vpack.c.b16 %v8281, %v8281
  %8310 = vmatprep.subr.bf16.mxu0 0
  %8311 = vmatpush1.bf16.msra.mxu0 %v8143
  %8312 = vmatprep.subr.bf16.mxu0 0
  %8313 = vmatpush1.bf16.msra.mxu0 %v8142
  %8314 = vmatprep.subr.bf16.mxu0 0
  %8315 = vmatpush1.bf16.msra.mxu0 %v8141
  %8316 = vmatprep.subr.bf16.mxu0 0
  %8317 = vmatpush1.bf16.msra.mxu0 %v8140
  %8318 = vmatprep.subr.bf16.mxu0 0
  %8319 = vmatpush1.bf16.msra.mxu0 %v8139
  %8320 = vmatprep.subr.bf16.mxu0 0
  %8321 = vmatpush1.bf16.msra.mxu0 %v8138
  %8322 = vmatprep.subr.bf16.mxu0 0
  %8323 = vmatpush1.bf16.msra.mxu0 %v8137
  %8324 = vmatprep.subr.bf16.mxu0 0
  %8325 = vmatpush1.bf16.msra.mxu0 %v8136
  %8326 = vmatprep.subr.bf16.mxu0 0
  %8327 = vmatpush2.bf16.msra.mxu0 %v8151
  %8328 = vmatprep.subr.bf16.mxu0 0
  %8329 = vmatpush2.bf16.msra.mxu0 %v8150
  %8330 = vmatprep.subr.bf16.mxu0 0
  %8331 = vmatpush2.bf16.msra.mxu0 %v8149
  %8332 = vmatprep.subr.bf16.mxu0 0
  %8333 = vmatpush2.bf16.msra.mxu0 %v8148
  %8334 = vmatprep.subr.bf16.mxu0 0
  %8335 = vmatpush2.bf16.msra.mxu0 %v8147
  %8336 = vmatprep.subr.bf16.mxu0 0
  %8337 = vmatpush2.bf16.msra.mxu0 %v8146
  %8338 = vmatprep.subr.bf16.mxu0 0
  %8339 = vmatpush2.bf16.msra.mxu0 %v8145
  %8340 = vmatprep.subr.bf16.mxu0 0
  %8341 = vmatpush2.bf16.msra.mxu0 %v8144
  %8342 = vmatprep.mubr.bf16.mxu0 %v8283
  %8343 = vmatmul.mubr.bf16.gmra.mxu0 %v8282
  %v8344 = vpop.f32.mrf.mxu0
  %v8345 = vadd.f32 %v8181, %v8344
  %v8346 = vpop.f32.mrf.mxu0
  %v8347 = vpop.f32.mrf.mxu0
  %v8348 = vadd.f32 %v8186, %v8347
  %v8349 = vpop.f32.mrf.mxu0
  %8350 = vmatprep.mubr.bf16.mxu0 %v8285
  %8351 = vmatmul.mubr.bf16.gmra.mxu0 %v8284
  %v8352 = vpop.f32.mrf.mxu0
  %v8353 = vadd.f32 %v8191, %v8352
  %v8354 = vpop.f32.mrf.mxu0
  %v8355 = vpop.f32.mrf.mxu0
  %v8356 = vadd.f32 %v8196, %v8355
  %v8357 = vpop.f32.mrf.mxu0
  %8358 = vmatprep.mubr.bf16.mxu0 %v8287
  %8359 = vmatmul.mubr.bf16.gmra.mxu0 %v8286
  %v8360 = vpop.f32.mrf.mxu0
  %v8361 = vadd.f32 %v8201, %v8360
  %v8362 = vpop.f32.mrf.mxu0
  %v8363 = vpop.f32.mrf.mxu0
  %v8364 = vadd.f32 %v8206, %v8363
  %v8365 = vpop.f32.mrf.mxu0
  %8366 = vmatprep.mubr.bf16.mxu0 %v8289
  %8367 = vmatmul.mubr.bf16.gmra.mxu0 %v8288
  %v8368 = vpop.f32.mrf.mxu0
  %v8369 = vadd.f32 %v8211, %v8368
  %v8370 = vpop.f32.mrf.mxu0
  %v8371 = vpop.f32.mrf.mxu0
  %v8372 = vadd.f32 %v8216, %v8371
  %v8373 = vpop.f32.mrf.mxu0
  %8374 = vmatprep.mubr.bf16.mxu0 %v8291
  %8375 = vmatmul.mubr.bf16.gmra.mxu0 %v8290
  %v8376 = vpop.f32.mrf.mxu0
  %v8377 = vadd.f32 %v8221, %v8376
  %v8378 = vpop.f32.mrf.mxu0
  %v8379 = vpop.f32.mrf.mxu0
  %v8380 = vadd.f32 %v8226, %v8379
  %v8381 = vpop.f32.mrf.mxu0
  %8382 = vmatprep.mubr.bf16.mxu0 %v8293
  %8383 = vmatmul.mubr.bf16.gmra.mxu0 %v8292
  %v8384 = vpop.f32.mrf.mxu0
  %v8385 = vadd.f32 %v8231, %v8384
  %v8386 = vpop.f32.mrf.mxu0
  %v8387 = vpop.f32.mrf.mxu0
  %v8388 = vadd.f32 %v8236, %v8387
  %v8389 = vpop.f32.mrf.mxu0
  %8390 = vmatprep.mubr.bf16.mxu0 %v8295
  %8391 = vmatmul.mubr.bf16.gmra.mxu0 %v8294
  %v8392 = vpop.f32.mrf.mxu0
  %v8393 = vadd.f32 %v8241, %v8392
  %v8394 = vpop.f32.mrf.mxu0
  %v8395 = vpop.f32.mrf.mxu0
  %v8396 = vpop.f32.mrf.mxu0
  %8397 = vdwg.mxu0
  %v8398 = vmax.f32 %v8345, 0.0
  %v8399 = vmax.f32 %v8348, 0.0
  %v8400 = vmax.f32 %v8353, 0.0
  %v8401 = vmax.f32 %v8356, 0.0
  %v8402 = vmax.f32 %v8361, 0.0
  %v8403 = vmax.f32 %v8364, 0.0
  %v8404 = vmax.f32 %v8369, 0.0
  %v8405 = vmax.f32 %v8372, 0.0
  %v8406 = vmax.f32 %v8377, 0.0
  %v8407 = vmax.f32 %v8380, 0.0
  %v8408 = vmax.f32 %v8385, 0.0
  %v8409 = vmax.f32 %v8388, 0.0
  %v8410 = vmax.f32 %v8393, 0.0
  %v8411 = vpack.c.bf16 %v8399, %v8398
  %v8412 = vpack.c.bf16 %v8401, %v8400
  %v8413 = vpack.c.bf16 %v8403, %v8402
  %v8414 = vpack.c.bf16 %v8405, %v8404
  %v8415 = vpack.c.bf16 %v8407, %v8406
  %v8416 = vpack.c.bf16 %v8409, %v8408
  %v8417 = vpack.c.bf16 %v8410, %v8410
  %v8418 = vld [vmem:[%s14] sm:$0x1]
  %v8419 = vld [vmem:[#allocation2] sm:$0x1]
  %8421 = vset.pattern.permute.xlu0 0
  %8422 = vperm.xlu0 %8421, %v8419
  %v8423 = vpop.permute.xlu0 %8422
  %v8425 = vlaneseq
  %v8426 = vshrl.u32 %v8425, 7
  %v8427 = vsub.s32 0, %v8426
  %v8428 = vrot.slane %v8423, %v8427
  %vm8429 = vcmask 818176
  %v8431 = vsel %vm8429, %v8418, 0
  %vm8433 = vcmask 1041408
  %v8435 = vsel %vm8433, %v8417, 0
  %8437 = vmatprep.subr.bf16.mxu0 0
  %8438 = vmatpush1.bf16.msra.mxu0 0
  %8439 = vmatprep.subr.bf16.mxu0 0
  %8440 = vmatpush1.bf16.msra.mxu0 %v8435
  %8441 = vmatprep.subr.bf16.mxu0 0
  %8442 = vmatpush1.bf16.msra.mxu0 %v8416
  %8443 = vmatprep.subr.bf16.mxu0 0
  %8444 = vmatpush1.bf16.msra.mxu0 %v8415
  %8445 = vmatprep.subr.bf16.mxu0 0
  %8446 = vmatpush1.bf16.msra.mxu0 %v8414
  %8447 = vmatprep.subr.bf16.mxu0 0
  %8448 = vmatpush1.bf16.msra.mxu0 %v8413
  %8449 = vmatprep.subr.bf16.mxu0 0
  %8450 = vmatpush1.bf16.msra.mxu0 %v8412
  %8451 = vmatprep.subr.bf16.mxu0 0
  %8452 = vmatpush1.bf16.msra.mxu0 %v8411
  %8453 = vmatprep.subr.bf16.mxu0 0
  %8454 = vmatpush2.bf16.msra.mxu0 0
  %8455 = vmatprep.subr.bf16.mxu0 0
  %8456 = vmatpush2.bf16.msra.mxu0 0
  %8457 = vmatprep.subr.bf16.mxu0 0
  %8458 = vmatpush2.bf16.msra.mxu0 0
  %8459 = vmatprep.subr.bf16.mxu0 0
  %8460 = vmatpush2.bf16.msra.mxu0 0
  %8461 = vmatprep.subr.bf16.mxu0 0
  %8462 = vmatpush2.bf16.msra.mxu0 0
  %8463 = vmatprep.subr.bf16.mxu0 0
  %8464 = vmatpush2.bf16.msra.mxu0 0
  %8465 = vmatprep.subr.bf16.mxu0 0
  %8466 = vmatpush2.bf16.msra.mxu0 0
  %8467 = vmatprep.subr.bf16.mxu0 0
  %8468 = vmatpush2.bf16.msra.mxu0 0
  %8469 = vmatprep.mubr.bf16.mxu0 0
  %8470 = vmatmul.mubr.bf16.gmra.mxu0 %v8431
  %v8471 = vpop.f32.mrf.mxu0
  %v8472 = vadd.f32 %v8428, %v8471
  %v8473 = vpop.f32.mrf.mxu0
  %v8474 = vpop.f32.mrf.mxu0
  %v8475 = vpop.f32.mrf.mxu0
  %8476 = vdwg.mxu0
  %v8477 = vld [vmem:[%s16] sm:$0xff]
  %v8478 = vld [vmem:[%s16 + $0x8] sm:$0xff]
  %v8479 = vld [vmem:[%s16 + $0x10] sm:$0xff]
  %v8480 = vld [vmem:[%s16 + $0x18] sm:$0xff]
  %v8481 = vld [vmem:[%s16 + $0x20] sm:$0xff]
  %v8482 = vld [vmem:[%s16 + $0x28] sm:$0xff]
  %v8483 = vld [vmem:[%s16 + $0x30] sm:$0xff]
  %v8484 = vld [vmem:[%s16 + $0x38] sm:$0xff]
  %v8485 = vld [vmem:[%s16 + $0x40] sm:$0xff]
  %v8486 = vld [vmem:[%s16 + $0x48] sm:$0xff]
  %v8487 = vld [vmem:[%s16 + $0x50] sm:$0xff]
  %v8488 = vld [vmem:[%s16 + $0x58] sm:$0xff]
  %v8489 = vld [vmem:[%s16 + $0x60] sm:$0x33]
  %v8490 = vld [vmem:[%s17] sm:$0xff]
  %v8491 = vld [vmem:[%s17 + $0x8] sm:$0xff]
  %v8492 = vld [vmem:[%s17 + $0x10] sm:$0xff]
  %v8493 = vld [vmem:[%s17 + $0x18] sm:$0xff]
  %v8494 = vld [vmem:[%s17 + $0x20] sm:$0xff]
  %v8495 = vld [vmem:[%s17 + $0x28] sm:$0xff]
  %v8496 = vld [vmem:[%s17 + $0x30] sm:$0xff]
  %v8497 = vld [vmem:[%s17 + $0x38] sm:$0xff]
  %v8498 = vld [vmem:[%s17 + $0x40] sm:$0xff]
  %v8499 = vld [vmem:[%s17 + $0x48] sm:$0xff]
  %v8500 = vld [vmem:[%s17 + $0x50] sm:$0xff]
  %v8501 = vld [vmem:[%s17 + $0x58] sm:$0xff]
  %v8502 = vld [vmem:[%s17 + $0x60] sm:$0xf]
  %8504 = vset.pattern.permute.xlu0 0
  %8505 = vperm.xlu0 %8504, %v8490
  %v8506 = vpop.permute.xlu0 %8505
  %8509 = vset.pattern.permute.xlu0 0
  %8510 = vperm.xlu0 %8509, %v8491
  %v8511 = vpop.permute.xlu0 %8510
  %8514 = vset.pattern.permute.xlu0 0
  %8515 = vperm.xlu0 %8514, %v8492
  %v8516 = vpop.permute.xlu0 %8515
  %8519 = vset.pattern.permute.xlu0 0
  %8520 = vperm.xlu0 %8519, %v8493
  %v8521 = vpop.permute.xlu0 %8520
  %8524 = vset.pattern.permute.xlu0 0
  %8525 = vperm.xlu0 %8524, %v8494
  %v8526 = vpop.permute.xlu0 %8525
  %8529 = vset.pattern.permute.xlu0 0
  %8530 = vperm.xlu0 %8529, %v8495
  %v8531 = vpop.permute.xlu0 %8530
  %8534 = vset.pattern.permute.xlu0 0
  %8535 = vperm.xlu0 %8534, %v8496
  %v8536 = vpop.permute.xlu0 %8535
  %8539 = vset.pattern.permute.xlu0 0
  %8540 = vperm.xlu0 %8539, %v8497
  %v8541 = vpop.permute.xlu0 %8540
  %8544 = vset.pattern.permute.xlu0 0
  %8545 = vperm.xlu0 %8544, %v8498
  %v8546 = vpop.permute.xlu0 %8545
  %8549 = vset.pattern.permute.xlu0 0
  %8550 = vperm.xlu0 %8549, %v8499
  %v8551 = vpop.permute.xlu0 %8550
  %8554 = vset.pattern.permute.xlu0 0
  %8555 = vperm.xlu0 %8554, %v8500
  %v8556 = vpop.permute.xlu0 %8555
  %8559 = vset.pattern.permute.xlu0 0
  %8560 = vperm.xlu0 %8559, %v8501
  %v8561 = vpop.permute.xlu0 %8560
  %8564 = vset.pattern.permute.xlu0 0
  %8565 = vperm.xlu0 %8564, %v8502
  %v8566 = vpop.permute.xlu0 %8565
  %v8581 = vunpack.c.l.b16 %v8477
  %v8582 = vunpack.c.h.b16 %v8477
  %v8583 = vunpack.c.l.b16 %v8478
  %v8584 = vunpack.c.h.b16 %v8478
  %v8585 = vunpack.c.l.b16 %v8479
  %v8586 = vunpack.c.h.b16 %v8479
  %v8587 = vunpack.c.l.b16 %v8480
  %v8588 = vunpack.c.h.b16 %v8480
  %v8589 = vunpack.c.l.b16 %v8481
  %v8590 = vunpack.c.h.b16 %v8481
  %v8591 = vunpack.c.l.b16 %v8482
  %v8592 = vunpack.c.h.b16 %v8482
  %v8593 = vunpack.c.l.b16 %v8483
  %v8594 = vunpack.c.h.b16 %v8483
  %v8595 = vunpack.c.l.b16 %v8484
  %v8596 = vunpack.c.h.b16 %v8484
  %v8597 = vunpack.c.l.b16 %v8485
  %v8598 = vunpack.c.h.b16 %v8485
  %v8599 = vunpack.c.l.b16 %v8486
  %v8600 = vunpack.c.h.b16 %v8486
  %v8601 = vunpack.c.l.b16 %v8487
  %v8602 = vunpack.c.h.b16 %v8487
  %v8603 = vunpack.c.l.b16 %v8488
  %v8604 = vunpack.c.h.b16 %v8488
  %v8605 = vunpack.c.l.b16 %v8489
  %v8606 = vunpack.c.h.b16 %v8489
  %v8607 = vpack.c.b16 %v8583, %v8581
  %v8608 = vpack.c.b16 %v8584, %v8582
  %v8609 = vpack.c.b16 %v8587, %v8585
  %v8610 = vpack.c.b16 %v8588, %v8586
  %v8611 = vpack.c.b16 %v8591, %v8589
  %v8612 = vpack.c.b16 %v8592, %v8590
  %v8613 = vpack.c.b16 %v8595, %v8593
  %v8614 = vpack.c.b16 %v8596, %v8594
  %v8615 = vpack.c.b16 %v8599, %v8597
  %v8616 = vpack.c.b16 %v8600, %v8598
  %v8617 = vpack.c.b16 %v8603, %v8601
  %v8618 = vpack.c.b16 %v8604, %v8602
  %v8619 = vpack.c.b16 %v8605, %v8605
  %v8620 = vpack.c.b16 %v8606, %v8606
  %8635 = vmatprep.subr.bf16.mxu0 0
  %8636 = vmatpush1.bf16.msra.mxu0 %v8143
  %8637 = vmatprep.subr.bf16.mxu0 0
  %8638 = vmatpush1.bf16.msra.mxu0 %v8142
  %8639 = vmatprep.subr.bf16.mxu0 0
  %8640 = vmatpush1.bf16.msra.mxu0 %v8141
  %8641 = vmatprep.subr.bf16.mxu0 0
  %8642 = vmatpush1.bf16.msra.mxu0 %v8140
  %8643 = vmatprep.subr.bf16.mxu0 0
  %8644 = vmatpush1.bf16.msra.mxu0 %v8139
  %8645 = vmatprep.subr.bf16.mxu0 0
  %8646 = vmatpush1.bf16.msra.mxu0 %v8138
  %8647 = vmatprep.subr.bf16.mxu0 0
  %8648 = vmatpush1.bf16.msra.mxu0 %v8137
  %8649 = vmatprep.subr.bf16.mxu0 0
  %8650 = vmatpush1.bf16.msra.mxu0 %v8136
  %8651 = vmatprep.subr.bf16.mxu0 0
  %8652 = vmatpush2.bf16.msra.mxu0 %v8151
  %8653 = vmatprep.subr.bf16.mxu0 0
  %8654 = vmatpush2.bf16.msra.mxu0 %v8150
  %8655 = vmatprep.subr.bf16.mxu0 0
  %8656 = vmatpush2.bf16.msra.mxu0 %v8149
  %8657 = vmatprep.subr.bf16.mxu0 0
  %8658 = vmatpush2.bf16.msra.mxu0 %v8148
  %8659 = vmatprep.subr.bf16.mxu0 0
  %8660 = vmatpush2.bf16.msra.mxu0 %v8147
  %8661 = vmatprep.subr.bf16.mxu0 0
  %8662 = vmatpush2.bf16.msra.mxu0 %v8146
  %8663 = vmatprep.subr.bf16.mxu0 0
  %8664 = vmatpush2.bf16.msra.mxu0 %v8145
  %8665 = vmatprep.subr.bf16.mxu0 0
  %8666 = vmatpush2.bf16.msra.mxu0 %v8144
  %8667 = vmatprep.mubr.bf16.mxu0 %v8608
  %8668 = vmatmul.mubr.bf16.gmra.mxu0 %v8607
  %v8669 = vpop.f32.mrf.mxu0
  %v8670 = vadd.f32 %v8506, %v8669
  %v8671 = vpop.f32.mrf.mxu0
  %v8672 = vpop.f32.mrf.mxu0
  %v8673 = vadd.f32 %v8511, %v8672
  %v8674 = vpop.f32.mrf.mxu0
  %8675 = vmatprep.mubr.bf16.mxu0 %v8610
  %8676 = vmatmul.mubr.bf16.gmra.mxu0 %v8609
  %v8677 = vpop.f32.mrf.mxu0
  %v8678 = vadd.f32 %v8516, %v8677
  %v8679 = vpop.f32.mrf.mxu0
  %v8680 = vpop.f32.mrf.mxu0
  %v8681 = vadd.f32 %v8521, %v8680
  %v8682 = vpop.f32.mrf.mxu0
  %8683 = vmatprep.mubr.bf16.mxu0 %v8612
  %8684 = vmatmul.mubr.bf16.gmra.mxu0 %v8611
  %v8685 = vpop.f32.mrf.mxu0
  %v8686 = vadd.f32 %v8526, %v8685
  %v8687 = vpop.f32.mrf.mxu0
  %v8688 = vpop.f32.mrf.mxu0
  %v8689 = vadd.f32 %v8531, %v8688
  %v8690 = vpop.f32.mrf.mxu0
  %8691 = vmatprep.mubr.bf16.mxu0 %v8614
  %8692 = vmatmul.mubr.bf16.gmra.mxu0 %v8613
  %v8693 = vpop.f32.mrf.mxu0
  %v8694 = vadd.f32 %v8536, %v8693
  %v8695 = vpop.f32.mrf.mxu0
  %v8696 = vpop.f32.mrf.mxu0
  %v8697 = vadd.f32 %v8541, %v8696
  %v8698 = vpop.f32.mrf.mxu0
  %8699 = vmatprep.mubr.bf16.mxu0 %v8616
  %8700 = vmatmul.mubr.bf16.gmra.mxu0 %v8615
  %v8701 = vpop.f32.mrf.mxu0
  %v8702 = vadd.f32 %v8546, %v8701
  %v8703 = vpop.f32.mrf.mxu0
  %v8704 = vpop.f32.mrf.mxu0
  %v8705 = vadd.f32 %v8551, %v8704
  %v8706 = vpop.f32.mrf.mxu0
  %8707 = vmatprep.mubr.bf16.mxu0 %v8618
  %8708 = vmatmul.mubr.bf16.gmra.mxu0 %v8617
  %v8709 = vpop.f32.mrf.mxu0
  %v8710 = vadd.f32 %v8556, %v8709
  %v8711 = vpop.f32.mrf.mxu0
  %v8712 = vpop.f32.mrf.mxu0
  %v8713 = vadd.f32 %v8561, %v8712
  %v8714 = vpop.f32.mrf.mxu0
  %8715 = vmatprep.mubr.bf16.mxu0 %v8620
  %8716 = vmatmul.mubr.bf16.gmra.mxu0 %v8619
  %v8717 = vpop.f32.mrf.mxu0
  %v8718 = vadd.f32 %v8566, %v8717
  %v8719 = vpop.f32.mrf.mxu0
  %v8720 = vpop.f32.mrf.mxu0
  %v8721 = vpop.f32.mrf.mxu0
  %8722 = vdwg.mxu0
  %v8723 = vmax.f32 %v8670, 0.0
  %v8724 = vmax.f32 %v8673, 0.0
  %v8725 = vmax.f32 %v8678, 0.0
  %v8726 = vmax.f32 %v8681, 0.0
  %v8727 = vmax.f32 %v8686, 0.0
  %v8728 = vmax.f32 %v8689, 0.0
  %v8729 = vmax.f32 %v8694, 0.0
  %v8730 = vmax.f32 %v8697, 0.0
  %v8731 = vmax.f32 %v8702, 0.0
  %v8732 = vmax.f32 %v8705, 0.0
  %v8733 = vmax.f32 %v8710, 0.0
  %v8734 = vmax.f32 %v8713, 0.0
  %v8735 = vmax.f32 %v8718, 0.0
  %v8736 = vpack.c.bf16 %v8724, %v8723
  %v8737 = vpack.c.bf16 %v8726, %v8725
  %v8738 = vpack.c.bf16 %v8728, %v8727
  %v8739 = vpack.c.bf16 %v8730, %v8729
  %v8740 = vpack.c.bf16 %v8732, %v8731
  %v8741 = vpack.c.bf16 %v8734, %v8733
  %v8742 = vpack.c.bf16 %v8735, %v8735
  %v8743 = vld [vmem:[%s18] sm:$0x7]
  %v8744 = vld [vmem:[%s19] sm:$0x3f]
  %8746 = vset.pattern.permute.xlu0 0
  %8747 = vperm.xlu0 %8746, %v8744
  %v8748 = vpop.permute.xlu0 %8747
  %v8751 = vsel %vm8429, %v8743, 0
  %v8754 = vsel %vm8433, %v8742, 0
  %8756 = vmatprep.subr.bf16.mxu0 0
  %8757 = vmatpush1.bf16.msra.mxu0 0
  %8758 = vmatprep.subr.bf16.mxu0 0
  %8759 = vmatpush1.bf16.msra.mxu0 %v8754
  %8760 = vmatprep.subr.bf16.mxu0 0
  %8761 = vmatpush1.bf16.msra.mxu0 %v8741
  %8762 = vmatprep.subr.bf16.mxu0 0
  %8763 = vmatpush1.bf16.msra.mxu0 %v8740
  %8764 = vmatprep.subr.bf16.mxu0 0
  %8765 = vmatpush1.bf16.msra.mxu0 %v8739
  %8766 = vmatprep.subr.bf16.mxu0 0
  %8767 = vmatpush1.bf16.msra.mxu0 %v8738
  %8768 = vmatprep.subr.bf16.mxu0 0
  %8769 = vmatpush1.bf16.msra.mxu0 %v8737
  %8770 = vmatprep.subr.bf16.mxu0 0
  %8771 = vmatpush1.bf16.msra.mxu0 %v8736
  %8772 = vmatprep.subr.bf16.mxu0 0
  %8773 = vmatpush2.bf16.msra.mxu0 0
  %8774 = vmatprep.subr.bf16.mxu0 0
  %8775 = vmatpush2.bf16.msra.mxu0 0
  %8776 = vmatprep.subr.bf16.mxu0 0
  %8777 = vmatpush2.bf16.msra.mxu0 0
  %8778 = vmatprep.subr.bf16.mxu0 0
  %8779 = vmatpush2.bf16.msra.mxu0 0
  %8780 = vmatprep.subr.bf16.mxu0 0
  %8781 = vmatpush2.bf16.msra.mxu0 0
  %8782 = vmatprep.subr.bf16.mxu0 0
  %8783 = vmatpush2.bf16.msra.mxu0 0
  %8784 = vmatprep.subr.bf16.mxu0 0
  %8785 = vmatpush2.bf16.msra.mxu0 0
  %8786 = vmatprep.subr.bf16.mxu0 0
  %8787 = vmatpush2.bf16.msra.mxu0 0
  %8788 = vmatprep.mubr.bf16.mxu0 0
  %8789 = vmatmul.mubr.bf16.gmra.mxu0 %v8751
  %v8790 = vpop.f32.mrf.mxu0
  %v8791 = vadd.f32 %v8748, %v8790
  %v8792 = vpop.f32.mrf.mxu0
  %v8793 = vpop.f32.mrf.mxu0
  %v8794 = vpop.f32.mrf.mxu0
  %8795 = vdwg.mxu0
  %vm8796 = vcmp.gt.f32.partialorder %v8791, 20.0
  %v8797 = vmin.f32 %v8791, 20.0
  %v8798 = vmul.f32 %v8797, 1.442695
  %v8799 = vpow.pop %v8798
  %v8800 = vadd.f32 %v8799, 1.0
  %v8801 = vlog2.pop %v8800
  %v8802 = vmul.f32 %v8801, 0.6931472
  %v8803 = vmul.f32 -0.5, %v8799
  %v8804 = vadd.f32 %v8803, 1.0
  %v8805 = vmul.f32 %v8804, %v8799
  %v8806 = vand.u32 2147483647, %v8799
  %vm8807 = vcmp.lt.f32.partialorder %v8806, 0.0004427343
  %v8808 = vsel %vm8807, %v8805, %v8802
  %v8809 = vsel %vm8796, %v8791, %v8808
  %v8810 = vadd.f32 %v8809, 1.0
  %vm8811 = vcmask 13312
  %8812 = vst.msk [vmem:[%s20] sm:$0x3f] %vm8811, %v8810
  %vm8813 = vcmask 8192
  %8814 = vst.msk [vmem:[%s20 + $0x6] sm:$0x1] %vm8813, %v8472
  %8815 = vst.msk [vmem:[%s20 + $0x7] sm:$0x1] %vm8813, 0.0
  // Predicated region
  $region82: #{net_forward.5} parent=0 // pred_check
    _
  $region83: #{net_forward.5} parent=0 // pred_check_branch
    %8817 = sbr.rel (0) target = $region85
  $region84: #{net_forward.5} parent=0 // pred_region
    _
  $region85: #{net_forward.5} parent=0 // pred_fallthru
    _
  // Predicated region
  $region86: #{net_forward.5} parent=0 // pred_check
    _
  $region87: #{net_forward.5} parent=0 // pred_check_branch
    %8819 = sbr.rel (0) target = $region89
  $region88: #{net_forward.5} parent=0 // pred_region
    _
  $region89: #{net_forward.5} parent=0 // pred_fallthru
    _

</llo_original>
